<compile_context>
chip_gen: v7x
topology: tpu7x:2x2x1
jax: 0.10.0
libtpu: 0.0.40
codegen_flags: <defaults>
</compile_context>

<pallas_src>
import functools

import jax
import jax.numpy as jnp
from jax.experimental import pallas as pl
from jax.experimental.pallas import tpu as pltpu

_LANE = 128


def _round_up(x, m):
    return (x + m - 1) // m * m


def _pick_time_chunk(T, cap=64):
    """Largest divisor of T that is <= cap (amortizes per-grid-step overhead)."""
    for c in range(min(T, cap), 0, -1):
        if T % c == 0:
            return c
    return 1


# ---------------------------------------------------------------------------
# Kernel: fused multi-layer GRU over one time-chunk per grid step
# ---------------------------------------------------------------------------
def _make_gru_kernel(num_layers, Hp, t_chunk):
    L = num_layers

    def kernel(*refs):
        x_ref, h0_ref = refs[0], refs[1]          # (T_CHUNK,B,Ep), (L,B,Hp)
        w_refs = refs[2:2 + 4 * L]                # per layer: wx, wh, bx, bhn
        out_ref = refs[2 + 4 * L]                 # (T_CHUNK, B, Hp)
        hT_ref = refs[3 + 4 * L]                  # (L, B, Hp)
        h_scr = refs[4 + 4 * L]                   # (L, B, Hp) running hidden

        # Initialize running hidden state once, at the first time-chunk.
        @pl.when(pl.program_id(0) == 0)
        def _():
            h_scr[...] = h0_ref[...]

        def step(t, carry):
            x_t = x_ref[t]                        # (B, Din_p)
            for l in range(L):
                wx_ref, wh_ref, bx_ref, bhn_ref = w_refs[4 * l:4 * l + 4]
                h_prev = h_scr[l]                 # (B, Hp)
                # One fused matmul per side; r|z|n packed along lanes at
                # 128-aligned offsets so the gate slices below are free.
                gx = jnp.dot(x_t, wx_ref[...],
                             preferred_element_type=jnp.float32) + bx_ref[...]
                gh = jnp.dot(h_prev, wh_ref[...],
                             preferred_element_type=jnp.float32)
                r = jax.nn.sigmoid(gx[:, :Hp] + gh[:, :Hp])
                z = jax.nn.sigmoid(gx[:, Hp:2 * Hp] + gh[:, Hp:2 * Hp])
                n = jnp.tanh(gx[:, 2 * Hp:] + r * (gh[:, 2 * Hp:] + bhn_ref[...]))
                h_new = (1.0 - z) * n + z * h_prev
                h_scr[l] = h_new
                x_t = h_new                       # input to next layer
            out_ref[t] = x_t                      # VMEM write; HBM slab DMA/chunk
            return carry

        # Short chunks fully unrolled for LLO scheduler visibility.
        jax.lax.fori_loop(0, t_chunk, step, 0, unroll=(t_chunk <= 16))
        hT_ref[...] = h_scr[...]

    return kernel


# ---------------------------------------------------------------------------
# One-time parameter packing (outside the jitted forward)
# ---------------------------------------------------------------------------
def pack_decoder_params(params, num_layers, embedding_dim, hidden_size):
    """Pre-transpose/stack GRU weights into lane-padded fused-gate layout."""
    H, E = hidden_size, embedding_dim
    Hp, Ep = _round_up(H, _LANE), _round_up(E, _LANE)
    layers = []
    for l in range(num_layers):
        Din = E if l == 0 else H
        Dp = Ep if l == 0 else Hp
        w_ih = jnp.asarray(params[f"w_ih_l{l}"], jnp.float32)   # (3H, Din), r|z|n
        w_hh = jnp.asarray(params[f"w_hh_l{l}"], jnp.float32)   # (3H, H)
        b_ih = jnp.asarray(params[f"b_ih_l{l}"], jnp.float32)   # (3H,)
        b_hh = jnp.asarray(params[f"b_hh_l{l}"], jnp.float32)   # (3H,)

        wx = jnp.zeros((Dp, 3 * Hp), jnp.float32)
        wh = jnp.zeros((Hp, 3 * Hp), jnp.float32)
        bx = jnp.zeros((1, 3 * Hp), jnp.float32)
        bhn = jnp.zeros((1, Hp), jnp.float32)
        for g in range(3):
            wx = wx.at[:Din, g * Hp:g * Hp + H].set(w_ih[g * H:(g + 1) * H, :].T)
            wh = wh.at[:H, g * Hp:g * Hp + H].set(w_hh[g * H:(g + 1) * H, :].T)
        # Fold r/z biases (ih+hh); keep b_hh_n separate (it sits inside r*gh_n).
        bx = bx.at[0, 0:H].set(b_ih[0:H] + b_hh[0:H])
        bx = bx.at[0, Hp:Hp + H].set(b_ih[H:2 * H] + b_hh[H:2 * H])
        bx = bx.at[0, 2 * Hp:2 * Hp + H].set(b_ih[2 * H:3 * H])
        bhn = bhn.at[0, :H].set(b_hh[2 * H:3 * H])
        layers.append((wx, wh, bx, bhn))
    return {
        "embedding": jnp.asarray(params["embedding"], jnp.float32),
        "layers": tuple(layers),
    }


# ---------------------------------------------------------------------------
# Forward
# ---------------------------------------------------------------------------
@functools.partial(jax.jit,
                   static_argnames=("num_layers", "embedding_dim", "hidden_size"))
def _decoder_forward_impl(x_ids, h0, emb, layer_params, *,
                          num_layers, embedding_dim, hidden_size):
    B, T = x_ids.shape
    L, H, E = num_layers, hidden_size, embedding_dim
    Hp, Ep = _round_up(H, _LANE), _round_up(E, _LANE)

    # Embedding lookup in plain XLA: tiny table gather, essentially free.
    e = jnp.take(emb, x_ids, axis=0).astype(jnp.float32)          # (B, T, E)

    # Time-major, lane-padded layout for the kernel.
    x = jnp.transpose(e, (1, 0, 2))                                # (T, B, E)
    x = jnp.pad(x, ((0, 0), (0, 0), (0, Ep - E)))                  # (T, B, Ep)
    h0p = jnp.pad(h0.astype(jnp.float32),
                  ((0, 0), (0, 0), (0, Hp - H)))                   # (L, B, Hp)

    t_chunk = _pick_time_chunk(T)
    num_chunks = T // t_chunk

    flat_w = []
    in_specs = [
        pl.BlockSpec((t_chunk, B, Ep), lambda c: (c, 0, 0)),       # x chunk
        pl.BlockSpec((L, B, Hp), lambda c: (0, 0, 0)),             # h0 (constant)
    ]
    # Constant-index operands: Pallas DMAs them once; a single buffer
    # (pipeline_mode=pl.Buffered(1)) would also save the second VMEM copy but
    # is left at the default for lowering robustness.
    for l, (wx, wh, bx, bhn) in enumerate(layer_params):
        Dp = Ep if l == 0 else Hp
        flat_w += [wx, wh, bx, bhn]
        in_specs += [
            pl.BlockSpec((Dp, 3 * Hp), lambda c: (0, 0)),
            pl.BlockSpec((Hp, 3 * Hp), lambda c: (0, 0)),
            pl.BlockSpec((1, 3 * Hp), lambda c: (0, 0)),
            pl.BlockSpec((1, Hp), lambda c: (0, 0)),
        ]

    out_specs = (pl.BlockSpec((t_chunk, B, Hp), lambda c: (c, 0, 0)),
                 pl.BlockSpec((L, B, Hp), lambda c: (0, 0, 0)))
    out_shape = (jax.ShapeDtypeStruct((T, B, Hp), jnp.float32),
                 jax.ShapeDtypeStruct((L, B, Hp), jnp.float32))

    # Explicit VMEM budget (v7x: 64 MiB physical / 32 MiB default scoped).
    vmem = 2 * t_chunk * B * (Ep + Hp) * 4          # double-buffered x/out chunks
    vmem += (2 * 2 + 1) * L * B * Hp * 4            # h0 in + hT out + h scratch
    for l in range(L):
        Dp = Ep if l == 0 else Hp
        vmem += 2 * ((Dp + Hp) * 3 * Hp + 4 * Hp) * 4   # resident weights/biases
    vmem_limit = int(min(max(2 * vmem, 8 << 20), 48 << 20))

    kernel = _make_gru_kernel(L, Hp, t_chunk)

    out_pad, hT_pad = pl.pallas_call(
        kernel,
        out_shape=out_shape,
        grid_spec=pltpu.PrefetchScalarGridSpec(
            num_scalar_prefetch=0,
            grid=(num_chunks,),
            in_specs=in_specs,
            out_specs=out_specs,
            scratch_shapes=[pltpu.VMEM((L, B, Hp), jnp.float32)],
        ),
        compiler_params=pltpu.CompilerParams(
            dimension_semantics=("arbitrary",),     # true sequential recurrence
            vmem_limit_bytes=vmem_limit),
    )(x, h0p, *flat_w)

    out = jnp.transpose(out_pad[:, :, :H], (1, 0, 2))   # (B, T, H), batch_first
    hT = hT_pad[:, :, :H]                               # (L, B, H)
    return out, hT


def decoder_forward(x_ids, h0, packed, *, num_layers, embedding_dim, hidden_size):
    return _decoder_forward_impl(
        x_ids, h0, packed["embedding"], packed["layers"],
        num_layers=num_layers, embedding_dim=embedding_dim,
        hidden_size=hidden_size)


# ---------------------------------------------------------------------------
# Pure-JAX reference (mirrors torch.nn.GRU / Embedding 1:1)
# ---------------------------------------------------------------------------
def decoder_ref(x_ids, h0, params):
    L, B, H = h0.shape
    x = params["embedding"][x_ids]                 # (B, T, E)
    hs = []
    for l in range(L):
        Wih = params[f"w_ih_l{l}"]
        Whh = params[f"w_hh_l{l}"]
        bih = params[f"b_ih_l{l}"]
        bhh = params[f"b_hh_l{l}"]

        def step(h, x_t, Wih=Wih, Whh=Whh, bih=bih, bhh=bhh):
            gx = x_t @ Wih.T + bih                 # (B, 3H)
            gh = h @ Whh.T + bhh
            r = jax.nn.sigmoid(gx[:, :H] + gh[:, :H])
            z = jax.nn.sigmoid(gx[:, H:2 * H] + gh[:, H:2 * H])
            n = jnp.tanh(gx[:, 2 * H:] + r * gh[:, 2 * H:])
            h_new = (1.0 - z) * n + z * h
            return h_new, h_new

        hT, ys = jax.lax.scan(step, h0[l], jnp.swapaxes(x, 0, 1))  # ys: (T,B,H)
        x = jnp.swapaxes(ys, 0, 1)
        hs.append(hT)
    return x, jnp.stack(hs, axis=0)


# ---------------------------------------------------------------------------
if __name__ == "__main__":
    vocab_size, embedding_dim, hidden_size, num_layers = 50, 16, 32, 2
    batch, seq = 2, 8

    key = jax.random.PRNGKey(0)
    ks = jax.random.split(key, 3 + 4 * num_layers)

    x_ids = jax.random.randint(ks[0], (batch, seq), 0, vocab_size, dtype=jnp.int32)
    h0 = jax.random.normal(ks[1], (num_layers, batch, hidden_size), jnp.float32)

    params = {
        "embedding": 0.5 * jax.random.normal(
            ks[2], (vocab_size, embedding_dim), jnp.float32),
    }
    kidx = 3
    for l in range(num_layers):
        d_in = embedding_dim if l == 0 else hidden_size
        params[f"w_ih_l{l}"] = 0.3 * jax.random.normal(
            ks[kidx + 0], (3 * hidden_size, d_in), jnp.float32)
        params[f"w_hh_l{l}"] = 0.3 * jax.random.normal(
            ks[kidx + 1], (3 * hidden_size, hidden_size), jnp.float32)
        params[f"b_ih_l{l}"] = 0.1 * jax.random.normal(
            ks[kidx + 2], (3 * hidden_size,), jnp.float32)
        params[f"b_hh_l{l}"] = 0.1 * jax.random.normal(
            ks[kidx + 3], (3 * hidden_size,), jnp.float32)
        kidx += 4

    packed = pack_decoder_params(params, num_layers, embedding_dim, hidden_size)

    out, h_T = decoder_forward(
        x_ids, h0, packed, num_layers=num_layers,
        embedding_dim=embedding_dim, hidden_size=hidden_size)
    jax.block_until_ready((out, h_T))

    out_r, h_r = decoder_ref(x_ids, h0, params)
    assert out.shape == (batch, seq, hidden_size)
    assert h_T.shape == (num_layers, batch, hidden_size)
    assert jnp.allclose(out, out_r, atol=1e-3, rtol=1e-3), \
        float(jnp.max(jnp.abs(out - out_r)))
    assert jnp.allclose(h_T, h_r, atol=1e-3, rtol=1e-3), \
        float(jnp.max(jnp.abs(h_T - h_r)))

    print("KERNEL_OK")
</pallas_src>

<mosaic_0001>
module attributes {stable_mosaic.version = 11 : i64} {
  func.func @kernel(%arg0: i32, %arg1: memref<8x2x128xf32, #tpu.memory_space<vmem>>, %arg2: memref<2x2x128xf32, #tpu.memory_space<vmem>>, %arg3: memref<128x384xf32, #tpu.memory_space<vmem>>, %arg4: memref<128x384xf32, #tpu.memory_space<vmem>>, %arg5: memref<1x384xf32, #tpu.memory_space<vmem>>, %arg6: memref<1x128xf32, #tpu.memory_space<vmem>>, %arg7: memref<128x384xf32, #tpu.memory_space<vmem>>, %arg8: memref<128x384xf32, #tpu.memory_space<vmem>>, %arg9: memref<1x384xf32, #tpu.memory_space<vmem>>, %arg10: memref<1x128xf32, #tpu.memory_space<vmem>>, %arg11: memref<8x2x128xf32, #tpu.memory_space<vmem>>, %arg12: memref<2x2x128xf32, #tpu.memory_space<vmem>>, %arg13: memref<2x2x128xf32, #tpu.memory_space<vmem>>) attributes {dimension_semantics = [#tpu.dimension_semantics<arbitrary>], iteration_bounds = array<i64: 1>, scalar_prefetch = 0 : i64, scratch_operands = 1 : i64, tpu.core_type = #tpu.core_type<tc>, window_params = [{transform_indices = @transform_0, window_bounds = array<i64: 8, 2, 128>}, {pipeline_mode = #tpu.pipeline_mode<synchronous>, transform_indices = @transform_1, window_bounds = array<i64: 2, 2, 128>}, {pipeline_mode = #tpu.pipeline_mode<synchronous>, transform_indices = @transform_2, window_bounds = array<i64: 128, 384>}, {pipeline_mode = #tpu.pipeline_mode<synchronous>, transform_indices = @transform_3, window_bounds = array<i64: 128, 384>}, {pipeline_mode = #tpu.pipeline_mode<synchronous>, transform_indices = @transform_4, window_bounds = array<i64: 1, 384>}, {pipeline_mode = #tpu.pipeline_mode<synchronous>, transform_indices = @transform_5, window_bounds = array<i64: 1, 128>}, {pipeline_mode = #tpu.pipeline_mode<synchronous>, transform_indices = @transform_6, window_bounds = array<i64: 128, 384>}, {pipeline_mode = #tpu.pipeline_mode<synchronous>, transform_indices = @transform_7, window_bounds = array<i64: 128, 384>}, {pipeline_mode = #tpu.pipeline_mode<synchronous>, transform_indices = @transform_8, window_bounds = array<i64: 1, 384>}, {pipeline_mode = #tpu.pipeline_mode<synchronous>, transform_indices = @transform_9, window_bounds = array<i64: 1, 128>}, {transform_indices = @transform_10, window_bounds = array<i64: 8, 2, 128>}, {pipeline_mode = #tpu.pipeline_mode<synchronous>, transform_indices = @transform_11, window_bounds = array<i64: 2, 2, 128>}]} {
    %c0_i32 = arith.constant 0 : i32
    %0 = arith.cmpi eq, %arg0, %c0_i32 : i32
    %1 = arith.extui %0 : i1 to i32
    %c0_i32_0 = arith.constant 0 : i32
    %2 = arith.cmpi ne, %1, %c0_i32_0 : i32
    scf.if %2 {
      %c0_341 = arith.constant 0 : index
      %c0_342 = arith.constant 0 : index
      %c0_343 = arith.constant 0 : index
      %717 = vector.load %arg2[%c0_341, %c0_342, %c0_343] : memref<2x2x128xf32, #tpu.memory_space<vmem>>, vector<2x2x128xf32>
      %c0_344 = arith.constant 0 : index
      %c0_345 = arith.constant 0 : index
      %c0_346 = arith.constant 0 : index
      %718 = vector.load %arg13[%c0_344, %c0_345, %c0_346] : memref<2x2x128xf32, #tpu.memory_space<vmem>>, vector<2x2x128xf32>
      tpu.vector_store %arg13[%c0_344, %c0_345, %c0_346], %717 {strides = array<i32>} : memref<2x2x128xf32, #tpu.memory_space<vmem>>, vector<2x2x128xf32>,
    } else {
    }
    %c0_i32_1 = arith.constant 0 : i32
    %3 = arith.index_cast %c0_i32_1 : i32 to index
    %c0 = arith.constant 0 : index
    %c0_2 = arith.constant 0 : index
    %4 = vector.load %arg1[%3, %c0, %c0_2] : memref<8x2x128xf32, #tpu.memory_space<vmem>>, vector<1x2x128xf32>
    %5 = vector.shape_cast %4 : vector<1x2x128xf32> to vector<2x128xf32>
    %c0_3 = arith.constant 0 : index
    %c0_4 = arith.constant 0 : index
    %c0_5 = arith.constant 0 : index
    %6 = vector.load %arg13[%c0_3, %c0_4, %c0_5] : memref<2x2x128xf32, #tpu.memory_space<vmem>>, vector<1x2x128xf32>
    %7 = vector.shape_cast %6 : vector<1x2x128xf32> to vector<2x128xf32>
    %c0_6 = arith.constant 0 : index
    %c0_7 = arith.constant 0 : index
    %8 = vector.load %arg3[%c0_6, %c0_7] : memref<128x384xf32, #tpu.memory_space<vmem>>, vector<128x384xf32>
    %cst = arith.constant dense<0.000000e+00> : vector<2x384xf32>
    %9 = tpu.matmul %5, %8, %cst {dimension_numbers = #tpu.dot_dimension_numbers<[1], [0], [0], [1], [0, 0, 1, 1], [], []>} : vector<2x128xf32>, vector<128x384xf32>, vector<2x384xf32> -> vector<2x384xf32>
    %c0_8 = arith.constant 0 : index
    %c0_9 = arith.constant 0 : index
    %10 = vector.load %arg5[%c0_8, %c0_9] : memref<1x384xf32, #tpu.memory_space<vmem>>, vector<1x384xf32>
    %11 = vector.broadcast %10 : vector<1x384xf32> to vector<2x384xf32>
    %12 = arith.addf %9, %11 : vector<2x384xf32>
    %c0_10 = arith.constant 0 : index
    %c0_11 = arith.constant 0 : index
    %13 = vector.load %arg4[%c0_10, %c0_11] : memref<128x384xf32, #tpu.memory_space<vmem>>, vector<128x384xf32>
    %cst_12 = arith.constant dense<0.000000e+00> : vector<2x384xf32>
    %14 = tpu.matmul %7, %13, %cst_12 {dimension_numbers = #tpu.dot_dimension_numbers<[1], [0], [0], [1], [0, 0, 1, 1], [], []>} : vector<2x128xf32>, vector<128x384xf32>, vector<2x384xf32> -> vector<2x384xf32>
    %15 = vector.extract_strided_slice %12 {offsets = [0, 0], sizes = [2, 128], strides = [1, 1]} : vector<2x384xf32> to vector<2x128xf32>
    %16 = vector.extract_strided_slice %14 {offsets = [0, 0], sizes = [2, 128], strides = [1, 1]} : vector<2x384xf32> to vector<2x128xf32>
    %17 = arith.addf %15, %16 : vector<2x128xf32>
    %18 = arith.negf %17 : vector<2x128xf32>
    %19 = math.exp %18 : vector<2x128xf32>
    %cst_13 = arith.constant 1.000000e+00 : f32
    %20 = vector.broadcast %cst_13 : f32 to vector<2x128xf32>
    %21 = arith.addf %20, %19 : vector<2x128xf32>
    %22 = arith.divf %20, %21 : vector<2x128xf32>
    %23 = vector.extract_strided_slice %12 {offsets = [0, 128], sizes = [2, 128], strides = [1, 1]} : vector<2x384xf32> to vector<2x128xf32>
    %24 = vector.extract_strided_slice %14 {offsets = [0, 128], sizes = [2, 128], strides = [1, 1]} : vector<2x384xf32> to vector<2x128xf32>
    %25 = arith.addf %23, %24 : vector<2x128xf32>
    %26 = arith.negf %25 : vector<2x128xf32>
    %27 = math.exp %26 : vector<2x128xf32>
    %cst_14 = arith.constant 1.000000e+00 : f32
    %28 = vector.broadcast %cst_14 : f32 to vector<2x128xf32>
    %29 = arith.addf %28, %27 : vector<2x128xf32>
    %30 = arith.divf %28, %29 : vector<2x128xf32>
    %31 = vector.extract_strided_slice %12 {offsets = [0, 256], sizes = [2, 128], strides = [1, 1]} : vector<2x384xf32> to vector<2x128xf32>
    %32 = vector.extract_strided_slice %14 {offsets = [0, 256], sizes = [2, 128], strides = [1, 1]} : vector<2x384xf32> to vector<2x128xf32>
    %c0_15 = arith.constant 0 : index
    %c0_16 = arith.constant 0 : index
    %33 = vector.load %arg6[%c0_15, %c0_16] : memref<1x128xf32, #tpu.memory_space<vmem>>, vector<1x128xf32>
    %34 = vector.broadcast %33 : vector<1x128xf32> to vector<2x128xf32>
    %35 = arith.addf %32, %34 : vector<2x128xf32>
    %36 = arith.mulf %22, %35 : vector<2x128xf32>
    %37 = arith.addf %31, %36 : vector<2x128xf32>
    %38 = math.tanh %37 : vector<2x128xf32>
    %cst_17 = arith.constant 1.000000e+00 : f32
    %39 = vector.broadcast %cst_17 : f32 to vector<2x128xf32>
    %40 = arith.subf %39, %30 : vector<2x128xf32>
    %41 = arith.mulf %40, %38 : vector<2x128xf32>
    %42 = arith.mulf %30, %7 : vector<2x128xf32>
    %43 = arith.addf %41, %42 : vector<2x128xf32>
    %c0_18 = arith.constant 0 : index
    %c0_19 = arith.constant 0 : index
    %c0_20 = arith.constant 0 : index
    %44 = vector.load %arg13[%c0_18, %c0_19, %c0_20] : memref<2x2x128xf32, #tpu.memory_space<vmem>>, vector<1x2x128xf32>
    %45 = vector.shape_cast %44 : vector<1x2x128xf32> to vector<2x128xf32>
    %46 = vector.shape_cast %43 : vector<2x128xf32> to vector<1x2x128xf32>
    tpu.vector_store %arg13[%c0_18, %c0_19, %c0_20], %46 {strides = array<i32>} : memref<2x2x128xf32, #tpu.memory_space<vmem>>, vector<1x2x128xf32>,
    %c1 = arith.constant 1 : index
    %c0_21 = arith.constant 0 : index
    %c0_22 = arith.constant 0 : index
    %47 = vector.load %arg13[%c1, %c0_21, %c0_22] : memref<2x2x128xf32, #tpu.memory_space<vmem>>, vector<1x2x128xf32>
    %48 = vector.shape_cast %47 : vector<1x2x128xf32> to vector<2x128xf32>
    %c0_23 = arith.constant 0 : index
    %c0_24 = arith.constant 0 : index
    %49 = vector.load %arg7[%c0_23, %c0_24] : memref<128x384xf32, #tpu.memory_space<vmem>>, vector<128x384xf32>
    %cst_25 = arith.constant dense<0.000000e+00> : vector<2x384xf32>
    %50 = tpu.matmul %43, %49, %cst_25 {dimension_numbers = #tpu.dot_dimension_numbers<[1], [0], [0], [1], [0, 0, 1, 1], [], []>} : vector<2x128xf32>, vector<128x384xf32>, vector<2x384xf32> -> vector<2x384xf32>
    %c0_26 = arith.constant 0 : index
    %c0_27 = arith.constant 0 : index
    %51 = vector.load %arg9[%c0_26, %c0_27] : memref<1x384xf32, #tpu.memory_space<vmem>>, vector<1x384xf32>
    %52 = vector.broadcast %51 : vector<1x384xf32> to vector<2x384xf32>
    %53 = arith.addf %50, %52 : vector<2x384xf32>
    %c0_28 = arith.constant 0 : index
    %c0_29 = arith.constant 0 : index
    %54 = vector.load %arg8[%c0_28, %c0_29] : memref<128x384xf32, #tpu.memory_space<vmem>>, vector<128x384xf32>
    %cst_30 = arith.constant dense<0.000000e+00> : vector<2x384xf32>
    %55 = tpu.matmul %48, %54, %cst_30 {dimension_numbers = #tpu.dot_dimension_numbers<[1], [0], [0], [1], [0, 0, 1, 1], [], []>} : vector<2x128xf32>, vector<128x384xf32>, vector<2x384xf32> -> vector<2x384xf32>
    %56 = vector.extract_strided_slice %53 {offsets = [0, 0], sizes = [2, 128], strides = [1, 1]} : vector<2x384xf32> to vector<2x128xf32>
    %57 = vector.extract_strided_slice %55 {offsets = [0, 0], sizes = [2, 128], strides = [1, 1]} : vector<2x384xf32> to vector<2x128xf32>
    %58 = arith.addf %56, %57 : vector<2x128xf32>
    %59 = arith.negf %58 : vector<2x128xf32>
    %60 = math.exp %59 : vector<2x128xf32>
    %cst_31 = arith.constant 1.000000e+00 : f32
    %61 = vector.broadcast %cst_31 : f32 to vector<2x128xf32>
    %62 = arith.addf %61, %60 : vector<2x128xf32>
    %63 = arith.divf %61, %62 : vector<2x128xf32>
    %64 = vector.extract_strided_slice %53 {offsets = [0, 128], sizes = [2, 128], strides = [1, 1]} : vector<2x384xf32> to vector<2x128xf32>
    %65 = vector.extract_strided_slice %55 {offsets = [0, 128], sizes = [2, 128], strides = [1, 1]} : vector<2x384xf32> to vector<2x128xf32>
    %66 = arith.addf %64, %65 : vector<2x128xf32>
    %67 = arith.negf %66 : vector<2x128xf32>
    %68 = math.exp %67 : vector<2x128xf32>
    %cst_32 = arith.constant 1.000000e+00 : f32
    %69 = vector.broadcast %cst_32 : f32 to vector<2x128xf32>
    %70 = arith.addf %69, %68 : vector<2x128xf32>
    %71 = arith.divf %69, %70 : vector<2x128xf32>
    %72 = vector.extract_strided_slice %53 {offsets = [0, 256], sizes = [2, 128], strides = [1, 1]} : vector<2x384xf32> to vector<2x128xf32>
    %73 = vector.extract_strided_slice %55 {offsets = [0, 256], sizes = [2, 128], strides = [1, 1]} : vector<2x384xf32> to vector<2x128xf32>
    %c0_33 = arith.constant 0 : index
    %c0_34 = arith.constant 0 : index
    %74 = vector.load %arg10[%c0_33, %c0_34] : memref<1x128xf32, #tpu.memory_space<vmem>>, vector<1x128xf32>
    %75 = vector.broadcast %74 : vector<1x128xf32> to vector<2x128xf32>
    %76 = arith.addf %73, %75 : vector<2x128xf32>
    %77 = arith.mulf %63, %76 : vector<2x128xf32>
    %78 = arith.addf %72, %77 : vector<2x128xf32>
    %79 = math.tanh %78 : vector<2x128xf32>
    %cst_35 = arith.constant 1.000000e+00 : f32
    %80 = vector.broadcast %cst_35 : f32 to vector<2x128xf32>
    %81 = arith.subf %80, %71 : vector<2x128xf32>
    %82 = arith.mulf %81, %79 : vector<2x128xf32>
    %83 = arith.mulf %71, %48 : vector<2x128xf32>
    %84 = arith.addf %82, %83 : vector<2x128xf32>
    %c1_36 = arith.constant 1 : index
    %c0_37 = arith.constant 0 : index
    %c0_38 = arith.constant 0 : index
    %85 = vector.load %arg13[%c1_36, %c0_37, %c0_38] : memref<2x2x128xf32, #tpu.memory_space<vmem>>, vector<1x2x128xf32>
    %86 = vector.shape_cast %85 : vector<1x2x128xf32> to vector<2x128xf32>
    %87 = vector.shape_cast %84 : vector<2x128xf32> to vector<1x2x128xf32>
    tpu.vector_store %arg13[%c1_36, %c0_37, %c0_38], %87 {strides = array<i32>} : memref<2x2x128xf32, #tpu.memory_space<vmem>>, vector<1x2x128xf32>,
    %88 = arith.index_cast %c0_i32_1 : i32 to index
    %c0_39 = arith.constant 0 : index
    %c0_40 = arith.constant 0 : index
    %89 = vector.load %arg11[%88, %c0_39, %c0_40] : memref<8x2x128xf32, #tpu.memory_space<vmem>>, vector<1x2x128xf32>
    %90 = vector.shape_cast %89 : vector<1x2x128xf32> to vector<2x128xf32>
    %91 = vector.shape_cast %84 : vector<2x128xf32> to vector<1x2x128xf32>
    tpu.vector_store %arg11[%88, %c0_39, %c0_40], %91 {strides = array<i32>} : memref<8x2x128xf32, #tpu.memory_space<vmem>>, vector<1x2x128xf32>,
    %c1_i32 = arith.constant 1 : i32
    %92 = arith.index_cast %c1_i32 : i32 to index
    %c0_41 = arith.constant 0 : index
    %c0_42 = arith.constant 0 : index
    %93 = vector.load %arg1[%92, %c0_41, %c0_42] : memref<8x2x128xf32, #tpu.memory_space<vmem>>, vector<1x2x128xf32>
    %94 = vector.shape_cast %93 : vector<1x2x128xf32> to vector<2x128xf32>
    %c0_43 = arith.constant 0 : index
    %c0_44 = arith.constant 0 : index
    %c0_45 = arith.constant 0 : index
    %95 = vector.load %arg13[%c0_43, %c0_44, %c0_45] : memref<2x2x128xf32, #tpu.memory_space<vmem>>, vector<1x2x128xf32>
    %96 = vector.shape_cast %95 : vector<1x2x128xf32> to vector<2x128xf32>
    %c0_46 = arith.constant 0 : index
    %c0_47 = arith.constant 0 : index
    %97 = vector.load %arg3[%c0_46, %c0_47] : memref<128x384xf32, #tpu.memory_space<vmem>>, vector<128x384xf32>
    %cst_48 = arith.constant dense<0.000000e+00> : vector<2x384xf32>
    %98 = tpu.matmul %94, %97, %cst_48 {dimension_numbers = #tpu.dot_dimension_numbers<[1], [0], [0], [1], [0, 0, 1, 1], [], []>} : vector<2x128xf32>, vector<128x384xf32>, vector<2x384xf32> -> vector<2x384xf32>
    %c0_49 = arith.constant 0 : index
    %c0_50 = arith.constant 0 : index
    %99 = vector.load %arg5[%c0_49, %c0_50] : memref<1x384xf32, #tpu.memory_space<vmem>>, vector<1x384xf32>
    %100 = vector.broadcast %99 : vector<1x384xf32> to vector<2x384xf32>
    %101 = arith.addf %98, %100 : vector<2x384xf32>
    %c0_51 = arith.constant 0 : index
    %c0_52 = arith.constant 0 : index
    %102 = vector.load %arg4[%c0_51, %c0_52] : memref<128x384xf32, #tpu.memory_space<vmem>>, vector<128x384xf32>
    %cst_53 = arith.constant dense<0.000000e+00> : vector<2x384xf32>
    %103 = tpu.matmul %96, %102, %cst_53 {dimension_numbers = #tpu.dot_dimension_numbers<[1], [0], [0], [1], [0, 0, 1, 1], [], []>} : vector<2x128xf32>, vector<128x384xf32>, vector<2x384xf32> -> vector<2x384xf32>
    %104 = vector.extract_strided_slice %101 {offsets = [0, 0], sizes = [2, 128], strides = [1, 1]} : vector<2x384xf32> to vector<2x128xf32>
    %105 = vector.extract_strided_slice %103 {offsets = [0, 0], sizes = [2, 128], strides = [1, 1]} : vector<2x384xf32> to vector<2x128xf32>
    %106 = arith.addf %104, %105 : vector<2x128xf32>
    %107 = arith.negf %106 : vector<2x128xf32>
    %108 = math.exp %107 : vector<2x128xf32>
    %cst_54 = arith.constant 1.000000e+00 : f32
    %109 = vector.broadcast %cst_54 : f32 to vector<2x128xf32>
    %110 = arith.addf %109, %108 : vector<2x128xf32>
    %111 = arith.divf %109, %110 : vector<2x128xf32>
    %112 = vector.extract_strided_slice %101 {offsets = [0, 128], sizes = [2, 128], strides = [1, 1]} : vector<2x384xf32> to vector<2x128xf32>
    %113 = vector.extract_strided_slice %103 {offsets = [0, 128], sizes = [2, 128], strides = [1, 1]} : vector<2x384xf32> to vector<2x128xf32>
    %114 = arith.addf %112, %113 : vector<2x128xf32>
    %115 = arith.negf %114 : vector<2x128xf32>
    %116 = math.exp %115 : vector<2x128xf32>
    %cst_55 = arith.constant 1.000000e+00 : f32
    %117 = vector.broadcast %cst_55 : f32 to vector<2x128xf32>
    %118 = arith.addf %117, %116 : vector<2x128xf32>
    %119 = arith.divf %117, %118 : vector<2x128xf32>
    %120 = vector.extract_strided_slice %101 {offsets = [0, 256], sizes = [2, 128], strides = [1, 1]} : vector<2x384xf32> to vector<2x128xf32>
    %121 = vector.extract_strided_slice %103 {offsets = [0, 256], sizes = [2, 128], strides = [1, 1]} : vector<2x384xf32> to vector<2x128xf32>
    %c0_56 = arith.constant 0 : index
    %c0_57 = arith.constant 0 : index
    %122 = vector.load %arg6[%c0_56, %c0_57] : memref<1x128xf32, #tpu.memory_space<vmem>>, vector<1x128xf32>
    %123 = vector.broadcast %122 : vector<1x128xf32> to vector<2x128xf32>
    %124 = arith.addf %121, %123 : vector<2x128xf32>
    %125 = arith.mulf %111, %124 : vector<2x128xf32>
    %126 = arith.addf %120, %125 : vector<2x128xf32>
    %127 = math.tanh %126 : vector<2x128xf32>
    %cst_58 = arith.constant 1.000000e+00 : f32
    %128 = vector.broadcast %cst_58 : f32 to vector<2x128xf32>
    %129 = arith.subf %128, %119 : vector<2x128xf32>
    %130 = arith.mulf %129, %127 : vector<2x128xf32>
    %131 = arith.mulf %119, %96 : vector<2x128xf32>
    %132 = arith.addf %130, %131 : vector<2x128xf32>
    %c0_59 = arith.constant 0 : index
    %c0_60 = arith.constant 0 : index
    %c0_61 = arith.constant 0 : index
    %133 = vector.load %arg13[%c0_59, %c0_60, %c0_61] : memref<2x2x128xf32, #tpu.memory_space<vmem>>, vector<1x2x128xf32>
    %134 = vector.shape_cast %133 : vector<1x2x128xf32> to vector<2x128xf32>
    %135 = vector.shape_cast %132 : vector<2x128xf32> to vector<1x2x128xf32>
    tpu.vector_store %arg13[%c0_59, %c0_60, %c0_61], %135 {strides = array<i32>} : memref<2x2x128xf32, #tpu.memory_space<vmem>>, vector<1x2x128xf32>,
    %c1_62 = arith.constant 1 : index
    %c0_63 = arith.constant 0 : index
    %c0_64 = arith.constant 0 : index
    %136 = vector.load %arg13[%c1_62, %c0_63, %c0_64] : memref<2x2x128xf32, #tpu.memory_space<vmem>>, vector<1x2x128xf32>
    %137 = vector.shape_cast %136 : vector<1x2x128xf32> to vector<2x128xf32>
    %c0_65 = arith.constant 0 : index
    %c0_66 = arith.constant 0 : index
    %138 = vector.load %arg7[%c0_65, %c0_66] : memref<128x384xf32, #tpu.memory_space<vmem>>, vector<128x384xf32>
    %cst_67 = arith.constant dense<0.000000e+00> : vector<2x384xf32>
    %139 = tpu.matmul %132, %138, %cst_67 {dimension_numbers = #tpu.dot_dimension_numbers<[1], [0], [0], [1], [0, 0, 1, 1], [], []>} : vector<2x128xf32>, vector<128x384xf32>, vector<2x384xf32> -> vector<2x384xf32>
    %c0_68 = arith.constant 0 : index
    %c0_69 = arith.constant 0 : index
    %140 = vector.load %arg9[%c0_68, %c0_69] : memref<1x384xf32, #tpu.memory_space<vmem>>, vector<1x384xf32>
    %141 = vector.broadcast %140 : vector<1x384xf32> to vector<2x384xf32>
    %142 = arith.addf %139, %141 : vector<2x384xf32>
    %c0_70 = arith.constant 0 : index
    %c0_71 = arith.constant 0 : index
    %143 = vector.load %arg8[%c0_70, %c0_71] : memref<128x384xf32, #tpu.memory_space<vmem>>, vector<128x384xf32>
    %cst_72 = arith.constant dense<0.000000e+00> : vector<2x384xf32>
    %144 = tpu.matmul %137, %143, %cst_72 {dimension_numbers = #tpu.dot_dimension_numbers<[1], [0], [0], [1], [0, 0, 1, 1], [], []>} : vector<2x128xf32>, vector<128x384xf32>, vector<2x384xf32> -> vector<2x384xf32>
    %145 = vector.extract_strided_slice %142 {offsets = [0, 0], sizes = [2, 128], strides = [1, 1]} : vector<2x384xf32> to vector<2x128xf32>
    %146 = vector.extract_strided_slice %144 {offsets = [0, 0], sizes = [2, 128], strides = [1, 1]} : vector<2x384xf32> to vector<2x128xf32>
    %147 = arith.addf %145, %146 : vector<2x128xf32>
    %148 = arith.negf %147 : vector<2x128xf32>
    %149 = math.exp %148 : vector<2x128xf32>
    %cst_73 = arith.constant 1.000000e+00 : f32
    %150 = vector.broadcast %cst_73 : f32 to vector<2x128xf32>
    %151 = arith.addf %150, %149 : vector<2x128xf32>
    %152 = arith.divf %150, %151 : vector<2x128xf32>
    %153 = vector.extract_strided_slice %142 {offsets = [0, 128], sizes = [2, 128], strides = [1, 1]} : vector<2x384xf32> to vector<2x128xf32>
    %154 = vector.extract_strided_slice %144 {offsets = [0, 128], sizes = [2, 128], strides = [1, 1]} : vector<2x384xf32> to vector<2x128xf32>
    %155 = arith.addf %153, %154 : vector<2x128xf32>
    %156 = arith.negf %155 : vector<2x128xf32>
    %157 = math.exp %156 : vector<2x128xf32>
    %cst_74 = arith.constant 1.000000e+00 : f32
    %158 = vector.broadcast %cst_74 : f32 to vector<2x128xf32>
    %159 = arith.addf %158, %157 : vector<2x128xf32>
    %160 = arith.divf %158, %159 : vector<2x128xf32>
    %161 = vector.extract_strided_slice %142 {offsets = [0, 256], sizes = [2, 128], strides = [1, 1]} : vector<2x384xf32> to vector<2x128xf32>
    %162 = vector.extract_strided_slice %144 {offsets = [0, 256], sizes = [2, 128], strides = [1, 1]} : vector<2x384xf32> to vector<2x128xf32>
    %c0_75 = arith.constant 0 : index
    %c0_76 = arith.constant 0 : index
    %163 = vector.load %arg10[%c0_75, %c0_76] : memref<1x128xf32, #tpu.memory_space<vmem>>, vector<1x128xf32>
    %164 = vector.broadcast %163 : vector<1x128xf32> to vector<2x128xf32>
    %165 = arith.addf %162, %164 : vector<2x128xf32>
    %166 = arith.mulf %152, %165 : vector<2x128xf32>
    %167 = arith.addf %161, %166 : vector<2x128xf32>
    %168 = math.tanh %167 : vector<2x128xf32>
    %cst_77 = arith.constant 1.000000e+00 : f32
    %169 = vector.broadcast %cst_77 : f32 to vector<2x128xf32>
    %170 = arith.subf %169, %160 : vector<2x128xf32>
    %171 = arith.mulf %170, %168 : vector<2x128xf32>
    %172 = arith.mulf %160, %137 : vector<2x128xf32>
    %173 = arith.addf %171, %172 : vector<2x128xf32>
    %c1_78 = arith.constant 1 : index
    %c0_79 = arith.constant 0 : index
    %c0_80 = arith.constant 0 : index
    %174 = vector.load %arg13[%c1_78, %c0_79, %c0_80] : memref<2x2x128xf32, #tpu.memory_space<vmem>>, vector<1x2x128xf32>
    %175 = vector.shape_cast %174 : vector<1x2x128xf32> to vector<2x128xf32>
    %176 = vector.shape_cast %173 : vector<2x128xf32> to vector<1x2x128xf32>
    tpu.vector_store %arg13[%c1_78, %c0_79, %c0_80], %176 {strides = array<i32>} : memref<2x2x128xf32, #tpu.memory_space<vmem>>, vector<1x2x128xf32>,
    %177 = arith.index_cast %c1_i32 : i32 to index
    %c0_81 = arith.constant 0 : index
    %c0_82 = arith.constant 0 : index
    %178 = vector.load %arg11[%177, %c0_81, %c0_82] : memref<8x2x128xf32, #tpu.memory_space<vmem>>, vector<1x2x128xf32>
    %179 = vector.shape_cast %178 : vector<1x2x128xf32> to vector<2x128xf32>
    %180 = vector.shape_cast %173 : vector<2x128xf32> to vector<1x2x128xf32>
    tpu.vector_store %arg11[%177, %c0_81, %c0_82], %180 {strides = array<i32>} : memref<8x2x128xf32, #tpu.memory_space<vmem>>, vector<1x2x128xf32>,
    %c2_i32 = arith.constant 2 : i32
    %181 = arith.index_cast %c2_i32 : i32 to index
    %c0_83 = arith.constant 0 : index
    %c0_84 = arith.constant 0 : index
    %182 = vector.load %arg1[%181, %c0_83, %c0_84] : memref<8x2x128xf32, #tpu.memory_space<vmem>>, vector<1x2x128xf32>
    %183 = vector.shape_cast %182 : vector<1x2x128xf32> to vector<2x128xf32>
    %c0_85 = arith.constant 0 : index
    %c0_86 = arith.constant 0 : index
    %c0_87 = arith.constant 0 : index
    %184 = vector.load %arg13[%c0_85, %c0_86, %c0_87] : memref<2x2x128xf32, #tpu.memory_space<vmem>>, vector<1x2x128xf32>
    %185 = vector.shape_cast %184 : vector<1x2x128xf32> to vector<2x128xf32>
    %c0_88 = arith.constant 0 : index
    %c0_89 = arith.constant 0 : index
    %186 = vector.load %arg3[%c0_88, %c0_89] : memref<128x384xf32, #tpu.memory_space<vmem>>, vector<128x384xf32>
    %cst_90 = arith.constant dense<0.000000e+00> : vector<2x384xf32>
    %187 = tpu.matmul %183, %186, %cst_90 {dimension_numbers = #tpu.dot_dimension_numbers<[1], [0], [0], [1], [0, 0, 1, 1], [], []>} : vector<2x128xf32>, vector<128x384xf32>, vector<2x384xf32> -> vector<2x384xf32>
    %c0_91 = arith.constant 0 : index
    %c0_92 = arith.constant 0 : index
    %188 = vector.load %arg5[%c0_91, %c0_92] : memref<1x384xf32, #tpu.memory_space<vmem>>, vector<1x384xf32>
    %189 = vector.broadcast %188 : vector<1x384xf32> to vector<2x384xf32>
    %190 = arith.addf %187, %189 : vector<2x384xf32>
    %c0_93 = arith.constant 0 : index
    %c0_94 = arith.constant 0 : index
    %191 = vector.load %arg4[%c0_93, %c0_94] : memref<128x384xf32, #tpu.memory_space<vmem>>, vector<128x384xf32>
    %cst_95 = arith.constant dense<0.000000e+00> : vector<2x384xf32>
    %192 = tpu.matmul %185, %191, %cst_95 {dimension_numbers = #tpu.dot_dimension_numbers<[1], [0], [0], [1], [0, 0, 1, 1], [], []>} : vector<2x128xf32>, vector<128x384xf32>, vector<2x384xf32> -> vector<2x384xf32>
    %193 = vector.extract_strided_slice %190 {offsets = [0, 0], sizes = [2, 128], strides = [1, 1]} : vector<2x384xf32> to vector<2x128xf32>
    %194 = vector.extract_strided_slice %192 {offsets = [0, 0], sizes = [2, 128], strides = [1, 1]} : vector<2x384xf32> to vector<2x128xf32>
    %195 = arith.addf %193, %194 : vector<2x128xf32>
    %196 = arith.negf %195 : vector<2x128xf32>
    %197 = math.exp %196 : vector<2x128xf32>
    %cst_96 = arith.constant 1.000000e+00 : f32
    %198 = vector.broadcast %cst_96 : f32 to vector<2x128xf32>
    %199 = arith.addf %198, %197 : vector<2x128xf32>
    %200 = arith.divf %198, %199 : vector<2x128xf32>
    %201 = vector.extract_strided_slice %190 {offsets = [0, 128], sizes = [2, 128], strides = [1, 1]} : vector<2x384xf32> to vector<2x128xf32>
    %202 = vector.extract_strided_slice %192 {offsets = [0, 128], sizes = [2, 128], strides = [1, 1]} : vector<2x384xf32> to vector<2x128xf32>
    %203 = arith.addf %201, %202 : vector<2x128xf32>
    %204 = arith.negf %203 : vector<2x128xf32>
    %205 = math.exp %204 : vector<2x128xf32>
    %cst_97 = arith.constant 1.000000e+00 : f32
    %206 = vector.broadcast %cst_97 : f32 to vector<2x128xf32>
    %207 = arith.addf %206, %205 : vector<2x128xf32>
    %208 = arith.divf %206, %207 : vector<2x128xf32>
    %209 = vector.extract_strided_slice %190 {offsets = [0, 256], sizes = [2, 128], strides = [1, 1]} : vector<2x384xf32> to vector<2x128xf32>
    %210 = vector.extract_strided_slice %192 {offsets = [0, 256], sizes = [2, 128], strides = [1, 1]} : vector<2x384xf32> to vector<2x128xf32>
    %c0_98 = arith.constant 0 : index
    %c0_99 = arith.constant 0 : index
    %211 = vector.load %arg6[%c0_98, %c0_99] : memref<1x128xf32, #tpu.memory_space<vmem>>, vector<1x128xf32>
    %212 = vector.broadcast %211 : vector<1x128xf32> to vector<2x128xf32>
    %213 = arith.addf %210, %212 : vector<2x128xf32>
    %214 = arith.mulf %200, %213 : vector<2x128xf32>
    %215 = arith.addf %209, %214 : vector<2x128xf32>
    %216 = math.tanh %215 : vector<2x128xf32>
    %cst_100 = arith.constant 1.000000e+00 : f32
    %217 = vector.broadcast %cst_100 : f32 to vector<2x128xf32>
    %218 = arith.subf %217, %208 : vector<2x128xf32>
    %219 = arith.mulf %218, %216 : vector<2x128xf32>
    %220 = arith.mulf %208, %185 : vector<2x128xf32>
    %221 = arith.addf %219, %220 : vector<2x128xf32>
    %c0_101 = arith.constant 0 : index
    %c0_102 = arith.constant 0 : index
    %c0_103 = arith.constant 0 : index
    %222 = vector.load %arg13[%c0_101, %c0_102, %c0_103] : memref<2x2x128xf32, #tpu.memory_space<vmem>>, vector<1x2x128xf32>
    %223 = vector.shape_cast %222 : vector<1x2x128xf32> to vector<2x128xf32>
    %224 = vector.shape_cast %221 : vector<2x128xf32> to vector<1x2x128xf32>
    tpu.vector_store %arg13[%c0_101, %c0_102, %c0_103], %224 {strides = array<i32>} : memref<2x2x128xf32, #tpu.memory_space<vmem>>, vector<1x2x128xf32>,
    %c1_104 = arith.constant 1 : index
    %c0_105 = arith.constant 0 : index
    %c0_106 = arith.constant 0 : index
    %225 = vector.load %arg13[%c1_104, %c0_105, %c0_106] : memref<2x2x128xf32, #tpu.memory_space<vmem>>, vector<1x2x128xf32>
    %226 = vector.shape_cast %225 : vector<1x2x128xf32> to vector<2x128xf32>
    %c0_107 = arith.constant 0 : index
    %c0_108 = arith.constant 0 : index
    %227 = vector.load %arg7[%c0_107, %c0_108] : memref<128x384xf32, #tpu.memory_space<vmem>>, vector<128x384xf32>
    %cst_109 = arith.constant dense<0.000000e+00> : vector<2x384xf32>
    %228 = tpu.matmul %221, %227, %cst_109 {dimension_numbers = #tpu.dot_dimension_numbers<[1], [0], [0], [1], [0, 0, 1, 1], [], []>} : vector<2x128xf32>, vector<128x384xf32>, vector<2x384xf32> -> vector<2x384xf32>
    %c0_110 = arith.constant 0 : index
    %c0_111 = arith.constant 0 : index
    %229 = vector.load %arg9[%c0_110, %c0_111] : memref<1x384xf32, #tpu.memory_space<vmem>>, vector<1x384xf32>
    %230 = vector.broadcast %229 : vector<1x384xf32> to vector<2x384xf32>
    %231 = arith.addf %228, %230 : vector<2x384xf32>
    %c0_112 = arith.constant 0 : index
    %c0_113 = arith.constant 0 : index
    %232 = vector.load %arg8[%c0_112, %c0_113] : memref<128x384xf32, #tpu.memory_space<vmem>>, vector<128x384xf32>
    %cst_114 = arith.constant dense<0.000000e+00> : vector<2x384xf32>
    %233 = tpu.matmul %226, %232, %cst_114 {dimension_numbers = #tpu.dot_dimension_numbers<[1], [0], [0], [1], [0, 0, 1, 1], [], []>} : vector<2x128xf32>, vector<128x384xf32>, vector<2x384xf32> -> vector<2x384xf32>
    %234 = vector.extract_strided_slice %231 {offsets = [0, 0], sizes = [2, 128], strides = [1, 1]} : vector<2x384xf32> to vector<2x128xf32>
    %235 = vector.extract_strided_slice %233 {offsets = [0, 0], sizes = [2, 128], strides = [1, 1]} : vector<2x384xf32> to vector<2x128xf32>
    %236 = arith.addf %234, %235 : vector<2x128xf32>
    %237 = arith.negf %236 : vector<2x128xf32>
    %238 = math.exp %237 : vector<2x128xf32>
    %cst_115 = arith.constant 1.000000e+00 : f32
    %239 = vector.broadcast %cst_115 : f32 to vector<2x128xf32>
    %240 = arith.addf %239, %238 : vector<2x128xf32>
    %241 = arith.divf %239, %240 : vector<2x128xf32>
    %242 = vector.extract_strided_slice %231 {offsets = [0, 128], sizes = [2, 128], strides = [1, 1]} : vector<2x384xf32> to vector<2x128xf32>
    %243 = vector.extract_strided_slice %233 {offsets = [0, 128], sizes = [2, 128], strides = [1, 1]} : vector<2x384xf32> to vector<2x128xf32>
    %244 = arith.addf %242, %243 : vector<2x128xf32>
    %245 = arith.negf %244 : vector<2x128xf32>
    %246 = math.exp %245 : vector<2x128xf32>
    %cst_116 = arith.constant 1.000000e+00 : f32
    %247 = vector.broadcast %cst_116 : f32 to vector<2x128xf32>
    %248 = arith.addf %247, %246 : vector<2x128xf32>
    %249 = arith.divf %247, %248 : vector<2x128xf32>
    %250 = vector.extract_strided_slice %231 {offsets = [0, 256], sizes = [2, 128], strides = [1, 1]} : vector<2x384xf32> to vector<2x128xf32>
    %251 = vector.extract_strided_slice %233 {offsets = [0, 256], sizes = [2, 128], strides = [1, 1]} : vector<2x384xf32> to vector<2x128xf32>
    %c0_117 = arith.constant 0 : index
    %c0_118 = arith.constant 0 : index
    %252 = vector.load %arg10[%c0_117, %c0_118] : memref<1x128xf32, #tpu.memory_space<vmem>>, vector<1x128xf32>
    %253 = vector.broadcast %252 : vector<1x128xf32> to vector<2x128xf32>
    %254 = arith.addf %251, %253 : vector<2x128xf32>
    %255 = arith.mulf %241, %254 : vector<2x128xf32>
    %256 = arith.addf %250, %255 : vector<2x128xf32>
    %257 = math.tanh %256 : vector<2x128xf32>
    %cst_119 = arith.constant 1.000000e+00 : f32
    %258 = vector.broadcast %cst_119 : f32 to vector<2x128xf32>
    %259 = arith.subf %258, %249 : vector<2x128xf32>
    %260 = arith.mulf %259, %257 : vector<2x128xf32>
    %261 = arith.mulf %249, %226 : vector<2x128xf32>
    %262 = arith.addf %260, %261 : vector<2x128xf32>
    %c1_120 = arith.constant 1 : index
    %c0_121 = arith.constant 0 : index
    %c0_122 = arith.constant 0 : index
    %263 = vector.load %arg13[%c1_120, %c0_121, %c0_122] : memref<2x2x128xf32, #tpu.memory_space<vmem>>, vector<1x2x128xf32>
    %264 = vector.shape_cast %263 : vector<1x2x128xf32> to vector<2x128xf32>
    %265 = vector.shape_cast %262 : vector<2x128xf32> to vector<1x2x128xf32>
    tpu.vector_store %arg13[%c1_120, %c0_121, %c0_122], %265 {strides = array<i32>} : memref<2x2x128xf32, #tpu.memory_space<vmem>>, vector<1x2x128xf32>,
    %266 = arith.index_cast %c2_i32 : i32 to index
    %c0_123 = arith.constant 0 : index
    %c0_124 = arith.constant 0 : index
    %267 = vector.load %arg11[%266, %c0_123, %c0_124] : memref<8x2x128xf32, #tpu.memory_space<vmem>>, vector<1x2x128xf32>
    %268 = vector.shape_cast %267 : vector<1x2x128xf32> to vector<2x128xf32>
    %269 = vector.shape_cast %262 : vector<2x128xf32> to vector<1x2x128xf32>
    tpu.vector_store %arg11[%266, %c0_123, %c0_124], %269 {strides = array<i32>} : memref<8x2x128xf32, #tpu.memory_space<vmem>>, vector<1x2x128xf32>,
    %c3_i32 = arith.constant 3 : i32
    %270 = arith.index_cast %c3_i32 : i32 to index
    %c0_125 = arith.constant 0 : index
    %c0_126 = arith.constant 0 : index
    %271 = vector.load %arg1[%270, %c0_125, %c0_126] : memref<8x2x128xf32, #tpu.memory_space<vmem>>, vector<1x2x128xf32>
    %272 = vector.shape_cast %271 : vector<1x2x128xf32> to vector<2x128xf32>
    %c0_127 = arith.constant 0 : index
    %c0_128 = arith.constant 0 : index
    %c0_129 = arith.constant 0 : index
    %273 = vector.load %arg13[%c0_127, %c0_128, %c0_129] : memref<2x2x128xf32, #tpu.memory_space<vmem>>, vector<1x2x128xf32>
    %274 = vector.shape_cast %273 : vector<1x2x128xf32> to vector<2x128xf32>
    %c0_130 = arith.constant 0 : index
    %c0_131 = arith.constant 0 : index
    %275 = vector.load %arg3[%c0_130, %c0_131] : memref<128x384xf32, #tpu.memory_space<vmem>>, vector<128x384xf32>
    %cst_132 = arith.constant dense<0.000000e+00> : vector<2x384xf32>
    %276 = tpu.matmul %272, %275, %cst_132 {dimension_numbers = #tpu.dot_dimension_numbers<[1], [0], [0], [1], [0, 0, 1, 1], [], []>} : vector<2x128xf32>, vector<128x384xf32>, vector<2x384xf32> -> vector<2x384xf32>
    %c0_133 = arith.constant 0 : index
    %c0_134 = arith.constant 0 : index
    %277 = vector.load %arg5[%c0_133, %c0_134] : memref<1x384xf32, #tpu.memory_space<vmem>>, vector<1x384xf32>
    %278 = vector.broadcast %277 : vector<1x384xf32> to vector<2x384xf32>
    %279 = arith.addf %276, %278 : vector<2x384xf32>
    %c0_135 = arith.constant 0 : index
    %c0_136 = arith.constant 0 : index
    %280 = vector.load %arg4[%c0_135, %c0_136] : memref<128x384xf32, #tpu.memory_space<vmem>>, vector<128x384xf32>
    %cst_137 = arith.constant dense<0.000000e+00> : vector<2x384xf32>
    %281 = tpu.matmul %274, %280, %cst_137 {dimension_numbers = #tpu.dot_dimension_numbers<[1], [0], [0], [1], [0, 0, 1, 1], [], []>} : vector<2x128xf32>, vector<128x384xf32>, vector<2x384xf32> -> vector<2x384xf32>
    %282 = vector.extract_strided_slice %279 {offsets = [0, 0], sizes = [2, 128], strides = [1, 1]} : vector<2x384xf32> to vector<2x128xf32>
    %283 = vector.extract_strided_slice %281 {offsets = [0, 0], sizes = [2, 128], strides = [1, 1]} : vector<2x384xf32> to vector<2x128xf32>
    %284 = arith.addf %282, %283 : vector<2x128xf32>
    %285 = arith.negf %284 : vector<2x128xf32>
    %286 = math.exp %285 : vector<2x128xf32>
    %cst_138 = arith.constant 1.000000e+00 : f32
    %287 = vector.broadcast %cst_138 : f32 to vector<2x128xf32>
    %288 = arith.addf %287, %286 : vector<2x128xf32>
    %289 = arith.divf %287, %288 : vector<2x128xf32>
    %290 = vector.extract_strided_slice %279 {offsets = [0, 128], sizes = [2, 128], strides = [1, 1]} : vector<2x384xf32> to vector<2x128xf32>
    %291 = vector.extract_strided_slice %281 {offsets = [0, 128], sizes = [2, 128], strides = [1, 1]} : vector<2x384xf32> to vector<2x128xf32>
    %292 = arith.addf %290, %291 : vector<2x128xf32>
    %293 = arith.negf %292 : vector<2x128xf32>
    %294 = math.exp %293 : vector<2x128xf32>
    %cst_139 = arith.constant 1.000000e+00 : f32
    %295 = vector.broadcast %cst_139 : f32 to vector<2x128xf32>
    %296 = arith.addf %295, %294 : vector<2x128xf32>
    %297 = arith.divf %295, %296 : vector<2x128xf32>
    %298 = vector.extract_strided_slice %279 {offsets = [0, 256], sizes = [2, 128], strides = [1, 1]} : vector<2x384xf32> to vector<2x128xf32>
    %299 = vector.extract_strided_slice %281 {offsets = [0, 256], sizes = [2, 128], strides = [1, 1]} : vector<2x384xf32> to vector<2x128xf32>
    %c0_140 = arith.constant 0 : index
    %c0_141 = arith.constant 0 : index
    %300 = vector.load %arg6[%c0_140, %c0_141] : memref<1x128xf32, #tpu.memory_space<vmem>>, vector<1x128xf32>
    %301 = vector.broadcast %300 : vector<1x128xf32> to vector<2x128xf32>
    %302 = arith.addf %299, %301 : vector<2x128xf32>
    %303 = arith.mulf %289, %302 : vector<2x128xf32>
    %304 = arith.addf %298, %303 : vector<2x128xf32>
    %305 = math.tanh %304 : vector<2x128xf32>
    %cst_142 = arith.constant 1.000000e+00 : f32
    %306 = vector.broadcast %cst_142 : f32 to vector<2x128xf32>
    %307 = arith.subf %306, %297 : vector<2x128xf32>
    %308 = arith.mulf %307, %305 : vector<2x128xf32>
    %309 = arith.mulf %297, %274 : vector<2x128xf32>
    %310 = arith.addf %308, %309 : vector<2x128xf32>
    %c0_143 = arith.constant 0 : index
    %c0_144 = arith.constant 0 : index
    %c0_145 = arith.constant 0 : index
    %311 = vector.load %arg13[%c0_143, %c0_144, %c0_145] : memref<2x2x128xf32, #tpu.memory_space<vmem>>, vector<1x2x128xf32>
    %312 = vector.shape_cast %311 : vector<1x2x128xf32> to vector<2x128xf32>
    %313 = vector.shape_cast %310 : vector<2x128xf32> to vector<1x2x128xf32>
    tpu.vector_store %arg13[%c0_143, %c0_144, %c0_145], %313 {strides = array<i32>} : memref<2x2x128xf32, #tpu.memory_space<vmem>>, vector<1x2x128xf32>,
    %c1_146 = arith.constant 1 : index
    %c0_147 = arith.constant 0 : index
    %c0_148 = arith.constant 0 : index
    %314 = vector.load %arg13[%c1_146, %c0_147, %c0_148] : memref<2x2x128xf32, #tpu.memory_space<vmem>>, vector<1x2x128xf32>
    %315 = vector.shape_cast %314 : vector<1x2x128xf32> to vector<2x128xf32>
    %c0_149 = arith.constant 0 : index
    %c0_150 = arith.constant 0 : index
    %316 = vector.load %arg7[%c0_149, %c0_150] : memref<128x384xf32, #tpu.memory_space<vmem>>, vector<128x384xf32>
    %cst_151 = arith.constant dense<0.000000e+00> : vector<2x384xf32>
    %317 = tpu.matmul %310, %316, %cst_151 {dimension_numbers = #tpu.dot_dimension_numbers<[1], [0], [0], [1], [0, 0, 1, 1], [], []>} : vector<2x128xf32>, vector<128x384xf32>, vector<2x384xf32> -> vector<2x384xf32>
    %c0_152 = arith.constant 0 : index
    %c0_153 = arith.constant 0 : index
    %318 = vector.load %arg9[%c0_152, %c0_153] : memref<1x384xf32, #tpu.memory_space<vmem>>, vector<1x384xf32>
    %319 = vector.broadcast %318 : vector<1x384xf32> to vector<2x384xf32>
    %320 = arith.addf %317, %319 : vector<2x384xf32>
    %c0_154 = arith.constant 0 : index
    %c0_155 = arith.constant 0 : index
    %321 = vector.load %arg8[%c0_154, %c0_155] : memref<128x384xf32, #tpu.memory_space<vmem>>, vector<128x384xf32>
    %cst_156 = arith.constant dense<0.000000e+00> : vector<2x384xf32>
    %322 = tpu.matmul %315, %321, %cst_156 {dimension_numbers = #tpu.dot_dimension_numbers<[1], [0], [0], [1], [0, 0, 1, 1], [], []>} : vector<2x128xf32>, vector<128x384xf32>, vector<2x384xf32> -> vector<2x384xf32>
    %323 = vector.extract_strided_slice %320 {offsets = [0, 0], sizes = [2, 128], strides = [1, 1]} : vector<2x384xf32> to vector<2x128xf32>
    %324 = vector.extract_strided_slice %322 {offsets = [0, 0], sizes = [2, 128], strides = [1, 1]} : vector<2x384xf32> to vector<2x128xf32>
    %325 = arith.addf %323, %324 : vector<2x128xf32>
    %326 = arith.negf %325 : vector<2x128xf32>
    %327 = math.exp %326 : vector<2x128xf32>
    %cst_157 = arith.constant 1.000000e+00 : f32
    %328 = vector.broadcast %cst_157 : f32 to vector<2x128xf32>
    %329 = arith.addf %328, %327 : vector<2x128xf32>
    %330 = arith.divf %328, %329 : vector<2x128xf32>
    %331 = vector.extract_strided_slice %320 {offsets = [0, 128], sizes = [2, 128], strides = [1, 1]} : vector<2x384xf32> to vector<2x128xf32>
    %332 = vector.extract_strided_slice %322 {offsets = [0, 128], sizes = [2, 128], strides = [1, 1]} : vector<2x384xf32> to vector<2x128xf32>
    %333 = arith.addf %331, %332 : vector<2x128xf32>
    %334 = arith.negf %333 : vector<2x128xf32>
    %335 = math.exp %334 : vector<2x128xf32>
    %cst_158 = arith.constant 1.000000e+00 : f32
    %336 = vector.broadcast %cst_158 : f32 to vector<2x128xf32>
    %337 = arith.addf %336, %335 : vector<2x128xf32>
    %338 = arith.divf %336, %337 : vector<2x128xf32>
    %339 = vector.extract_strided_slice %320 {offsets = [0, 256], sizes = [2, 128], strides = [1, 1]} : vector<2x384xf32> to vector<2x128xf32>
    %340 = vector.extract_strided_slice %322 {offsets = [0, 256], sizes = [2, 128], strides = [1, 1]} : vector<2x384xf32> to vector<2x128xf32>
    %c0_159 = arith.constant 0 : index
    %c0_160 = arith.constant 0 : index
    %341 = vector.load %arg10[%c0_159, %c0_160] : memref<1x128xf32, #tpu.memory_space<vmem>>, vector<1x128xf32>
    %342 = vector.broadcast %341 : vector<1x128xf32> to vector<2x128xf32>
    %343 = arith.addf %340, %342 : vector<2x128xf32>
    %344 = arith.mulf %330, %343 : vector<2x128xf32>
    %345 = arith.addf %339, %344 : vector<2x128xf32>
    %346 = math.tanh %345 : vector<2x128xf32>
    %cst_161 = arith.constant 1.000000e+00 : f32
    %347 = vector.broadcast %cst_161 : f32 to vector<2x128xf32>
    %348 = arith.subf %347, %338 : vector<2x128xf32>
    %349 = arith.mulf %348, %346 : vector<2x128xf32>
    %350 = arith.mulf %338, %315 : vector<2x128xf32>
    %351 = arith.addf %349, %350 : vector<2x128xf32>
    %c1_162 = arith.constant 1 : index
    %c0_163 = arith.constant 0 : index
    %c0_164 = arith.constant 0 : index
    %352 = vector.load %arg13[%c1_162, %c0_163, %c0_164] : memref<2x2x128xf32, #tpu.memory_space<vmem>>, vector<1x2x128xf32>
    %353 = vector.shape_cast %352 : vector<1x2x128xf32> to vector<2x128xf32>
    %354 = vector.shape_cast %351 : vector<2x128xf32> to vector<1x2x128xf32>
    tpu.vector_store %arg13[%c1_162, %c0_163, %c0_164], %354 {strides = array<i32>} : memref<2x2x128xf32, #tpu.memory_space<vmem>>, vector<1x2x128xf32>,
    %355 = arith.index_cast %c3_i32 : i32 to index
    %c0_165 = arith.constant 0 : index
    %c0_166 = arith.constant 0 : index
    %356 = vector.load %arg11[%355, %c0_165, %c0_166] : memref<8x2x128xf32, #tpu.memory_space<vmem>>, vector<1x2x128xf32>
    %357 = vector.shape_cast %356 : vector<1x2x128xf32> to vector<2x128xf32>
    %358 = vector.shape_cast %351 : vector<2x128xf32> to vector<1x2x128xf32>
    tpu.vector_store %arg11[%355, %c0_165, %c0_166], %358 {strides = array<i32>} : memref<8x2x128xf32, #tpu.memory_space<vmem>>, vector<1x2x128xf32>,
    %c4_i32 = arith.constant 4 : i32
    %359 = arith.index_cast %c4_i32 : i32 to index
    %c0_167 = arith.constant 0 : index
    %c0_168 = arith.constant 0 : index
    %360 = vector.load %arg1[%359, %c0_167, %c0_168] : memref<8x2x128xf32, #tpu.memory_space<vmem>>, vector<1x2x128xf32>
    %361 = vector.shape_cast %360 : vector<1x2x128xf32> to vector<2x128xf32>
    %c0_169 = arith.constant 0 : index
    %c0_170 = arith.constant 0 : index
    %c0_171 = arith.constant 0 : index
    %362 = vector.load %arg13[%c0_169, %c0_170, %c0_171] : memref<2x2x128xf32, #tpu.memory_space<vmem>>, vector<1x2x128xf32>
    %363 = vector.shape_cast %362 : vector<1x2x128xf32> to vector<2x128xf32>
    %c0_172 = arith.constant 0 : index
    %c0_173 = arith.constant 0 : index
    %364 = vector.load %arg3[%c0_172, %c0_173] : memref<128x384xf32, #tpu.memory_space<vmem>>, vector<128x384xf32>
    %cst_174 = arith.constant dense<0.000000e+00> : vector<2x384xf32>
    %365 = tpu.matmul %361, %364, %cst_174 {dimension_numbers = #tpu.dot_dimension_numbers<[1], [0], [0], [1], [0, 0, 1, 1], [], []>} : vector<2x128xf32>, vector<128x384xf32>, vector<2x384xf32> -> vector<2x384xf32>
    %c0_175 = arith.constant 0 : index
    %c0_176 = arith.constant 0 : index
    %366 = vector.load %arg5[%c0_175, %c0_176] : memref<1x384xf32, #tpu.memory_space<vmem>>, vector<1x384xf32>
    %367 = vector.broadcast %366 : vector<1x384xf32> to vector<2x384xf32>
    %368 = arith.addf %365, %367 : vector<2x384xf32>
    %c0_177 = arith.constant 0 : index
    %c0_178 = arith.constant 0 : index
    %369 = vector.load %arg4[%c0_177, %c0_178] : memref<128x384xf32, #tpu.memory_space<vmem>>, vector<128x384xf32>
    %cst_179 = arith.constant dense<0.000000e+00> : vector<2x384xf32>
    %370 = tpu.matmul %363, %369, %cst_179 {dimension_numbers = #tpu.dot_dimension_numbers<[1], [0], [0], [1], [0, 0, 1, 1], [], []>} : vector<2x128xf32>, vector<128x384xf32>, vector<2x384xf32> -> vector<2x384xf32>
    %371 = vector.extract_strided_slice %368 {offsets = [0, 0], sizes = [2, 128], strides = [1, 1]} : vector<2x384xf32> to vector<2x128xf32>
    %372 = vector.extract_strided_slice %370 {offsets = [0, 0], sizes = [2, 128], strides = [1, 1]} : vector<2x384xf32> to vector<2x128xf32>
    %373 = arith.addf %371, %372 : vector<2x128xf32>
    %374 = arith.negf %373 : vector<2x128xf32>
    %375 = math.exp %374 : vector<2x128xf32>
    %cst_180 = arith.constant 1.000000e+00 : f32
    %376 = vector.broadcast %cst_180 : f32 to vector<2x128xf32>
    %377 = arith.addf %376, %375 : vector<2x128xf32>
    %378 = arith.divf %376, %377 : vector<2x128xf32>
    %379 = vector.extract_strided_slice %368 {offsets = [0, 128], sizes = [2, 128], strides = [1, 1]} : vector<2x384xf32> to vector<2x128xf32>
    %380 = vector.extract_strided_slice %370 {offsets = [0, 128], sizes = [2, 128], strides = [1, 1]} : vector<2x384xf32> to vector<2x128xf32>
    %381 = arith.addf %379, %380 : vector<2x128xf32>
    %382 = arith.negf %381 : vector<2x128xf32>
    %383 = math.exp %382 : vector<2x128xf32>
    %cst_181 = arith.constant 1.000000e+00 : f32
    %384 = vector.broadcast %cst_181 : f32 to vector<2x128xf32>
    %385 = arith.addf %384, %383 : vector<2x128xf32>
    %386 = arith.divf %384, %385 : vector<2x128xf32>
    %387 = vector.extract_strided_slice %368 {offsets = [0, 256], sizes = [2, 128], strides = [1, 1]} : vector<2x384xf32> to vector<2x128xf32>
    %388 = vector.extract_strided_slice %370 {offsets = [0, 256], sizes = [2, 128], strides = [1, 1]} : vector<2x384xf32> to vector<2x128xf32>
    %c0_182 = arith.constant 0 : index
    %c0_183 = arith.constant 0 : index
    %389 = vector.load %arg6[%c0_182, %c0_183] : memref<1x128xf32, #tpu.memory_space<vmem>>, vector<1x128xf32>
    %390 = vector.broadcast %389 : vector<1x128xf32> to vector<2x128xf32>
    %391 = arith.addf %388, %390 : vector<2x128xf32>
    %392 = arith.mulf %378, %391 : vector<2x128xf32>
    %393 = arith.addf %387, %392 : vector<2x128xf32>
    %394 = math.tanh %393 : vector<2x128xf32>
    %cst_184 = arith.constant 1.000000e+00 : f32
    %395 = vector.broadcast %cst_184 : f32 to vector<2x128xf32>
    %396 = arith.subf %395, %386 : vector<2x128xf32>
    %397 = arith.mulf %396, %394 : vector<2x128xf32>
    %398 = arith.mulf %386, %363 : vector<2x128xf32>
    %399 = arith.addf %397, %398 : vector<2x128xf32>
    %c0_185 = arith.constant 0 : index
    %c0_186 = arith.constant 0 : index
    %c0_187 = arith.constant 0 : index
    %400 = vector.load %arg13[%c0_185, %c0_186, %c0_187] : memref<2x2x128xf32, #tpu.memory_space<vmem>>, vector<1x2x128xf32>
    %401 = vector.shape_cast %400 : vector<1x2x128xf32> to vector<2x128xf32>
    %402 = vector.shape_cast %399 : vector<2x128xf32> to vector<1x2x128xf32>
    tpu.vector_store %arg13[%c0_185, %c0_186, %c0_187], %402 {strides = array<i32>} : memref<2x2x128xf32, #tpu.memory_space<vmem>>, vector<1x2x128xf32>,
    %c1_188 = arith.constant 1 : index
    %c0_189 = arith.constant 0 : index
    %c0_190 = arith.constant 0 : index
    %403 = vector.load %arg13[%c1_188, %c0_189, %c0_190] : memref<2x2x128xf32, #tpu.memory_space<vmem>>, vector<1x2x128xf32>
    %404 = vector.shape_cast %403 : vector<1x2x128xf32> to vector<2x128xf32>
    %c0_191 = arith.constant 0 : index
    %c0_192 = arith.constant 0 : index
    %405 = vector.load %arg7[%c0_191, %c0_192] : memref<128x384xf32, #tpu.memory_space<vmem>>, vector<128x384xf32>
    %cst_193 = arith.constant dense<0.000000e+00> : vector<2x384xf32>
    %406 = tpu.matmul %399, %405, %cst_193 {dimension_numbers = #tpu.dot_dimension_numbers<[1], [0], [0], [1], [0, 0, 1, 1], [], []>} : vector<2x128xf32>, vector<128x384xf32>, vector<2x384xf32> -> vector<2x384xf32>
    %c0_194 = arith.constant 0 : index
    %c0_195 = arith.constant 0 : index
    %407 = vector.load %arg9[%c0_194, %c0_195] : memref<1x384xf32, #tpu.memory_space<vmem>>, vector<1x384xf32>
    %408 = vector.broadcast %407 : vector<1x384xf32> to vector<2x384xf32>
    %409 = arith.addf %406, %408 : vector<2x384xf32>
    %c0_196 = arith.constant 0 : index
    %c0_197 = arith.constant 0 : index
    %410 = vector.load %arg8[%c0_196, %c0_197] : memref<128x384xf32, #tpu.memory_space<vmem>>, vector<128x384xf32>
    %cst_198 = arith.constant dense<0.000000e+00> : vector<2x384xf32>
    %411 = tpu.matmul %404, %410, %cst_198 {dimension_numbers = #tpu.dot_dimension_numbers<[1], [0], [0], [1], [0, 0, 1, 1], [], []>} : vector<2x128xf32>, vector<128x384xf32>, vector<2x384xf32> -> vector<2x384xf32>
    %412 = vector.extract_strided_slice %409 {offsets = [0, 0], sizes = [2, 128], strides = [1, 1]} : vector<2x384xf32> to vector<2x128xf32>
    %413 = vector.extract_strided_slice %411 {offsets = [0, 0], sizes = [2, 128], strides = [1, 1]} : vector<2x384xf32> to vector<2x128xf32>
    %414 = arith.addf %412, %413 : vector<2x128xf32>
    %415 = arith.negf %414 : vector<2x128xf32>
    %416 = math.exp %415 : vector<2x128xf32>
    %cst_199 = arith.constant 1.000000e+00 : f32
    %417 = vector.broadcast %cst_199 : f32 to vector<2x128xf32>
    %418 = arith.addf %417, %416 : vector<2x128xf32>
    %419 = arith.divf %417, %418 : vector<2x128xf32>
    %420 = vector.extract_strided_slice %409 {offsets = [0, 128], sizes = [2, 128], strides = [1, 1]} : vector<2x384xf32> to vector<2x128xf32>
    %421 = vector.extract_strided_slice %411 {offsets = [0, 128], sizes = [2, 128], strides = [1, 1]} : vector<2x384xf32> to vector<2x128xf32>
    %422 = arith.addf %420, %421 : vector<2x128xf32>
    %423 = arith.negf %422 : vector<2x128xf32>
    %424 = math.exp %423 : vector<2x128xf32>
    %cst_200 = arith.constant 1.000000e+00 : f32
    %425 = vector.broadcast %cst_200 : f32 to vector<2x128xf32>
    %426 = arith.addf %425, %424 : vector<2x128xf32>
    %427 = arith.divf %425, %426 : vector<2x128xf32>
    %428 = vector.extract_strided_slice %409 {offsets = [0, 256], sizes = [2, 128], strides = [1, 1]} : vector<2x384xf32> to vector<2x128xf32>
    %429 = vector.extract_strided_slice %411 {offsets = [0, 256], sizes = [2, 128], strides = [1, 1]} : vector<2x384xf32> to vector<2x128xf32>
    %c0_201 = arith.constant 0 : index
    %c0_202 = arith.constant 0 : index
    %430 = vector.load %arg10[%c0_201, %c0_202] : memref<1x128xf32, #tpu.memory_space<vmem>>, vector<1x128xf32>
    %431 = vector.broadcast %430 : vector<1x128xf32> to vector<2x128xf32>
    %432 = arith.addf %429, %431 : vector<2x128xf32>
    %433 = arith.mulf %419, %432 : vector<2x128xf32>
    %434 = arith.addf %428, %433 : vector<2x128xf32>
    %435 = math.tanh %434 : vector<2x128xf32>
    %cst_203 = arith.constant 1.000000e+00 : f32
    %436 = vector.broadcast %cst_203 : f32 to vector<2x128xf32>
    %437 = arith.subf %436, %427 : vector<2x128xf32>
    %438 = arith.mulf %437, %435 : vector<2x128xf32>
    %439 = arith.mulf %427, %404 : vector<2x128xf32>
    %440 = arith.addf %438, %439 : vector<2x128xf32>
    %c1_204 = arith.constant 1 : index
    %c0_205 = arith.constant 0 : index
    %c0_206 = arith.constant 0 : index
    %441 = vector.load %arg13[%c1_204, %c0_205, %c0_206] : memref<2x2x128xf32, #tpu.memory_space<vmem>>, vector<1x2x128xf32>
    %442 = vector.shape_cast %441 : vector<1x2x128xf32> to vector<2x128xf32>
    %443 = vector.shape_cast %440 : vector<2x128xf32> to vector<1x2x128xf32>
    tpu.vector_store %arg13[%c1_204, %c0_205, %c0_206], %443 {strides = array<i32>} : memref<2x2x128xf32, #tpu.memory_space<vmem>>, vector<1x2x128xf32>,
    %444 = arith.index_cast %c4_i32 : i32 to index
    %c0_207 = arith.constant 0 : index
    %c0_208 = arith.constant 0 : index
    %445 = vector.load %arg11[%444, %c0_207, %c0_208] : memref<8x2x128xf32, #tpu.memory_space<vmem>>, vector<1x2x128xf32>
    %446 = vector.shape_cast %445 : vector<1x2x128xf32> to vector<2x128xf32>
    %447 = vector.shape_cast %440 : vector<2x128xf32> to vector<1x2x128xf32>
    tpu.vector_store %arg11[%444, %c0_207, %c0_208], %447 {strides = array<i32>} : memref<8x2x128xf32, #tpu.memory_space<vmem>>, vector<1x2x128xf32>,
    %c5_i32 = arith.constant 5 : i32
    %448 = arith.index_cast %c5_i32 : i32 to index
    %c0_209 = arith.constant 0 : index
    %c0_210 = arith.constant 0 : index
    %449 = vector.load %arg1[%448, %c0_209, %c0_210] : memref<8x2x128xf32, #tpu.memory_space<vmem>>, vector<1x2x128xf32>
    %450 = vector.shape_cast %449 : vector<1x2x128xf32> to vector<2x128xf32>
    %c0_211 = arith.constant 0 : index
    %c0_212 = arith.constant 0 : index
    %c0_213 = arith.constant 0 : index
    %451 = vector.load %arg13[%c0_211, %c0_212, %c0_213] : memref<2x2x128xf32, #tpu.memory_space<vmem>>, vector<1x2x128xf32>
    %452 = vector.shape_cast %451 : vector<1x2x128xf32> to vector<2x128xf32>
    %c0_214 = arith.constant 0 : index
    %c0_215 = arith.constant 0 : index
    %453 = vector.load %arg3[%c0_214, %c0_215] : memref<128x384xf32, #tpu.memory_space<vmem>>, vector<128x384xf32>
    %cst_216 = arith.constant dense<0.000000e+00> : vector<2x384xf32>
    %454 = tpu.matmul %450, %453, %cst_216 {dimension_numbers = #tpu.dot_dimension_numbers<[1], [0], [0], [1], [0, 0, 1, 1], [], []>} : vector<2x128xf32>, vector<128x384xf32>, vector<2x384xf32> -> vector<2x384xf32>
    %c0_217 = arith.constant 0 : index
    %c0_218 = arith.constant 0 : index
    %455 = vector.load %arg5[%c0_217, %c0_218] : memref<1x384xf32, #tpu.memory_space<vmem>>, vector<1x384xf32>
    %456 = vector.broadcast %455 : vector<1x384xf32> to vector<2x384xf32>
    %457 = arith.addf %454, %456 : vector<2x384xf32>
    %c0_219 = arith.constant 0 : index
    %c0_220 = arith.constant 0 : index
    %458 = vector.load %arg4[%c0_219, %c0_220] : memref<128x384xf32, #tpu.memory_space<vmem>>, vector<128x384xf32>
    %cst_221 = arith.constant dense<0.000000e+00> : vector<2x384xf32>
    %459 = tpu.matmul %452, %458, %cst_221 {dimension_numbers = #tpu.dot_dimension_numbers<[1], [0], [0], [1], [0, 0, 1, 1], [], []>} : vector<2x128xf32>, vector<128x384xf32>, vector<2x384xf32> -> vector<2x384xf32>
    %460 = vector.extract_strided_slice %457 {offsets = [0, 0], sizes = [2, 128], strides = [1, 1]} : vector<2x384xf32> to vector<2x128xf32>
    %461 = vector.extract_strided_slice %459 {offsets = [0, 0], sizes = [2, 128], strides = [1, 1]} : vector<2x384xf32> to vector<2x128xf32>
    %462 = arith.addf %460, %461 : vector<2x128xf32>
    %463 = arith.negf %462 : vector<2x128xf32>
    %464 = math.exp %463 : vector<2x128xf32>
    %cst_222 = arith.constant 1.000000e+00 : f32
    %465 = vector.broadcast %cst_222 : f32 to vector<2x128xf32>
    %466 = arith.addf %465, %464 : vector<2x128xf32>
    %467 = arith.divf %465, %466 : vector<2x128xf32>
    %468 = vector.extract_strided_slice %457 {offsets = [0, 128], sizes = [2, 128], strides = [1, 1]} : vector<2x384xf32> to vector<2x128xf32>
    %469 = vector.extract_strided_slice %459 {offsets = [0, 128], sizes = [2, 128], strides = [1, 1]} : vector<2x384xf32> to vector<2x128xf32>
    %470 = arith.addf %468, %469 : vector<2x128xf32>
    %471 = arith.negf %470 : vector<2x128xf32>
    %472 = math.exp %471 : vector<2x128xf32>
    %cst_223 = arith.constant 1.000000e+00 : f32
    %473 = vector.broadcast %cst_223 : f32 to vector<2x128xf32>
    %474 = arith.addf %473, %472 : vector<2x128xf32>
    %475 = arith.divf %473, %474 : vector<2x128xf32>
    %476 = vector.extract_strided_slice %457 {offsets = [0, 256], sizes = [2, 128], strides = [1, 1]} : vector<2x384xf32> to vector<2x128xf32>
    %477 = vector.extract_strided_slice %459 {offsets = [0, 256], sizes = [2, 128], strides = [1, 1]} : vector<2x384xf32> to vector<2x128xf32>
    %c0_224 = arith.constant 0 : index
    %c0_225 = arith.constant 0 : index
    %478 = vector.load %arg6[%c0_224, %c0_225] : memref<1x128xf32, #tpu.memory_space<vmem>>, vector<1x128xf32>
    %479 = vector.broadcast %478 : vector<1x128xf32> to vector<2x128xf32>
    %480 = arith.addf %477, %479 : vector<2x128xf32>
    %481 = arith.mulf %467, %480 : vector<2x128xf32>
    %482 = arith.addf %476, %481 : vector<2x128xf32>
    %483 = math.tanh %482 : vector<2x128xf32>
    %cst_226 = arith.constant 1.000000e+00 : f32
    %484 = vector.broadcast %cst_226 : f32 to vector<2x128xf32>
    %485 = arith.subf %484, %475 : vector<2x128xf32>
    %486 = arith.mulf %485, %483 : vector<2x128xf32>
    %487 = arith.mulf %475, %452 : vector<2x128xf32>
    %488 = arith.addf %486, %487 : vector<2x128xf32>
    %c0_227 = arith.constant 0 : index
    %c0_228 = arith.constant 0 : index
    %c0_229 = arith.constant 0 : index
    %489 = vector.load %arg13[%c0_227, %c0_228, %c0_229] : memref<2x2x128xf32, #tpu.memory_space<vmem>>, vector<1x2x128xf32>
    %490 = vector.shape_cast %489 : vector<1x2x128xf32> to vector<2x128xf32>
    %491 = vector.shape_cast %488 : vector<2x128xf32> to vector<1x2x128xf32>
    tpu.vector_store %arg13[%c0_227, %c0_228, %c0_229], %491 {strides = array<i32>} : memref<2x2x128xf32, #tpu.memory_space<vmem>>, vector<1x2x128xf32>,
    %c1_230 = arith.constant 1 : index
    %c0_231 = arith.constant 0 : index
    %c0_232 = arith.constant 0 : index
    %492 = vector.load %arg13[%c1_230, %c0_231, %c0_232] : memref<2x2x128xf32, #tpu.memory_space<vmem>>, vector<1x2x128xf32>
    %493 = vector.shape_cast %492 : vector<1x2x128xf32> to vector<2x128xf32>
    %c0_233 = arith.constant 0 : index
    %c0_234 = arith.constant 0 : index
    %494 = vector.load %arg7[%c0_233, %c0_234] : memref<128x384xf32, #tpu.memory_space<vmem>>, vector<128x384xf32>
    %cst_235 = arith.constant dense<0.000000e+00> : vector<2x384xf32>
    %495 = tpu.matmul %488, %494, %cst_235 {dimension_numbers = #tpu.dot_dimension_numbers<[1], [0], [0], [1], [0, 0, 1, 1], [], []>} : vector<2x128xf32>, vector<128x384xf32>, vector<2x384xf32> -> vector<2x384xf32>
    %c0_236 = arith.constant 0 : index
    %c0_237 = arith.constant 0 : index
    %496 = vector.load %arg9[%c0_236, %c0_237] : memref<1x384xf32, #tpu.memory_space<vmem>>, vector<1x384xf32>
    %497 = vector.broadcast %496 : vector<1x384xf32> to vector<2x384xf32>
    %498 = arith.addf %495, %497 : vector<2x384xf32>
    %c0_238 = arith.constant 0 : index
    %c0_239 = arith.constant 0 : index
    %499 = vector.load %arg8[%c0_238, %c0_239] : memref<128x384xf32, #tpu.memory_space<vmem>>, vector<128x384xf32>
    %cst_240 = arith.constant dense<0.000000e+00> : vector<2x384xf32>
    %500 = tpu.matmul %493, %499, %cst_240 {dimension_numbers = #tpu.dot_dimension_numbers<[1], [0], [0], [1], [0, 0, 1, 1], [], []>} : vector<2x128xf32>, vector<128x384xf32>, vector<2x384xf32> -> vector<2x384xf32>
    %501 = vector.extract_strided_slice %498 {offsets = [0, 0], sizes = [2, 128], strides = [1, 1]} : vector<2x384xf32> to vector<2x128xf32>
    %502 = vector.extract_strided_slice %500 {offsets = [0, 0], sizes = [2, 128], strides = [1, 1]} : vector<2x384xf32> to vector<2x128xf32>
    %503 = arith.addf %501, %502 : vector<2x128xf32>
    %504 = arith.negf %503 : vector<2x128xf32>
    %505 = math.exp %504 : vector<2x128xf32>
    %cst_241 = arith.constant 1.000000e+00 : f32
    %506 = vector.broadcast %cst_241 : f32 to vector<2x128xf32>
    %507 = arith.addf %506, %505 : vector<2x128xf32>
    %508 = arith.divf %506, %507 : vector<2x128xf32>
    %509 = vector.extract_strided_slice %498 {offsets = [0, 128], sizes = [2, 128], strides = [1, 1]} : vector<2x384xf32> to vector<2x128xf32>
    %510 = vector.extract_strided_slice %500 {offsets = [0, 128], sizes = [2, 128], strides = [1, 1]} : vector<2x384xf32> to vector<2x128xf32>
    %511 = arith.addf %509, %510 : vector<2x128xf32>
    %512 = arith.negf %511 : vector<2x128xf32>
    %513 = math.exp %512 : vector<2x128xf32>
    %cst_242 = arith.constant 1.000000e+00 : f32
    %514 = vector.broadcast %cst_242 : f32 to vector<2x128xf32>
    %515 = arith.addf %514, %513 : vector<2x128xf32>
    %516 = arith.divf %514, %515 : vector<2x128xf32>
    %517 = vector.extract_strided_slice %498 {offsets = [0, 256], sizes = [2, 128], strides = [1, 1]} : vector<2x384xf32> to vector<2x128xf32>
    %518 = vector.extract_strided_slice %500 {offsets = [0, 256], sizes = [2, 128], strides = [1, 1]} : vector<2x384xf32> to vector<2x128xf32>
    %c0_243 = arith.constant 0 : index
    %c0_244 = arith.constant 0 : index
    %519 = vector.load %arg10[%c0_243, %c0_244] : memref<1x128xf32, #tpu.memory_space<vmem>>, vector<1x128xf32>
    %520 = vector.broadcast %519 : vector<1x128xf32> to vector<2x128xf32>
    %521 = arith.addf %518, %520 : vector<2x128xf32>
    %522 = arith.mulf %508, %521 : vector<2x128xf32>
    %523 = arith.addf %517, %522 : vector<2x128xf32>
    %524 = math.tanh %523 : vector<2x128xf32>
    %cst_245 = arith.constant 1.000000e+00 : f32
    %525 = vector.broadcast %cst_245 : f32 to vector<2x128xf32>
    %526 = arith.subf %525, %516 : vector<2x128xf32>
    %527 = arith.mulf %526, %524 : vector<2x128xf32>
    %528 = arith.mulf %516, %493 : vector<2x128xf32>
    %529 = arith.addf %527, %528 : vector<2x128xf32>
    %c1_246 = arith.constant 1 : index
    %c0_247 = arith.constant 0 : index
    %c0_248 = arith.constant 0 : index
    %530 = vector.load %arg13[%c1_246, %c0_247, %c0_248] : memref<2x2x128xf32, #tpu.memory_space<vmem>>, vector<1x2x128xf32>
    %531 = vector.shape_cast %530 : vector<1x2x128xf32> to vector<2x128xf32>
    %532 = vector.shape_cast %529 : vector<2x128xf32> to vector<1x2x128xf32>
    tpu.vector_store %arg13[%c1_246, %c0_247, %c0_248], %532 {strides = array<i32>} : memref<2x2x128xf32, #tpu.memory_space<vmem>>, vector<1x2x128xf32>,
    %533 = arith.index_cast %c5_i32 : i32 to index
    %c0_249 = arith.constant 0 : index
    %c0_250 = arith.constant 0 : index
    %534 = vector.load %arg11[%533, %c0_249, %c0_250] : memref<8x2x128xf32, #tpu.memory_space<vmem>>, vector<1x2x128xf32>
    %535 = vector.shape_cast %534 : vector<1x2x128xf32> to vector<2x128xf32>
    %536 = vector.shape_cast %529 : vector<2x128xf32> to vector<1x2x128xf32>
    tpu.vector_store %arg11[%533, %c0_249, %c0_250], %536 {strides = array<i32>} : memref<8x2x128xf32, #tpu.memory_space<vmem>>, vector<1x2x128xf32>,
    %c6_i32 = arith.constant 6 : i32
    %537 = arith.index_cast %c6_i32 : i32 to index
    %c0_251 = arith.constant 0 : index
    %c0_252 = arith.constant 0 : index
    %538 = vector.load %arg1[%537, %c0_251, %c0_252] : memref<8x2x128xf32, #tpu.memory_space<vmem>>, vector<1x2x128xf32>
    %539 = vector.shape_cast %538 : vector<1x2x128xf32> to vector<2x128xf32>
    %c0_253 = arith.constant 0 : index
    %c0_254 = arith.constant 0 : index
    %c0_255 = arith.constant 0 : index
    %540 = vector.load %arg13[%c0_253, %c0_254, %c0_255] : memref<2x2x128xf32, #tpu.memory_space<vmem>>, vector<1x2x128xf32>
    %541 = vector.shape_cast %540 : vector<1x2x128xf32> to vector<2x128xf32>
    %c0_256 = arith.constant 0 : index
    %c0_257 = arith.constant 0 : index
    %542 = vector.load %arg3[%c0_256, %c0_257] : memref<128x384xf32, #tpu.memory_space<vmem>>, vector<128x384xf32>
    %cst_258 = arith.constant dense<0.000000e+00> : vector<2x384xf32>
    %543 = tpu.matmul %539, %542, %cst_258 {dimension_numbers = #tpu.dot_dimension_numbers<[1], [0], [0], [1], [0, 0, 1, 1], [], []>} : vector<2x128xf32>, vector<128x384xf32>, vector<2x384xf32> -> vector<2x384xf32>
    %c0_259 = arith.constant 0 : index
    %c0_260 = arith.constant 0 : index
    %544 = vector.load %arg5[%c0_259, %c0_260] : memref<1x384xf32, #tpu.memory_space<vmem>>, vector<1x384xf32>
    %545 = vector.broadcast %544 : vector<1x384xf32> to vector<2x384xf32>
    %546 = arith.addf %543, %545 : vector<2x384xf32>
    %c0_261 = arith.constant 0 : index
    %c0_262 = arith.constant 0 : index
    %547 = vector.load %arg4[%c0_261, %c0_262] : memref<128x384xf32, #tpu.memory_space<vmem>>, vector<128x384xf32>
    %cst_263 = arith.constant dense<0.000000e+00> : vector<2x384xf32>
    %548 = tpu.matmul %541, %547, %cst_263 {dimension_numbers = #tpu.dot_dimension_numbers<[1], [0], [0], [1], [0, 0, 1, 1], [], []>} : vector<2x128xf32>, vector<128x384xf32>, vector<2x384xf32> -> vector<2x384xf32>
    %549 = vector.extract_strided_slice %546 {offsets = [0, 0], sizes = [2, 128], strides = [1, 1]} : vector<2x384xf32> to vector<2x128xf32>
    %550 = vector.extract_strided_slice %548 {offsets = [0, 0], sizes = [2, 128], strides = [1, 1]} : vector<2x384xf32> to vector<2x128xf32>
    %551 = arith.addf %549, %550 : vector<2x128xf32>
    %552 = arith.negf %551 : vector<2x128xf32>
    %553 = math.exp %552 : vector<2x128xf32>
    %cst_264 = arith.constant 1.000000e+00 : f32
    %554 = vector.broadcast %cst_264 : f32 to vector<2x128xf32>
    %555 = arith.addf %554, %553 : vector<2x128xf32>
    %556 = arith.divf %554, %555 : vector<2x128xf32>
    %557 = vector.extract_strided_slice %546 {offsets = [0, 128], sizes = [2, 128], strides = [1, 1]} : vector<2x384xf32> to vector<2x128xf32>
    %558 = vector.extract_strided_slice %548 {offsets = [0, 128], sizes = [2, 128], strides = [1, 1]} : vector<2x384xf32> to vector<2x128xf32>
    %559 = arith.addf %557, %558 : vector<2x128xf32>
    %560 = arith.negf %559 : vector<2x128xf32>
    %561 = math.exp %560 : vector<2x128xf32>
    %cst_265 = arith.constant 1.000000e+00 : f32
    %562 = vector.broadcast %cst_265 : f32 to vector<2x128xf32>
    %563 = arith.addf %562, %561 : vector<2x128xf32>
    %564 = arith.divf %562, %563 : vector<2x128xf32>
    %565 = vector.extract_strided_slice %546 {offsets = [0, 256], sizes = [2, 128], strides = [1, 1]} : vector<2x384xf32> to vector<2x128xf32>
    %566 = vector.extract_strided_slice %548 {offsets = [0, 256], sizes = [2, 128], strides = [1, 1]} : vector<2x384xf32> to vector<2x128xf32>
    %c0_266 = arith.constant 0 : index
    %c0_267 = arith.constant 0 : index
    %567 = vector.load %arg6[%c0_266, %c0_267] : memref<1x128xf32, #tpu.memory_space<vmem>>, vector<1x128xf32>
    %568 = vector.broadcast %567 : vector<1x128xf32> to vector<2x128xf32>
    %569 = arith.addf %566, %568 : vector<2x128xf32>
    %570 = arith.mulf %556, %569 : vector<2x128xf32>
    %571 = arith.addf %565, %570 : vector<2x128xf32>
    %572 = math.tanh %571 : vector<2x128xf32>
    %cst_268 = arith.constant 1.000000e+00 : f32
    %573 = vector.broadcast %cst_268 : f32 to vector<2x128xf32>
    %574 = arith.subf %573, %564 : vector<2x128xf32>
    %575 = arith.mulf %574, %572 : vector<2x128xf32>
    %576 = arith.mulf %564, %541 : vector<2x128xf32>
    %577 = arith.addf %575, %576 : vector<2x128xf32>
    %c0_269 = arith.constant 0 : index
    %c0_270 = arith.constant 0 : index
    %c0_271 = arith.constant 0 : index
    %578 = vector.load %arg13[%c0_269, %c0_270, %c0_271] : memref<2x2x128xf32, #tpu.memory_space<vmem>>, vector<1x2x128xf32>
    %579 = vector.shape_cast %578 : vector<1x2x128xf32> to vector<2x128xf32>
    %580 = vector.shape_cast %577 : vector<2x128xf32> to vector<1x2x128xf32>
    tpu.vector_store %arg13[%c0_269, %c0_270, %c0_271], %580 {strides = array<i32>} : memref<2x2x128xf32, #tpu.memory_space<vmem>>, vector<1x2x128xf32>,
    %c1_272 = arith.constant 1 : index
    %c0_273 = arith.constant 0 : index
    %c0_274 = arith.constant 0 : index
    %581 = vector.load %arg13[%c1_272, %c0_273, %c0_274] : memref<2x2x128xf32, #tpu.memory_space<vmem>>, vector<1x2x128xf32>
    %582 = vector.shape_cast %581 : vector<1x2x128xf32> to vector<2x128xf32>
    %c0_275 = arith.constant 0 : index
    %c0_276 = arith.constant 0 : index
    %583 = vector.load %arg7[%c0_275, %c0_276] : memref<128x384xf32, #tpu.memory_space<vmem>>, vector<128x384xf32>
    %cst_277 = arith.constant dense<0.000000e+00> : vector<2x384xf32>
    %584 = tpu.matmul %577, %583, %cst_277 {dimension_numbers = #tpu.dot_dimension_numbers<[1], [0], [0], [1], [0, 0, 1, 1], [], []>} : vector<2x128xf32>, vector<128x384xf32>, vector<2x384xf32> -> vector<2x384xf32>
    %c0_278 = arith.constant 0 : index
    %c0_279 = arith.constant 0 : index
    %585 = vector.load %arg9[%c0_278, %c0_279] : memref<1x384xf32, #tpu.memory_space<vmem>>, vector<1x384xf32>
    %586 = vector.broadcast %585 : vector<1x384xf32> to vector<2x384xf32>
    %587 = arith.addf %584, %586 : vector<2x384xf32>
    %c0_280 = arith.constant 0 : index
    %c0_281 = arith.constant 0 : index
    %588 = vector.load %arg8[%c0_280, %c0_281] : memref<128x384xf32, #tpu.memory_space<vmem>>, vector<128x384xf32>
    %cst_282 = arith.constant dense<0.000000e+00> : vector<2x384xf32>
    %589 = tpu.matmul %582, %588, %cst_282 {dimension_numbers = #tpu.dot_dimension_numbers<[1], [0], [0], [1], [0, 0, 1, 1], [], []>} : vector<2x128xf32>, vector<128x384xf32>, vector<2x384xf32> -> vector<2x384xf32>
    %590 = vector.extract_strided_slice %587 {offsets = [0, 0], sizes = [2, 128], strides = [1, 1]} : vector<2x384xf32> to vector<2x128xf32>
    %591 = vector.extract_strided_slice %589 {offsets = [0, 0], sizes = [2, 128], strides = [1, 1]} : vector<2x384xf32> to vector<2x128xf32>
    %592 = arith.addf %590, %591 : vector<2x128xf32>
    %593 = arith.negf %592 : vector<2x128xf32>
    %594 = math.exp %593 : vector<2x128xf32>
    %cst_283 = arith.constant 1.000000e+00 : f32
    %595 = vector.broadcast %cst_283 : f32 to vector<2x128xf32>
    %596 = arith.addf %595, %594 : vector<2x128xf32>
    %597 = arith.divf %595, %596 : vector<2x128xf32>
    %598 = vector.extract_strided_slice %587 {offsets = [0, 128], sizes = [2, 128], strides = [1, 1]} : vector<2x384xf32> to vector<2x128xf32>
    %599 = vector.extract_strided_slice %589 {offsets = [0, 128], sizes = [2, 128], strides = [1, 1]} : vector<2x384xf32> to vector<2x128xf32>
    %600 = arith.addf %598, %599 : vector<2x128xf32>
    %601 = arith.negf %600 : vector<2x128xf32>
    %602 = math.exp %601 : vector<2x128xf32>
    %cst_284 = arith.constant 1.000000e+00 : f32
    %603 = vector.broadcast %cst_284 : f32 to vector<2x128xf32>
    %604 = arith.addf %603, %602 : vector<2x128xf32>
    %605 = arith.divf %603, %604 : vector<2x128xf32>
    %606 = vector.extract_strided_slice %587 {offsets = [0, 256], sizes = [2, 128], strides = [1, 1]} : vector<2x384xf32> to vector<2x128xf32>
    %607 = vector.extract_strided_slice %589 {offsets = [0, 256], sizes = [2, 128], strides = [1, 1]} : vector<2x384xf32> to vector<2x128xf32>
    %c0_285 = arith.constant 0 : index
    %c0_286 = arith.constant 0 : index
    %608 = vector.load %arg10[%c0_285, %c0_286] : memref<1x128xf32, #tpu.memory_space<vmem>>, vector<1x128xf32>
    %609 = vector.broadcast %608 : vector<1x128xf32> to vector<2x128xf32>
    %610 = arith.addf %607, %609 : vector<2x128xf32>
    %611 = arith.mulf %597, %610 : vector<2x128xf32>
    %612 = arith.addf %606, %611 : vector<2x128xf32>
    %613 = math.tanh %612 : vector<2x128xf32>
    %cst_287 = arith.constant 1.000000e+00 : f32
    %614 = vector.broadcast %cst_287 : f32 to vector<2x128xf32>
    %615 = arith.subf %614, %605 : vector<2x128xf32>
    %616 = arith.mulf %615, %613 : vector<2x128xf32>
    %617 = arith.mulf %605, %582 : vector<2x128xf32>
    %618 = arith.addf %616, %617 : vector<2x128xf32>
    %c1_288 = arith.constant 1 : index
    %c0_289 = arith.constant 0 : index
    %c0_290 = arith.constant 0 : index
    %619 = vector.load %arg13[%c1_288, %c0_289, %c0_290] : memref<2x2x128xf32, #tpu.memory_space<vmem>>, vector<1x2x128xf32>
    %620 = vector.shape_cast %619 : vector<1x2x128xf32> to vector<2x128xf32>
    %621 = vector.shape_cast %618 : vector<2x128xf32> to vector<1x2x128xf32>
    tpu.vector_store %arg13[%c1_288, %c0_289, %c0_290], %621 {strides = array<i32>} : memref<2x2x128xf32, #tpu.memory_space<vmem>>, vector<1x2x128xf32>,
    %622 = arith.index_cast %c6_i32 : i32 to index
    %c0_291 = arith.constant 0 : index
    %c0_292 = arith.constant 0 : index
    %623 = vector.load %arg11[%622, %c0_291, %c0_292] : memref<8x2x128xf32, #tpu.memory_space<vmem>>, vector<1x2x128xf32>
    %624 = vector.shape_cast %623 : vector<1x2x128xf32> to vector<2x128xf32>
    %625 = vector.shape_cast %618 : vector<2x128xf32> to vector<1x2x128xf32>
    tpu.vector_store %arg11[%622, %c0_291, %c0_292], %625 {strides = array<i32>} : memref<8x2x128xf32, #tpu.memory_space<vmem>>, vector<1x2x128xf32>,
    %c7_i32 = arith.constant 7 : i32
    %626 = arith.index_cast %c7_i32 : i32 to index
    %c0_293 = arith.constant 0 : index
    %c0_294 = arith.constant 0 : index
    %627 = vector.load %arg1[%626, %c0_293, %c0_294] : memref<8x2x128xf32, #tpu.memory_space<vmem>>, vector<1x2x128xf32>
    %628 = vector.shape_cast %627 : vector<1x2x128xf32> to vector<2x128xf32>
    %c0_295 = arith.constant 0 : index
    %c0_296 = arith.constant 0 : index
    %c0_297 = arith.constant 0 : index
    %629 = vector.load %arg13[%c0_295, %c0_296, %c0_297] : memref<2x2x128xf32, #tpu.memory_space<vmem>>, vector<1x2x128xf32>
    %630 = vector.shape_cast %629 : vector<1x2x128xf32> to vector<2x128xf32>
    %c0_298 = arith.constant 0 : index
    %c0_299 = arith.constant 0 : index
    %631 = vector.load %arg3[%c0_298, %c0_299] : memref<128x384xf32, #tpu.memory_space<vmem>>, vector<128x384xf32>
    %cst_300 = arith.constant dense<0.000000e+00> : vector<2x384xf32>
    %632 = tpu.matmul %628, %631, %cst_300 {dimension_numbers = #tpu.dot_dimension_numbers<[1], [0], [0], [1], [0, 0, 1, 1], [], []>} : vector<2x128xf32>, vector<128x384xf32>, vector<2x384xf32> -> vector<2x384xf32>
    %c0_301 = arith.constant 0 : index
    %c0_302 = arith.constant 0 : index
    %633 = vector.load %arg5[%c0_301, %c0_302] : memref<1x384xf32, #tpu.memory_space<vmem>>, vector<1x384xf32>
    %634 = vector.broadcast %633 : vector<1x384xf32> to vector<2x384xf32>
    %635 = arith.addf %632, %634 : vector<2x384xf32>
    %c0_303 = arith.constant 0 : index
    %c0_304 = arith.constant 0 : index
    %636 = vector.load %arg4[%c0_303, %c0_304] : memref<128x384xf32, #tpu.memory_space<vmem>>, vector<128x384xf32>
    %cst_305 = arith.constant dense<0.000000e+00> : vector<2x384xf32>
    %637 = tpu.matmul %630, %636, %cst_305 {dimension_numbers = #tpu.dot_dimension_numbers<[1], [0], [0], [1], [0, 0, 1, 1], [], []>} : vector<2x128xf32>, vector<128x384xf32>, vector<2x384xf32> -> vector<2x384xf32>
    %638 = vector.extract_strided_slice %635 {offsets = [0, 0], sizes = [2, 128], strides = [1, 1]} : vector<2x384xf32> to vector<2x128xf32>
    %639 = vector.extract_strided_slice %637 {offsets = [0, 0], sizes = [2, 128], strides = [1, 1]} : vector<2x384xf32> to vector<2x128xf32>
    %640 = arith.addf %638, %639 : vector<2x128xf32>
    %641 = arith.negf %640 : vector<2x128xf32>
    %642 = math.exp %641 : vector<2x128xf32>
    %cst_306 = arith.constant 1.000000e+00 : f32
    %643 = vector.broadcast %cst_306 : f32 to vector<2x128xf32>
    %644 = arith.addf %643, %642 : vector<2x128xf32>
    %645 = arith.divf %643, %644 : vector<2x128xf32>
    %646 = vector.extract_strided_slice %635 {offsets = [0, 128], sizes = [2, 128], strides = [1, 1]} : vector<2x384xf32> to vector<2x128xf32>
    %647 = vector.extract_strided_slice %637 {offsets = [0, 128], sizes = [2, 128], strides = [1, 1]} : vector<2x384xf32> to vector<2x128xf32>
    %648 = arith.addf %646, %647 : vector<2x128xf32>
    %649 = arith.negf %648 : vector<2x128xf32>
    %650 = math.exp %649 : vector<2x128xf32>
    %cst_307 = arith.constant 1.000000e+00 : f32
    %651 = vector.broadcast %cst_307 : f32 to vector<2x128xf32>
    %652 = arith.addf %651, %650 : vector<2x128xf32>
    %653 = arith.divf %651, %652 : vector<2x128xf32>
    %654 = vector.extract_strided_slice %635 {offsets = [0, 256], sizes = [2, 128], strides = [1, 1]} : vector<2x384xf32> to vector<2x128xf32>
    %655 = vector.extract_strided_slice %637 {offsets = [0, 256], sizes = [2, 128], strides = [1, 1]} : vector<2x384xf32> to vector<2x128xf32>
    %c0_308 = arith.constant 0 : index
    %c0_309 = arith.constant 0 : index
    %656 = vector.load %arg6[%c0_308, %c0_309] : memref<1x128xf32, #tpu.memory_space<vmem>>, vector<1x128xf32>
    %657 = vector.broadcast %656 : vector<1x128xf32> to vector<2x128xf32>
    %658 = arith.addf %655, %657 : vector<2x128xf32>
    %659 = arith.mulf %645, %658 : vector<2x128xf32>
    %660 = arith.addf %654, %659 : vector<2x128xf32>
    %661 = math.tanh %660 : vector<2x128xf32>
    %cst_310 = arith.constant 1.000000e+00 : f32
    %662 = vector.broadcast %cst_310 : f32 to vector<2x128xf32>
    %663 = arith.subf %662, %653 : vector<2x128xf32>
    %664 = arith.mulf %663, %661 : vector<2x128xf32>
    %665 = arith.mulf %653, %630 : vector<2x128xf32>
    %666 = arith.addf %664, %665 : vector<2x128xf32>
    %c0_311 = arith.constant 0 : index
    %c0_312 = arith.constant 0 : index
    %c0_313 = arith.constant 0 : index
    %667 = vector.load %arg13[%c0_311, %c0_312, %c0_313] : memref<2x2x128xf32, #tpu.memory_space<vmem>>, vector<1x2x128xf32>
    %668 = vector.shape_cast %667 : vector<1x2x128xf32> to vector<2x128xf32>
    %669 = vector.shape_cast %666 : vector<2x128xf32> to vector<1x2x128xf32>
    tpu.vector_store %arg13[%c0_311, %c0_312, %c0_313], %669 {strides = array<i32>} : memref<2x2x128xf32, #tpu.memory_space<vmem>>, vector<1x2x128xf32>,
    %c1_314 = arith.constant 1 : index
    %c0_315 = arith.constant 0 : index
    %c0_316 = arith.constant 0 : index
    %670 = vector.load %arg13[%c1_314, %c0_315, %c0_316] : memref<2x2x128xf32, #tpu.memory_space<vmem>>, vector<1x2x128xf32>
    %671 = vector.shape_cast %670 : vector<1x2x128xf32> to vector<2x128xf32>
    %c0_317 = arith.constant 0 : index
    %c0_318 = arith.constant 0 : index
    %672 = vector.load %arg7[%c0_317, %c0_318] : memref<128x384xf32, #tpu.memory_space<vmem>>, vector<128x384xf32>
    %cst_319 = arith.constant dense<0.000000e+00> : vector<2x384xf32>
    %673 = tpu.matmul %666, %672, %cst_319 {dimension_numbers = #tpu.dot_dimension_numbers<[1], [0], [0], [1], [0, 0, 1, 1], [], []>} : vector<2x128xf32>, vector<128x384xf32>, vector<2x384xf32> -> vector<2x384xf32>
    %c0_320 = arith.constant 0 : index
    %c0_321 = arith.constant 0 : index
    %674 = vector.load %arg9[%c0_320, %c0_321] : memref<1x384xf32, #tpu.memory_space<vmem>>, vector<1x384xf32>
    %675 = vector.broadcast %674 : vector<1x384xf32> to vector<2x384xf32>
    %676 = arith.addf %673, %675 : vector<2x384xf32>
    %c0_322 = arith.constant 0 : index
    %c0_323 = arith.constant 0 : index
    %677 = vector.load %arg8[%c0_322, %c0_323] : memref<128x384xf32, #tpu.memory_space<vmem>>, vector<128x384xf32>
    %cst_324 = arith.constant dense<0.000000e+00> : vector<2x384xf32>
    %678 = tpu.matmul %671, %677, %cst_324 {dimension_numbers = #tpu.dot_dimension_numbers<[1], [0], [0], [1], [0, 0, 1, 1], [], []>} : vector<2x128xf32>, vector<128x384xf32>, vector<2x384xf32> -> vector<2x384xf32>
    %679 = vector.extract_strided_slice %676 {offsets = [0, 0], sizes = [2, 128], strides = [1, 1]} : vector<2x384xf32> to vector<2x128xf32>
    %680 = vector.extract_strided_slice %678 {offsets = [0, 0], sizes = [2, 128], strides = [1, 1]} : vector<2x384xf32> to vector<2x128xf32>
    %681 = arith.addf %679, %680 : vector<2x128xf32>
    %682 = arith.negf %681 : vector<2x128xf32>
    %683 = math.exp %682 : vector<2x128xf32>
    %cst_325 = arith.constant 1.000000e+00 : f32
    %684 = vector.broadcast %cst_325 : f32 to vector<2x128xf32>
    %685 = arith.addf %684, %683 : vector<2x128xf32>
    %686 = arith.divf %684, %685 : vector<2x128xf32>
    %687 = vector.extract_strided_slice %676 {offsets = [0, 128], sizes = [2, 128], strides = [1, 1]} : vector<2x384xf32> to vector<2x128xf32>
    %688 = vector.extract_strided_slice %678 {offsets = [0, 128], sizes = [2, 128], strides = [1, 1]} : vector<2x384xf32> to vector<2x128xf32>
    %689 = arith.addf %687, %688 : vector<2x128xf32>
    %690 = arith.negf %689 : vector<2x128xf32>
    %691 = math.exp %690 : vector<2x128xf32>
    %cst_326 = arith.constant 1.000000e+00 : f32
    %692 = vector.broadcast %cst_326 : f32 to vector<2x128xf32>
    %693 = arith.addf %692, %691 : vector<2x128xf32>
    %694 = arith.divf %692, %693 : vector<2x128xf32>
    %695 = vector.extract_strided_slice %676 {offsets = [0, 256], sizes = [2, 128], strides = [1, 1]} : vector<2x384xf32> to vector<2x128xf32>
    %696 = vector.extract_strided_slice %678 {offsets = [0, 256], sizes = [2, 128], strides = [1, 1]} : vector<2x384xf32> to vector<2x128xf32>
    %c0_327 = arith.constant 0 : index
    %c0_328 = arith.constant 0 : index
    %697 = vector.load %arg10[%c0_327, %c0_328] : memref<1x128xf32, #tpu.memory_space<vmem>>, vector<1x128xf32>
    %698 = vector.broadcast %697 : vector<1x128xf32> to vector<2x128xf32>
    %699 = arith.addf %696, %698 : vector<2x128xf32>
    %700 = arith.mulf %686, %699 : vector<2x128xf32>
    %701 = arith.addf %695, %700 : vector<2x128xf32>
    %702 = math.tanh %701 : vector<2x128xf32>
    %cst_329 = arith.constant 1.000000e+00 : f32
    %703 = vector.broadcast %cst_329 : f32 to vector<2x128xf32>
    %704 = arith.subf %703, %694 : vector<2x128xf32>
    %705 = arith.mulf %704, %702 : vector<2x128xf32>
    %706 = arith.mulf %694, %671 : vector<2x128xf32>
    %707 = arith.addf %705, %706 : vector<2x128xf32>
    %c1_330 = arith.constant 1 : index
    %c0_331 = arith.constant 0 : index
    %c0_332 = arith.constant 0 : index
    %708 = vector.load %arg13[%c1_330, %c0_331, %c0_332] : memref<2x2x128xf32, #tpu.memory_space<vmem>>, vector<1x2x128xf32>
    %709 = vector.shape_cast %708 : vector<1x2x128xf32> to vector<2x128xf32>
    %710 = vector.shape_cast %707 : vector<2x128xf32> to vector<1x2x128xf32>
    tpu.vector_store %arg13[%c1_330, %c0_331, %c0_332], %710 {strides = array<i32>} : memref<2x2x128xf32, #tpu.memory_space<vmem>>, vector<1x2x128xf32>,
    %711 = arith.index_cast %c7_i32 : i32 to index
    %c0_333 = arith.constant 0 : index
    %c0_334 = arith.constant 0 : index
    %712 = vector.load %arg11[%711, %c0_333, %c0_334] : memref<8x2x128xf32, #tpu.memory_space<vmem>>, vector<1x2x128xf32>
    %713 = vector.shape_cast %712 : vector<1x2x128xf32> to vector<2x128xf32>
    %714 = vector.shape_cast %707 : vector<2x128xf32> to vector<1x2x128xf32>
    tpu.vector_store %arg11[%711, %c0_333, %c0_334], %714 {strides = array<i32>} : memref<8x2x128xf32, #tpu.memory_space<vmem>>, vector<1x2x128xf32>,
    %c8_i32 = arith.constant 8 : i32
    %c0_335 = arith.constant 0 : index
    %c0_336 = arith.constant 0 : index
    %c0_337 = arith.constant 0 : index
    %715 = vector.load %arg13[%c0_335, %c0_336, %c0_337] : memref<2x2x128xf32, #tpu.memory_space<vmem>>, vector<2x2x128xf32>
    %c0_338 = arith.constant 0 : index
    %c0_339 = arith.constant 0 : index
    %c0_340 = arith.constant 0 : index
    %716 = vector.load %arg12[%c0_338, %c0_339, %c0_340] : memref<2x2x128xf32, #tpu.memory_space<vmem>>, vector<2x2x128xf32>
    tpu.vector_store %arg12[%c0_338, %c0_339, %c0_340], %715 {strides = array<i32>} : memref<2x2x128xf32, #tpu.memory_space<vmem>>, vector<2x2x128xf32>,
    return
  }
  func.func @transform_0(%arg0: i32) -> (i32, i32, i32) {
    %c0_i32 = arith.constant 0 : i32
    %c0_i32_0 = arith.constant 0 : i32
    %c0_i32_1 = arith.constant 0 : i32
    return %arg0, %c0_i32, %c0_i32_0 : i32, i32, i32
  }
  func.func @transform_1(%arg0: i32) -> (i32, i32, i32) {
    %c0_i32 = arith.constant 0 : i32
    %c0_i32_0 = arith.constant 0 : i32
    %c0_i32_1 = arith.constant 0 : i32
    %c0_i32_2 = arith.constant 0 : i32
    return %c0_i32, %c0_i32_0, %c0_i32_1 : i32, i32, i32
  }
  func.func @transform_2(%arg0: i32) -> (i32, i32) {
    %c0_i32 = arith.constant 0 : i32
    %c0_i32_0 = arith.constant 0 : i32
    %c0_i32_1 = arith.constant 0 : i32
    return %c0_i32, %c0_i32_0 : i32, i32
  }
  func.func @transform_3(%arg0: i32) -> (i32, i32) {
    %c0_i32 = arith.constant 0 : i32
    %c0_i32_0 = arith.constant 0 : i32
    %c0_i32_1 = arith.constant 0 : i32
    return %c0_i32, %c0_i32_0 : i32, i32
  }
  func.func @transform_4(%arg0: i32) -> (i32, i32) {
    %c0_i32 = arith.constant 0 : i32
    %c0_i32_0 = arith.constant 0 : i32
    %c0_i32_1 = arith.constant 0 : i32
    return %c0_i32, %c0_i32_0 : i32, i32
  }
  func.func @transform_5(%arg0: i32) -> (i32, i32) {
    %c0_i32 = arith.constant 0 : i32
    %c0_i32_0 = arith.constant 0 : i32
    %c0_i32_1 = arith.constant 0 : i32
    return %c0_i32, %c0_i32_0 : i32, i32
  }
  func.func @transform_6(%arg0: i32) -> (i32, i32) {
    %c0_i32 = arith.constant 0 : i32
    %c0_i32_0 = arith.constant 0 : i32
    %c0_i32_1 = arith.constant 0 : i32
    return %c0_i32, %c0_i32_0 : i32, i32
  }
  func.func @transform_7(%arg0: i32) -> (i32, i32) {
    %c0_i32 = arith.constant 0 : i32
    %c0_i32_0 = arith.constant 0 : i32
    %c0_i32_1 = arith.constant 0 : i32
    return %c0_i32, %c0_i32_0 : i32, i32
  }
  func.func @transform_8(%arg0: i32) -> (i32, i32) {
    %c0_i32 = arith.constant 0 : i32
    %c0_i32_0 = arith.constant 0 : i32
    %c0_i32_1 = arith.constant 0 : i32
    return %c0_i32, %c0_i32_0 : i32, i32
  }
  func.func @transform_9(%arg0: i32) -> (i32, i32) {
    %c0_i32 = arith.constant 0 : i32
    %c0_i32_0 = arith.constant 0 : i32
    %c0_i32_1 = arith.constant 0 : i32
    return %c0_i32, %c0_i32_0 : i32, i32
  }
  func.func @transform_10(%arg0: i32) -> (i32, i32, i32) {
    %c0_i32 = arith.constant 0 : i32
    %c0_i32_0 = arith.constant 0 : i32
    %c0_i32_1 = arith.constant 0 : i32
    return %arg0, %c0_i32, %c0_i32_0 : i32, i32, i32
  }
  func.func @transform_11(%arg0: i32) -> (i32, i32, i32) {
    %c0_i32 = arith.constant 0 : i32
    %c0_i32_0 = arith.constant 0 : i32
    %c0_i32_1 = arith.constant 0 : i32
    %c0_i32_2 = arith.constant 0 : i32
    return %c0_i32, %c0_i32_0, %c0_i32_1 : i32, i32, i32
  }
}

</mosaic_0001>

<llo_original>
// kernel: _decoder_forward_impl.1
$region0: #{_decoder_forward_impl.1}
  #allocation0 [shape = 'u32[]', space=smem, size = 0x4, offset = 0x4, fixed_abs, tag = 'smem constant byte address 0x4 - core index']
  #allocation1 [shape = 'u32[144,128]{1,0:T(1,128)}', space=vmem, size = 0x12000, scoped, tag = 'internal scratch']
  #allocation2 [shape = 'f32[2,2,128]{2,1,0:T(2,128)}', space=vmem, size = 0x800, scoped, tag = 'scratch operand']
  %s0 = inlined_call_operand.vmem [shape: f32[8,2,128], index: 0, kind: input, shape index: {}]
  %s1 = inlined_call_operand.vmem [shape: f32[2,2,128], index: 1, kind: input, shape index: {}]
  %s2 = inlined_call_operand.hbm [shape: f32[128,384], index: 2, kind: input, shape index: {}]
  %s3 = inlined_call_operand.hbm [shape: f32[128,384], index: 3, kind: input, shape index: {}]
  %s4 = inlined_call_operand.vmem [shape: f32[1,384], index: 4, kind: input, shape index: {}]
  %s5 = inlined_call_operand.vmem [shape: f32[1,128], index: 5, kind: input, shape index: {}]
  %s6 = inlined_call_operand.hbm [shape: f32[128,384], index: 6, kind: input, shape index: {}]
  %s7 = inlined_call_operand.hbm [shape: f32[128,384], index: 7, kind: input, shape index: {}]
  %s8 = inlined_call_operand.vmem [shape: f32[1,384], index: 8, kind: input, shape index: {}]
  %s9 = inlined_call_operand.vmem [shape: f32[1,128], index: 9, kind: input, shape index: {}]
  %s10 = inlined_call_operand.vmem [shape: f32[8,2,128], index: 10, kind: output, shape index: {0}]
  %s11 = inlined_call_operand.hbm [shape: f32[2,2,128], index: 11, kind: output, shape index: {1}]
  %12 = xla_tuple %s10, %s11
  %s13 = sld [smem:[#allocation0]]
  $region78: #{_decoder_forward_impl.1} parent=0
    _
  %s15 = ssub.s32 1, %s13
  %s16 = scalar_select 0, %s15, %s13
  $region1: #{_decoder_forward_impl.1} parent=0
    #allocation3 [shape = 'u8[196608]{0}', space=vmem, size = 0x30000, scoped, tag = 'input window, operand 2, single buffered']
    #allocation4 [shape = 's32[1]{0}', space=sflag, size = 0x4, scoped, tag = 'scoped memory for _decoder_forward_impl.1']
    #allocation5 [shape = 's32[1]{0}', space=sflag, size = 0x4, scoped, tag = 'scoped memory for _decoder_forward_impl.1']
    #allocation6 [shape = 'u8[196608]{0}', space=vmem, size = 0x30000, scoped, tag = 'input window, operand 3, single buffered']
    #allocation7 [shape = 's32[1]{0}', space=sflag, size = 0x4, scoped, tag = 'scoped memory for _decoder_forward_impl.1']
    #allocation8 [shape = 'u8[196608]{0}', space=vmem, size = 0x30000, scoped, tag = 'input window, operand 6, single buffered']
    #allocation9 [shape = 'u8[196608]{0}', space=vmem, size = 0x30000, scoped, tag = 'input window, operand 7, single buffered']
    #allocation10 [shape = 's32[1]{0}', space=sflag, size = 0x4, scoped, tag = 'scoped memory for _decoder_forward_impl.1']
    #allocation11 [shape = 'u8[2048]{0}', space=vmem, size = 0x800, scoped, tag = 'output window, operand 1, single buffered']
    %17 = vsyncpa [#allocation4], 0
    %18 = vsyncpa [#allocation7], 0
    %19 = vsyncpa [#allocation10], 0
    %20 = vsyncpa [#allocation5], 0
    // Predicated region
    $region2: #{_decoder_forward_impl.1} parent=1 // pred_check
      _
    $region3: #{_decoder_forward_impl.1} parent=1 // pred_check_branch
      %22 = sbr.rel (0) target = $region5
    $region4: #{_decoder_forward_impl.1} parent=1 // pred_region
      _
    $region5: #{_decoder_forward_impl.1} parent=1 // pred_fallthru
      _
    // Predicated region
    $region6: #{_decoder_forward_impl.1} parent=1 // pred_check
      _
    $region7: #{_decoder_forward_impl.1} parent=1 // pred_check_branch
      %24 = sbr.rel (0) target = $region9
    $region8: #{_decoder_forward_impl.1} parent=1 // pred_region
      _
    $region9: #{_decoder_forward_impl.1} parent=1 // pred_fallthru
      _
    // Predicated region
    $region10: #{_decoder_forward_impl.1} parent=1 // pred_check
      _
    $region11: #{_decoder_forward_impl.1} parent=1 // pred_check_branch
      %26 = sbr.rel (0) target = $region13
    $region12: #{_decoder_forward_impl.1} parent=1 // pred_region
      %s28 = ssub.s32 6144, 6144
      %29 = vsyncadd [#allocation4], %s28
      %s30 = sshll.u32 [#allocation3], 4
      %s31 = int_to_ptr.vmem [resolvable:$true] %s30
      %36 = dma.hbm_to_vmem [thread:$0]  %s2, 6144, %s31, [#allocation4], 384, 384, 24
    $region13: #{_decoder_forward_impl.1} parent=1 // pred_fallthru
      _
    // Predicated region
    $region14: #{_decoder_forward_impl.1} parent=1 // pred_check
      _
    $region15: #{_decoder_forward_impl.1} parent=1 // pred_check_branch
      %38 = sbr.rel (0) target = $region17
    $region16: #{_decoder_forward_impl.1} parent=1 // pred_region
      %s40 = ssub.s32 6144, 6144
      %41 = vsyncadd [#allocation7], %s40
      %s42 = sshll.u32 [#allocation6], 4
      %s43 = int_to_ptr.vmem [resolvable:$true] %s42
      %48 = dma.hbm_to_vmem [thread:$0]  %s3, 6144, %s43, [#allocation7], 384, 384, 24
    $region17: #{_decoder_forward_impl.1} parent=1 // pred_fallthru
      _
    // Predicated region
    $region18: #{_decoder_forward_impl.1} parent=1 // pred_check
      _
    $region19: #{_decoder_forward_impl.1} parent=1 // pred_check_branch
      %50 = sbr.rel (0) target = $region21
    $region20: #{_decoder_forward_impl.1} parent=1 // pred_region
      _
    $region21: #{_decoder_forward_impl.1} parent=1 // pred_fallthru
      _
    // Predicated region
    $region22: #{_decoder_forward_impl.1} parent=1 // pred_check
      _
    $region23: #{_decoder_forward_impl.1} parent=1 // pred_check_branch
      %52 = sbr.rel (0) target = $region25
    $region24: #{_decoder_forward_impl.1} parent=1 // pred_region
      _
    $region25: #{_decoder_forward_impl.1} parent=1 // pred_fallthru
      _
    // Predicated region
    $region26: #{_decoder_forward_impl.1} parent=1 // pred_check
      _
    $region27: #{_decoder_forward_impl.1} parent=1 // pred_check_branch
      %54 = sbr.rel (0) target = $region29
    $region28: #{_decoder_forward_impl.1} parent=1 // pred_region
      %s56 = ssub.s32 6144, 6144
      %57 = vsyncadd [#allocation7], %s56
      %s58 = sshll.u32 [#allocation8], 4
      %s59 = int_to_ptr.vmem [resolvable:$true] %s58
      %64 = dma.hbm_to_vmem [thread:$0]  %s6, 6144, %s59, [#allocation7], 384, 384, 24
    $region29: #{_decoder_forward_impl.1} parent=1 // pred_fallthru
      _
    // Predicated region
    $region30: #{_decoder_forward_impl.1} parent=1 // pred_check
      _
    $region31: #{_decoder_forward_impl.1} parent=1 // pred_check_branch
      %66 = sbr.rel (0) target = $region33
    $region32: #{_decoder_forward_impl.1} parent=1 // pred_region
      %s68 = ssub.s32 6144, 6144
      %69 = vsyncadd [#allocation10], %s68
      %s70 = sshll.u32 [#allocation9], 4
      %s71 = int_to_ptr.vmem [resolvable:$true] %s70
      %76 = dma.hbm_to_vmem [thread:$0]  %s7, 6144, %s71, [#allocation10], 384, 384, 24
    $region33: #{_decoder_forward_impl.1} parent=1 // pred_fallthru
      _
    // Predicated region
    $region34: #{_decoder_forward_impl.1} parent=1 // pred_check
      _
    $region35: #{_decoder_forward_impl.1} parent=1 // pred_check_branch
      %78 = sbr.rel (0) target = $region37
    $region36: #{_decoder_forward_impl.1} parent=1 // pred_region
      _
    $region37: #{_decoder_forward_impl.1} parent=1 // pred_fallthru
      _
    // Predicated region
    $region38: #{_decoder_forward_impl.1} parent=1 // pred_check
      _
    $region39: #{_decoder_forward_impl.1} parent=1 // pred_check_branch
      %80 = sbr.rel (0) target = $region41
    $region40: #{_decoder_forward_impl.1} parent=1 // pred_region
      _
    $region41: #{_decoder_forward_impl.1} parent=1 // pred_fallthru
      _
    // Predicated region
    $region42: #{_decoder_forward_impl.1} parent=1 // pred_check
      _
    $region43: #{_decoder_forward_impl.1} parent=1 // pred_check_branch
      %82 = sbr.rel (0) target = $region45
    $region44: #{_decoder_forward_impl.1} parent=1 // pred_region
      %83 = dma.done [#allocation4], 6144
    $region45: #{_decoder_forward_impl.1} parent=1 // pred_fallthru
      _
    // Predicated region
    $region46: #{_decoder_forward_impl.1} parent=1 // pred_check
      _
    $region47: #{_decoder_forward_impl.1} parent=1 // pred_check_branch
      %85 = sbr.rel (0) target = $region49
    $region48: #{_decoder_forward_impl.1} parent=1 // pred_region
      %86 = dma.done [#allocation7], 6144
    $region49: #{_decoder_forward_impl.1} parent=1 // pred_fallthru
      _
    // Predicated region
    $region50: #{_decoder_forward_impl.1} parent=1 // pred_check
      _
    $region51: #{_decoder_forward_impl.1} parent=1 // pred_check_branch
      %88 = sbr.rel (0) target = $region53
    $region52: #{_decoder_forward_impl.1} parent=1 // pred_region
      %89 = dma.done [#allocation7], 6144
    $region53: #{_decoder_forward_impl.1} parent=1 // pred_fallthru
      _
    // Predicated region
    $region54: #{_decoder_forward_impl.1} parent=1 // pred_check
      _
    $region55: #{_decoder_forward_impl.1} parent=1 // pred_check_branch
      %91 = sbr.rel (0) target = $region57
    $region56: #{_decoder_forward_impl.1} parent=1 // pred_region
      %92 = dma.done [#allocation10], 6144
    $region57: #{_decoder_forward_impl.1} parent=1 // pred_fallthru
      _
    %p93 = scmp.eq.s32.totalorder 0, 0
    // Predicated region
    $region58: #{_decoder_forward_impl.1} parent=1 // pred_check
      %p94 = pneg %p93
    $region59: #{_decoder_forward_impl.1} parent=1 // pred_check_branch
      %96 = sbr.rel (%p94) target = $region61
    $region60: #{_decoder_forward_impl.1} parent=1 // pred_region
      %v97 = vld [vmem:[%s1] sm:$0x3]
      %v98 = vld [vmem:[%s1 + $0x2] sm:$0x3]
      %99 = vst [vmem:[#allocation2] sm:$0x3] %v97
      %100 = vst [vmem:[#allocation2 + $0x2] sm:$0x3] %v98
    $region61: #{_decoder_forward_impl.1} parent=1 // pred_fallthru
      _
    %v101 = vld [vmem:[%s0] sm:$0x3]
    %v102 = vld [vmem:[#allocation2] sm:$0x3]
    %v103 = vld [vmem:[#allocation3] sm:$0xff]
    %v104 = vld [vmem:[#allocation3 + $0x8] sm:$0xff]
    %v105 = vld [vmem:[#allocation3 + $0x10] sm:$0xff]
    %v106 = vld [vmem:[#allocation3 + $0x18] sm:$0xff]
    %v107 = vld [vmem:[#allocation3 + $0x20] sm:$0xff]
    %v108 = vld [vmem:[#allocation3 + $0x28] sm:$0xff]
    %v109 = vld [vmem:[#allocation3 + $0x30] sm:$0xff]
    %v110 = vld [vmem:[#allocation3 + $0x38] sm:$0xff]
    %v111 = vld [vmem:[#allocation3 + $0x40] sm:$0xff]
    %v112 = vld [vmem:[#allocation3 + $0x48] sm:$0xff]
    %v113 = vld [vmem:[#allocation3 + $0x50] sm:$0xff]
    %v114 = vld [vmem:[#allocation3 + $0x58] sm:$0xff]
    %v115 = vld [vmem:[#allocation3 + $0x60] sm:$0xff]
    %v116 = vld [vmem:[#allocation3 + $0x68] sm:$0xff]
    %v117 = vld [vmem:[#allocation3 + $0x70] sm:$0xff]
    %v118 = vld [vmem:[#allocation3 + $0x78] sm:$0xff]
    %v119 = vld [vmem:[#allocation3 + $0x80] sm:$0xff]
    %v120 = vld [vmem:[#allocation3 + $0x88] sm:$0xff]
    %v121 = vld [vmem:[#allocation3 + $0x90] sm:$0xff]
    %v122 = vld [vmem:[#allocation3 + $0x98] sm:$0xff]
    %v123 = vld [vmem:[#allocation3 + $0xa0] sm:$0xff]
    %v124 = vld [vmem:[#allocation3 + $0xa8] sm:$0xff]
    %v125 = vld [vmem:[#allocation3 + $0xb0] sm:$0xff]
    %v126 = vld [vmem:[#allocation3 + $0xb8] sm:$0xff]
    %v127 = vld [vmem:[#allocation3 + $0xc0] sm:$0xff]
    %v128 = vld [vmem:[#allocation3 + $0xc8] sm:$0xff]
    %v129 = vld [vmem:[#allocation3 + $0xd0] sm:$0xff]
    %v130 = vld [vmem:[#allocation3 + $0xd8] sm:$0xff]
    %v131 = vld [vmem:[#allocation3 + $0xe0] sm:$0xff]
    %v132 = vld [vmem:[#allocation3 + $0xe8] sm:$0xff]
    %v133 = vld [vmem:[#allocation3 + $0xf0] sm:$0xff]
    %v134 = vld [vmem:[#allocation3 + $0xf8] sm:$0xff]
    %v135 = vld [vmem:[#allocation3 + $0x100] sm:$0xff]
    %v136 = vld [vmem:[#allocation3 + $0x108] sm:$0xff]
    %v137 = vld [vmem:[#allocation3 + $0x110] sm:$0xff]
    %v138 = vld [vmem:[#allocation3 + $0x118] sm:$0xff]
    %v139 = vld [vmem:[#allocation3 + $0x120] sm:$0xff]
    %v140 = vld [vmem:[#allocation3 + $0x128] sm:$0xff]
    %v141 = vld [vmem:[#allocation3 + $0x130] sm:$0xff]
    %v142 = vld [vmem:[#allocation3 + $0x138] sm:$0xff]
    %v143 = vld [vmem:[#allocation3 + $0x140] sm:$0xff]
    %v144 = vld [vmem:[#allocation3 + $0x148] sm:$0xff]
    %v145 = vld [vmem:[#allocation3 + $0x150] sm:$0xff]
    %v146 = vld [vmem:[#allocation3 + $0x158] sm:$0xff]
    %v147 = vld [vmem:[#allocation3 + $0x160] sm:$0xff]
    %v148 = vld [vmem:[#allocation3 + $0x168] sm:$0xff]
    %v149 = vld [vmem:[#allocation3 + $0x170] sm:$0xff]
    %v150 = vld [vmem:[#allocation3 + $0x178] sm:$0xff]
    %v151 = vld [vmem:[%s4] sm:$0x7]
    %v153 = vlaneseq
    %v154 = vshrl.u32 %v153, 7
    %v155 = vsub.s32 0, %v154
    %v156 = vrot.slane %v151, %v155
    %v157 = vlaneseq
    %v158 = vshrl.u32 %v157, 7
    %v159 = vsub.s32 1, %v158
    %v160 = vrot.slane %v151, %v159
    %v161 = vlaneseq
    %v162 = vshrl.u32 %v161, 7
    %v163 = vsub.s32 2, %v162
    %v164 = vrot.slane %v151, %v163
    %168 = vmatprep.subr.mxu0 %v104
    %169 = vmatpush1.msra.mxu0 %v103
    %170 = vmatprep.subr.mxu0 %v107
    %171 = vmatpush1.msra.mxu0 %v106
    %172 = vmatprep.subr.mxu0 %v110
    %173 = vmatpush1.msra.mxu0 %v109
    %174 = vmatprep.subr.mxu0 %v113
    %175 = vmatpush1.msra.mxu0 %v112
    %176 = vmatprep.subr.mxu0 %v116
    %177 = vmatpush1.msra.mxu0 %v115
    %178 = vmatprep.subr.mxu0 %v119
    %179 = vmatpush1.msra.mxu0 %v118
    %180 = vmatprep.subr.mxu0 %v122
    %181 = vmatpush1.msra.mxu0 %v121
    %182 = vmatprep.subr.mxu0 %v125
    %183 = vmatpush1.msra.mxu0 %v124
    %184 = vmatprep.subr.mxu0 %v128
    %185 = vmatpush1.msra.mxu0 %v127
    %186 = vmatprep.subr.mxu0 %v131
    %187 = vmatpush1.msra.mxu0 %v130
    %188 = vmatprep.subr.mxu0 %v134
    %189 = vmatpush1.msra.mxu0 %v133
    %190 = vmatprep.subr.mxu0 %v137
    %191 = vmatpush1.msra.mxu0 %v136
    %192 = vmatprep.subr.mxu0 %v140
    %193 = vmatpush1.msra.mxu0 %v139
    %194 = vmatprep.subr.mxu0 %v143
    %195 = vmatpush1.msra.mxu0 %v142
    %196 = vmatprep.subr.mxu0 %v146
    %197 = vmatpush1.msra.mxu0 %v145
    %198 = vmatprep.subr.mxu0 %v149
    %199 = vmatpush1.msra.mxu0 %v148
    %200 = vmatprep.subr.mxu0 0.0
    %201 = vmatpush1.msra.mxu0 0.0
    %202 = vmatprep.subr.mxu0 0.0
    %203 = vmatpush1.msra.mxu0 0.0
    %204 = vmatprep.subr.mxu0 0.0
    %205 = vmatpush1.msra.mxu0 0.0
    %206 = vmatprep.subr.mxu0 0.0
    %207 = vmatpush1.msra.mxu0 0.0
    %208 = vmatprep.subr.mxu0 0.0
    %209 = vmatpush1.msra.mxu0 0.0
    %210 = vmatprep.subr.mxu0 0.0
    %211 = vmatpush1.msra.mxu0 0.0
    %212 = vmatprep.subr.mxu0 0.0
    %213 = vmatpush1.msra.mxu0 0.0
    %214 = vmatprep.subr.mxu0 0.0
    %215 = vmatpush1.msra.mxu0 0.0
    %216 = vmatprep.subr.mxu0 0.0
    %217 = vmatpush1.msra.mxu0 0.0
    %218 = vmatprep.subr.mxu0 0.0
    %219 = vmatpush1.msra.mxu0 0.0
    %220 = vmatprep.subr.mxu0 0.0
    %221 = vmatpush1.msra.mxu0 0.0
    %222 = vmatprep.subr.mxu0 0.0
    %223 = vmatpush1.msra.mxu0 0.0
    %224 = vmatprep.subr.mxu0 0.0
    %225 = vmatpush1.msra.mxu0 0.0
    %226 = vmatprep.subr.mxu0 0.0
    %227 = vmatpush1.msra.mxu0 0.0
    %228 = vmatprep.subr.mxu0 0.0
    %229 = vmatpush1.msra.mxu0 0.0
    %230 = vmatprep.subr.mxu0 0.0
    %231 = vmatpush1.msra.mxu0 0.0
    %232 = vmatprep.mubr.f32.mxu0 0.0
    %233 = vmatmul.mubr.f32.gmra.mrb[0].mxu0 %v101
    %v234 = vpop.f32.mrb[0].mxu0
    %v235 = vadd.f32 %v156, %v234
    %v236 = vpop.f32.mrb[0].mxu0
    %v237 = vadd.f32 %v160, %v236
    %238 = vdwg.mxu0
    %239 = vmatprep.subr.mxu0 0.0
    %240 = vmatpush1.msra.mxu0 %v105
    %241 = vmatprep.subr.mxu0 0.0
    %242 = vmatpush1.msra.mxu0 %v108
    %243 = vmatprep.subr.mxu0 0.0
    %244 = vmatpush1.msra.mxu0 %v111
    %245 = vmatprep.subr.mxu0 0.0
    %246 = vmatpush1.msra.mxu0 %v114
    %247 = vmatprep.subr.mxu0 0.0
    %248 = vmatpush1.msra.mxu0 %v117
    %249 = vmatprep.subr.mxu0 0.0
    %250 = vmatpush1.msra.mxu0 %v120
    %251 = vmatprep.subr.mxu0 0.0
    %252 = vmatpush1.msra.mxu0 %v123
    %253 = vmatprep.subr.mxu0 0.0
    %254 = vmatpush1.msra.mxu0 %v126
    %255 = vmatprep.subr.mxu0 0.0
    %256 = vmatpush1.msra.mxu0 %v129
    %257 = vmatprep.subr.mxu0 0.0
    %258 = vmatpush1.msra.mxu0 %v132
    %259 = vmatprep.subr.mxu0 0.0
    %260 = vmatpush1.msra.mxu0 %v135
    %261 = vmatprep.subr.mxu0 0.0
    %262 = vmatpush1.msra.mxu0 %v138
    %263 = vmatprep.subr.mxu0 0.0
    %264 = vmatpush1.msra.mxu0 %v141
    %265 = vmatprep.subr.mxu0 0.0
    %266 = vmatpush1.msra.mxu0 %v144
    %267 = vmatprep.subr.mxu0 0.0
    %268 = vmatpush1.msra.mxu0 %v147
    %269 = vmatprep.subr.mxu0 0.0
    %270 = vmatpush1.msra.mxu0 %v150
    %271 = vmatprep.subr.mxu0 0.0
    %272 = vmatpush1.msra.mxu0 0.0
    %273 = vmatprep.subr.mxu0 0.0
    %274 = vmatpush1.msra.mxu0 0.0
    %275 = vmatprep.subr.mxu0 0.0
    %276 = vmatpush1.msra.mxu0 0.0
    %277 = vmatprep.subr.mxu0 0.0
    %278 = vmatpush1.msra.mxu0 0.0
    %279 = vmatprep.subr.mxu0 0.0
    %280 = vmatpush1.msra.mxu0 0.0
    %281 = vmatprep.subr.mxu0 0.0
    %282 = vmatpush1.msra.mxu0 0.0
    %283 = vmatprep.subr.mxu0 0.0
    %284 = vmatpush1.msra.mxu0 0.0
    %285 = vmatprep.subr.mxu0 0.0
    %286 = vmatpush1.msra.mxu0 0.0
    %287 = vmatprep.subr.mxu0 0.0
    %288 = vmatpush1.msra.mxu0 0.0
    %289 = vmatprep.subr.mxu0 0.0
    %290 = vmatpush1.msra.mxu0 0.0
    %291 = vmatprep.subr.mxu0 0.0
    %292 = vmatpush1.msra.mxu0 0.0
    %293 = vmatprep.subr.mxu0 0.0
    %294 = vmatpush1.msra.mxu0 0.0
    %295 = vmatprep.subr.mxu0 0.0
    %296 = vmatpush1.msra.mxu0 0.0
    %297 = vmatprep.subr.mxu0 0.0
    %298 = vmatpush1.msra.mxu0 0.0
    %299 = vmatprep.subr.mxu0 0.0
    %300 = vmatpush1.msra.mxu0 0.0
    %301 = vmatprep.subr.mxu0 0.0
    %302 = vmatpush1.msra.mxu0 0.0
    %303 = vmatprep.mubr.f32.mxu0 0.0
    %304 = vmatmul.mubr.f32.gmra.mrb[0].mxu0 %v101
    %v305 = vpop.f32.mrb[0].mxu0
    %v306 = vadd.f32 %v164, %v305
    %v307 = vpop.f32.mrb[0].mxu0
    %308 = vdwg.mxu0
    %v309 = vld [vmem:[#allocation6] sm:$0xff]
    %v310 = vld [vmem:[#allocation6 + $0x8] sm:$0xff]
    %v311 = vld [vmem:[#allocation6 + $0x10] sm:$0xff]
    %v312 = vld [vmem:[#allocation6 + $0x18] sm:$0xff]
    %v313 = vld [vmem:[#allocation6 + $0x20] sm:$0xff]
    %v314 = vld [vmem:[#allocation6 + $0x28] sm:$0xff]
    %v315 = vld [vmem:[#allocation6 + $0x30] sm:$0xff]
    %v316 = vld [vmem:[#allocation6 + $0x38] sm:$0xff]
    %v317 = vld [vmem:[#allocation6 + $0x40] sm:$0xff]
    %v318 = vld [vmem:[#allocation6 + $0x48] sm:$0xff]
    %v319 = vld [vmem:[#allocation6 + $0x50] sm:$0xff]
    %v320 = vld [vmem:[#allocation6 + $0x58] sm:$0xff]
    %v321 = vld [vmem:[#allocation6 + $0x60] sm:$0xff]
    %v322 = vld [vmem:[#allocation6 + $0x68] sm:$0xff]
    %v323 = vld [vmem:[#allocation6 + $0x70] sm:$0xff]
    %v324 = vld [vmem:[#allocation6 + $0x78] sm:$0xff]
    %v325 = vld [vmem:[#allocation6 + $0x80] sm:$0xff]
    %v326 = vld [vmem:[#allocation6 + $0x88] sm:$0xff]
    %v327 = vld [vmem:[#allocation6 + $0x90] sm:$0xff]
    %v328 = vld [vmem:[#allocation6 + $0x98] sm:$0xff]
    %v329 = vld [vmem:[#allocation6 + $0xa0] sm:$0xff]
    %v330 = vld [vmem:[#allocation6 + $0xa8] sm:$0xff]
    %v331 = vld [vmem:[#allocation6 + $0xb0] sm:$0xff]
    %v332 = vld [vmem:[#allocation6 + $0xb8] sm:$0xff]
    %v333 = vld [vmem:[#allocation6 + $0xc0] sm:$0xff]
    %v334 = vld [vmem:[#allocation6 + $0xc8] sm:$0xff]
    %v335 = vld [vmem:[#allocation6 + $0xd0] sm:$0xff]
    %v336 = vld [vmem:[#allocation6 + $0xd8] sm:$0xff]
    %v337 = vld [vmem:[#allocation6 + $0xe0] sm:$0xff]
    %v338 = vld [vmem:[#allocation6 + $0xe8] sm:$0xff]
    %v339 = vld [vmem:[#allocation6 + $0xf0] sm:$0xff]
    %v340 = vld [vmem:[#allocation6 + $0xf8] sm:$0xff]
    %v341 = vld [vmem:[#allocation6 + $0x100] sm:$0xff]
    %v342 = vld [vmem:[#allocation6 + $0x108] sm:$0xff]
    %v343 = vld [vmem:[#allocation6 + $0x110] sm:$0xff]
    %v344 = vld [vmem:[#allocation6 + $0x118] sm:$0xff]
    %v345 = vld [vmem:[#allocation6 + $0x120] sm:$0xff]
    %v346 = vld [vmem:[#allocation6 + $0x128] sm:$0xff]
    %v347 = vld [vmem:[#allocation6 + $0x130] sm:$0xff]
    %v348 = vld [vmem:[#allocation6 + $0x138] sm:$0xff]
    %v349 = vld [vmem:[#allocation6 + $0x140] sm:$0xff]
    %v350 = vld [vmem:[#allocation6 + $0x148] sm:$0xff]
    %v351 = vld [vmem:[#allocation6 + $0x150] sm:$0xff]
    %v352 = vld [vmem:[#allocation6 + $0x158] sm:$0xff]
    %v353 = vld [vmem:[#allocation6 + $0x160] sm:$0xff]
    %v354 = vld [vmem:[#allocation6 + $0x168] sm:$0xff]
    %v355 = vld [vmem:[#allocation6 + $0x170] sm:$0xff]
    %v356 = vld [vmem:[#allocation6 + $0x178] sm:$0xff]
    %357 = vmatprep.subr.mxu0 %v310
    %358 = vmatpush1.msra.mxu0 %v309
    %359 = vmatprep.subr.mxu0 %v313
    %360 = vmatpush1.msra.mxu0 %v312
    %361 = vmatprep.subr.mxu0 %v316
    %362 = vmatpush1.msra.mxu0 %v315
    %363 = vmatprep.subr.mxu0 %v319
    %364 = vmatpush1.msra.mxu0 %v318
    %365 = vmatprep.subr.mxu0 %v322
    %366 = vmatpush1.msra.mxu0 %v321
    %367 = vmatprep.subr.mxu0 %v325
    %368 = vmatpush1.msra.mxu0 %v324
    %369 = vmatprep.subr.mxu0 %v328
    %370 = vmatpush1.msra.mxu0 %v327
    %371 = vmatprep.subr.mxu0 %v331
    %372 = vmatpush1.msra.mxu0 %v330
    %373 = vmatprep.subr.mxu0 %v334
    %374 = vmatpush1.msra.mxu0 %v333
    %375 = vmatprep.subr.mxu0 %v337
    %376 = vmatpush1.msra.mxu0 %v336
    %377 = vmatprep.subr.mxu0 %v340
    %378 = vmatpush1.msra.mxu0 %v339
    %379 = vmatprep.subr.mxu0 %v343
    %380 = vmatpush1.msra.mxu0 %v342
    %381 = vmatprep.subr.mxu0 %v346
    %382 = vmatpush1.msra.mxu0 %v345
    %383 = vmatprep.subr.mxu0 %v349
    %384 = vmatpush1.msra.mxu0 %v348
    %385 = vmatprep.subr.mxu0 %v352
    %386 = vmatpush1.msra.mxu0 %v351
    %387 = vmatprep.subr.mxu0 %v355
    %388 = vmatpush1.msra.mxu0 %v354
    %389 = vmatprep.subr.mxu0 0.0
    %390 = vmatpush1.msra.mxu0 0.0
    %391 = vmatprep.subr.mxu0 0.0
    %392 = vmatpush1.msra.mxu0 0.0
    %393 = vmatprep.subr.mxu0 0.0
    %394 = vmatpush1.msra.mxu0 0.0
    %395 = vmatprep.subr.mxu0 0.0
    %396 = vmatpush1.msra.mxu0 0.0
    %397 = vmatprep.subr.mxu0 0.0
    %398 = vmatpush1.msra.mxu0 0.0
    %399 = vmatprep.subr.mxu0 0.0
    %400 = vmatpush1.msra.mxu0 0.0
    %401 = vmatprep.subr.mxu0 0.0
    %402 = vmatpush1.msra.mxu0 0.0
    %403 = vmatprep.subr.mxu0 0.0
    %404 = vmatpush1.msra.mxu0 0.0
    %405 = vmatprep.subr.mxu0 0.0
    %406 = vmatpush1.msra.mxu0 0.0
    %407 = vmatprep.subr.mxu0 0.0
    %408 = vmatpush1.msra.mxu0 0.0
    %409 = vmatprep.subr.mxu0 0.0
    %410 = vmatpush1.msra.mxu0 0.0
    %411 = vmatprep.subr.mxu0 0.0
    %412 = vmatpush1.msra.mxu0 0.0
    %413 = vmatprep.subr.mxu0 0.0
    %414 = vmatpush1.msra.mxu0 0.0
    %415 = vmatprep.subr.mxu0 0.0
    %416 = vmatpush1.msra.mxu0 0.0
    %417 = vmatprep.subr.mxu0 0.0
    %418 = vmatpush1.msra.mxu0 0.0
    %419 = vmatprep.subr.mxu0 0.0
    %420 = vmatpush1.msra.mxu0 0.0
    %421 = vmatprep.mubr.f32.mxu0 0.0
    %422 = vmatmul.mubr.f32.gmra.mrb[0].mxu0 %v102
    %v423 = vpop.f32.mrb[0].mxu0
    %v424 = vadd.f32 0.0, %v423
    %v425 = vpop.f32.mrb[0].mxu0
    %v426 = vadd.f32 0.0, %v425
    %427 = vdwg.mxu0
    %428 = vmatprep.subr.mxu0 0.0
    %429 = vmatpush1.msra.mxu0 %v311
    %430 = vmatprep.subr.mxu0 0.0
    %431 = vmatpush1.msra.mxu0 %v314
    %432 = vmatprep.subr.mxu0 0.0
    %433 = vmatpush1.msra.mxu0 %v317
    %434 = vmatprep.subr.mxu0 0.0
    %435 = vmatpush1.msra.mxu0 %v320
    %436 = vmatprep.subr.mxu0 0.0
    %437 = vmatpush1.msra.mxu0 %v323
    %438 = vmatprep.subr.mxu0 0.0
    %439 = vmatpush1.msra.mxu0 %v326
    %440 = vmatprep.subr.mxu0 0.0
    %441 = vmatpush1.msra.mxu0 %v329
    %442 = vmatprep.subr.mxu0 0.0
    %443 = vmatpush1.msra.mxu0 %v332
    %444 = vmatprep.subr.mxu0 0.0
    %445 = vmatpush1.msra.mxu0 %v335
    %446 = vmatprep.subr.mxu0 0.0
    %447 = vmatpush1.msra.mxu0 %v338
    %448 = vmatprep.subr.mxu0 0.0
    %449 = vmatpush1.msra.mxu0 %v341
    %450 = vmatprep.subr.mxu0 0.0
    %451 = vmatpush1.msra.mxu0 %v344
    %452 = vmatprep.subr.mxu0 0.0
    %453 = vmatpush1.msra.mxu0 %v347
    %454 = vmatprep.subr.mxu0 0.0
    %455 = vmatpush1.msra.mxu0 %v350
    %456 = vmatprep.subr.mxu0 0.0
    %457 = vmatpush1.msra.mxu0 %v353
    %458 = vmatprep.subr.mxu0 0.0
    %459 = vmatpush1.msra.mxu0 %v356
    %460 = vmatprep.subr.mxu0 0.0
    %461 = vmatpush1.msra.mxu0 0.0
    %462 = vmatprep.subr.mxu0 0.0
    %463 = vmatpush1.msra.mxu0 0.0
    %464 = vmatprep.subr.mxu0 0.0
    %465 = vmatpush1.msra.mxu0 0.0
    %466 = vmatprep.subr.mxu0 0.0
    %467 = vmatpush1.msra.mxu0 0.0
    %468 = vmatprep.subr.mxu0 0.0
    %469 = vmatpush1.msra.mxu0 0.0
    %470 = vmatprep.subr.mxu0 0.0
    %471 = vmatpush1.msra.mxu0 0.0
    %472 = vmatprep.subr.mxu0 0.0
    %473 = vmatpush1.msra.mxu0 0.0
    %474 = vmatprep.subr.mxu0 0.0
    %475 = vmatpush1.msra.mxu0 0.0
    %476 = vmatprep.subr.mxu0 0.0
    %477 = vmatpush1.msra.mxu0 0.0
    %478 = vmatprep.subr.mxu0 0.0
    %479 = vmatpush1.msra.mxu0 0.0
    %480 = vmatprep.subr.mxu0 0.0
    %481 = vmatpush1.msra.mxu0 0.0
    %482 = vmatprep.subr.mxu0 0.0
    %483 = vmatpush1.msra.mxu0 0.0
    %484 = vmatprep.subr.mxu0 0.0
    %485 = vmatpush1.msra.mxu0 0.0
    %486 = vmatprep.subr.mxu0 0.0
    %487 = vmatpush1.msra.mxu0 0.0
    %488 = vmatprep.subr.mxu0 0.0
    %489 = vmatpush1.msra.mxu0 0.0
    %490 = vmatprep.subr.mxu0 0.0
    %491 = vmatpush1.msra.mxu0 0.0
    %492 = vmatprep.mubr.f32.mxu0 0.0
    %493 = vmatmul.mubr.f32.gmra.mrb[0].mxu0 %v102
    %v494 = vpop.f32.mrb[0].mxu0
    %v495 = vadd.f32 0.0, %v494
    %v496 = vpop.f32.mrb[0].mxu0
    %497 = vdwg.mxu0
    %v498 = vadd.f32 %v235, %v424
    %v499 = vxor.u32 %v498, 2147483648
    %v500 = vmul.f32 %v499, 1.442695
    %v501 = vpow.pop %v500
    %v502 = vadd.f32 %v501, 1.0
    %v503 = vrcp.pop %v502
    %v504 = vmul.f32 1.0, %v503
    %v505 = vadd.f32 %v237, %v426
    %v506 = vxor.u32 %v505, 2147483648
    %v507 = vmul.f32 %v506, 1.442695
    %v508 = vpow.pop %v507
    %v509 = vadd.f32 %v508, 1.0
    %v510 = vrcp.pop %v509
    %v511 = vmul.f32 1.0, %v510
    %v512 = vld [vmem:[%s5] sm:$0x1]
    %v514 = vlaneseq
    %v515 = vshrl.u32 %v514, 7
    %v516 = vsub.s32 0, %v515
    %v517 = vrot.slane %v512, %v516
    %v519 = vadd.f32 %v495, %v517
    %v520 = vmul.f32 %v504, %v519
    %v521 = vadd.f32 %v306, %v520
    %v522 = vtanh.pop %v521
    %v523 = vsub.f32 1.0, %v511
    %v524 = vmul.f32 %v523, %v522
    %v525 = vmul.f32 %v511, %v102
    %v526 = vadd.f32 %v524, %v525
    %527 = vst [vmem:[#allocation2] sm:$0x3] %v526
    %s528 = scalar_lea.vmem [#allocation2], 2
    %v529 = vld [vmem:[%s528] sm:$0x3]
    %v530 = vld [vmem:[#allocation8] sm:$0xff]
    %v531 = vld [vmem:[#allocation8 + $0x8] sm:$0xff]
    %v532 = vld [vmem:[#allocation8 + $0x10] sm:$0xff]
    %v533 = vld [vmem:[#allocation8 + $0x18] sm:$0xff]
    %v534 = vld [vmem:[#allocation8 + $0x20] sm:$0xff]
    %v535 = vld [vmem:[#allocation8 + $0x28] sm:$0xff]
    %v536 = vld [vmem:[#allocation8 + $0x30] sm:$0xff]
    %v537 = vld [vmem:[#allocation8 + $0x38] sm:$0xff]
    %v538 = vld [vmem:[#allocation8 + $0x40] sm:$0xff]
    %v539 = vld [vmem:[#allocation8 + $0x48] sm:$0xff]
    %v540 = vld [vmem:[#allocation8 + $0x50] sm:$0xff]
    %v541 = vld [vmem:[#allocation8 + $0x58] sm:$0xff]
    %v542 = vld [vmem:[#allocation8 + $0x60] sm:$0xff]
    %v543 = vld [vmem:[#allocation8 + $0x68] sm:$0xff]
    %v544 = vld [vmem:[#allocation8 + $0x70] sm:$0xff]
    %v545 = vld [vmem:[#allocation8 + $0x78] sm:$0xff]
    %v546 = vld [vmem:[#allocation8 + $0x80] sm:$0xff]
    %v547 = vld [vmem:[#allocation8 + $0x88] sm:$0xff]
    %v548 = vld [vmem:[#allocation8 + $0x90] sm:$0xff]
    %v549 = vld [vmem:[#allocation8 + $0x98] sm:$0xff]
    %v550 = vld [vmem:[#allocation8 + $0xa0] sm:$0xff]
    %v551 = vld [vmem:[#allocation8 + $0xa8] sm:$0xff]
    %v552 = vld [vmem:[#allocation8 + $0xb0] sm:$0xff]
    %v553 = vld [vmem:[#allocation8 + $0xb8] sm:$0xff]
    %v554 = vld [vmem:[#allocation8 + $0xc0] sm:$0xff]
    %v555 = vld [vmem:[#allocation8 + $0xc8] sm:$0xff]
    %v556 = vld [vmem:[#allocation8 + $0xd0] sm:$0xff]
    %v557 = vld [vmem:[#allocation8 + $0xd8] sm:$0xff]
    %v558 = vld [vmem:[#allocation8 + $0xe0] sm:$0xff]
    %v559 = vld [vmem:[#allocation8 + $0xe8] sm:$0xff]
    %v560 = vld [vmem:[#allocation8 + $0xf0] sm:$0xff]
    %v561 = vld [vmem:[#allocation8 + $0xf8] sm:$0xff]
    %v562 = vld [vmem:[#allocation8 + $0x100] sm:$0xff]
    %v563 = vld [vmem:[#allocation8 + $0x108] sm:$0xff]
    %v564 = vld [vmem:[#allocation8 + $0x110] sm:$0xff]
    %v565 = vld [vmem:[#allocation8 + $0x118] sm:$0xff]
    %v566 = vld [vmem:[#allocation8 + $0x120] sm:$0xff]
    %v567 = vld [vmem:[#allocation8 + $0x128] sm:$0xff]
    %v568 = vld [vmem:[#allocation8 + $0x130] sm:$0xff]
    %v569 = vld [vmem:[#allocation8 + $0x138] sm:$0xff]
    %v570 = vld [vmem:[#allocation8 + $0x140] sm:$0xff]
    %v571 = vld [vmem:[#allocation8 + $0x148] sm:$0xff]
    %v572 = vld [vmem:[#allocation8 + $0x150] sm:$0xff]
    %v573 = vld [vmem:[#allocation8 + $0x158] sm:$0xff]
    %v574 = vld [vmem:[#allocation8 + $0x160] sm:$0xff]
    %v575 = vld [vmem:[#allocation8 + $0x168] sm:$0xff]
    %v576 = vld [vmem:[#allocation8 + $0x170] sm:$0xff]
    %v577 = vld [vmem:[#allocation8 + $0x178] sm:$0xff]
    %v578 = vld [vmem:[%s8] sm:$0x7]
    %v580 = vlaneseq
    %v581 = vshrl.u32 %v580, 7
    %v582 = vsub.s32 0, %v581
    %v583 = vrot.slane %v578, %v582
    %v584 = vlaneseq
    %v585 = vshrl.u32 %v584, 7
    %v586 = vsub.s32 1, %v585
    %v587 = vrot.slane %v578, %v586
    %v588 = vlaneseq
    %v589 = vshrl.u32 %v588, 7
    %v590 = vsub.s32 2, %v589
    %v591 = vrot.slane %v578, %v590
    %595 = vmatprep.subr.mxu0 %v531
    %596 = vmatpush1.msra.mxu0 %v530
    %597 = vmatprep.subr.mxu0 %v534
    %598 = vmatpush1.msra.mxu0 %v533
    %599 = vmatprep.subr.mxu0 %v537
    %600 = vmatpush1.msra.mxu0 %v536
    %601 = vmatprep.subr.mxu0 %v540
    %602 = vmatpush1.msra.mxu0 %v539
    %603 = vmatprep.subr.mxu0 %v543
    %604 = vmatpush1.msra.mxu0 %v542
    %605 = vmatprep.subr.mxu0 %v546
    %606 = vmatpush1.msra.mxu0 %v545
    %607 = vmatprep.subr.mxu0 %v549
    %608 = vmatpush1.msra.mxu0 %v548
    %609 = vmatprep.subr.mxu0 %v552
    %610 = vmatpush1.msra.mxu0 %v551
    %611 = vmatprep.subr.mxu0 %v555
    %612 = vmatpush1.msra.mxu0 %v554
    %613 = vmatprep.subr.mxu0 %v558
    %614 = vmatpush1.msra.mxu0 %v557
    %615 = vmatprep.subr.mxu0 %v561
    %616 = vmatpush1.msra.mxu0 %v560
    %617 = vmatprep.subr.mxu0 %v564
    %618 = vmatpush1.msra.mxu0 %v563
    %619 = vmatprep.subr.mxu0 %v567
    %620 = vmatpush1.msra.mxu0 %v566
    %621 = vmatprep.subr.mxu0 %v570
    %622 = vmatpush1.msra.mxu0 %v569
    %623 = vmatprep.subr.mxu0 %v573
    %624 = vmatpush1.msra.mxu0 %v572
    %625 = vmatprep.subr.mxu0 %v576
    %626 = vmatpush1.msra.mxu0 %v575
    %627 = vmatprep.subr.mxu0 0.0
    %628 = vmatpush1.msra.mxu0 0.0
    %629 = vmatprep.subr.mxu0 0.0
    %630 = vmatpush1.msra.mxu0 0.0
    %631 = vmatprep.subr.mxu0 0.0
    %632 = vmatpush1.msra.mxu0 0.0
    %633 = vmatprep.subr.mxu0 0.0
    %634 = vmatpush1.msra.mxu0 0.0
    %635 = vmatprep.subr.mxu0 0.0
    %636 = vmatpush1.msra.mxu0 0.0
    %637 = vmatprep.subr.mxu0 0.0
    %638 = vmatpush1.msra.mxu0 0.0
    %639 = vmatprep.subr.mxu0 0.0
    %640 = vmatpush1.msra.mxu0 0.0
    %641 = vmatprep.subr.mxu0 0.0
    %642 = vmatpush1.msra.mxu0 0.0
    %643 = vmatprep.subr.mxu0 0.0
    %644 = vmatpush1.msra.mxu0 0.0
    %645 = vmatprep.subr.mxu0 0.0
    %646 = vmatpush1.msra.mxu0 0.0
    %647 = vmatprep.subr.mxu0 0.0
    %648 = vmatpush1.msra.mxu0 0.0
    %649 = vmatprep.subr.mxu0 0.0
    %650 = vmatpush1.msra.mxu0 0.0
    %651 = vmatprep.subr.mxu0 0.0
    %652 = vmatpush1.msra.mxu0 0.0
    %653 = vmatprep.subr.mxu0 0.0
    %654 = vmatpush1.msra.mxu0 0.0
    %655 = vmatprep.subr.mxu0 0.0
    %656 = vmatpush1.msra.mxu0 0.0
    %657 = vmatprep.subr.mxu0 0.0
    %658 = vmatpush1.msra.mxu0 0.0
    %659 = vmatprep.mubr.f32.mxu0 0.0
    %660 = vmatmul.mubr.f32.gmra.mrb[0].mxu0 %v526
    %v661 = vpop.f32.mrb[0].mxu0
    %v662 = vadd.f32 %v583, %v661
    %v663 = vpop.f32.mrb[0].mxu0
    %v664 = vadd.f32 %v587, %v663
    %665 = vdwg.mxu0
    %666 = vmatprep.subr.mxu0 0.0
    %667 = vmatpush1.msra.mxu0 %v532
    %668 = vmatprep.subr.mxu0 0.0
    %669 = vmatpush1.msra.mxu0 %v535
    %670 = vmatprep.subr.mxu0 0.0
    %671 = vmatpush1.msra.mxu0 %v538
    %672 = vmatprep.subr.mxu0 0.0
    %673 = vmatpush1.msra.mxu0 %v541
    %674 = vmatprep.subr.mxu0 0.0
    %675 = vmatpush1.msra.mxu0 %v544
    %676 = vmatprep.subr.mxu0 0.0
    %677 = vmatpush1.msra.mxu0 %v547
    %678 = vmatprep.subr.mxu0 0.0
    %679 = vmatpush1.msra.mxu0 %v550
    %680 = vmatprep.subr.mxu0 0.0
    %681 = vmatpush1.msra.mxu0 %v553
    %682 = vmatprep.subr.mxu0 0.0
    %683 = vmatpush1.msra.mxu0 %v556
    %684 = vmatprep.subr.mxu0 0.0
    %685 = vmatpush1.msra.mxu0 %v559
    %686 = vmatprep.subr.mxu0 0.0
    %687 = vmatpush1.msra.mxu0 %v562
    %688 = vmatprep.subr.mxu0 0.0
    %689 = vmatpush1.msra.mxu0 %v565
    %690 = vmatprep.subr.mxu0 0.0
    %691 = vmatpush1.msra.mxu0 %v568
    %692 = vmatprep.subr.mxu0 0.0
    %693 = vmatpush1.msra.mxu0 %v571
    %694 = vmatprep.subr.mxu0 0.0
    %695 = vmatpush1.msra.mxu0 %v574
    %696 = vmatprep.subr.mxu0 0.0
    %697 = vmatpush1.msra.mxu0 %v577
    %698 = vmatprep.subr.mxu0 0.0
    %699 = vmatpush1.msra.mxu0 0.0
    %700 = vmatprep.subr.mxu0 0.0
    %701 = vmatpush1.msra.mxu0 0.0
    %702 = vmatprep.subr.mxu0 0.0
    %703 = vmatpush1.msra.mxu0 0.0
    %704 = vmatprep.subr.mxu0 0.0
    %705 = vmatpush1.msra.mxu0 0.0
    %706 = vmatprep.subr.mxu0 0.0
    %707 = vmatpush1.msra.mxu0 0.0
    %708 = vmatprep.subr.mxu0 0.0
    %709 = vmatpush1.msra.mxu0 0.0
    %710 = vmatprep.subr.mxu0 0.0
    %711 = vmatpush1.msra.mxu0 0.0
    %712 = vmatprep.subr.mxu0 0.0
    %713 = vmatpush1.msra.mxu0 0.0
    %714 = vmatprep.subr.mxu0 0.0
    %715 = vmatpush1.msra.mxu0 0.0
    %716 = vmatprep.subr.mxu0 0.0
    %717 = vmatpush1.msra.mxu0 0.0
    %718 = vmatprep.subr.mxu0 0.0
    %719 = vmatpush1.msra.mxu0 0.0
    %720 = vmatprep.subr.mxu0 0.0
    %721 = vmatpush1.msra.mxu0 0.0
    %722 = vmatprep.subr.mxu0 0.0
    %723 = vmatpush1.msra.mxu0 0.0
    %724 = vmatprep.subr.mxu0 0.0
    %725 = vmatpush1.msra.mxu0 0.0
    %726 = vmatprep.subr.mxu0 0.0
    %727 = vmatpush1.msra.mxu0 0.0
    %728 = vmatprep.subr.mxu0 0.0
    %729 = vmatpush1.msra.mxu0 0.0
    %730 = vmatprep.mubr.f32.mxu0 0.0
    %731 = vmatmul.mubr.f32.gmra.mrb[0].mxu0 %v526
    %v732 = vpop.f32.mrb[0].mxu0
    %v733 = vadd.f32 %v591, %v732
    %v734 = vpop.f32.mrb[0].mxu0
    %735 = vdwg.mxu0
    %v736 = vld [vmem:[#allocation9] sm:$0xff]
    %v737 = vld [vmem:[#allocation9 + $0x8] sm:$0xff]
    %v738 = vld [vmem:[#allocation9 + $0x10] sm:$0xff]
    %v739 = vld [vmem:[#allocation9 + $0x18] sm:$0xff]
    %v740 = vld [vmem:[#allocation9 + $0x20] sm:$0xff]
    %v741 = vld [vmem:[#allocation9 + $0x28] sm:$0xff]
    %v742 = vld [vmem:[#allocation9 + $0x30] sm:$0xff]
    %v743 = vld [vmem:[#allocation9 + $0x38] sm:$0xff]
    %v744 = vld [vmem:[#allocation9 + $0x40] sm:$0xff]
    %v745 = vld [vmem:[#allocation9 + $0x48] sm:$0xff]
    %v746 = vld [vmem:[#allocation9 + $0x50] sm:$0xff]
    %v747 = vld [vmem:[#allocation9 + $0x58] sm:$0xff]
    %v748 = vld [vmem:[#allocation9 + $0x60] sm:$0xff]
    %v749 = vld [vmem:[#allocation9 + $0x68] sm:$0xff]
    %v750 = vld [vmem:[#allocation9 + $0x70] sm:$0xff]
    %v751 = vld [vmem:[#allocation9 + $0x78] sm:$0xff]
    %v752 = vld [vmem:[#allocation9 + $0x80] sm:$0xff]
    %v753 = vld [vmem:[#allocation9 + $0x88] sm:$0xff]
    %v754 = vld [vmem:[#allocation9 + $0x90] sm:$0xff]
    %v755 = vld [vmem:[#allocation9 + $0x98] sm:$0xff]
    %v756 = vld [vmem:[#allocation9 + $0xa0] sm:$0xff]
    %v757 = vld [vmem:[#allocation9 + $0xa8] sm:$0xff]
    %v758 = vld [vmem:[#allocation9 + $0xb0] sm:$0xff]
    %v759 = vld [vmem:[#allocation9 + $0xb8] sm:$0xff]
    %v760 = vld [vmem:[#allocation9 + $0xc0] sm:$0xff]
    %v761 = vld [vmem:[#allocation9 + $0xc8] sm:$0xff]
    %v762 = vld [vmem:[#allocation9 + $0xd0] sm:$0xff]
    %v763 = vld [vmem:[#allocation9 + $0xd8] sm:$0xff]
    %v764 = vld [vmem:[#allocation9 + $0xe0] sm:$0xff]
    %v765 = vld [vmem:[#allocation9 + $0xe8] sm:$0xff]
    %v766 = vld [vmem:[#allocation9 + $0xf0] sm:$0xff]
    %v767 = vld [vmem:[#allocation9 + $0xf8] sm:$0xff]
    %v768 = vld [vmem:[#allocation9 + $0x100] sm:$0xff]
    %v769 = vld [vmem:[#allocation9 + $0x108] sm:$0xff]
    %v770 = vld [vmem:[#allocation9 + $0x110] sm:$0xff]
    %v771 = vld [vmem:[#allocation9 + $0x118] sm:$0xff]
    %v772 = vld [vmem:[#allocation9 + $0x120] sm:$0xff]
    %v773 = vld [vmem:[#allocation9 + $0x128] sm:$0xff]
    %v774 = vld [vmem:[#allocation9 + $0x130] sm:$0xff]
    %v775 = vld [vmem:[#allocation9 + $0x138] sm:$0xff]
    %v776 = vld [vmem:[#allocation9 + $0x140] sm:$0xff]
    %v777 = vld [vmem:[#allocation9 + $0x148] sm:$0xff]
    %v778 = vld [vmem:[#allocation9 + $0x150] sm:$0xff]
    %v779 = vld [vmem:[#allocation9 + $0x158] sm:$0xff]
    %v780 = vld [vmem:[#allocation9 + $0x160] sm:$0xff]
    %v781 = vld [vmem:[#allocation9 + $0x168] sm:$0xff]
    %v782 = vld [vmem:[#allocation9 + $0x170] sm:$0xff]
    %v783 = vld [vmem:[#allocation9 + $0x178] sm:$0xff]
    %784 = vmatprep.subr.mxu0 %v737
    %785 = vmatpush1.msra.mxu0 %v736
    %786 = vmatprep.subr.mxu0 %v740
    %787 = vmatpush1.msra.mxu0 %v739
    %788 = vmatprep.subr.mxu0 %v743
    %789 = vmatpush1.msra.mxu0 %v742
    %790 = vmatprep.subr.mxu0 %v746
    %791 = vmatpush1.msra.mxu0 %v745
    %792 = vmatprep.subr.mxu0 %v749
    %793 = vmatpush1.msra.mxu0 %v748
    %794 = vmatprep.subr.mxu0 %v752
    %795 = vmatpush1.msra.mxu0 %v751
    %796 = vmatprep.subr.mxu0 %v755
    %797 = vmatpush1.msra.mxu0 %v754
    %798 = vmatprep.subr.mxu0 %v758
    %799 = vmatpush1.msra.mxu0 %v757
    %800 = vmatprep.subr.mxu0 %v761
    %801 = vmatpush1.msra.mxu0 %v760
    %802 = vmatprep.subr.mxu0 %v764
    %803 = vmatpush1.msra.mxu0 %v763
    %804 = vmatprep.subr.mxu0 %v767
    %805 = vmatpush1.msra.mxu0 %v766
    %806 = vmatprep.subr.mxu0 %v770
    %807 = vmatpush1.msra.mxu0 %v769
    %808 = vmatprep.subr.mxu0 %v773
    %809 = vmatpush1.msra.mxu0 %v772
    %810 = vmatprep.subr.mxu0 %v776
    %811 = vmatpush1.msra.mxu0 %v775
    %812 = vmatprep.subr.mxu0 %v779
    %813 = vmatpush1.msra.mxu0 %v778
    %814 = vmatprep.subr.mxu0 %v782
    %815 = vmatpush1.msra.mxu0 %v781
    %816 = vmatprep.subr.mxu0 0.0
    %817 = vmatpush1.msra.mxu0 0.0
    %818 = vmatprep.subr.mxu0 0.0
    %819 = vmatpush1.msra.mxu0 0.0
    %820 = vmatprep.subr.mxu0 0.0
    %821 = vmatpush1.msra.mxu0 0.0
    %822 = vmatprep.subr.mxu0 0.0
    %823 = vmatpush1.msra.mxu0 0.0
    %824 = vmatprep.subr.mxu0 0.0
    %825 = vmatpush1.msra.mxu0 0.0
    %826 = vmatprep.subr.mxu0 0.0
    %827 = vmatpush1.msra.mxu0 0.0
    %828 = vmatprep.subr.mxu0 0.0
    %829 = vmatpush1.msra.mxu0 0.0
    %830 = vmatprep.subr.mxu0 0.0
    %831 = vmatpush1.msra.mxu0 0.0
    %832 = vmatprep.subr.mxu0 0.0
    %833 = vmatpush1.msra.mxu0 0.0
    %834 = vmatprep.subr.mxu0 0.0
    %835 = vmatpush1.msra.mxu0 0.0
    %836 = vmatprep.subr.mxu0 0.0
    %837 = vmatpush1.msra.mxu0 0.0
    %838 = vmatprep.subr.mxu0 0.0
    %839 = vmatpush1.msra.mxu0 0.0
    %840 = vmatprep.subr.mxu0 0.0
    %841 = vmatpush1.msra.mxu0 0.0
    %842 = vmatprep.subr.mxu0 0.0
    %843 = vmatpush1.msra.mxu0 0.0
    %844 = vmatprep.subr.mxu0 0.0
    %845 = vmatpush1.msra.mxu0 0.0
    %846 = vmatprep.subr.mxu0 0.0
    %847 = vmatpush1.msra.mxu0 0.0
    %848 = vmatprep.mubr.f32.mxu0 0.0
    %849 = vmatmul.mubr.f32.gmra.mrb[0].mxu0 %v529
    %v850 = vpop.f32.mrb[0].mxu0
    %v851 = vadd.f32 0.0, %v850
    %v852 = vpop.f32.mrb[0].mxu0
    %v853 = vadd.f32 0.0, %v852
    %854 = vdwg.mxu0
    %855 = vmatprep.subr.mxu0 0.0
    %856 = vmatpush1.msra.mxu0 %v738
    %857 = vmatprep.subr.mxu0 0.0
    %858 = vmatpush1.msra.mxu0 %v741
    %859 = vmatprep.subr.mxu0 0.0
    %860 = vmatpush1.msra.mxu0 %v744
    %861 = vmatprep.subr.mxu0 0.0
    %862 = vmatpush1.msra.mxu0 %v747
    %863 = vmatprep.subr.mxu0 0.0
    %864 = vmatpush1.msra.mxu0 %v750
    %865 = vmatprep.subr.mxu0 0.0
    %866 = vmatpush1.msra.mxu0 %v753
    %867 = vmatprep.subr.mxu0 0.0
    %868 = vmatpush1.msra.mxu0 %v756
    %869 = vmatprep.subr.mxu0 0.0
    %870 = vmatpush1.msra.mxu0 %v759
    %871 = vmatprep.subr.mxu0 0.0
    %872 = vmatpush1.msra.mxu0 %v762
    %873 = vmatprep.subr.mxu0 0.0
    %874 = vmatpush1.msra.mxu0 %v765
    %875 = vmatprep.subr.mxu0 0.0
    %876 = vmatpush1.msra.mxu0 %v768
    %877 = vmatprep.subr.mxu0 0.0
    %878 = vmatpush1.msra.mxu0 %v771
    %879 = vmatprep.subr.mxu0 0.0
    %880 = vmatpush1.msra.mxu0 %v774
    %881 = vmatprep.subr.mxu0 0.0
    %882 = vmatpush1.msra.mxu0 %v777
    %883 = vmatprep.subr.mxu0 0.0
    %884 = vmatpush1.msra.mxu0 %v780
    %885 = vmatprep.subr.mxu0 0.0
    %886 = vmatpush1.msra.mxu0 %v783
    %887 = vmatprep.subr.mxu0 0.0
    %888 = vmatpush1.msra.mxu0 0.0
    %889 = vmatprep.subr.mxu0 0.0
    %890 = vmatpush1.msra.mxu0 0.0
    %891 = vmatprep.subr.mxu0 0.0
    %892 = vmatpush1.msra.mxu0 0.0
    %893 = vmatprep.subr.mxu0 0.0
    %894 = vmatpush1.msra.mxu0 0.0
    %895 = vmatprep.subr.mxu0 0.0
    %896 = vmatpush1.msra.mxu0 0.0
    %897 = vmatprep.subr.mxu0 0.0
    %898 = vmatpush1.msra.mxu0 0.0
    %899 = vmatprep.subr.mxu0 0.0
    %900 = vmatpush1.msra.mxu0 0.0
    %901 = vmatprep.subr.mxu0 0.0
    %902 = vmatpush1.msra.mxu0 0.0
    %903 = vmatprep.subr.mxu0 0.0
    %904 = vmatpush1.msra.mxu0 0.0
    %905 = vmatprep.subr.mxu0 0.0
    %906 = vmatpush1.msra.mxu0 0.0
    %907 = vmatprep.subr.mxu0 0.0
    %908 = vmatpush1.msra.mxu0 0.0
    %909 = vmatprep.subr.mxu0 0.0
    %910 = vmatpush1.msra.mxu0 0.0
    %911 = vmatprep.subr.mxu0 0.0
    %912 = vmatpush1.msra.mxu0 0.0
    %913 = vmatprep.subr.mxu0 0.0
    %914 = vmatpush1.msra.mxu0 0.0
    %915 = vmatprep.subr.mxu0 0.0
    %916 = vmatpush1.msra.mxu0 0.0
    %917 = vmatprep.subr.mxu0 0.0
    %918 = vmatpush1.msra.mxu0 0.0
    %919 = vmatprep.mubr.f32.mxu0 0.0
    %920 = vmatmul.mubr.f32.gmra.mrb[0].mxu0 %v529
    %v921 = vpop.f32.mrb[0].mxu0
    %v922 = vadd.f32 0.0, %v921
    %v923 = vpop.f32.mrb[0].mxu0
    %924 = vdwg.mxu0
    %v925 = vadd.f32 %v662, %v851
    %v926 = vxor.u32 %v925, 2147483648
    %v927 = vmul.f32 %v926, 1.442695
    %v928 = vpow.pop %v927
    %v929 = vadd.f32 %v928, 1.0
    %v930 = vrcp.pop %v929
    %v931 = vmul.f32 1.0, %v930
    %v932 = vadd.f32 %v664, %v853
    %v933 = vxor.u32 %v932, 2147483648
    %v934 = vmul.f32 %v933, 1.442695
    %v935 = vpow.pop %v934
    %v936 = vadd.f32 %v935, 1.0
    %v937 = vrcp.pop %v936
    %v938 = vmul.f32 1.0, %v937
    %v939 = vld [vmem:[%s9] sm:$0x1]
    %v941 = vlaneseq
    %v942 = vshrl.u32 %v941, 7
    %v943 = vsub.s32 0, %v942
    %v944 = vrot.slane %v939, %v943
    %v946 = vadd.f32 %v922, %v944
    %v947 = vmul.f32 %v931, %v946
    %v948 = vadd.f32 %v733, %v947
    %v949 = vtanh.pop %v948
    %v950 = vsub.f32 1.0, %v938
    %v951 = vmul.f32 %v950, %v949
    %v952 = vmul.f32 %v938, %v529
    %v953 = vadd.f32 %v951, %v952
    %954 = vst [vmem:[%s528] sm:$0x3] %v953
    %955 = vst [vmem:[%s10] sm:$0x3] %v953
    %s956 = scalar_lea.vmem %s0, 2
    %v957 = vld [vmem:[%s956] sm:$0x3]
    %v958 = vld [vmem:[#allocation2] sm:$0x3]
    %v959 = vld [vmem:[#allocation3] sm:$0xff]
    %v960 = vld [vmem:[#allocation3 + $0x8] sm:$0xff]
    %v961 = vld [vmem:[#allocation3 + $0x10] sm:$0xff]
    %v962 = vld [vmem:[#allocation3 + $0x18] sm:$0xff]
    %v963 = vld [vmem:[#allocation3 + $0x20] sm:$0xff]
    %v964 = vld [vmem:[#allocation3 + $0x28] sm:$0xff]
    %v965 = vld [vmem:[#allocation3 + $0x30] sm:$0xff]
    %v966 = vld [vmem:[#allocation3 + $0x38] sm:$0xff]
    %v967 = vld [vmem:[#allocation3 + $0x40] sm:$0xff]
    %v968 = vld [vmem:[#allocation3 + $0x48] sm:$0xff]
    %v969 = vld [vmem:[#allocation3 + $0x50] sm:$0xff]
    %v970 = vld [vmem:[#allocation3 + $0x58] sm:$0xff]
    %v971 = vld [vmem:[#allocation3 + $0x60] sm:$0xff]
    %v972 = vld [vmem:[#allocation3 + $0x68] sm:$0xff]
    %v973 = vld [vmem:[#allocation3 + $0x70] sm:$0xff]
    %v974 = vld [vmem:[#allocation3 + $0x78] sm:$0xff]
    %v975 = vld [vmem:[#allocation3 + $0x80] sm:$0xff]
    %v976 = vld [vmem:[#allocation3 + $0x88] sm:$0xff]
    %v977 = vld [vmem:[#allocation3 + $0x90] sm:$0xff]
    %v978 = vld [vmem:[#allocation3 + $0x98] sm:$0xff]
    %v979 = vld [vmem:[#allocation3 + $0xa0] sm:$0xff]
    %v980 = vld [vmem:[#allocation3 + $0xa8] sm:$0xff]
    %v981 = vld [vmem:[#allocation3 + $0xb0] sm:$0xff]
    %v982 = vld [vmem:[#allocation3 + $0xb8] sm:$0xff]
    %v983 = vld [vmem:[#allocation3 + $0xc0] sm:$0xff]
    %v984 = vld [vmem:[#allocation3 + $0xc8] sm:$0xff]
    %v985 = vld [vmem:[#allocation3 + $0xd0] sm:$0xff]
    %v986 = vld [vmem:[#allocation3 + $0xd8] sm:$0xff]
    %v987 = vld [vmem:[#allocation3 + $0xe0] sm:$0xff]
    %v988 = vld [vmem:[#allocation3 + $0xe8] sm:$0xff]
    %v989 = vld [vmem:[#allocation3 + $0xf0] sm:$0xff]
    %v990 = vld [vmem:[#allocation3 + $0xf8] sm:$0xff]
    %v991 = vld [vmem:[#allocation3 + $0x100] sm:$0xff]
    %v992 = vld [vmem:[#allocation3 + $0x108] sm:$0xff]
    %v993 = vld [vmem:[#allocation3 + $0x110] sm:$0xff]
    %v994 = vld [vmem:[#allocation3 + $0x118] sm:$0xff]
    %v995 = vld [vmem:[#allocation3 + $0x120] sm:$0xff]
    %v996 = vld [vmem:[#allocation3 + $0x128] sm:$0xff]
    %v997 = vld [vmem:[#allocation3 + $0x130] sm:$0xff]
    %v998 = vld [vmem:[#allocation3 + $0x138] sm:$0xff]
    %v999 = vld [vmem:[#allocation3 + $0x140] sm:$0xff]
    %v1000 = vld [vmem:[#allocation3 + $0x148] sm:$0xff]
    %v1001 = vld [vmem:[#allocation3 + $0x150] sm:$0xff]
    %v1002 = vld [vmem:[#allocation3 + $0x158] sm:$0xff]
    %v1003 = vld [vmem:[#allocation3 + $0x160] sm:$0xff]
    %v1004 = vld [vmem:[#allocation3 + $0x168] sm:$0xff]
    %v1005 = vld [vmem:[#allocation3 + $0x170] sm:$0xff]
    %v1006 = vld [vmem:[#allocation3 + $0x178] sm:$0xff]
    %v1007 = vld [vmem:[%s4] sm:$0x7]
    %v1009 = vlaneseq
    %v1010 = vshrl.u32 %v1009, 7
    %v1011 = vsub.s32 0, %v1010
    %v1012 = vrot.slane %v1007, %v1011
    %v1013 = vlaneseq
    %v1014 = vshrl.u32 %v1013, 7
    %v1015 = vsub.s32 1, %v1014
    %v1016 = vrot.slane %v1007, %v1015
    %v1017 = vlaneseq
    %v1018 = vshrl.u32 %v1017, 7
    %v1019 = vsub.s32 2, %v1018
    %v1020 = vrot.slane %v1007, %v1019
    %1024 = vmatprep.subr.mxu0 %v960
    %1025 = vmatpush1.msra.mxu0 %v959
    %1026 = vmatprep.subr.mxu0 %v963
    %1027 = vmatpush1.msra.mxu0 %v962
    %1028 = vmatprep.subr.mxu0 %v966
    %1029 = vmatpush1.msra.mxu0 %v965
    %1030 = vmatprep.subr.mxu0 %v969
    %1031 = vmatpush1.msra.mxu0 %v968
    %1032 = vmatprep.subr.mxu0 %v972
    %1033 = vmatpush1.msra.mxu0 %v971
    %1034 = vmatprep.subr.mxu0 %v975
    %1035 = vmatpush1.msra.mxu0 %v974
    %1036 = vmatprep.subr.mxu0 %v978
    %1037 = vmatpush1.msra.mxu0 %v977
    %1038 = vmatprep.subr.mxu0 %v981
    %1039 = vmatpush1.msra.mxu0 %v980
    %1040 = vmatprep.subr.mxu0 %v984
    %1041 = vmatpush1.msra.mxu0 %v983
    %1042 = vmatprep.subr.mxu0 %v987
    %1043 = vmatpush1.msra.mxu0 %v986
    %1044 = vmatprep.subr.mxu0 %v990
    %1045 = vmatpush1.msra.mxu0 %v989
    %1046 = vmatprep.subr.mxu0 %v993
    %1047 = vmatpush1.msra.mxu0 %v992
    %1048 = vmatprep.subr.mxu0 %v996
    %1049 = vmatpush1.msra.mxu0 %v995
    %1050 = vmatprep.subr.mxu0 %v999
    %1051 = vmatpush1.msra.mxu0 %v998
    %1052 = vmatprep.subr.mxu0 %v1002
    %1053 = vmatpush1.msra.mxu0 %v1001
    %1054 = vmatprep.subr.mxu0 %v1005
    %1055 = vmatpush1.msra.mxu0 %v1004
    %1056 = vmatprep.subr.mxu0 0.0
    %1057 = vmatpush1.msra.mxu0 0.0
    %1058 = vmatprep.subr.mxu0 0.0
    %1059 = vmatpush1.msra.mxu0 0.0
    %1060 = vmatprep.subr.mxu0 0.0
    %1061 = vmatpush1.msra.mxu0 0.0
    %1062 = vmatprep.subr.mxu0 0.0
    %1063 = vmatpush1.msra.mxu0 0.0
    %1064 = vmatprep.subr.mxu0 0.0
    %1065 = vmatpush1.msra.mxu0 0.0
    %1066 = vmatprep.subr.mxu0 0.0
    %1067 = vmatpush1.msra.mxu0 0.0
    %1068 = vmatprep.subr.mxu0 0.0
    %1069 = vmatpush1.msra.mxu0 0.0
    %1070 = vmatprep.subr.mxu0 0.0
    %1071 = vmatpush1.msra.mxu0 0.0
    %1072 = vmatprep.subr.mxu0 0.0
    %1073 = vmatpush1.msra.mxu0 0.0
    %1074 = vmatprep.subr.mxu0 0.0
    %1075 = vmatpush1.msra.mxu0 0.0
    %1076 = vmatprep.subr.mxu0 0.0
    %1077 = vmatpush1.msra.mxu0 0.0
    %1078 = vmatprep.subr.mxu0 0.0
    %1079 = vmatpush1.msra.mxu0 0.0
    %1080 = vmatprep.subr.mxu0 0.0
    %1081 = vmatpush1.msra.mxu0 0.0
    %1082 = vmatprep.subr.mxu0 0.0
    %1083 = vmatpush1.msra.mxu0 0.0
    %1084 = vmatprep.subr.mxu0 0.0
    %1085 = vmatpush1.msra.mxu0 0.0
    %1086 = vmatprep.subr.mxu0 0.0
    %1087 = vmatpush1.msra.mxu0 0.0
    %1088 = vmatprep.mubr.f32.mxu0 0.0
    %1089 = vmatmul.mubr.f32.gmra.mrb[0].mxu0 %v957
    %v1090 = vpop.f32.mrb[0].mxu0
    %v1091 = vadd.f32 %v1012, %v1090
    %v1092 = vpop.f32.mrb[0].mxu0
    %v1093 = vadd.f32 %v1016, %v1092
    %1094 = vdwg.mxu0
    %1095 = vmatprep.subr.mxu0 0.0
    %1096 = vmatpush1.msra.mxu0 %v961
    %1097 = vmatprep.subr.mxu0 0.0
    %1098 = vmatpush1.msra.mxu0 %v964
    %1099 = vmatprep.subr.mxu0 0.0
    %1100 = vmatpush1.msra.mxu0 %v967
    %1101 = vmatprep.subr.mxu0 0.0
    %1102 = vmatpush1.msra.mxu0 %v970
    %1103 = vmatprep.subr.mxu0 0.0
    %1104 = vmatpush1.msra.mxu0 %v973
    %1105 = vmatprep.subr.mxu0 0.0
    %1106 = vmatpush1.msra.mxu0 %v976
    %1107 = vmatprep.subr.mxu0 0.0
    %1108 = vmatpush1.msra.mxu0 %v979
    %1109 = vmatprep.subr.mxu0 0.0
    %1110 = vmatpush1.msra.mxu0 %v982
    %1111 = vmatprep.subr.mxu0 0.0
    %1112 = vmatpush1.msra.mxu0 %v985
    %1113 = vmatprep.subr.mxu0 0.0
    %1114 = vmatpush1.msra.mxu0 %v988
    %1115 = vmatprep.subr.mxu0 0.0
    %1116 = vmatpush1.msra.mxu0 %v991
    %1117 = vmatprep.subr.mxu0 0.0
    %1118 = vmatpush1.msra.mxu0 %v994
    %1119 = vmatprep.subr.mxu0 0.0
    %1120 = vmatpush1.msra.mxu0 %v997
    %1121 = vmatprep.subr.mxu0 0.0
    %1122 = vmatpush1.msra.mxu0 %v1000
    %1123 = vmatprep.subr.mxu0 0.0
    %1124 = vmatpush1.msra.mxu0 %v1003
    %1125 = vmatprep.subr.mxu0 0.0
    %1126 = vmatpush1.msra.mxu0 %v1006
    %1127 = vmatprep.subr.mxu0 0.0
    %1128 = vmatpush1.msra.mxu0 0.0
    %1129 = vmatprep.subr.mxu0 0.0
    %1130 = vmatpush1.msra.mxu0 0.0
    %1131 = vmatprep.subr.mxu0 0.0
    %1132 = vmatpush1.msra.mxu0 0.0
    %1133 = vmatprep.subr.mxu0 0.0
    %1134 = vmatpush1.msra.mxu0 0.0
    %1135 = vmatprep.subr.mxu0 0.0
    %1136 = vmatpush1.msra.mxu0 0.0
    %1137 = vmatprep.subr.mxu0 0.0
    %1138 = vmatpush1.msra.mxu0 0.0
    %1139 = vmatprep.subr.mxu0 0.0
    %1140 = vmatpush1.msra.mxu0 0.0
    %1141 = vmatprep.subr.mxu0 0.0
    %1142 = vmatpush1.msra.mxu0 0.0
    %1143 = vmatprep.subr.mxu0 0.0
    %1144 = vmatpush1.msra.mxu0 0.0
    %1145 = vmatprep.subr.mxu0 0.0
    %1146 = vmatpush1.msra.mxu0 0.0
    %1147 = vmatprep.subr.mxu0 0.0
    %1148 = vmatpush1.msra.mxu0 0.0
    %1149 = vmatprep.subr.mxu0 0.0
    %1150 = vmatpush1.msra.mxu0 0.0
    %1151 = vmatprep.subr.mxu0 0.0
    %1152 = vmatpush1.msra.mxu0 0.0
    %1153 = vmatprep.subr.mxu0 0.0
    %1154 = vmatpush1.msra.mxu0 0.0
    %1155 = vmatprep.subr.mxu0 0.0
    %1156 = vmatpush1.msra.mxu0 0.0
    %1157 = vmatprep.subr.mxu0 0.0
    %1158 = vmatpush1.msra.mxu0 0.0
    %1159 = vmatprep.mubr.f32.mxu0 0.0
    %1160 = vmatmul.mubr.f32.gmra.mrb[0].mxu0 %v957
    %v1161 = vpop.f32.mrb[0].mxu0
    %v1162 = vadd.f32 %v1020, %v1161
    %v1163 = vpop.f32.mrb[0].mxu0
    %1164 = vdwg.mxu0
    %v1165 = vld [vmem:[#allocation6] sm:$0xff]
    %v1166 = vld [vmem:[#allocation6 + $0x8] sm:$0xff]
    %v1167 = vld [vmem:[#allocation6 + $0x10] sm:$0xff]
    %v1168 = vld [vmem:[#allocation6 + $0x18] sm:$0xff]
    %v1169 = vld [vmem:[#allocation6 + $0x20] sm:$0xff]
    %v1170 = vld [vmem:[#allocation6 + $0x28] sm:$0xff]
    %v1171 = vld [vmem:[#allocation6 + $0x30] sm:$0xff]
    %v1172 = vld [vmem:[#allocation6 + $0x38] sm:$0xff]
    %v1173 = vld [vmem:[#allocation6 + $0x40] sm:$0xff]
    %v1174 = vld [vmem:[#allocation6 + $0x48] sm:$0xff]
    %v1175 = vld [vmem:[#allocation6 + $0x50] sm:$0xff]
    %v1176 = vld [vmem:[#allocation6 + $0x58] sm:$0xff]
    %v1177 = vld [vmem:[#allocation6 + $0x60] sm:$0xff]
    %v1178 = vld [vmem:[#allocation6 + $0x68] sm:$0xff]
    %v1179 = vld [vmem:[#allocation6 + $0x70] sm:$0xff]
    %v1180 = vld [vmem:[#allocation6 + $0x78] sm:$0xff]
    %v1181 = vld [vmem:[#allocation6 + $0x80] sm:$0xff]
    %v1182 = vld [vmem:[#allocation6 + $0x88] sm:$0xff]
    %v1183 = vld [vmem:[#allocation6 + $0x90] sm:$0xff]
    %v1184 = vld [vmem:[#allocation6 + $0x98] sm:$0xff]
    %v1185 = vld [vmem:[#allocation6 + $0xa0] sm:$0xff]
    %v1186 = vld [vmem:[#allocation6 + $0xa8] sm:$0xff]
    %v1187 = vld [vmem:[#allocation6 + $0xb0] sm:$0xff]
    %v1188 = vld [vmem:[#allocation6 + $0xb8] sm:$0xff]
    %v1189 = vld [vmem:[#allocation6 + $0xc0] sm:$0xff]
    %v1190 = vld [vmem:[#allocation6 + $0xc8] sm:$0xff]
    %v1191 = vld [vmem:[#allocation6 + $0xd0] sm:$0xff]
    %v1192 = vld [vmem:[#allocation6 + $0xd8] sm:$0xff]
    %v1193 = vld [vmem:[#allocation6 + $0xe0] sm:$0xff]
    %v1194 = vld [vmem:[#allocation6 + $0xe8] sm:$0xff]
    %v1195 = vld [vmem:[#allocation6 + $0xf0] sm:$0xff]
    %v1196 = vld [vmem:[#allocation6 + $0xf8] sm:$0xff]
    %v1197 = vld [vmem:[#allocation6 + $0x100] sm:$0xff]
    %v1198 = vld [vmem:[#allocation6 + $0x108] sm:$0xff]
    %v1199 = vld [vmem:[#allocation6 + $0x110] sm:$0xff]
    %v1200 = vld [vmem:[#allocation6 + $0x118] sm:$0xff]
    %v1201 = vld [vmem:[#allocation6 + $0x120] sm:$0xff]
    %v1202 = vld [vmem:[#allocation6 + $0x128] sm:$0xff]
    %v1203 = vld [vmem:[#allocation6 + $0x130] sm:$0xff]
    %v1204 = vld [vmem:[#allocation6 + $0x138] sm:$0xff]
    %v1205 = vld [vmem:[#allocation6 + $0x140] sm:$0xff]
    %v1206 = vld [vmem:[#allocation6 + $0x148] sm:$0xff]
    %v1207 = vld [vmem:[#allocation6 + $0x150] sm:$0xff]
    %v1208 = vld [vmem:[#allocation6 + $0x158] sm:$0xff]
    %v1209 = vld [vmem:[#allocation6 + $0x160] sm:$0xff]
    %v1210 = vld [vmem:[#allocation6 + $0x168] sm:$0xff]
    %v1211 = vld [vmem:[#allocation6 + $0x170] sm:$0xff]
    %v1212 = vld [vmem:[#allocation6 + $0x178] sm:$0xff]
    %1213 = vmatprep.subr.mxu0 %v1166
    %1214 = vmatpush1.msra.mxu0 %v1165
    %1215 = vmatprep.subr.mxu0 %v1169
    %1216 = vmatpush1.msra.mxu0 %v1168
    %1217 = vmatprep.subr.mxu0 %v1172
    %1218 = vmatpush1.msra.mxu0 %v1171
    %1219 = vmatprep.subr.mxu0 %v1175
    %1220 = vmatpush1.msra.mxu0 %v1174
    %1221 = vmatprep.subr.mxu0 %v1178
    %1222 = vmatpush1.msra.mxu0 %v1177
    %1223 = vmatprep.subr.mxu0 %v1181
    %1224 = vmatpush1.msra.mxu0 %v1180
    %1225 = vmatprep.subr.mxu0 %v1184
    %1226 = vmatpush1.msra.mxu0 %v1183
    %1227 = vmatprep.subr.mxu0 %v1187
    %1228 = vmatpush1.msra.mxu0 %v1186
    %1229 = vmatprep.subr.mxu0 %v1190
    %1230 = vmatpush1.msra.mxu0 %v1189
    %1231 = vmatprep.subr.mxu0 %v1193
    %1232 = vmatpush1.msra.mxu0 %v1192
    %1233 = vmatprep.subr.mxu0 %v1196
    %1234 = vmatpush1.msra.mxu0 %v1195
    %1235 = vmatprep.subr.mxu0 %v1199
    %1236 = vmatpush1.msra.mxu0 %v1198
    %1237 = vmatprep.subr.mxu0 %v1202
    %1238 = vmatpush1.msra.mxu0 %v1201
    %1239 = vmatprep.subr.mxu0 %v1205
    %1240 = vmatpush1.msra.mxu0 %v1204
    %1241 = vmatprep.subr.mxu0 %v1208
    %1242 = vmatpush1.msra.mxu0 %v1207
    %1243 = vmatprep.subr.mxu0 %v1211
    %1244 = vmatpush1.msra.mxu0 %v1210
    %1245 = vmatprep.subr.mxu0 0.0
    %1246 = vmatpush1.msra.mxu0 0.0
    %1247 = vmatprep.subr.mxu0 0.0
    %1248 = vmatpush1.msra.mxu0 0.0
    %1249 = vmatprep.subr.mxu0 0.0
    %1250 = vmatpush1.msra.mxu0 0.0
    %1251 = vmatprep.subr.mxu0 0.0
    %1252 = vmatpush1.msra.mxu0 0.0
    %1253 = vmatprep.subr.mxu0 0.0
    %1254 = vmatpush1.msra.mxu0 0.0
    %1255 = vmatprep.subr.mxu0 0.0
    %1256 = vmatpush1.msra.mxu0 0.0
    %1257 = vmatprep.subr.mxu0 0.0
    %1258 = vmatpush1.msra.mxu0 0.0
    %1259 = vmatprep.subr.mxu0 0.0
    %1260 = vmatpush1.msra.mxu0 0.0
    %1261 = vmatprep.subr.mxu0 0.0
    %1262 = vmatpush1.msra.mxu0 0.0
    %1263 = vmatprep.subr.mxu0 0.0
    %1264 = vmatpush1.msra.mxu0 0.0
    %1265 = vmatprep.subr.mxu0 0.0
    %1266 = vmatpush1.msra.mxu0 0.0
    %1267 = vmatprep.subr.mxu0 0.0
    %1268 = vmatpush1.msra.mxu0 0.0
    %1269 = vmatprep.subr.mxu0 0.0
    %1270 = vmatpush1.msra.mxu0 0.0
    %1271 = vmatprep.subr.mxu0 0.0
    %1272 = vmatpush1.msra.mxu0 0.0
    %1273 = vmatprep.subr.mxu0 0.0
    %1274 = vmatpush1.msra.mxu0 0.0
    %1275 = vmatprep.subr.mxu0 0.0
    %1276 = vmatpush1.msra.mxu0 0.0
    %1277 = vmatprep.mubr.f32.mxu0 0.0
    %1278 = vmatmul.mubr.f32.gmra.mrb[0].mxu0 %v958
    %v1279 = vpop.f32.mrb[0].mxu0
    %v1280 = vadd.f32 0.0, %v1279
    %v1281 = vpop.f32.mrb[0].mxu0
    %v1282 = vadd.f32 0.0, %v1281
    %1283 = vdwg.mxu0
    %1284 = vmatprep.subr.mxu0 0.0
    %1285 = vmatpush1.msra.mxu0 %v1167
    %1286 = vmatprep.subr.mxu0 0.0
    %1287 = vmatpush1.msra.mxu0 %v1170
    %1288 = vmatprep.subr.mxu0 0.0
    %1289 = vmatpush1.msra.mxu0 %v1173
    %1290 = vmatprep.subr.mxu0 0.0
    %1291 = vmatpush1.msra.mxu0 %v1176
    %1292 = vmatprep.subr.mxu0 0.0
    %1293 = vmatpush1.msra.mxu0 %v1179
    %1294 = vmatprep.subr.mxu0 0.0
    %1295 = vmatpush1.msra.mxu0 %v1182
    %1296 = vmatprep.subr.mxu0 0.0
    %1297 = vmatpush1.msra.mxu0 %v1185
    %1298 = vmatprep.subr.mxu0 0.0
    %1299 = vmatpush1.msra.mxu0 %v1188
    %1300 = vmatprep.subr.mxu0 0.0
    %1301 = vmatpush1.msra.mxu0 %v1191
    %1302 = vmatprep.subr.mxu0 0.0
    %1303 = vmatpush1.msra.mxu0 %v1194
    %1304 = vmatprep.subr.mxu0 0.0
    %1305 = vmatpush1.msra.mxu0 %v1197
    %1306 = vmatprep.subr.mxu0 0.0
    %1307 = vmatpush1.msra.mxu0 %v1200
    %1308 = vmatprep.subr.mxu0 0.0
    %1309 = vmatpush1.msra.mxu0 %v1203
    %1310 = vmatprep.subr.mxu0 0.0
    %1311 = vmatpush1.msra.mxu0 %v1206
    %1312 = vmatprep.subr.mxu0 0.0
    %1313 = vmatpush1.msra.mxu0 %v1209
    %1314 = vmatprep.subr.mxu0 0.0
    %1315 = vmatpush1.msra.mxu0 %v1212
    %1316 = vmatprep.subr.mxu0 0.0
    %1317 = vmatpush1.msra.mxu0 0.0
    %1318 = vmatprep.subr.mxu0 0.0
    %1319 = vmatpush1.msra.mxu0 0.0
    %1320 = vmatprep.subr.mxu0 0.0
    %1321 = vmatpush1.msra.mxu0 0.0
    %1322 = vmatprep.subr.mxu0 0.0
    %1323 = vmatpush1.msra.mxu0 0.0
    %1324 = vmatprep.subr.mxu0 0.0
    %1325 = vmatpush1.msra.mxu0 0.0
    %1326 = vmatprep.subr.mxu0 0.0
    %1327 = vmatpush1.msra.mxu0 0.0
    %1328 = vmatprep.subr.mxu0 0.0
    %1329 = vmatpush1.msra.mxu0 0.0
    %1330 = vmatprep.subr.mxu0 0.0
    %1331 = vmatpush1.msra.mxu0 0.0
    %1332 = vmatprep.subr.mxu0 0.0
    %1333 = vmatpush1.msra.mxu0 0.0
    %1334 = vmatprep.subr.mxu0 0.0
    %1335 = vmatpush1.msra.mxu0 0.0
    %1336 = vmatprep.subr.mxu0 0.0
    %1337 = vmatpush1.msra.mxu0 0.0
    %1338 = vmatprep.subr.mxu0 0.0
    %1339 = vmatpush1.msra.mxu0 0.0
    %1340 = vmatprep.subr.mxu0 0.0
    %1341 = vmatpush1.msra.mxu0 0.0
    %1342 = vmatprep.subr.mxu0 0.0
    %1343 = vmatpush1.msra.mxu0 0.0
    %1344 = vmatprep.subr.mxu0 0.0
    %1345 = vmatpush1.msra.mxu0 0.0
    %1346 = vmatprep.subr.mxu0 0.0
    %1347 = vmatpush1.msra.mxu0 0.0
    %1348 = vmatprep.mubr.f32.mxu0 0.0
    %1349 = vmatmul.mubr.f32.gmra.mrb[0].mxu0 %v958
    %v1350 = vpop.f32.mrb[0].mxu0
    %v1351 = vadd.f32 0.0, %v1350
    %v1352 = vpop.f32.mrb[0].mxu0
    %1353 = vdwg.mxu0
    %v1354 = vadd.f32 %v1091, %v1280
    %v1355 = vxor.u32 %v1354, 2147483648
    %v1356 = vmul.f32 %v1355, 1.442695
    %v1357 = vpow.pop %v1356
    %v1358 = vadd.f32 %v1357, 1.0
    %v1359 = vrcp.pop %v1358
    %v1360 = vmul.f32 1.0, %v1359
    %v1361 = vadd.f32 %v1093, %v1282
    %v1362 = vxor.u32 %v1361, 2147483648
    %v1363 = vmul.f32 %v1362, 1.442695
    %v1364 = vpow.pop %v1363
    %v1365 = vadd.f32 %v1364, 1.0
    %v1366 = vrcp.pop %v1365
    %v1367 = vmul.f32 1.0, %v1366
    %v1368 = vld [vmem:[%s5] sm:$0x1]
    %v1370 = vlaneseq
    %v1371 = vshrl.u32 %v1370, 7
    %v1372 = vsub.s32 0, %v1371
    %v1373 = vrot.slane %v1368, %v1372
    %v1375 = vadd.f32 %v1351, %v1373
    %v1376 = vmul.f32 %v1360, %v1375
    %v1377 = vadd.f32 %v1162, %v1376
    %v1378 = vtanh.pop %v1377
    %v1379 = vsub.f32 1.0, %v1367
    %v1380 = vmul.f32 %v1379, %v1378
    %v1381 = vmul.f32 %v1367, %v958
    %v1382 = vadd.f32 %v1380, %v1381
    %1383 = vst [vmem:[#allocation2] sm:$0x3] %v1382
    %v1384 = vld [vmem:[%s528] sm:$0x3]
    %v1385 = vld [vmem:[#allocation8] sm:$0xff]
    %v1386 = vld [vmem:[#allocation8 + $0x8] sm:$0xff]
    %v1387 = vld [vmem:[#allocation8 + $0x10] sm:$0xff]
    %v1388 = vld [vmem:[#allocation8 + $0x18] sm:$0xff]
    %v1389 = vld [vmem:[#allocation8 + $0x20] sm:$0xff]
    %v1390 = vld [vmem:[#allocation8 + $0x28] sm:$0xff]
    %v1391 = vld [vmem:[#allocation8 + $0x30] sm:$0xff]
    %v1392 = vld [vmem:[#allocation8 + $0x38] sm:$0xff]
    %v1393 = vld [vmem:[#allocation8 + $0x40] sm:$0xff]
    %v1394 = vld [vmem:[#allocation8 + $0x48] sm:$0xff]
    %v1395 = vld [vmem:[#allocation8 + $0x50] sm:$0xff]
    %v1396 = vld [vmem:[#allocation8 + $0x58] sm:$0xff]
    %v1397 = vld [vmem:[#allocation8 + $0x60] sm:$0xff]
    %v1398 = vld [vmem:[#allocation8 + $0x68] sm:$0xff]
    %v1399 = vld [vmem:[#allocation8 + $0x70] sm:$0xff]
    %v1400 = vld [vmem:[#allocation8 + $0x78] sm:$0xff]
    %v1401 = vld [vmem:[#allocation8 + $0x80] sm:$0xff]
    %v1402 = vld [vmem:[#allocation8 + $0x88] sm:$0xff]
    %v1403 = vld [vmem:[#allocation8 + $0x90] sm:$0xff]
    %v1404 = vld [vmem:[#allocation8 + $0x98] sm:$0xff]
    %v1405 = vld [vmem:[#allocation8 + $0xa0] sm:$0xff]
    %v1406 = vld [vmem:[#allocation8 + $0xa8] sm:$0xff]
    %v1407 = vld [vmem:[#allocation8 + $0xb0] sm:$0xff]
    %v1408 = vld [vmem:[#allocation8 + $0xb8] sm:$0xff]
    %v1409 = vld [vmem:[#allocation8 + $0xc0] sm:$0xff]
    %v1410 = vld [vmem:[#allocation8 + $0xc8] sm:$0xff]
    %v1411 = vld [vmem:[#allocation8 + $0xd0] sm:$0xff]
    %v1412 = vld [vmem:[#allocation8 + $0xd8] sm:$0xff]
    %v1413 = vld [vmem:[#allocation8 + $0xe0] sm:$0xff]
    %v1414 = vld [vmem:[#allocation8 + $0xe8] sm:$0xff]
    %v1415 = vld [vmem:[#allocation8 + $0xf0] sm:$0xff]
    %v1416 = vld [vmem:[#allocation8 + $0xf8] sm:$0xff]
    %v1417 = vld [vmem:[#allocation8 + $0x100] sm:$0xff]
    %v1418 = vld [vmem:[#allocation8 + $0x108] sm:$0xff]
    %v1419 = vld [vmem:[#allocation8 + $0x110] sm:$0xff]
    %v1420 = vld [vmem:[#allocation8 + $0x118] sm:$0xff]
    %v1421 = vld [vmem:[#allocation8 + $0x120] sm:$0xff]
    %v1422 = vld [vmem:[#allocation8 + $0x128] sm:$0xff]
    %v1423 = vld [vmem:[#allocation8 + $0x130] sm:$0xff]
    %v1424 = vld [vmem:[#allocation8 + $0x138] sm:$0xff]
    %v1425 = vld [vmem:[#allocation8 + $0x140] sm:$0xff]
    %v1426 = vld [vmem:[#allocation8 + $0x148] sm:$0xff]
    %v1427 = vld [vmem:[#allocation8 + $0x150] sm:$0xff]
    %v1428 = vld [vmem:[#allocation8 + $0x158] sm:$0xff]
    %v1429 = vld [vmem:[#allocation8 + $0x160] sm:$0xff]
    %v1430 = vld [vmem:[#allocation8 + $0x168] sm:$0xff]
    %v1431 = vld [vmem:[#allocation8 + $0x170] sm:$0xff]
    %v1432 = vld [vmem:[#allocation8 + $0x178] sm:$0xff]
    %v1433 = vld [vmem:[%s8] sm:$0x7]
    %v1435 = vlaneseq
    %v1436 = vshrl.u32 %v1435, 7
    %v1437 = vsub.s32 0, %v1436
    %v1438 = vrot.slane %v1433, %v1437
    %v1439 = vlaneseq
    %v1440 = vshrl.u32 %v1439, 7
    %v1441 = vsub.s32 1, %v1440
    %v1442 = vrot.slane %v1433, %v1441
    %v1443 = vlaneseq
    %v1444 = vshrl.u32 %v1443, 7
    %v1445 = vsub.s32 2, %v1444
    %v1446 = vrot.slane %v1433, %v1445
    %1450 = vmatprep.subr.mxu0 %v1386
    %1451 = vmatpush1.msra.mxu0 %v1385
    %1452 = vmatprep.subr.mxu0 %v1389
    %1453 = vmatpush1.msra.mxu0 %v1388
    %1454 = vmatprep.subr.mxu0 %v1392
    %1455 = vmatpush1.msra.mxu0 %v1391
    %1456 = vmatprep.subr.mxu0 %v1395
    %1457 = vmatpush1.msra.mxu0 %v1394
    %1458 = vmatprep.subr.mxu0 %v1398
    %1459 = vmatpush1.msra.mxu0 %v1397
    %1460 = vmatprep.subr.mxu0 %v1401
    %1461 = vmatpush1.msra.mxu0 %v1400
    %1462 = vmatprep.subr.mxu0 %v1404
    %1463 = vmatpush1.msra.mxu0 %v1403
    %1464 = vmatprep.subr.mxu0 %v1407
    %1465 = vmatpush1.msra.mxu0 %v1406
    %1466 = vmatprep.subr.mxu0 %v1410
    %1467 = vmatpush1.msra.mxu0 %v1409
    %1468 = vmatprep.subr.mxu0 %v1413
    %1469 = vmatpush1.msra.mxu0 %v1412
    %1470 = vmatprep.subr.mxu0 %v1416
    %1471 = vmatpush1.msra.mxu0 %v1415
    %1472 = vmatprep.subr.mxu0 %v1419
    %1473 = vmatpush1.msra.mxu0 %v1418
    %1474 = vmatprep.subr.mxu0 %v1422
    %1475 = vmatpush1.msra.mxu0 %v1421
    %1476 = vmatprep.subr.mxu0 %v1425
    %1477 = vmatpush1.msra.mxu0 %v1424
    %1478 = vmatprep.subr.mxu0 %v1428
    %1479 = vmatpush1.msra.mxu0 %v1427
    %1480 = vmatprep.subr.mxu0 %v1431
    %1481 = vmatpush1.msra.mxu0 %v1430
    %1482 = vmatprep.subr.mxu0 0.0
    %1483 = vmatpush1.msra.mxu0 0.0
    %1484 = vmatprep.subr.mxu0 0.0
    %1485 = vmatpush1.msra.mxu0 0.0
    %1486 = vmatprep.subr.mxu0 0.0
    %1487 = vmatpush1.msra.mxu0 0.0
    %1488 = vmatprep.subr.mxu0 0.0
    %1489 = vmatpush1.msra.mxu0 0.0
    %1490 = vmatprep.subr.mxu0 0.0
    %1491 = vmatpush1.msra.mxu0 0.0
    %1492 = vmatprep.subr.mxu0 0.0
    %1493 = vmatpush1.msra.mxu0 0.0
    %1494 = vmatprep.subr.mxu0 0.0
    %1495 = vmatpush1.msra.mxu0 0.0
    %1496 = vmatprep.subr.mxu0 0.0
    %1497 = vmatpush1.msra.mxu0 0.0
    %1498 = vmatprep.subr.mxu0 0.0
    %1499 = vmatpush1.msra.mxu0 0.0
    %1500 = vmatprep.subr.mxu0 0.0
    %1501 = vmatpush1.msra.mxu0 0.0
    %1502 = vmatprep.subr.mxu0 0.0
    %1503 = vmatpush1.msra.mxu0 0.0
    %1504 = vmatprep.subr.mxu0 0.0
    %1505 = vmatpush1.msra.mxu0 0.0
    %1506 = vmatprep.subr.mxu0 0.0
    %1507 = vmatpush1.msra.mxu0 0.0
    %1508 = vmatprep.subr.mxu0 0.0
    %1509 = vmatpush1.msra.mxu0 0.0
    %1510 = vmatprep.subr.mxu0 0.0
    %1511 = vmatpush1.msra.mxu0 0.0
    %1512 = vmatprep.subr.mxu0 0.0
    %1513 = vmatpush1.msra.mxu0 0.0
    %1514 = vmatprep.mubr.f32.mxu0 0.0
    %1515 = vmatmul.mubr.f32.gmra.mrb[0].mxu0 %v1382
    %v1516 = vpop.f32.mrb[0].mxu0
    %v1517 = vadd.f32 %v1438, %v1516
    %v1518 = vpop.f32.mrb[0].mxu0
    %v1519 = vadd.f32 %v1442, %v1518
    %1520 = vdwg.mxu0
    %1521 = vmatprep.subr.mxu0 0.0
    %1522 = vmatpush1.msra.mxu0 %v1387
    %1523 = vmatprep.subr.mxu0 0.0
    %1524 = vmatpush1.msra.mxu0 %v1390
    %1525 = vmatprep.subr.mxu0 0.0
    %1526 = vmatpush1.msra.mxu0 %v1393
    %1527 = vmatprep.subr.mxu0 0.0
    %1528 = vmatpush1.msra.mxu0 %v1396
    %1529 = vmatprep.subr.mxu0 0.0
    %1530 = vmatpush1.msra.mxu0 %v1399
    %1531 = vmatprep.subr.mxu0 0.0
    %1532 = vmatpush1.msra.mxu0 %v1402
    %1533 = vmatprep.subr.mxu0 0.0
    %1534 = vmatpush1.msra.mxu0 %v1405
    %1535 = vmatprep.subr.mxu0 0.0
    %1536 = vmatpush1.msra.mxu0 %v1408
    %1537 = vmatprep.subr.mxu0 0.0
    %1538 = vmatpush1.msra.mxu0 %v1411
    %1539 = vmatprep.subr.mxu0 0.0
    %1540 = vmatpush1.msra.mxu0 %v1414
    %1541 = vmatprep.subr.mxu0 0.0
    %1542 = vmatpush1.msra.mxu0 %v1417
    %1543 = vmatprep.subr.mxu0 0.0
    %1544 = vmatpush1.msra.mxu0 %v1420
    %1545 = vmatprep.subr.mxu0 0.0
    %1546 = vmatpush1.msra.mxu0 %v1423
    %1547 = vmatprep.subr.mxu0 0.0
    %1548 = vmatpush1.msra.mxu0 %v1426
    %1549 = vmatprep.subr.mxu0 0.0
    %1550 = vmatpush1.msra.mxu0 %v1429
    %1551 = vmatprep.subr.mxu0 0.0
    %1552 = vmatpush1.msra.mxu0 %v1432
    %1553 = vmatprep.subr.mxu0 0.0
    %1554 = vmatpush1.msra.mxu0 0.0
    %1555 = vmatprep.subr.mxu0 0.0
    %1556 = vmatpush1.msra.mxu0 0.0
    %1557 = vmatprep.subr.mxu0 0.0
    %1558 = vmatpush1.msra.mxu0 0.0
    %1559 = vmatprep.subr.mxu0 0.0
    %1560 = vmatpush1.msra.mxu0 0.0
    %1561 = vmatprep.subr.mxu0 0.0
    %1562 = vmatpush1.msra.mxu0 0.0
    %1563 = vmatprep.subr.mxu0 0.0
    %1564 = vmatpush1.msra.mxu0 0.0
    %1565 = vmatprep.subr.mxu0 0.0
    %1566 = vmatpush1.msra.mxu0 0.0
    %1567 = vmatprep.subr.mxu0 0.0
    %1568 = vmatpush1.msra.mxu0 0.0
    %1569 = vmatprep.subr.mxu0 0.0
    %1570 = vmatpush1.msra.mxu0 0.0
    %1571 = vmatprep.subr.mxu0 0.0
    %1572 = vmatpush1.msra.mxu0 0.0
    %1573 = vmatprep.subr.mxu0 0.0
    %1574 = vmatpush1.msra.mxu0 0.0
    %1575 = vmatprep.subr.mxu0 0.0
    %1576 = vmatpush1.msra.mxu0 0.0
    %1577 = vmatprep.subr.mxu0 0.0
    %1578 = vmatpush1.msra.mxu0 0.0
    %1579 = vmatprep.subr.mxu0 0.0
    %1580 = vmatpush1.msra.mxu0 0.0
    %1581 = vmatprep.subr.mxu0 0.0
    %1582 = vmatpush1.msra.mxu0 0.0
    %1583 = vmatprep.subr.mxu0 0.0
    %1584 = vmatpush1.msra.mxu0 0.0
    %1585 = vmatprep.mubr.f32.mxu0 0.0
    %1586 = vmatmul.mubr.f32.gmra.mrb[0].mxu0 %v1382
    %v1587 = vpop.f32.mrb[0].mxu0
    %v1588 = vadd.f32 %v1446, %v1587
    %v1589 = vpop.f32.mrb[0].mxu0
    %1590 = vdwg.mxu0
    %v1591 = vld [vmem:[#allocation9] sm:$0xff]
    %v1592 = vld [vmem:[#allocation9 + $0x8] sm:$0xff]
    %v1593 = vld [vmem:[#allocation9 + $0x10] sm:$0xff]
    %v1594 = vld [vmem:[#allocation9 + $0x18] sm:$0xff]
    %v1595 = vld [vmem:[#allocation9 + $0x20] sm:$0xff]
    %v1596 = vld [vmem:[#allocation9 + $0x28] sm:$0xff]
    %v1597 = vld [vmem:[#allocation9 + $0x30] sm:$0xff]
    %v1598 = vld [vmem:[#allocation9 + $0x38] sm:$0xff]
    %v1599 = vld [vmem:[#allocation9 + $0x40] sm:$0xff]
    %v1600 = vld [vmem:[#allocation9 + $0x48] sm:$0xff]
    %v1601 = vld [vmem:[#allocation9 + $0x50] sm:$0xff]
    %v1602 = vld [vmem:[#allocation9 + $0x58] sm:$0xff]
    %v1603 = vld [vmem:[#allocation9 + $0x60] sm:$0xff]
    %v1604 = vld [vmem:[#allocation9 + $0x68] sm:$0xff]
    %v1605 = vld [vmem:[#allocation9 + $0x70] sm:$0xff]
    %v1606 = vld [vmem:[#allocation9 + $0x78] sm:$0xff]
    %v1607 = vld [vmem:[#allocation9 + $0x80] sm:$0xff]
    %v1608 = vld [vmem:[#allocation9 + $0x88] sm:$0xff]
    %v1609 = vld [vmem:[#allocation9 + $0x90] sm:$0xff]
    %v1610 = vld [vmem:[#allocation9 + $0x98] sm:$0xff]
    %v1611 = vld [vmem:[#allocation9 + $0xa0] sm:$0xff]
    %v1612 = vld [vmem:[#allocation9 + $0xa8] sm:$0xff]
    %v1613 = vld [vmem:[#allocation9 + $0xb0] sm:$0xff]
    %v1614 = vld [vmem:[#allocation9 + $0xb8] sm:$0xff]
    %v1615 = vld [vmem:[#allocation9 + $0xc0] sm:$0xff]
    %v1616 = vld [vmem:[#allocation9 + $0xc8] sm:$0xff]
    %v1617 = vld [vmem:[#allocation9 + $0xd0] sm:$0xff]
    %v1618 = vld [vmem:[#allocation9 + $0xd8] sm:$0xff]
    %v1619 = vld [vmem:[#allocation9 + $0xe0] sm:$0xff]
    %v1620 = vld [vmem:[#allocation9 + $0xe8] sm:$0xff]
    %v1621 = vld [vmem:[#allocation9 + $0xf0] sm:$0xff]
    %v1622 = vld [vmem:[#allocation9 + $0xf8] sm:$0xff]
    %v1623 = vld [vmem:[#allocation9 + $0x100] sm:$0xff]
    %v1624 = vld [vmem:[#allocation9 + $0x108] sm:$0xff]
    %v1625 = vld [vmem:[#allocation9 + $0x110] sm:$0xff]
    %v1626 = vld [vmem:[#allocation9 + $0x118] sm:$0xff]
    %v1627 = vld [vmem:[#allocation9 + $0x120] sm:$0xff]
    %v1628 = vld [vmem:[#allocation9 + $0x128] sm:$0xff]
    %v1629 = vld [vmem:[#allocation9 + $0x130] sm:$0xff]
    %v1630 = vld [vmem:[#allocation9 + $0x138] sm:$0xff]
    %v1631 = vld [vmem:[#allocation9 + $0x140] sm:$0xff]
    %v1632 = vld [vmem:[#allocation9 + $0x148] sm:$0xff]
    %v1633 = vld [vmem:[#allocation9 + $0x150] sm:$0xff]
    %v1634 = vld [vmem:[#allocation9 + $0x158] sm:$0xff]
    %v1635 = vld [vmem:[#allocation9 + $0x160] sm:$0xff]
    %v1636 = vld [vmem:[#allocation9 + $0x168] sm:$0xff]
    %v1637 = vld [vmem:[#allocation9 + $0x170] sm:$0xff]
    %v1638 = vld [vmem:[#allocation9 + $0x178] sm:$0xff]
    %1639 = vmatprep.subr.mxu0 %v1592
    %1640 = vmatpush1.msra.mxu0 %v1591
    %1641 = vmatprep.subr.mxu0 %v1595
    %1642 = vmatpush1.msra.mxu0 %v1594
    %1643 = vmatprep.subr.mxu0 %v1598
    %1644 = vmatpush1.msra.mxu0 %v1597
    %1645 = vmatprep.subr.mxu0 %v1601
    %1646 = vmatpush1.msra.mxu0 %v1600
    %1647 = vmatprep.subr.mxu0 %v1604
    %1648 = vmatpush1.msra.mxu0 %v1603
    %1649 = vmatprep.subr.mxu0 %v1607
    %1650 = vmatpush1.msra.mxu0 %v1606
    %1651 = vmatprep.subr.mxu0 %v1610
    %1652 = vmatpush1.msra.mxu0 %v1609
    %1653 = vmatprep.subr.mxu0 %v1613
    %1654 = vmatpush1.msra.mxu0 %v1612
    %1655 = vmatprep.subr.mxu0 %v1616
    %1656 = vmatpush1.msra.mxu0 %v1615
    %1657 = vmatprep.subr.mxu0 %v1619
    %1658 = vmatpush1.msra.mxu0 %v1618
    %1659 = vmatprep.subr.mxu0 %v1622
    %1660 = vmatpush1.msra.mxu0 %v1621
    %1661 = vmatprep.subr.mxu0 %v1625
    %1662 = vmatpush1.msra.mxu0 %v1624
    %1663 = vmatprep.subr.mxu0 %v1628
    %1664 = vmatpush1.msra.mxu0 %v1627
    %1665 = vmatprep.subr.mxu0 %v1631
    %1666 = vmatpush1.msra.mxu0 %v1630
    %1667 = vmatprep.subr.mxu0 %v1634
    %1668 = vmatpush1.msra.mxu0 %v1633
    %1669 = vmatprep.subr.mxu0 %v1637
    %1670 = vmatpush1.msra.mxu0 %v1636
    %1671 = vmatprep.subr.mxu0 0.0
    %1672 = vmatpush1.msra.mxu0 0.0
    %1673 = vmatprep.subr.mxu0 0.0
    %1674 = vmatpush1.msra.mxu0 0.0
    %1675 = vmatprep.subr.mxu0 0.0
    %1676 = vmatpush1.msra.mxu0 0.0
    %1677 = vmatprep.subr.mxu0 0.0
    %1678 = vmatpush1.msra.mxu0 0.0
    %1679 = vmatprep.subr.mxu0 0.0
    %1680 = vmatpush1.msra.mxu0 0.0
    %1681 = vmatprep.subr.mxu0 0.0
    %1682 = vmatpush1.msra.mxu0 0.0
    %1683 = vmatprep.subr.mxu0 0.0
    %1684 = vmatpush1.msra.mxu0 0.0
    %1685 = vmatprep.subr.mxu0 0.0
    %1686 = vmatpush1.msra.mxu0 0.0
    %1687 = vmatprep.subr.mxu0 0.0
    %1688 = vmatpush1.msra.mxu0 0.0
    %1689 = vmatprep.subr.mxu0 0.0
    %1690 = vmatpush1.msra.mxu0 0.0
    %1691 = vmatprep.subr.mxu0 0.0
    %1692 = vmatpush1.msra.mxu0 0.0
    %1693 = vmatprep.subr.mxu0 0.0
    %1694 = vmatpush1.msra.mxu0 0.0
    %1695 = vmatprep.subr.mxu0 0.0
    %1696 = vmatpush1.msra.mxu0 0.0
    %1697 = vmatprep.subr.mxu0 0.0
    %1698 = vmatpush1.msra.mxu0 0.0
    %1699 = vmatprep.subr.mxu0 0.0
    %1700 = vmatpush1.msra.mxu0 0.0
    %1701 = vmatprep.subr.mxu0 0.0
    %1702 = vmatpush1.msra.mxu0 0.0
    %1703 = vmatprep.mubr.f32.mxu0 0.0
    %1704 = vmatmul.mubr.f32.gmra.mrb[0].mxu0 %v1384
    %v1705 = vpop.f32.mrb[0].mxu0
    %v1706 = vadd.f32 0.0, %v1705
    %v1707 = vpop.f32.mrb[0].mxu0
    %v1708 = vadd.f32 0.0, %v1707
    %1709 = vdwg.mxu0
    %1710 = vmatprep.subr.mxu0 0.0
    %1711 = vmatpush1.msra.mxu0 %v1593
    %1712 = vmatprep.subr.mxu0 0.0
    %1713 = vmatpush1.msra.mxu0 %v1596
    %1714 = vmatprep.subr.mxu0 0.0
    %1715 = vmatpush1.msra.mxu0 %v1599
    %1716 = vmatprep.subr.mxu0 0.0
    %1717 = vmatpush1.msra.mxu0 %v1602
    %1718 = vmatprep.subr.mxu0 0.0
    %1719 = vmatpush1.msra.mxu0 %v1605
    %1720 = vmatprep.subr.mxu0 0.0
    %1721 = vmatpush1.msra.mxu0 %v1608
    %1722 = vmatprep.subr.mxu0 0.0
    %1723 = vmatpush1.msra.mxu0 %v1611
    %1724 = vmatprep.subr.mxu0 0.0
    %1725 = vmatpush1.msra.mxu0 %v1614
    %1726 = vmatprep.subr.mxu0 0.0
    %1727 = vmatpush1.msra.mxu0 %v1617
    %1728 = vmatprep.subr.mxu0 0.0
    %1729 = vmatpush1.msra.mxu0 %v1620
    %1730 = vmatprep.subr.mxu0 0.0
    %1731 = vmatpush1.msra.mxu0 %v1623
    %1732 = vmatprep.subr.mxu0 0.0
    %1733 = vmatpush1.msra.mxu0 %v1626
    %1734 = vmatprep.subr.mxu0 0.0
    %1735 = vmatpush1.msra.mxu0 %v1629
    %1736 = vmatprep.subr.mxu0 0.0
    %1737 = vmatpush1.msra.mxu0 %v1632
    %1738 = vmatprep.subr.mxu0 0.0
    %1739 = vmatpush1.msra.mxu0 %v1635
    %1740 = vmatprep.subr.mxu0 0.0
    %1741 = vmatpush1.msra.mxu0 %v1638
    %1742 = vmatprep.subr.mxu0 0.0
    %1743 = vmatpush1.msra.mxu0 0.0
    %1744 = vmatprep.subr.mxu0 0.0
    %1745 = vmatpush1.msra.mxu0 0.0
    %1746 = vmatprep.subr.mxu0 0.0
    %1747 = vmatpush1.msra.mxu0 0.0
    %1748 = vmatprep.subr.mxu0 0.0
    %1749 = vmatpush1.msra.mxu0 0.0
    %1750 = vmatprep.subr.mxu0 0.0
    %1751 = vmatpush1.msra.mxu0 0.0
    %1752 = vmatprep.subr.mxu0 0.0
    %1753 = vmatpush1.msra.mxu0 0.0
    %1754 = vmatprep.subr.mxu0 0.0
    %1755 = vmatpush1.msra.mxu0 0.0
    %1756 = vmatprep.subr.mxu0 0.0
    %1757 = vmatpush1.msra.mxu0 0.0
    %1758 = vmatprep.subr.mxu0 0.0
    %1759 = vmatpush1.msra.mxu0 0.0
    %1760 = vmatprep.subr.mxu0 0.0
    %1761 = vmatpush1.msra.mxu0 0.0
    %1762 = vmatprep.subr.mxu0 0.0
    %1763 = vmatpush1.msra.mxu0 0.0
    %1764 = vmatprep.subr.mxu0 0.0
    %1765 = vmatpush1.msra.mxu0 0.0
    %1766 = vmatprep.subr.mxu0 0.0
    %1767 = vmatpush1.msra.mxu0 0.0
    %1768 = vmatprep.subr.mxu0 0.0
    %1769 = vmatpush1.msra.mxu0 0.0
    %1770 = vmatprep.subr.mxu0 0.0
    %1771 = vmatpush1.msra.mxu0 0.0
    %1772 = vmatprep.subr.mxu0 0.0
    %1773 = vmatpush1.msra.mxu0 0.0
    %1774 = vmatprep.mubr.f32.mxu0 0.0
    %1775 = vmatmul.mubr.f32.gmra.mrb[0].mxu0 %v1384
    %v1776 = vpop.f32.mrb[0].mxu0
    %v1777 = vadd.f32 0.0, %v1776
    %v1778 = vpop.f32.mrb[0].mxu0
    %1779 = vdwg.mxu0
    %v1780 = vadd.f32 %v1517, %v1706
    %v1781 = vxor.u32 %v1780, 2147483648
    %v1782 = vmul.f32 %v1781, 1.442695
    %v1783 = vpow.pop %v1782
    %v1784 = vadd.f32 %v1783, 1.0
    %v1785 = vrcp.pop %v1784
    %v1786 = vmul.f32 1.0, %v1785
    %v1787 = vadd.f32 %v1519, %v1708
    %v1788 = vxor.u32 %v1787, 2147483648
    %v1789 = vmul.f32 %v1788, 1.442695
    %v1790 = vpow.pop %v1789
    %v1791 = vadd.f32 %v1790, 1.0
    %v1792 = vrcp.pop %v1791
    %v1793 = vmul.f32 1.0, %v1792
    %v1794 = vld [vmem:[%s9] sm:$0x1]
    %v1796 = vlaneseq
    %v1797 = vshrl.u32 %v1796, 7
    %v1798 = vsub.s32 0, %v1797
    %v1799 = vrot.slane %v1794, %v1798
    %v1801 = vadd.f32 %v1777, %v1799
    %v1802 = vmul.f32 %v1786, %v1801
    %v1803 = vadd.f32 %v1588, %v1802
    %v1804 = vtanh.pop %v1803
    %v1805 = vsub.f32 1.0, %v1793
    %v1806 = vmul.f32 %v1805, %v1804
    %v1807 = vmul.f32 %v1793, %v1384
    %v1808 = vadd.f32 %v1806, %v1807
    %1809 = vst [vmem:[%s528] sm:$0x3] %v1808
    %s1810 = scalar_lea.vmem %s10, 2
    %1811 = vst [vmem:[%s1810] sm:$0x3] %v1808
    %s1812 = scalar_lea.vmem %s0, 4
    %v1813 = vld [vmem:[%s1812] sm:$0x3]
    %v1814 = vld [vmem:[#allocation2] sm:$0x3]
    %v1815 = vld [vmem:[#allocation3] sm:$0xff]
    %v1816 = vld [vmem:[#allocation3 + $0x8] sm:$0xff]
    %v1817 = vld [vmem:[#allocation3 + $0x10] sm:$0xff]
    %v1818 = vld [vmem:[#allocation3 + $0x18] sm:$0xff]
    %v1819 = vld [vmem:[#allocation3 + $0x20] sm:$0xff]
    %v1820 = vld [vmem:[#allocation3 + $0x28] sm:$0xff]
    %v1821 = vld [vmem:[#allocation3 + $0x30] sm:$0xff]
    %v1822 = vld [vmem:[#allocation3 + $0x38] sm:$0xff]
    %v1823 = vld [vmem:[#allocation3 + $0x40] sm:$0xff]
    %v1824 = vld [vmem:[#allocation3 + $0x48] sm:$0xff]
    %v1825 = vld [vmem:[#allocation3 + $0x50] sm:$0xff]
    %v1826 = vld [vmem:[#allocation3 + $0x58] sm:$0xff]
    %v1827 = vld [vmem:[#allocation3 + $0x60] sm:$0xff]
    %v1828 = vld [vmem:[#allocation3 + $0x68] sm:$0xff]
    %v1829 = vld [vmem:[#allocation3 + $0x70] sm:$0xff]
    %v1830 = vld [vmem:[#allocation3 + $0x78] sm:$0xff]
    %v1831 = vld [vmem:[#allocation3 + $0x80] sm:$0xff]
    %v1832 = vld [vmem:[#allocation3 + $0x88] sm:$0xff]
    %v1833 = vld [vmem:[#allocation3 + $0x90] sm:$0xff]
    %v1834 = vld [vmem:[#allocation3 + $0x98] sm:$0xff]
    %v1835 = vld [vmem:[#allocation3 + $0xa0] sm:$0xff]
    %v1836 = vld [vmem:[#allocation3 + $0xa8] sm:$0xff]
    %v1837 = vld [vmem:[#allocation3 + $0xb0] sm:$0xff]
    %v1838 = vld [vmem:[#allocation3 + $0xb8] sm:$0xff]
    %v1839 = vld [vmem:[#allocation3 + $0xc0] sm:$0xff]
    %v1840 = vld [vmem:[#allocation3 + $0xc8] sm:$0xff]
    %v1841 = vld [vmem:[#allocation3 + $0xd0] sm:$0xff]
    %v1842 = vld [vmem:[#allocation3 + $0xd8] sm:$0xff]
    %v1843 = vld [vmem:[#allocation3 + $0xe0] sm:$0xff]
    %v1844 = vld [vmem:[#allocation3 + $0xe8] sm:$0xff]
    %v1845 = vld [vmem:[#allocation3 + $0xf0] sm:$0xff]
    %v1846 = vld [vmem:[#allocation3 + $0xf8] sm:$0xff]
    %v1847 = vld [vmem:[#allocation3 + $0x100] sm:$0xff]
    %v1848 = vld [vmem:[#allocation3 + $0x108] sm:$0xff]
    %v1849 = vld [vmem:[#allocation3 + $0x110] sm:$0xff]
    %v1850 = vld [vmem:[#allocation3 + $0x118] sm:$0xff]
    %v1851 = vld [vmem:[#allocation3 + $0x120] sm:$0xff]
    %v1852 = vld [vmem:[#allocation3 + $0x128] sm:$0xff]
    %v1853 = vld [vmem:[#allocation3 + $0x130] sm:$0xff]
    %v1854 = vld [vmem:[#allocation3 + $0x138] sm:$0xff]
    %v1855 = vld [vmem:[#allocation3 + $0x140] sm:$0xff]
    %v1856 = vld [vmem:[#allocation3 + $0x148] sm:$0xff]
    %v1857 = vld [vmem:[#allocation3 + $0x150] sm:$0xff]
    %v1858 = vld [vmem:[#allocation3 + $0x158] sm:$0xff]
    %v1859 = vld [vmem:[#allocation3 + $0x160] sm:$0xff]
    %v1860 = vld [vmem:[#allocation3 + $0x168] sm:$0xff]
    %v1861 = vld [vmem:[#allocation3 + $0x170] sm:$0xff]
    %v1862 = vld [vmem:[#allocation3 + $0x178] sm:$0xff]
    %v1863 = vld [vmem:[%s4] sm:$0x7]
    %v1865 = vlaneseq
    %v1866 = vshrl.u32 %v1865, 7
    %v1867 = vsub.s32 0, %v1866
    %v1868 = vrot.slane %v1863, %v1867
    %v1869 = vlaneseq
    %v1870 = vshrl.u32 %v1869, 7
    %v1871 = vsub.s32 1, %v1870
    %v1872 = vrot.slane %v1863, %v1871
    %v1873 = vlaneseq
    %v1874 = vshrl.u32 %v1873, 7
    %v1875 = vsub.s32 2, %v1874
    %v1876 = vrot.slane %v1863, %v1875
    %1880 = vmatprep.subr.mxu0 %v1816
    %1881 = vmatpush1.msra.mxu0 %v1815
    %1882 = vmatprep.subr.mxu0 %v1819
    %1883 = vmatpush1.msra.mxu0 %v1818
    %1884 = vmatprep.subr.mxu0 %v1822
    %1885 = vmatpush1.msra.mxu0 %v1821
    %1886 = vmatprep.subr.mxu0 %v1825
    %1887 = vmatpush1.msra.mxu0 %v1824
    %1888 = vmatprep.subr.mxu0 %v1828
    %1889 = vmatpush1.msra.mxu0 %v1827
    %1890 = vmatprep.subr.mxu0 %v1831
    %1891 = vmatpush1.msra.mxu0 %v1830
    %1892 = vmatprep.subr.mxu0 %v1834
    %1893 = vmatpush1.msra.mxu0 %v1833
    %1894 = vmatprep.subr.mxu0 %v1837
    %1895 = vmatpush1.msra.mxu0 %v1836
    %1896 = vmatprep.subr.mxu0 %v1840
    %1897 = vmatpush1.msra.mxu0 %v1839
    %1898 = vmatprep.subr.mxu0 %v1843
    %1899 = vmatpush1.msra.mxu0 %v1842
    %1900 = vmatprep.subr.mxu0 %v1846
    %1901 = vmatpush1.msra.mxu0 %v1845
    %1902 = vmatprep.subr.mxu0 %v1849
    %1903 = vmatpush1.msra.mxu0 %v1848
    %1904 = vmatprep.subr.mxu0 %v1852
    %1905 = vmatpush1.msra.mxu0 %v1851
    %1906 = vmatprep.subr.mxu0 %v1855
    %1907 = vmatpush1.msra.mxu0 %v1854
    %1908 = vmatprep.subr.mxu0 %v1858
    %1909 = vmatpush1.msra.mxu0 %v1857
    %1910 = vmatprep.subr.mxu0 %v1861
    %1911 = vmatpush1.msra.mxu0 %v1860
    %1912 = vmatprep.subr.mxu0 0.0
    %1913 = vmatpush1.msra.mxu0 0.0
    %1914 = vmatprep.subr.mxu0 0.0
    %1915 = vmatpush1.msra.mxu0 0.0
    %1916 = vmatprep.subr.mxu0 0.0
    %1917 = vmatpush1.msra.mxu0 0.0
    %1918 = vmatprep.subr.mxu0 0.0
    %1919 = vmatpush1.msra.mxu0 0.0
    %1920 = vmatprep.subr.mxu0 0.0
    %1921 = vmatpush1.msra.mxu0 0.0
    %1922 = vmatprep.subr.mxu0 0.0
    %1923 = vmatpush1.msra.mxu0 0.0
    %1924 = vmatprep.subr.mxu0 0.0
    %1925 = vmatpush1.msra.mxu0 0.0
    %1926 = vmatprep.subr.mxu0 0.0
    %1927 = vmatpush1.msra.mxu0 0.0
    %1928 = vmatprep.subr.mxu0 0.0
    %1929 = vmatpush1.msra.mxu0 0.0
    %1930 = vmatprep.subr.mxu0 0.0
    %1931 = vmatpush1.msra.mxu0 0.0
    %1932 = vmatprep.subr.mxu0 0.0
    %1933 = vmatpush1.msra.mxu0 0.0
    %1934 = vmatprep.subr.mxu0 0.0
    %1935 = vmatpush1.msra.mxu0 0.0
    %1936 = vmatprep.subr.mxu0 0.0
    %1937 = vmatpush1.msra.mxu0 0.0
    %1938 = vmatprep.subr.mxu0 0.0
    %1939 = vmatpush1.msra.mxu0 0.0
    %1940 = vmatprep.subr.mxu0 0.0
    %1941 = vmatpush1.msra.mxu0 0.0
    %1942 = vmatprep.subr.mxu0 0.0
    %1943 = vmatpush1.msra.mxu0 0.0
    %1944 = vmatprep.mubr.f32.mxu0 0.0
    %1945 = vmatmul.mubr.f32.gmra.mrb[0].mxu0 %v1813
    %v1946 = vpop.f32.mrb[0].mxu0
    %v1947 = vadd.f32 %v1868, %v1946
    %v1948 = vpop.f32.mrb[0].mxu0
    %v1949 = vadd.f32 %v1872, %v1948
    %1950 = vdwg.mxu0
    %1951 = vmatprep.subr.mxu0 0.0
    %1952 = vmatpush1.msra.mxu0 %v1817
    %1953 = vmatprep.subr.mxu0 0.0
    %1954 = vmatpush1.msra.mxu0 %v1820
    %1955 = vmatprep.subr.mxu0 0.0
    %1956 = vmatpush1.msra.mxu0 %v1823
    %1957 = vmatprep.subr.mxu0 0.0
    %1958 = vmatpush1.msra.mxu0 %v1826
    %1959 = vmatprep.subr.mxu0 0.0
    %1960 = vmatpush1.msra.mxu0 %v1829
    %1961 = vmatprep.subr.mxu0 0.0
    %1962 = vmatpush1.msra.mxu0 %v1832
    %1963 = vmatprep.subr.mxu0 0.0
    %1964 = vmatpush1.msra.mxu0 %v1835
    %1965 = vmatprep.subr.mxu0 0.0
    %1966 = vmatpush1.msra.mxu0 %v1838
    %1967 = vmatprep.subr.mxu0 0.0
    %1968 = vmatpush1.msra.mxu0 %v1841
    %1969 = vmatprep.subr.mxu0 0.0
    %1970 = vmatpush1.msra.mxu0 %v1844
    %1971 = vmatprep.subr.mxu0 0.0
    %1972 = vmatpush1.msra.mxu0 %v1847
    %1973 = vmatprep.subr.mxu0 0.0
    %1974 = vmatpush1.msra.mxu0 %v1850
    %1975 = vmatprep.subr.mxu0 0.0
    %1976 = vmatpush1.msra.mxu0 %v1853
    %1977 = vmatprep.subr.mxu0 0.0
    %1978 = vmatpush1.msra.mxu0 %v1856
    %1979 = vmatprep.subr.mxu0 0.0
    %1980 = vmatpush1.msra.mxu0 %v1859
    %1981 = vmatprep.subr.mxu0 0.0
    %1982 = vmatpush1.msra.mxu0 %v1862
    %1983 = vmatprep.subr.mxu0 0.0
    %1984 = vmatpush1.msra.mxu0 0.0
    %1985 = vmatprep.subr.mxu0 0.0
    %1986 = vmatpush1.msra.mxu0 0.0
    %1987 = vmatprep.subr.mxu0 0.0
    %1988 = vmatpush1.msra.mxu0 0.0
    %1989 = vmatprep.subr.mxu0 0.0
    %1990 = vmatpush1.msra.mxu0 0.0
    %1991 = vmatprep.subr.mxu0 0.0
    %1992 = vmatpush1.msra.mxu0 0.0
    %1993 = vmatprep.subr.mxu0 0.0
    %1994 = vmatpush1.msra.mxu0 0.0
    %1995 = vmatprep.subr.mxu0 0.0
    %1996 = vmatpush1.msra.mxu0 0.0
    %1997 = vmatprep.subr.mxu0 0.0
    %1998 = vmatpush1.msra.mxu0 0.0
    %1999 = vmatprep.subr.mxu0 0.0
    %2000 = vmatpush1.msra.mxu0 0.0
    %2001 = vmatprep.subr.mxu0 0.0
    %2002 = vmatpush1.msra.mxu0 0.0
    %2003 = vmatprep.subr.mxu0 0.0
    %2004 = vmatpush1.msra.mxu0 0.0
    %2005 = vmatprep.subr.mxu0 0.0
    %2006 = vmatpush1.msra.mxu0 0.0
    %2007 = vmatprep.subr.mxu0 0.0
    %2008 = vmatpush1.msra.mxu0 0.0
    %2009 = vmatprep.subr.mxu0 0.0
    %2010 = vmatpush1.msra.mxu0 0.0
    %2011 = vmatprep.subr.mxu0 0.0
    %2012 = vmatpush1.msra.mxu0 0.0
    %2013 = vmatprep.subr.mxu0 0.0
    %2014 = vmatpush1.msra.mxu0 0.0
    %2015 = vmatprep.mubr.f32.mxu0 0.0
    %2016 = vmatmul.mubr.f32.gmra.mrb[0].mxu0 %v1813
    %v2017 = vpop.f32.mrb[0].mxu0
    %v2018 = vadd.f32 %v1876, %v2017
    %v2019 = vpop.f32.mrb[0].mxu0
    %2020 = vdwg.mxu0
    %v2021 = vld [vmem:[#allocation6] sm:$0xff]
    %v2022 = vld [vmem:[#allocation6 + $0x8] sm:$0xff]
    %v2023 = vld [vmem:[#allocation6 + $0x10] sm:$0xff]
    %v2024 = vld [vmem:[#allocation6 + $0x18] sm:$0xff]
    %v2025 = vld [vmem:[#allocation6 + $0x20] sm:$0xff]
    %v2026 = vld [vmem:[#allocation6 + $0x28] sm:$0xff]
    %v2027 = vld [vmem:[#allocation6 + $0x30] sm:$0xff]
    %v2028 = vld [vmem:[#allocation6 + $0x38] sm:$0xff]
    %v2029 = vld [vmem:[#allocation6 + $0x40] sm:$0xff]
    %v2030 = vld [vmem:[#allocation6 + $0x48] sm:$0xff]
    %v2031 = vld [vmem:[#allocation6 + $0x50] sm:$0xff]
    %v2032 = vld [vmem:[#allocation6 + $0x58] sm:$0xff]
    %v2033 = vld [vmem:[#allocation6 + $0x60] sm:$0xff]
    %v2034 = vld [vmem:[#allocation6 + $0x68] sm:$0xff]
    %v2035 = vld [vmem:[#allocation6 + $0x70] sm:$0xff]
    %v2036 = vld [vmem:[#allocation6 + $0x78] sm:$0xff]
    %v2037 = vld [vmem:[#allocation6 + $0x80] sm:$0xff]
    %v2038 = vld [vmem:[#allocation6 + $0x88] sm:$0xff]
    %v2039 = vld [vmem:[#allocation6 + $0x90] sm:$0xff]
    %v2040 = vld [vmem:[#allocation6 + $0x98] sm:$0xff]
    %v2041 = vld [vmem:[#allocation6 + $0xa0] sm:$0xff]
    %v2042 = vld [vmem:[#allocation6 + $0xa8] sm:$0xff]
    %v2043 = vld [vmem:[#allocation6 + $0xb0] sm:$0xff]
    %v2044 = vld [vmem:[#allocation6 + $0xb8] sm:$0xff]
    %v2045 = vld [vmem:[#allocation6 + $0xc0] sm:$0xff]
    %v2046 = vld [vmem:[#allocation6 + $0xc8] sm:$0xff]
    %v2047 = vld [vmem:[#allocation6 + $0xd0] sm:$0xff]
    %v2048 = vld [vmem:[#allocation6 + $0xd8] sm:$0xff]
    %v2049 = vld [vmem:[#allocation6 + $0xe0] sm:$0xff]
    %v2050 = vld [vmem:[#allocation6 + $0xe8] sm:$0xff]
    %v2051 = vld [vmem:[#allocation6 + $0xf0] sm:$0xff]
    %v2052 = vld [vmem:[#allocation6 + $0xf8] sm:$0xff]
    %v2053 = vld [vmem:[#allocation6 + $0x100] sm:$0xff]
    %v2054 = vld [vmem:[#allocation6 + $0x108] sm:$0xff]
    %v2055 = vld [vmem:[#allocation6 + $0x110] sm:$0xff]
    %v2056 = vld [vmem:[#allocation6 + $0x118] sm:$0xff]
    %v2057 = vld [vmem:[#allocation6 + $0x120] sm:$0xff]
    %v2058 = vld [vmem:[#allocation6 + $0x128] sm:$0xff]
    %v2059 = vld [vmem:[#allocation6 + $0x130] sm:$0xff]
    %v2060 = vld [vmem:[#allocation6 + $0x138] sm:$0xff]
    %v2061 = vld [vmem:[#allocation6 + $0x140] sm:$0xff]
    %v2062 = vld [vmem:[#allocation6 + $0x148] sm:$0xff]
    %v2063 = vld [vmem:[#allocation6 + $0x150] sm:$0xff]
    %v2064 = vld [vmem:[#allocation6 + $0x158] sm:$0xff]
    %v2065 = vld [vmem:[#allocation6 + $0x160] sm:$0xff]
    %v2066 = vld [vmem:[#allocation6 + $0x168] sm:$0xff]
    %v2067 = vld [vmem:[#allocation6 + $0x170] sm:$0xff]
    %v2068 = vld [vmem:[#allocation6 + $0x178] sm:$0xff]
    %2069 = vmatprep.subr.mxu0 %v2022
    %2070 = vmatpush1.msra.mxu0 %v2021
    %2071 = vmatprep.subr.mxu0 %v2025
    %2072 = vmatpush1.msra.mxu0 %v2024
    %2073 = vmatprep.subr.mxu0 %v2028
    %2074 = vmatpush1.msra.mxu0 %v2027
    %2075 = vmatprep.subr.mxu0 %v2031
    %2076 = vmatpush1.msra.mxu0 %v2030
    %2077 = vmatprep.subr.mxu0 %v2034
    %2078 = vmatpush1.msra.mxu0 %v2033
    %2079 = vmatprep.subr.mxu0 %v2037
    %2080 = vmatpush1.msra.mxu0 %v2036
    %2081 = vmatprep.subr.mxu0 %v2040
    %2082 = vmatpush1.msra.mxu0 %v2039
    %2083 = vmatprep.subr.mxu0 %v2043
    %2084 = vmatpush1.msra.mxu0 %v2042
    %2085 = vmatprep.subr.mxu0 %v2046
    %2086 = vmatpush1.msra.mxu0 %v2045
    %2087 = vmatprep.subr.mxu0 %v2049
    %2088 = vmatpush1.msra.mxu0 %v2048
    %2089 = vmatprep.subr.mxu0 %v2052
    %2090 = vmatpush1.msra.mxu0 %v2051
    %2091 = vmatprep.subr.mxu0 %v2055
    %2092 = vmatpush1.msra.mxu0 %v2054
    %2093 = vmatprep.subr.mxu0 %v2058
    %2094 = vmatpush1.msra.mxu0 %v2057
    %2095 = vmatprep.subr.mxu0 %v2061
    %2096 = vmatpush1.msra.mxu0 %v2060
    %2097 = vmatprep.subr.mxu0 %v2064
    %2098 = vmatpush1.msra.mxu0 %v2063
    %2099 = vmatprep.subr.mxu0 %v2067
    %2100 = vmatpush1.msra.mxu0 %v2066
    %2101 = vmatprep.subr.mxu0 0.0
    %2102 = vmatpush1.msra.mxu0 0.0
    %2103 = vmatprep.subr.mxu0 0.0
    %2104 = vmatpush1.msra.mxu0 0.0
    %2105 = vmatprep.subr.mxu0 0.0
    %2106 = vmatpush1.msra.mxu0 0.0
    %2107 = vmatprep.subr.mxu0 0.0
    %2108 = vmatpush1.msra.mxu0 0.0
    %2109 = vmatprep.subr.mxu0 0.0
    %2110 = vmatpush1.msra.mxu0 0.0
    %2111 = vmatprep.subr.mxu0 0.0
    %2112 = vmatpush1.msra.mxu0 0.0
    %2113 = vmatprep.subr.mxu0 0.0
    %2114 = vmatpush1.msra.mxu0 0.0
    %2115 = vmatprep.subr.mxu0 0.0
    %2116 = vmatpush1.msra.mxu0 0.0
    %2117 = vmatprep.subr.mxu0 0.0
    %2118 = vmatpush1.msra.mxu0 0.0
    %2119 = vmatprep.subr.mxu0 0.0
    %2120 = vmatpush1.msra.mxu0 0.0
    %2121 = vmatprep.subr.mxu0 0.0
    %2122 = vmatpush1.msra.mxu0 0.0
    %2123 = vmatprep.subr.mxu0 0.0
    %2124 = vmatpush1.msra.mxu0 0.0
    %2125 = vmatprep.subr.mxu0 0.0
    %2126 = vmatpush1.msra.mxu0 0.0
    %2127 = vmatprep.subr.mxu0 0.0
    %2128 = vmatpush1.msra.mxu0 0.0
    %2129 = vmatprep.subr.mxu0 0.0
    %2130 = vmatpush1.msra.mxu0 0.0
    %2131 = vmatprep.subr.mxu0 0.0
    %2132 = vmatpush1.msra.mxu0 0.0
    %2133 = vmatprep.mubr.f32.mxu0 0.0
    %2134 = vmatmul.mubr.f32.gmra.mrb[0].mxu0 %v1814
    %v2135 = vpop.f32.mrb[0].mxu0
    %v2136 = vadd.f32 0.0, %v2135
    %v2137 = vpop.f32.mrb[0].mxu0
    %v2138 = vadd.f32 0.0, %v2137
    %2139 = vdwg.mxu0
    %2140 = vmatprep.subr.mxu0 0.0
    %2141 = vmatpush1.msra.mxu0 %v2023
    %2142 = vmatprep.subr.mxu0 0.0
    %2143 = vmatpush1.msra.mxu0 %v2026
    %2144 = vmatprep.subr.mxu0 0.0
    %2145 = vmatpush1.msra.mxu0 %v2029
    %2146 = vmatprep.subr.mxu0 0.0
    %2147 = vmatpush1.msra.mxu0 %v2032
    %2148 = vmatprep.subr.mxu0 0.0
    %2149 = vmatpush1.msra.mxu0 %v2035
    %2150 = vmatprep.subr.mxu0 0.0
    %2151 = vmatpush1.msra.mxu0 %v2038
    %2152 = vmatprep.subr.mxu0 0.0
    %2153 = vmatpush1.msra.mxu0 %v2041
    %2154 = vmatprep.subr.mxu0 0.0
    %2155 = vmatpush1.msra.mxu0 %v2044
    %2156 = vmatprep.subr.mxu0 0.0
    %2157 = vmatpush1.msra.mxu0 %v2047
    %2158 = vmatprep.subr.mxu0 0.0
    %2159 = vmatpush1.msra.mxu0 %v2050
    %2160 = vmatprep.subr.mxu0 0.0
    %2161 = vmatpush1.msra.mxu0 %v2053
    %2162 = vmatprep.subr.mxu0 0.0
    %2163 = vmatpush1.msra.mxu0 %v2056
    %2164 = vmatprep.subr.mxu0 0.0
    %2165 = vmatpush1.msra.mxu0 %v2059
    %2166 = vmatprep.subr.mxu0 0.0
    %2167 = vmatpush1.msra.mxu0 %v2062
    %2168 = vmatprep.subr.mxu0 0.0
    %2169 = vmatpush1.msra.mxu0 %v2065
    %2170 = vmatprep.subr.mxu0 0.0
    %2171 = vmatpush1.msra.mxu0 %v2068
    %2172 = vmatprep.subr.mxu0 0.0
    %2173 = vmatpush1.msra.mxu0 0.0
    %2174 = vmatprep.subr.mxu0 0.0
    %2175 = vmatpush1.msra.mxu0 0.0
    %2176 = vmatprep.subr.mxu0 0.0
    %2177 = vmatpush1.msra.mxu0 0.0
    %2178 = vmatprep.subr.mxu0 0.0
    %2179 = vmatpush1.msra.mxu0 0.0
    %2180 = vmatprep.subr.mxu0 0.0
    %2181 = vmatpush1.msra.mxu0 0.0
    %2182 = vmatprep.subr.mxu0 0.0
    %2183 = vmatpush1.msra.mxu0 0.0
    %2184 = vmatprep.subr.mxu0 0.0
    %2185 = vmatpush1.msra.mxu0 0.0
    %2186 = vmatprep.subr.mxu0 0.0
    %2187 = vmatpush1.msra.mxu0 0.0
    %2188 = vmatprep.subr.mxu0 0.0
    %2189 = vmatpush1.msra.mxu0 0.0
    %2190 = vmatprep.subr.mxu0 0.0
    %2191 = vmatpush1.msra.mxu0 0.0
    %2192 = vmatprep.subr.mxu0 0.0
    %2193 = vmatpush1.msra.mxu0 0.0
    %2194 = vmatprep.subr.mxu0 0.0
    %2195 = vmatpush1.msra.mxu0 0.0
    %2196 = vmatprep.subr.mxu0 0.0
    %2197 = vmatpush1.msra.mxu0 0.0
    %2198 = vmatprep.subr.mxu0 0.0
    %2199 = vmatpush1.msra.mxu0 0.0
    %2200 = vmatprep.subr.mxu0 0.0
    %2201 = vmatpush1.msra.mxu0 0.0
    %2202 = vmatprep.subr.mxu0 0.0
    %2203 = vmatpush1.msra.mxu0 0.0
    %2204 = vmatprep.mubr.f32.mxu0 0.0
    %2205 = vmatmul.mubr.f32.gmra.mrb[0].mxu0 %v1814
    %v2206 = vpop.f32.mrb[0].mxu0
    %v2207 = vadd.f32 0.0, %v2206
    %v2208 = vpop.f32.mrb[0].mxu0
    %2209 = vdwg.mxu0
    %v2210 = vadd.f32 %v1947, %v2136
    %v2211 = vxor.u32 %v2210, 2147483648
    %v2212 = vmul.f32 %v2211, 1.442695
    %v2213 = vpow.pop %v2212
    %v2214 = vadd.f32 %v2213, 1.0
    %v2215 = vrcp.pop %v2214
    %v2216 = vmul.f32 1.0, %v2215
    %v2217 = vadd.f32 %v1949, %v2138
    %v2218 = vxor.u32 %v2217, 2147483648
    %v2219 = vmul.f32 %v2218, 1.442695
    %v2220 = vpow.pop %v2219
    %v2221 = vadd.f32 %v2220, 1.0
    %v2222 = vrcp.pop %v2221
    %v2223 = vmul.f32 1.0, %v2222
    %v2224 = vld [vmem:[%s5] sm:$0x1]
    %v2226 = vlaneseq
    %v2227 = vshrl.u32 %v2226, 7
    %v2228 = vsub.s32 0, %v2227
    %v2229 = vrot.slane %v2224, %v2228
    %v2231 = vadd.f32 %v2207, %v2229
    %v2232 = vmul.f32 %v2216, %v2231
    %v2233 = vadd.f32 %v2018, %v2232
    %v2234 = vtanh.pop %v2233
    %v2235 = vsub.f32 1.0, %v2223
    %v2236 = vmul.f32 %v2235, %v2234
    %v2237 = vmul.f32 %v2223, %v1814
    %v2238 = vadd.f32 %v2236, %v2237
    %2239 = vst [vmem:[#allocation2] sm:$0x3] %v2238
    %v2240 = vld [vmem:[%s528] sm:$0x3]
    %v2241 = vld [vmem:[#allocation8] sm:$0xff]
    %v2242 = vld [vmem:[#allocation8 + $0x8] sm:$0xff]
    %v2243 = vld [vmem:[#allocation8 + $0x10] sm:$0xff]
    %v2244 = vld [vmem:[#allocation8 + $0x18] sm:$0xff]
    %v2245 = vld [vmem:[#allocation8 + $0x20] sm:$0xff]
    %v2246 = vld [vmem:[#allocation8 + $0x28] sm:$0xff]
    %v2247 = vld [vmem:[#allocation8 + $0x30] sm:$0xff]
    %v2248 = vld [vmem:[#allocation8 + $0x38] sm:$0xff]
    %v2249 = vld [vmem:[#allocation8 + $0x40] sm:$0xff]
    %v2250 = vld [vmem:[#allocation8 + $0x48] sm:$0xff]
    %v2251 = vld [vmem:[#allocation8 + $0x50] sm:$0xff]
    %v2252 = vld [vmem:[#allocation8 + $0x58] sm:$0xff]
    %v2253 = vld [vmem:[#allocation8 + $0x60] sm:$0xff]
    %v2254 = vld [vmem:[#allocation8 + $0x68] sm:$0xff]
    %v2255 = vld [vmem:[#allocation8 + $0x70] sm:$0xff]
    %v2256 = vld [vmem:[#allocation8 + $0x78] sm:$0xff]
    %v2257 = vld [vmem:[#allocation8 + $0x80] sm:$0xff]
    %v2258 = vld [vmem:[#allocation8 + $0x88] sm:$0xff]
    %v2259 = vld [vmem:[#allocation8 + $0x90] sm:$0xff]
    %v2260 = vld [vmem:[#allocation8 + $0x98] sm:$0xff]
    %v2261 = vld [vmem:[#allocation8 + $0xa0] sm:$0xff]
    %v2262 = vld [vmem:[#allocation8 + $0xa8] sm:$0xff]
    %v2263 = vld [vmem:[#allocation8 + $0xb0] sm:$0xff]
    %v2264 = vld [vmem:[#allocation8 + $0xb8] sm:$0xff]
    %v2265 = vld [vmem:[#allocation8 + $0xc0] sm:$0xff]
    %v2266 = vld [vmem:[#allocation8 + $0xc8] sm:$0xff]
    %v2267 = vld [vmem:[#allocation8 + $0xd0] sm:$0xff]
    %v2268 = vld [vmem:[#allocation8 + $0xd8] sm:$0xff]
    %v2269 = vld [vmem:[#allocation8 + $0xe0] sm:$0xff]
    %v2270 = vld [vmem:[#allocation8 + $0xe8] sm:$0xff]
    %v2271 = vld [vmem:[#allocation8 + $0xf0] sm:$0xff]
    %v2272 = vld [vmem:[#allocation8 + $0xf8] sm:$0xff]
    %v2273 = vld [vmem:[#allocation8 + $0x100] sm:$0xff]
    %v2274 = vld [vmem:[#allocation8 + $0x108] sm:$0xff]
    %v2275 = vld [vmem:[#allocation8 + $0x110] sm:$0xff]
    %v2276 = vld [vmem:[#allocation8 + $0x118] sm:$0xff]
    %v2277 = vld [vmem:[#allocation8 + $0x120] sm:$0xff]
    %v2278 = vld [vmem:[#allocation8 + $0x128] sm:$0xff]
    %v2279 = vld [vmem:[#allocation8 + $0x130] sm:$0xff]
    %v2280 = vld [vmem:[#allocation8 + $0x138] sm:$0xff]
    %v2281 = vld [vmem:[#allocation8 + $0x140] sm:$0xff]
    %v2282 = vld [vmem:[#allocation8 + $0x148] sm:$0xff]
    %v2283 = vld [vmem:[#allocation8 + $0x150] sm:$0xff]
    %v2284 = vld [vmem:[#allocation8 + $0x158] sm:$0xff]
    %v2285 = vld [vmem:[#allocation8 + $0x160] sm:$0xff]
    %v2286 = vld [vmem:[#allocation8 + $0x168] sm:$0xff]
    %v2287 = vld [vmem:[#allocation8 + $0x170] sm:$0xff]
    %v2288 = vld [vmem:[#allocation8 + $0x178] sm:$0xff]
    %v2289 = vld [vmem:[%s8] sm:$0x7]
    %v2291 = vlaneseq
    %v2292 = vshrl.u32 %v2291, 7
    %v2293 = vsub.s32 0, %v2292
    %v2294 = vrot.slane %v2289, %v2293
    %v2295 = vlaneseq
    %v2296 = vshrl.u32 %v2295, 7
    %v2297 = vsub.s32 1, %v2296
    %v2298 = vrot.slane %v2289, %v2297
    %v2299 = vlaneseq
    %v2300 = vshrl.u32 %v2299, 7
    %v2301 = vsub.s32 2, %v2300
    %v2302 = vrot.slane %v2289, %v2301
    %2306 = vmatprep.subr.mxu0 %v2242
    %2307 = vmatpush1.msra.mxu0 %v2241
    %2308 = vmatprep.subr.mxu0 %v2245
    %2309 = vmatpush1.msra.mxu0 %v2244
    %2310 = vmatprep.subr.mxu0 %v2248
    %2311 = vmatpush1.msra.mxu0 %v2247
    %2312 = vmatprep.subr.mxu0 %v2251
    %2313 = vmatpush1.msra.mxu0 %v2250
    %2314 = vmatprep.subr.mxu0 %v2254
    %2315 = vmatpush1.msra.mxu0 %v2253
    %2316 = vmatprep.subr.mxu0 %v2257
    %2317 = vmatpush1.msra.mxu0 %v2256
    %2318 = vmatprep.subr.mxu0 %v2260
    %2319 = vmatpush1.msra.mxu0 %v2259
    %2320 = vmatprep.subr.mxu0 %v2263
    %2321 = vmatpush1.msra.mxu0 %v2262
    %2322 = vmatprep.subr.mxu0 %v2266
    %2323 = vmatpush1.msra.mxu0 %v2265
    %2324 = vmatprep.subr.mxu0 %v2269
    %2325 = vmatpush1.msra.mxu0 %v2268
    %2326 = vmatprep.subr.mxu0 %v2272
    %2327 = vmatpush1.msra.mxu0 %v2271
    %2328 = vmatprep.subr.mxu0 %v2275
    %2329 = vmatpush1.msra.mxu0 %v2274
    %2330 = vmatprep.subr.mxu0 %v2278
    %2331 = vmatpush1.msra.mxu0 %v2277
    %2332 = vmatprep.subr.mxu0 %v2281
    %2333 = vmatpush1.msra.mxu0 %v2280
    %2334 = vmatprep.subr.mxu0 %v2284
    %2335 = vmatpush1.msra.mxu0 %v2283
    %2336 = vmatprep.subr.mxu0 %v2287
    %2337 = vmatpush1.msra.mxu0 %v2286
    %2338 = vmatprep.subr.mxu0 0.0
    %2339 = vmatpush1.msra.mxu0 0.0
    %2340 = vmatprep.subr.mxu0 0.0
    %2341 = vmatpush1.msra.mxu0 0.0
    %2342 = vmatprep.subr.mxu0 0.0
    %2343 = vmatpush1.msra.mxu0 0.0
    %2344 = vmatprep.subr.mxu0 0.0
    %2345 = vmatpush1.msra.mxu0 0.0
    %2346 = vmatprep.subr.mxu0 0.0
    %2347 = vmatpush1.msra.mxu0 0.0
    %2348 = vmatprep.subr.mxu0 0.0
    %2349 = vmatpush1.msra.mxu0 0.0
    %2350 = vmatprep.subr.mxu0 0.0
    %2351 = vmatpush1.msra.mxu0 0.0
    %2352 = vmatprep.subr.mxu0 0.0
    %2353 = vmatpush1.msra.mxu0 0.0
    %2354 = vmatprep.subr.mxu0 0.0
    %2355 = vmatpush1.msra.mxu0 0.0
    %2356 = vmatprep.subr.mxu0 0.0
    %2357 = vmatpush1.msra.mxu0 0.0
    %2358 = vmatprep.subr.mxu0 0.0
    %2359 = vmatpush1.msra.mxu0 0.0
    %2360 = vmatprep.subr.mxu0 0.0
    %2361 = vmatpush1.msra.mxu0 0.0
    %2362 = vmatprep.subr.mxu0 0.0
    %2363 = vmatpush1.msra.mxu0 0.0
    %2364 = vmatprep.subr.mxu0 0.0
    %2365 = vmatpush1.msra.mxu0 0.0
    %2366 = vmatprep.subr.mxu0 0.0
    %2367 = vmatpush1.msra.mxu0 0.0
    %2368 = vmatprep.subr.mxu0 0.0
    %2369 = vmatpush1.msra.mxu0 0.0
    %2370 = vmatprep.mubr.f32.mxu0 0.0
    %2371 = vmatmul.mubr.f32.gmra.mrb[0].mxu0 %v2238
    %v2372 = vpop.f32.mrb[0].mxu0
    %v2373 = vadd.f32 %v2294, %v2372
    %v2374 = vpop.f32.mrb[0].mxu0
    %v2375 = vadd.f32 %v2298, %v2374
    %2376 = vdwg.mxu0
    %2377 = vmatprep.subr.mxu0 0.0
    %2378 = vmatpush1.msra.mxu0 %v2243
    %2379 = vmatprep.subr.mxu0 0.0
    %2380 = vmatpush1.msra.mxu0 %v2246
    %2381 = vmatprep.subr.mxu0 0.0
    %2382 = vmatpush1.msra.mxu0 %v2249
    %2383 = vmatprep.subr.mxu0 0.0
    %2384 = vmatpush1.msra.mxu0 %v2252
    %2385 = vmatprep.subr.mxu0 0.0
    %2386 = vmatpush1.msra.mxu0 %v2255
    %2387 = vmatprep.subr.mxu0 0.0
    %2388 = vmatpush1.msra.mxu0 %v2258
    %2389 = vmatprep.subr.mxu0 0.0
    %2390 = vmatpush1.msra.mxu0 %v2261
    %2391 = vmatprep.subr.mxu0 0.0
    %2392 = vmatpush1.msra.mxu0 %v2264
    %2393 = vmatprep.subr.mxu0 0.0
    %2394 = vmatpush1.msra.mxu0 %v2267
    %2395 = vmatprep.subr.mxu0 0.0
    %2396 = vmatpush1.msra.mxu0 %v2270
    %2397 = vmatprep.subr.mxu0 0.0
    %2398 = vmatpush1.msra.mxu0 %v2273
    %2399 = vmatprep.subr.mxu0 0.0
    %2400 = vmatpush1.msra.mxu0 %v2276
    %2401 = vmatprep.subr.mxu0 0.0
    %2402 = vmatpush1.msra.mxu0 %v2279
    %2403 = vmatprep.subr.mxu0 0.0
    %2404 = vmatpush1.msra.mxu0 %v2282
    %2405 = vmatprep.subr.mxu0 0.0
    %2406 = vmatpush1.msra.mxu0 %v2285
    %2407 = vmatprep.subr.mxu0 0.0
    %2408 = vmatpush1.msra.mxu0 %v2288
    %2409 = vmatprep.subr.mxu0 0.0
    %2410 = vmatpush1.msra.mxu0 0.0
    %2411 = vmatprep.subr.mxu0 0.0
    %2412 = vmatpush1.msra.mxu0 0.0
    %2413 = vmatprep.subr.mxu0 0.0
    %2414 = vmatpush1.msra.mxu0 0.0
    %2415 = vmatprep.subr.mxu0 0.0
    %2416 = vmatpush1.msra.mxu0 0.0
    %2417 = vmatprep.subr.mxu0 0.0
    %2418 = vmatpush1.msra.mxu0 0.0
    %2419 = vmatprep.subr.mxu0 0.0
    %2420 = vmatpush1.msra.mxu0 0.0
    %2421 = vmatprep.subr.mxu0 0.0
    %2422 = vmatpush1.msra.mxu0 0.0
    %2423 = vmatprep.subr.mxu0 0.0
    %2424 = vmatpush1.msra.mxu0 0.0
    %2425 = vmatprep.subr.mxu0 0.0
    %2426 = vmatpush1.msra.mxu0 0.0
    %2427 = vmatprep.subr.mxu0 0.0
    %2428 = vmatpush1.msra.mxu0 0.0
    %2429 = vmatprep.subr.mxu0 0.0
    %2430 = vmatpush1.msra.mxu0 0.0
    %2431 = vmatprep.subr.mxu0 0.0
    %2432 = vmatpush1.msra.mxu0 0.0
    %2433 = vmatprep.subr.mxu0 0.0
    %2434 = vmatpush1.msra.mxu0 0.0
    %2435 = vmatprep.subr.mxu0 0.0
    %2436 = vmatpush1.msra.mxu0 0.0
    %2437 = vmatprep.subr.mxu0 0.0
    %2438 = vmatpush1.msra.mxu0 0.0
    %2439 = vmatprep.subr.mxu0 0.0
    %2440 = vmatpush1.msra.mxu0 0.0
    %2441 = vmatprep.mubr.f32.mxu0 0.0
    %2442 = vmatmul.mubr.f32.gmra.mrb[0].mxu0 %v2238
    %v2443 = vpop.f32.mrb[0].mxu0
    %v2444 = vadd.f32 %v2302, %v2443
    %v2445 = vpop.f32.mrb[0].mxu0
    %2446 = vdwg.mxu0
    %v2447 = vld [vmem:[#allocation9] sm:$0xff]
    %v2448 = vld [vmem:[#allocation9 + $0x8] sm:$0xff]
    %v2449 = vld [vmem:[#allocation9 + $0x10] sm:$0xff]
    %v2450 = vld [vmem:[#allocation9 + $0x18] sm:$0xff]
    %v2451 = vld [vmem:[#allocation9 + $0x20] sm:$0xff]
    %v2452 = vld [vmem:[#allocation9 + $0x28] sm:$0xff]
    %v2453 = vld [vmem:[#allocation9 + $0x30] sm:$0xff]
    %v2454 = vld [vmem:[#allocation9 + $0x38] sm:$0xff]
    %v2455 = vld [vmem:[#allocation9 + $0x40] sm:$0xff]
    %v2456 = vld [vmem:[#allocation9 + $0x48] sm:$0xff]
    %v2457 = vld [vmem:[#allocation9 + $0x50] sm:$0xff]
    %v2458 = vld [vmem:[#allocation9 + $0x58] sm:$0xff]
    %v2459 = vld [vmem:[#allocation9 + $0x60] sm:$0xff]
    %v2460 = vld [vmem:[#allocation9 + $0x68] sm:$0xff]
    %v2461 = vld [vmem:[#allocation9 + $0x70] sm:$0xff]
    %v2462 = vld [vmem:[#allocation9 + $0x78] sm:$0xff]
    %v2463 = vld [vmem:[#allocation9 + $0x80] sm:$0xff]
    %v2464 = vld [vmem:[#allocation9 + $0x88] sm:$0xff]
    %v2465 = vld [vmem:[#allocation9 + $0x90] sm:$0xff]
    %v2466 = vld [vmem:[#allocation9 + $0x98] sm:$0xff]
    %v2467 = vld [vmem:[#allocation9 + $0xa0] sm:$0xff]
    %v2468 = vld [vmem:[#allocation9 + $0xa8] sm:$0xff]
    %v2469 = vld [vmem:[#allocation9 + $0xb0] sm:$0xff]
    %v2470 = vld [vmem:[#allocation9 + $0xb8] sm:$0xff]
    %v2471 = vld [vmem:[#allocation9 + $0xc0] sm:$0xff]
    %v2472 = vld [vmem:[#allocation9 + $0xc8] sm:$0xff]
    %v2473 = vld [vmem:[#allocation9 + $0xd0] sm:$0xff]
    %v2474 = vld [vmem:[#allocation9 + $0xd8] sm:$0xff]
    %v2475 = vld [vmem:[#allocation9 + $0xe0] sm:$0xff]
    %v2476 = vld [vmem:[#allocation9 + $0xe8] sm:$0xff]
    %v2477 = vld [vmem:[#allocation9 + $0xf0] sm:$0xff]
    %v2478 = vld [vmem:[#allocation9 + $0xf8] sm:$0xff]
    %v2479 = vld [vmem:[#allocation9 + $0x100] sm:$0xff]
    %v2480 = vld [vmem:[#allocation9 + $0x108] sm:$0xff]
    %v2481 = vld [vmem:[#allocation9 + $0x110] sm:$0xff]
    %v2482 = vld [vmem:[#allocation9 + $0x118] sm:$0xff]
    %v2483 = vld [vmem:[#allocation9 + $0x120] sm:$0xff]
    %v2484 = vld [vmem:[#allocation9 + $0x128] sm:$0xff]
    %v2485 = vld [vmem:[#allocation9 + $0x130] sm:$0xff]
    %v2486 = vld [vmem:[#allocation9 + $0x138] sm:$0xff]
    %v2487 = vld [vmem:[#allocation9 + $0x140] sm:$0xff]
    %v2488 = vld [vmem:[#allocation9 + $0x148] sm:$0xff]
    %v2489 = vld [vmem:[#allocation9 + $0x150] sm:$0xff]
    %v2490 = vld [vmem:[#allocation9 + $0x158] sm:$0xff]
    %v2491 = vld [vmem:[#allocation9 + $0x160] sm:$0xff]
    %v2492 = vld [vmem:[#allocation9 + $0x168] sm:$0xff]
    %v2493 = vld [vmem:[#allocation9 + $0x170] sm:$0xff]
    %v2494 = vld [vmem:[#allocation9 + $0x178] sm:$0xff]
    %2495 = vmatprep.subr.mxu0 %v2448
    %2496 = vmatpush1.msra.mxu0 %v2447
    %2497 = vmatprep.subr.mxu0 %v2451
    %2498 = vmatpush1.msra.mxu0 %v2450
    %2499 = vmatprep.subr.mxu0 %v2454
    %2500 = vmatpush1.msra.mxu0 %v2453
    %2501 = vmatprep.subr.mxu0 %v2457
    %2502 = vmatpush1.msra.mxu0 %v2456
    %2503 = vmatprep.subr.mxu0 %v2460
    %2504 = vmatpush1.msra.mxu0 %v2459
    %2505 = vmatprep.subr.mxu0 %v2463
    %2506 = vmatpush1.msra.mxu0 %v2462
    %2507 = vmatprep.subr.mxu0 %v2466
    %2508 = vmatpush1.msra.mxu0 %v2465
    %2509 = vmatprep.subr.mxu0 %v2469
    %2510 = vmatpush1.msra.mxu0 %v2468
    %2511 = vmatprep.subr.mxu0 %v2472
    %2512 = vmatpush1.msra.mxu0 %v2471
    %2513 = vmatprep.subr.mxu0 %v2475
    %2514 = vmatpush1.msra.mxu0 %v2474
    %2515 = vmatprep.subr.mxu0 %v2478
    %2516 = vmatpush1.msra.mxu0 %v2477
    %2517 = vmatprep.subr.mxu0 %v2481
    %2518 = vmatpush1.msra.mxu0 %v2480
    %2519 = vmatprep.subr.mxu0 %v2484
    %2520 = vmatpush1.msra.mxu0 %v2483
    %2521 = vmatprep.subr.mxu0 %v2487
    %2522 = vmatpush1.msra.mxu0 %v2486
    %2523 = vmatprep.subr.mxu0 %v2490
    %2524 = vmatpush1.msra.mxu0 %v2489
    %2525 = vmatprep.subr.mxu0 %v2493
    %2526 = vmatpush1.msra.mxu0 %v2492
    %2527 = vmatprep.subr.mxu0 0.0
    %2528 = vmatpush1.msra.mxu0 0.0
    %2529 = vmatprep.subr.mxu0 0.0
    %2530 = vmatpush1.msra.mxu0 0.0
    %2531 = vmatprep.subr.mxu0 0.0
    %2532 = vmatpush1.msra.mxu0 0.0
    %2533 = vmatprep.subr.mxu0 0.0
    %2534 = vmatpush1.msra.mxu0 0.0
    %2535 = vmatprep.subr.mxu0 0.0
    %2536 = vmatpush1.msra.mxu0 0.0
    %2537 = vmatprep.subr.mxu0 0.0
    %2538 = vmatpush1.msra.mxu0 0.0
    %2539 = vmatprep.subr.mxu0 0.0
    %2540 = vmatpush1.msra.mxu0 0.0
    %2541 = vmatprep.subr.mxu0 0.0
    %2542 = vmatpush1.msra.mxu0 0.0
    %2543 = vmatprep.subr.mxu0 0.0
    %2544 = vmatpush1.msra.mxu0 0.0
    %2545 = vmatprep.subr.mxu0 0.0
    %2546 = vmatpush1.msra.mxu0 0.0
    %2547 = vmatprep.subr.mxu0 0.0
    %2548 = vmatpush1.msra.mxu0 0.0
    %2549 = vmatprep.subr.mxu0 0.0
    %2550 = vmatpush1.msra.mxu0 0.0
    %2551 = vmatprep.subr.mxu0 0.0
    %2552 = vmatpush1.msra.mxu0 0.0
    %2553 = vmatprep.subr.mxu0 0.0
    %2554 = vmatpush1.msra.mxu0 0.0
    %2555 = vmatprep.subr.mxu0 0.0
    %2556 = vmatpush1.msra.mxu0 0.0
    %2557 = vmatprep.subr.mxu0 0.0
    %2558 = vmatpush1.msra.mxu0 0.0
    %2559 = vmatprep.mubr.f32.mxu0 0.0
    %2560 = vmatmul.mubr.f32.gmra.mrb[0].mxu0 %v2240
    %v2561 = vpop.f32.mrb[0].mxu0
    %v2562 = vadd.f32 0.0, %v2561
    %v2563 = vpop.f32.mrb[0].mxu0
    %v2564 = vadd.f32 0.0, %v2563
    %2565 = vdwg.mxu0
    %2566 = vmatprep.subr.mxu0 0.0
    %2567 = vmatpush1.msra.mxu0 %v2449
    %2568 = vmatprep.subr.mxu0 0.0
    %2569 = vmatpush1.msra.mxu0 %v2452
    %2570 = vmatprep.subr.mxu0 0.0
    %2571 = vmatpush1.msra.mxu0 %v2455
    %2572 = vmatprep.subr.mxu0 0.0
    %2573 = vmatpush1.msra.mxu0 %v2458
    %2574 = vmatprep.subr.mxu0 0.0
    %2575 = vmatpush1.msra.mxu0 %v2461
    %2576 = vmatprep.subr.mxu0 0.0
    %2577 = vmatpush1.msra.mxu0 %v2464
    %2578 = vmatprep.subr.mxu0 0.0
    %2579 = vmatpush1.msra.mxu0 %v2467
    %2580 = vmatprep.subr.mxu0 0.0
    %2581 = vmatpush1.msra.mxu0 %v2470
    %2582 = vmatprep.subr.mxu0 0.0
    %2583 = vmatpush1.msra.mxu0 %v2473
    %2584 = vmatprep.subr.mxu0 0.0
    %2585 = vmatpush1.msra.mxu0 %v2476
    %2586 = vmatprep.subr.mxu0 0.0
    %2587 = vmatpush1.msra.mxu0 %v2479
    %2588 = vmatprep.subr.mxu0 0.0
    %2589 = vmatpush1.msra.mxu0 %v2482
    %2590 = vmatprep.subr.mxu0 0.0
    %2591 = vmatpush1.msra.mxu0 %v2485
    %2592 = vmatprep.subr.mxu0 0.0
    %2593 = vmatpush1.msra.mxu0 %v2488
    %2594 = vmatprep.subr.mxu0 0.0
    %2595 = vmatpush1.msra.mxu0 %v2491
    %2596 = vmatprep.subr.mxu0 0.0
    %2597 = vmatpush1.msra.mxu0 %v2494
    %2598 = vmatprep.subr.mxu0 0.0
    %2599 = vmatpush1.msra.mxu0 0.0
    %2600 = vmatprep.subr.mxu0 0.0
    %2601 = vmatpush1.msra.mxu0 0.0
    %2602 = vmatprep.subr.mxu0 0.0
    %2603 = vmatpush1.msra.mxu0 0.0
    %2604 = vmatprep.subr.mxu0 0.0
    %2605 = vmatpush1.msra.mxu0 0.0
    %2606 = vmatprep.subr.mxu0 0.0
    %2607 = vmatpush1.msra.mxu0 0.0
    %2608 = vmatprep.subr.mxu0 0.0
    %2609 = vmatpush1.msra.mxu0 0.0
    %2610 = vmatprep.subr.mxu0 0.0
    %2611 = vmatpush1.msra.mxu0 0.0
    %2612 = vmatprep.subr.mxu0 0.0
    %2613 = vmatpush1.msra.mxu0 0.0
    %2614 = vmatprep.subr.mxu0 0.0
    %2615 = vmatpush1.msra.mxu0 0.0
    %2616 = vmatprep.subr.mxu0 0.0
    %2617 = vmatpush1.msra.mxu0 0.0
    %2618 = vmatprep.subr.mxu0 0.0
    %2619 = vmatpush1.msra.mxu0 0.0
    %2620 = vmatprep.subr.mxu0 0.0
    %2621 = vmatpush1.msra.mxu0 0.0
    %2622 = vmatprep.subr.mxu0 0.0
    %2623 = vmatpush1.msra.mxu0 0.0
    %2624 = vmatprep.subr.mxu0 0.0
    %2625 = vmatpush1.msra.mxu0 0.0
    %2626 = vmatprep.subr.mxu0 0.0
    %2627 = vmatpush1.msra.mxu0 0.0
    %2628 = vmatprep.subr.mxu0 0.0
    %2629 = vmatpush1.msra.mxu0 0.0
    %2630 = vmatprep.mubr.f32.mxu0 0.0
    %2631 = vmatmul.mubr.f32.gmra.mrb[0].mxu0 %v2240
    %v2632 = vpop.f32.mrb[0].mxu0
    %v2633 = vadd.f32 0.0, %v2632
    %v2634 = vpop.f32.mrb[0].mxu0
    %2635 = vdwg.mxu0
    %v2636 = vadd.f32 %v2373, %v2562
    %v2637 = vxor.u32 %v2636, 2147483648
    %v2638 = vmul.f32 %v2637, 1.442695
    %v2639 = vpow.pop %v2638
    %v2640 = vadd.f32 %v2639, 1.0
    %v2641 = vrcp.pop %v2640
    %v2642 = vmul.f32 1.0, %v2641
    %v2643 = vadd.f32 %v2375, %v2564
    %v2644 = vxor.u32 %v2643, 2147483648
    %v2645 = vmul.f32 %v2644, 1.442695
    %v2646 = vpow.pop %v2645
    %v2647 = vadd.f32 %v2646, 1.0
    %v2648 = vrcp.pop %v2647
    %v2649 = vmul.f32 1.0, %v2648
    %v2650 = vld [vmem:[%s9] sm:$0x1]
    %v2652 = vlaneseq
    %v2653 = vshrl.u32 %v2652, 7
    %v2654 = vsub.s32 0, %v2653
    %v2655 = vrot.slane %v2650, %v2654
    %v2657 = vadd.f32 %v2633, %v2655
    %v2658 = vmul.f32 %v2642, %v2657
    %v2659 = vadd.f32 %v2444, %v2658
    %v2660 = vtanh.pop %v2659
    %v2661 = vsub.f32 1.0, %v2649
    %v2662 = vmul.f32 %v2661, %v2660
    %v2663 = vmul.f32 %v2649, %v2240
    %v2664 = vadd.f32 %v2662, %v2663
    %2665 = vst [vmem:[%s528] sm:$0x3] %v2664
    %s2666 = scalar_lea.vmem %s10, 4
    %2667 = vst [vmem:[%s2666] sm:$0x3] %v2664
    %s2668 = scalar_lea.vmem %s0, 6
    %v2669 = vld [vmem:[%s2668] sm:$0x3]
    %v2670 = vld [vmem:[#allocation2] sm:$0x3]
    %v2671 = vld [vmem:[#allocation3] sm:$0xff]
    %v2672 = vld [vmem:[#allocation3 + $0x8] sm:$0xff]
    %v2673 = vld [vmem:[#allocation3 + $0x10] sm:$0xff]
    %v2674 = vld [vmem:[#allocation3 + $0x18] sm:$0xff]
    %v2675 = vld [vmem:[#allocation3 + $0x20] sm:$0xff]
    %v2676 = vld [vmem:[#allocation3 + $0x28] sm:$0xff]
    %v2677 = vld [vmem:[#allocation3 + $0x30] sm:$0xff]
    %v2678 = vld [vmem:[#allocation3 + $0x38] sm:$0xff]
    %v2679 = vld [vmem:[#allocation3 + $0x40] sm:$0xff]
    %v2680 = vld [vmem:[#allocation3 + $0x48] sm:$0xff]
    %v2681 = vld [vmem:[#allocation3 + $0x50] sm:$0xff]
    %v2682 = vld [vmem:[#allocation3 + $0x58] sm:$0xff]
    %v2683 = vld [vmem:[#allocation3 + $0x60] sm:$0xff]
    %v2684 = vld [vmem:[#allocation3 + $0x68] sm:$0xff]
    %v2685 = vld [vmem:[#allocation3 + $0x70] sm:$0xff]
    %v2686 = vld [vmem:[#allocation3 + $0x78] sm:$0xff]
    %v2687 = vld [vmem:[#allocation3 + $0x80] sm:$0xff]
    %v2688 = vld [vmem:[#allocation3 + $0x88] sm:$0xff]
    %v2689 = vld [vmem:[#allocation3 + $0x90] sm:$0xff]
    %v2690 = vld [vmem:[#allocation3 + $0x98] sm:$0xff]
    %v2691 = vld [vmem:[#allocation3 + $0xa0] sm:$0xff]
    %v2692 = vld [vmem:[#allocation3 + $0xa8] sm:$0xff]
    %v2693 = vld [vmem:[#allocation3 + $0xb0] sm:$0xff]
    %v2694 = vld [vmem:[#allocation3 + $0xb8] sm:$0xff]
    %v2695 = vld [vmem:[#allocation3 + $0xc0] sm:$0xff]
    %v2696 = vld [vmem:[#allocation3 + $0xc8] sm:$0xff]
    %v2697 = vld [vmem:[#allocation3 + $0xd0] sm:$0xff]
    %v2698 = vld [vmem:[#allocation3 + $0xd8] sm:$0xff]
    %v2699 = vld [vmem:[#allocation3 + $0xe0] sm:$0xff]
    %v2700 = vld [vmem:[#allocation3 + $0xe8] sm:$0xff]
    %v2701 = vld [vmem:[#allocation3 + $0xf0] sm:$0xff]
    %v2702 = vld [vmem:[#allocation3 + $0xf8] sm:$0xff]
    %v2703 = vld [vmem:[#allocation3 + $0x100] sm:$0xff]
    %v2704 = vld [vmem:[#allocation3 + $0x108] sm:$0xff]
    %v2705 = vld [vmem:[#allocation3 + $0x110] sm:$0xff]
    %v2706 = vld [vmem:[#allocation3 + $0x118] sm:$0xff]
    %v2707 = vld [vmem:[#allocation3 + $0x120] sm:$0xff]
    %v2708 = vld [vmem:[#allocation3 + $0x128] sm:$0xff]
    %v2709 = vld [vmem:[#allocation3 + $0x130] sm:$0xff]
    %v2710 = vld [vmem:[#allocation3 + $0x138] sm:$0xff]
    %v2711 = vld [vmem:[#allocation3 + $0x140] sm:$0xff]
    %v2712 = vld [vmem:[#allocation3 + $0x148] sm:$0xff]
    %v2713 = vld [vmem:[#allocation3 + $0x150] sm:$0xff]
    %v2714 = vld [vmem:[#allocation3 + $0x158] sm:$0xff]
    %v2715 = vld [vmem:[#allocation3 + $0x160] sm:$0xff]
    %v2716 = vld [vmem:[#allocation3 + $0x168] sm:$0xff]
    %v2717 = vld [vmem:[#allocation3 + $0x170] sm:$0xff]
    %v2718 = vld [vmem:[#allocation3 + $0x178] sm:$0xff]
    %v2719 = vld [vmem:[%s4] sm:$0x7]
    %v2721 = vlaneseq
    %v2722 = vshrl.u32 %v2721, 7
    %v2723 = vsub.s32 0, %v2722
    %v2724 = vrot.slane %v2719, %v2723
    %v2725 = vlaneseq
    %v2726 = vshrl.u32 %v2725, 7
    %v2727 = vsub.s32 1, %v2726
    %v2728 = vrot.slane %v2719, %v2727
    %v2729 = vlaneseq
    %v2730 = vshrl.u32 %v2729, 7
    %v2731 = vsub.s32 2, %v2730
    %v2732 = vrot.slane %v2719, %v2731
    %2736 = vmatprep.subr.mxu0 %v2672
    %2737 = vmatpush1.msra.mxu0 %v2671
    %2738 = vmatprep.subr.mxu0 %v2675
    %2739 = vmatpush1.msra.mxu0 %v2674
    %2740 = vmatprep.subr.mxu0 %v2678
    %2741 = vmatpush1.msra.mxu0 %v2677
    %2742 = vmatprep.subr.mxu0 %v2681
    %2743 = vmatpush1.msra.mxu0 %v2680
    %2744 = vmatprep.subr.mxu0 %v2684
    %2745 = vmatpush1.msra.mxu0 %v2683
    %2746 = vmatprep.subr.mxu0 %v2687
    %2747 = vmatpush1.msra.mxu0 %v2686
    %2748 = vmatprep.subr.mxu0 %v2690
    %2749 = vmatpush1.msra.mxu0 %v2689
    %2750 = vmatprep.subr.mxu0 %v2693
    %2751 = vmatpush1.msra.mxu0 %v2692
    %2752 = vmatprep.subr.mxu0 %v2696
    %2753 = vmatpush1.msra.mxu0 %v2695
    %2754 = vmatprep.subr.mxu0 %v2699
    %2755 = vmatpush1.msra.mxu0 %v2698
    %2756 = vmatprep.subr.mxu0 %v2702
    %2757 = vmatpush1.msra.mxu0 %v2701
    %2758 = vmatprep.subr.mxu0 %v2705
    %2759 = vmatpush1.msra.mxu0 %v2704
    %2760 = vmatprep.subr.mxu0 %v2708
    %2761 = vmatpush1.msra.mxu0 %v2707
    %2762 = vmatprep.subr.mxu0 %v2711
    %2763 = vmatpush1.msra.mxu0 %v2710
    %2764 = vmatprep.subr.mxu0 %v2714
    %2765 = vmatpush1.msra.mxu0 %v2713
    %2766 = vmatprep.subr.mxu0 %v2717
    %2767 = vmatpush1.msra.mxu0 %v2716
    %2768 = vmatprep.subr.mxu0 0.0
    %2769 = vmatpush1.msra.mxu0 0.0
    %2770 = vmatprep.subr.mxu0 0.0
    %2771 = vmatpush1.msra.mxu0 0.0
    %2772 = vmatprep.subr.mxu0 0.0
    %2773 = vmatpush1.msra.mxu0 0.0
    %2774 = vmatprep.subr.mxu0 0.0
    %2775 = vmatpush1.msra.mxu0 0.0
    %2776 = vmatprep.subr.mxu0 0.0
    %2777 = vmatpush1.msra.mxu0 0.0
    %2778 = vmatprep.subr.mxu0 0.0
    %2779 = vmatpush1.msra.mxu0 0.0
    %2780 = vmatprep.subr.mxu0 0.0
    %2781 = vmatpush1.msra.mxu0 0.0
    %2782 = vmatprep.subr.mxu0 0.0
    %2783 = vmatpush1.msra.mxu0 0.0
    %2784 = vmatprep.subr.mxu0 0.0
    %2785 = vmatpush1.msra.mxu0 0.0
    %2786 = vmatprep.subr.mxu0 0.0
    %2787 = vmatpush1.msra.mxu0 0.0
    %2788 = vmatprep.subr.mxu0 0.0
    %2789 = vmatpush1.msra.mxu0 0.0
    %2790 = vmatprep.subr.mxu0 0.0
    %2791 = vmatpush1.msra.mxu0 0.0
    %2792 = vmatprep.subr.mxu0 0.0
    %2793 = vmatpush1.msra.mxu0 0.0
    %2794 = vmatprep.subr.mxu0 0.0
    %2795 = vmatpush1.msra.mxu0 0.0
    %2796 = vmatprep.subr.mxu0 0.0
    %2797 = vmatpush1.msra.mxu0 0.0
    %2798 = vmatprep.subr.mxu0 0.0
    %2799 = vmatpush1.msra.mxu0 0.0
    %2800 = vmatprep.mubr.f32.mxu0 0.0
    %2801 = vmatmul.mubr.f32.gmra.mrb[0].mxu0 %v2669
    %v2802 = vpop.f32.mrb[0].mxu0
    %v2803 = vadd.f32 %v2724, %v2802
    %v2804 = vpop.f32.mrb[0].mxu0
    %v2805 = vadd.f32 %v2728, %v2804
    %2806 = vdwg.mxu0
    %2807 = vmatprep.subr.mxu0 0.0
    %2808 = vmatpush1.msra.mxu0 %v2673
    %2809 = vmatprep.subr.mxu0 0.0
    %2810 = vmatpush1.msra.mxu0 %v2676
    %2811 = vmatprep.subr.mxu0 0.0
    %2812 = vmatpush1.msra.mxu0 %v2679
    %2813 = vmatprep.subr.mxu0 0.0
    %2814 = vmatpush1.msra.mxu0 %v2682
    %2815 = vmatprep.subr.mxu0 0.0
    %2816 = vmatpush1.msra.mxu0 %v2685
    %2817 = vmatprep.subr.mxu0 0.0
    %2818 = vmatpush1.msra.mxu0 %v2688
    %2819 = vmatprep.subr.mxu0 0.0
    %2820 = vmatpush1.msra.mxu0 %v2691
    %2821 = vmatprep.subr.mxu0 0.0
    %2822 = vmatpush1.msra.mxu0 %v2694
    %2823 = vmatprep.subr.mxu0 0.0
    %2824 = vmatpush1.msra.mxu0 %v2697
    %2825 = vmatprep.subr.mxu0 0.0
    %2826 = vmatpush1.msra.mxu0 %v2700
    %2827 = vmatprep.subr.mxu0 0.0
    %2828 = vmatpush1.msra.mxu0 %v2703
    %2829 = vmatprep.subr.mxu0 0.0
    %2830 = vmatpush1.msra.mxu0 %v2706
    %2831 = vmatprep.subr.mxu0 0.0
    %2832 = vmatpush1.msra.mxu0 %v2709
    %2833 = vmatprep.subr.mxu0 0.0
    %2834 = vmatpush1.msra.mxu0 %v2712
    %2835 = vmatprep.subr.mxu0 0.0
    %2836 = vmatpush1.msra.mxu0 %v2715
    %2837 = vmatprep.subr.mxu0 0.0
    %2838 = vmatpush1.msra.mxu0 %v2718
    %2839 = vmatprep.subr.mxu0 0.0
    %2840 = vmatpush1.msra.mxu0 0.0
    %2841 = vmatprep.subr.mxu0 0.0
    %2842 = vmatpush1.msra.mxu0 0.0
    %2843 = vmatprep.subr.mxu0 0.0
    %2844 = vmatpush1.msra.mxu0 0.0
    %2845 = vmatprep.subr.mxu0 0.0
    %2846 = vmatpush1.msra.mxu0 0.0
    %2847 = vmatprep.subr.mxu0 0.0
    %2848 = vmatpush1.msra.mxu0 0.0
    %2849 = vmatprep.subr.mxu0 0.0
    %2850 = vmatpush1.msra.mxu0 0.0
    %2851 = vmatprep.subr.mxu0 0.0
    %2852 = vmatpush1.msra.mxu0 0.0
    %2853 = vmatprep.subr.mxu0 0.0
    %2854 = vmatpush1.msra.mxu0 0.0
    %2855 = vmatprep.subr.mxu0 0.0
    %2856 = vmatpush1.msra.mxu0 0.0
    %2857 = vmatprep.subr.mxu0 0.0
    %2858 = vmatpush1.msra.mxu0 0.0
    %2859 = vmatprep.subr.mxu0 0.0
    %2860 = vmatpush1.msra.mxu0 0.0
    %2861 = vmatprep.subr.mxu0 0.0
    %2862 = vmatpush1.msra.mxu0 0.0
    %2863 = vmatprep.subr.mxu0 0.0
    %2864 = vmatpush1.msra.mxu0 0.0
    %2865 = vmatprep.subr.mxu0 0.0
    %2866 = vmatpush1.msra.mxu0 0.0
    %2867 = vmatprep.subr.mxu0 0.0
    %2868 = vmatpush1.msra.mxu0 0.0
    %2869 = vmatprep.subr.mxu0 0.0
    %2870 = vmatpush1.msra.mxu0 0.0
    %2871 = vmatprep.mubr.f32.mxu0 0.0
    %2872 = vmatmul.mubr.f32.gmra.mrb[0].mxu0 %v2669
    %v2873 = vpop.f32.mrb[0].mxu0
    %v2874 = vadd.f32 %v2732, %v2873
    %v2875 = vpop.f32.mrb[0].mxu0
    %2876 = vdwg.mxu0
    %v2877 = vld [vmem:[#allocation6] sm:$0xff]
    %v2878 = vld [vmem:[#allocation6 + $0x8] sm:$0xff]
    %v2879 = vld [vmem:[#allocation6 + $0x10] sm:$0xff]
    %v2880 = vld [vmem:[#allocation6 + $0x18] sm:$0xff]
    %v2881 = vld [vmem:[#allocation6 + $0x20] sm:$0xff]
    %v2882 = vld [vmem:[#allocation6 + $0x28] sm:$0xff]
    %v2883 = vld [vmem:[#allocation6 + $0x30] sm:$0xff]
    %v2884 = vld [vmem:[#allocation6 + $0x38] sm:$0xff]
    %v2885 = vld [vmem:[#allocation6 + $0x40] sm:$0xff]
    %v2886 = vld [vmem:[#allocation6 + $0x48] sm:$0xff]
    %v2887 = vld [vmem:[#allocation6 + $0x50] sm:$0xff]
    %v2888 = vld [vmem:[#allocation6 + $0x58] sm:$0xff]
    %v2889 = vld [vmem:[#allocation6 + $0x60] sm:$0xff]
    %v2890 = vld [vmem:[#allocation6 + $0x68] sm:$0xff]
    %v2891 = vld [vmem:[#allocation6 + $0x70] sm:$0xff]
    %v2892 = vld [vmem:[#allocation6 + $0x78] sm:$0xff]
    %v2893 = vld [vmem:[#allocation6 + $0x80] sm:$0xff]
    %v2894 = vld [vmem:[#allocation6 + $0x88] sm:$0xff]
    %v2895 = vld [vmem:[#allocation6 + $0x90] sm:$0xff]
    %v2896 = vld [vmem:[#allocation6 + $0x98] sm:$0xff]
    %v2897 = vld [vmem:[#allocation6 + $0xa0] sm:$0xff]
    %v2898 = vld [vmem:[#allocation6 + $0xa8] sm:$0xff]
    %v2899 = vld [vmem:[#allocation6 + $0xb0] sm:$0xff]
    %v2900 = vld [vmem:[#allocation6 + $0xb8] sm:$0xff]
    %v2901 = vld [vmem:[#allocation6 + $0xc0] sm:$0xff]
    %v2902 = vld [vmem:[#allocation6 + $0xc8] sm:$0xff]
    %v2903 = vld [vmem:[#allocation6 + $0xd0] sm:$0xff]
    %v2904 = vld [vmem:[#allocation6 + $0xd8] sm:$0xff]
    %v2905 = vld [vmem:[#allocation6 + $0xe0] sm:$0xff]
    %v2906 = vld [vmem:[#allocation6 + $0xe8] sm:$0xff]
    %v2907 = vld [vmem:[#allocation6 + $0xf0] sm:$0xff]
    %v2908 = vld [vmem:[#allocation6 + $0xf8] sm:$0xff]
    %v2909 = vld [vmem:[#allocation6 + $0x100] sm:$0xff]
    %v2910 = vld [vmem:[#allocation6 + $0x108] sm:$0xff]
    %v2911 = vld [vmem:[#allocation6 + $0x110] sm:$0xff]
    %v2912 = vld [vmem:[#allocation6 + $0x118] sm:$0xff]
    %v2913 = vld [vmem:[#allocation6 + $0x120] sm:$0xff]
    %v2914 = vld [vmem:[#allocation6 + $0x128] sm:$0xff]
    %v2915 = vld [vmem:[#allocation6 + $0x130] sm:$0xff]
    %v2916 = vld [vmem:[#allocation6 + $0x138] sm:$0xff]
    %v2917 = vld [vmem:[#allocation6 + $0x140] sm:$0xff]
    %v2918 = vld [vmem:[#allocation6 + $0x148] sm:$0xff]
    %v2919 = vld [vmem:[#allocation6 + $0x150] sm:$0xff]
    %v2920 = vld [vmem:[#allocation6 + $0x158] sm:$0xff]
    %v2921 = vld [vmem:[#allocation6 + $0x160] sm:$0xff]
    %v2922 = vld [vmem:[#allocation6 + $0x168] sm:$0xff]
    %v2923 = vld [vmem:[#allocation6 + $0x170] sm:$0xff]
    %v2924 = vld [vmem:[#allocation6 + $0x178] sm:$0xff]
    %2925 = vmatprep.subr.mxu0 %v2878
    %2926 = vmatpush1.msra.mxu0 %v2877
    %2927 = vmatprep.subr.mxu0 %v2881
    %2928 = vmatpush1.msra.mxu0 %v2880
    %2929 = vmatprep.subr.mxu0 %v2884
    %2930 = vmatpush1.msra.mxu0 %v2883
    %2931 = vmatprep.subr.mxu0 %v2887
    %2932 = vmatpush1.msra.mxu0 %v2886
    %2933 = vmatprep.subr.mxu0 %v2890
    %2934 = vmatpush1.msra.mxu0 %v2889
    %2935 = vmatprep.subr.mxu0 %v2893
    %2936 = vmatpush1.msra.mxu0 %v2892
    %2937 = vmatprep.subr.mxu0 %v2896
    %2938 = vmatpush1.msra.mxu0 %v2895
    %2939 = vmatprep.subr.mxu0 %v2899
    %2940 = vmatpush1.msra.mxu0 %v2898
    %2941 = vmatprep.subr.mxu0 %v2902
    %2942 = vmatpush1.msra.mxu0 %v2901
    %2943 = vmatprep.subr.mxu0 %v2905
    %2944 = vmatpush1.msra.mxu0 %v2904
    %2945 = vmatprep.subr.mxu0 %v2908
    %2946 = vmatpush1.msra.mxu0 %v2907
    %2947 = vmatprep.subr.mxu0 %v2911
    %2948 = vmatpush1.msra.mxu0 %v2910
    %2949 = vmatprep.subr.mxu0 %v2914
    %2950 = vmatpush1.msra.mxu0 %v2913
    %2951 = vmatprep.subr.mxu0 %v2917
    %2952 = vmatpush1.msra.mxu0 %v2916
    %2953 = vmatprep.subr.mxu0 %v2920
    %2954 = vmatpush1.msra.mxu0 %v2919
    %2955 = vmatprep.subr.mxu0 %v2923
    %2956 = vmatpush1.msra.mxu0 %v2922
    %2957 = vmatprep.subr.mxu0 0.0
    %2958 = vmatpush1.msra.mxu0 0.0
    %2959 = vmatprep.subr.mxu0 0.0
    %2960 = vmatpush1.msra.mxu0 0.0
    %2961 = vmatprep.subr.mxu0 0.0
    %2962 = vmatpush1.msra.mxu0 0.0
    %2963 = vmatprep.subr.mxu0 0.0
    %2964 = vmatpush1.msra.mxu0 0.0
    %2965 = vmatprep.subr.mxu0 0.0
    %2966 = vmatpush1.msra.mxu0 0.0
    %2967 = vmatprep.subr.mxu0 0.0
    %2968 = vmatpush1.msra.mxu0 0.0
    %2969 = vmatprep.subr.mxu0 0.0
    %2970 = vmatpush1.msra.mxu0 0.0
    %2971 = vmatprep.subr.mxu0 0.0
    %2972 = vmatpush1.msra.mxu0 0.0
    %2973 = vmatprep.subr.mxu0 0.0
    %2974 = vmatpush1.msra.mxu0 0.0
    %2975 = vmatprep.subr.mxu0 0.0
    %2976 = vmatpush1.msra.mxu0 0.0
    %2977 = vmatprep.subr.mxu0 0.0
    %2978 = vmatpush1.msra.mxu0 0.0
    %2979 = vmatprep.subr.mxu0 0.0
    %2980 = vmatpush1.msra.mxu0 0.0
    %2981 = vmatprep.subr.mxu0 0.0
    %2982 = vmatpush1.msra.mxu0 0.0
    %2983 = vmatprep.subr.mxu0 0.0
    %2984 = vmatpush1.msra.mxu0 0.0
    %2985 = vmatprep.subr.mxu0 0.0
    %2986 = vmatpush1.msra.mxu0 0.0
    %2987 = vmatprep.subr.mxu0 0.0
    %2988 = vmatpush1.msra.mxu0 0.0
    %2989 = vmatprep.mubr.f32.mxu0 0.0
    %2990 = vmatmul.mubr.f32.gmra.mrb[0].mxu0 %v2670
    %v2991 = vpop.f32.mrb[0].mxu0
    %v2992 = vadd.f32 0.0, %v2991
    %v2993 = vpop.f32.mrb[0].mxu0
    %v2994 = vadd.f32 0.0, %v2993
    %2995 = vdwg.mxu0
    %2996 = vmatprep.subr.mxu0 0.0
    %2997 = vmatpush1.msra.mxu0 %v2879
    %2998 = vmatprep.subr.mxu0 0.0
    %2999 = vmatpush1.msra.mxu0 %v2882
    %3000 = vmatprep.subr.mxu0 0.0
    %3001 = vmatpush1.msra.mxu0 %v2885
    %3002 = vmatprep.subr.mxu0 0.0
    %3003 = vmatpush1.msra.mxu0 %v2888
    %3004 = vmatprep.subr.mxu0 0.0
    %3005 = vmatpush1.msra.mxu0 %v2891
    %3006 = vmatprep.subr.mxu0 0.0
    %3007 = vmatpush1.msra.mxu0 %v2894
    %3008 = vmatprep.subr.mxu0 0.0
    %3009 = vmatpush1.msra.mxu0 %v2897
    %3010 = vmatprep.subr.mxu0 0.0
    %3011 = vmatpush1.msra.mxu0 %v2900
    %3012 = vmatprep.subr.mxu0 0.0
    %3013 = vmatpush1.msra.mxu0 %v2903
    %3014 = vmatprep.subr.mxu0 0.0
    %3015 = vmatpush1.msra.mxu0 %v2906
    %3016 = vmatprep.subr.mxu0 0.0
    %3017 = vmatpush1.msra.mxu0 %v2909
    %3018 = vmatprep.subr.mxu0 0.0
    %3019 = vmatpush1.msra.mxu0 %v2912
    %3020 = vmatprep.subr.mxu0 0.0
    %3021 = vmatpush1.msra.mxu0 %v2915
    %3022 = vmatprep.subr.mxu0 0.0
    %3023 = vmatpush1.msra.mxu0 %v2918
    %3024 = vmatprep.subr.mxu0 0.0
    %3025 = vmatpush1.msra.mxu0 %v2921
    %3026 = vmatprep.subr.mxu0 0.0
    %3027 = vmatpush1.msra.mxu0 %v2924
    %3028 = vmatprep.subr.mxu0 0.0
    %3029 = vmatpush1.msra.mxu0 0.0
    %3030 = vmatprep.subr.mxu0 0.0
    %3031 = vmatpush1.msra.mxu0 0.0
    %3032 = vmatprep.subr.mxu0 0.0
    %3033 = vmatpush1.msra.mxu0 0.0
    %3034 = vmatprep.subr.mxu0 0.0
    %3035 = vmatpush1.msra.mxu0 0.0
    %3036 = vmatprep.subr.mxu0 0.0
    %3037 = vmatpush1.msra.mxu0 0.0
    %3038 = vmatprep.subr.mxu0 0.0
    %3039 = vmatpush1.msra.mxu0 0.0
    %3040 = vmatprep.subr.mxu0 0.0
    %3041 = vmatpush1.msra.mxu0 0.0
    %3042 = vmatprep.subr.mxu0 0.0
    %3043 = vmatpush1.msra.mxu0 0.0
    %3044 = vmatprep.subr.mxu0 0.0
    %3045 = vmatpush1.msra.mxu0 0.0
    %3046 = vmatprep.subr.mxu0 0.0
    %3047 = vmatpush1.msra.mxu0 0.0
    %3048 = vmatprep.subr.mxu0 0.0
    %3049 = vmatpush1.msra.mxu0 0.0
    %3050 = vmatprep.subr.mxu0 0.0
    %3051 = vmatpush1.msra.mxu0 0.0
    %3052 = vmatprep.subr.mxu0 0.0
    %3053 = vmatpush1.msra.mxu0 0.0
    %3054 = vmatprep.subr.mxu0 0.0
    %3055 = vmatpush1.msra.mxu0 0.0
    %3056 = vmatprep.subr.mxu0 0.0
    %3057 = vmatpush1.msra.mxu0 0.0
    %3058 = vmatprep.subr.mxu0 0.0
    %3059 = vmatpush1.msra.mxu0 0.0
    %3060 = vmatprep.mubr.f32.mxu0 0.0
    %3061 = vmatmul.mubr.f32.gmra.mrb[0].mxu0 %v2670
    %v3062 = vpop.f32.mrb[0].mxu0
    %v3063 = vadd.f32 0.0, %v3062
    %v3064 = vpop.f32.mrb[0].mxu0
    %3065 = vdwg.mxu0
    %v3066 = vadd.f32 %v2803, %v2992
    %v3067 = vxor.u32 %v3066, 2147483648
    %v3068 = vmul.f32 %v3067, 1.442695
    %v3069 = vpow.pop %v3068
    %v3070 = vadd.f32 %v3069, 1.0
    %v3071 = vrcp.pop %v3070
    %v3072 = vmul.f32 1.0, %v3071
    %v3073 = vadd.f32 %v2805, %v2994
    %v3074 = vxor.u32 %v3073, 2147483648
    %v3075 = vmul.f32 %v3074, 1.442695
    %v3076 = vpow.pop %v3075
    %v3077 = vadd.f32 %v3076, 1.0
    %v3078 = vrcp.pop %v3077
    %v3079 = vmul.f32 1.0, %v3078
    %v3080 = vld [vmem:[%s5] sm:$0x1]
    %v3082 = vlaneseq
    %v3083 = vshrl.u32 %v3082, 7
    %v3084 = vsub.s32 0, %v3083
    %v3085 = vrot.slane %v3080, %v3084
    %v3087 = vadd.f32 %v3063, %v3085
    %v3088 = vmul.f32 %v3072, %v3087
    %v3089 = vadd.f32 %v2874, %v3088
    %v3090 = vtanh.pop %v3089
    %v3091 = vsub.f32 1.0, %v3079
    %v3092 = vmul.f32 %v3091, %v3090
    %v3093 = vmul.f32 %v3079, %v2670
    %v3094 = vadd.f32 %v3092, %v3093
    %3095 = vst [vmem:[#allocation2] sm:$0x3] %v3094
    %v3096 = vld [vmem:[%s528] sm:$0x3]
    %v3097 = vld [vmem:[#allocation8] sm:$0xff]
    %v3098 = vld [vmem:[#allocation8 + $0x8] sm:$0xff]
    %v3099 = vld [vmem:[#allocation8 + $0x10] sm:$0xff]
    %v3100 = vld [vmem:[#allocation8 + $0x18] sm:$0xff]
    %v3101 = vld [vmem:[#allocation8 + $0x20] sm:$0xff]
    %v3102 = vld [vmem:[#allocation8 + $0x28] sm:$0xff]
    %v3103 = vld [vmem:[#allocation8 + $0x30] sm:$0xff]
    %v3104 = vld [vmem:[#allocation8 + $0x38] sm:$0xff]
    %v3105 = vld [vmem:[#allocation8 + $0x40] sm:$0xff]
    %v3106 = vld [vmem:[#allocation8 + $0x48] sm:$0xff]
    %v3107 = vld [vmem:[#allocation8 + $0x50] sm:$0xff]
    %v3108 = vld [vmem:[#allocation8 + $0x58] sm:$0xff]
    %v3109 = vld [vmem:[#allocation8 + $0x60] sm:$0xff]
    %v3110 = vld [vmem:[#allocation8 + $0x68] sm:$0xff]
    %v3111 = vld [vmem:[#allocation8 + $0x70] sm:$0xff]
    %v3112 = vld [vmem:[#allocation8 + $0x78] sm:$0xff]
    %v3113 = vld [vmem:[#allocation8 + $0x80] sm:$0xff]
    %v3114 = vld [vmem:[#allocation8 + $0x88] sm:$0xff]
    %v3115 = vld [vmem:[#allocation8 + $0x90] sm:$0xff]
    %v3116 = vld [vmem:[#allocation8 + $0x98] sm:$0xff]
    %v3117 = vld [vmem:[#allocation8 + $0xa0] sm:$0xff]
    %v3118 = vld [vmem:[#allocation8 + $0xa8] sm:$0xff]
    %v3119 = vld [vmem:[#allocation8 + $0xb0] sm:$0xff]
    %v3120 = vld [vmem:[#allocation8 + $0xb8] sm:$0xff]
    %v3121 = vld [vmem:[#allocation8 + $0xc0] sm:$0xff]
    %v3122 = vld [vmem:[#allocation8 + $0xc8] sm:$0xff]
    %v3123 = vld [vmem:[#allocation8 + $0xd0] sm:$0xff]
    %v3124 = vld [vmem:[#allocation8 + $0xd8] sm:$0xff]
    %v3125 = vld [vmem:[#allocation8 + $0xe0] sm:$0xff]
    %v3126 = vld [vmem:[#allocation8 + $0xe8] sm:$0xff]
    %v3127 = vld [vmem:[#allocation8 + $0xf0] sm:$0xff]
    %v3128 = vld [vmem:[#allocation8 + $0xf8] sm:$0xff]
    %v3129 = vld [vmem:[#allocation8 + $0x100] sm:$0xff]
    %v3130 = vld [vmem:[#allocation8 + $0x108] sm:$0xff]
    %v3131 = vld [vmem:[#allocation8 + $0x110] sm:$0xff]
    %v3132 = vld [vmem:[#allocation8 + $0x118] sm:$0xff]
    %v3133 = vld [vmem:[#allocation8 + $0x120] sm:$0xff]
    %v3134 = vld [vmem:[#allocation8 + $0x128] sm:$0xff]
    %v3135 = vld [vmem:[#allocation8 + $0x130] sm:$0xff]
    %v3136 = vld [vmem:[#allocation8 + $0x138] sm:$0xff]
    %v3137 = vld [vmem:[#allocation8 + $0x140] sm:$0xff]
    %v3138 = vld [vmem:[#allocation8 + $0x148] sm:$0xff]
    %v3139 = vld [vmem:[#allocation8 + $0x150] sm:$0xff]
    %v3140 = vld [vmem:[#allocation8 + $0x158] sm:$0xff]
    %v3141 = vld [vmem:[#allocation8 + $0x160] sm:$0xff]
    %v3142 = vld [vmem:[#allocation8 + $0x168] sm:$0xff]
    %v3143 = vld [vmem:[#allocation8 + $0x170] sm:$0xff]
    %v3144 = vld [vmem:[#allocation8 + $0x178] sm:$0xff]
    %v3145 = vld [vmem:[%s8] sm:$0x7]
    %v3147 = vlaneseq
    %v3148 = vshrl.u32 %v3147, 7
    %v3149 = vsub.s32 0, %v3148
    %v3150 = vrot.slane %v3145, %v3149
    %v3151 = vlaneseq
    %v3152 = vshrl.u32 %v3151, 7
    %v3153 = vsub.s32 1, %v3152
    %v3154 = vrot.slane %v3145, %v3153
    %v3155 = vlaneseq
    %v3156 = vshrl.u32 %v3155, 7
    %v3157 = vsub.s32 2, %v3156
    %v3158 = vrot.slane %v3145, %v3157
    %3162 = vmatprep.subr.mxu0 %v3098
    %3163 = vmatpush1.msra.mxu0 %v3097
    %3164 = vmatprep.subr.mxu0 %v3101
    %3165 = vmatpush1.msra.mxu0 %v3100
    %3166 = vmatprep.subr.mxu0 %v3104
    %3167 = vmatpush1.msra.mxu0 %v3103
    %3168 = vmatprep.subr.mxu0 %v3107
    %3169 = vmatpush1.msra.mxu0 %v3106
    %3170 = vmatprep.subr.mxu0 %v3110
    %3171 = vmatpush1.msra.mxu0 %v3109
    %3172 = vmatprep.subr.mxu0 %v3113
    %3173 = vmatpush1.msra.mxu0 %v3112
    %3174 = vmatprep.subr.mxu0 %v3116
    %3175 = vmatpush1.msra.mxu0 %v3115
    %3176 = vmatprep.subr.mxu0 %v3119
    %3177 = vmatpush1.msra.mxu0 %v3118
    %3178 = vmatprep.subr.mxu0 %v3122
    %3179 = vmatpush1.msra.mxu0 %v3121
    %3180 = vmatprep.subr.mxu0 %v3125
    %3181 = vmatpush1.msra.mxu0 %v3124
    %3182 = vmatprep.subr.mxu0 %v3128
    %3183 = vmatpush1.msra.mxu0 %v3127
    %3184 = vmatprep.subr.mxu0 %v3131
    %3185 = vmatpush1.msra.mxu0 %v3130
    %3186 = vmatprep.subr.mxu0 %v3134
    %3187 = vmatpush1.msra.mxu0 %v3133
    %3188 = vmatprep.subr.mxu0 %v3137
    %3189 = vmatpush1.msra.mxu0 %v3136
    %3190 = vmatprep.subr.mxu0 %v3140
    %3191 = vmatpush1.msra.mxu0 %v3139
    %3192 = vmatprep.subr.mxu0 %v3143
    %3193 = vmatpush1.msra.mxu0 %v3142
    %3194 = vmatprep.subr.mxu0 0.0
    %3195 = vmatpush1.msra.mxu0 0.0
    %3196 = vmatprep.subr.mxu0 0.0
    %3197 = vmatpush1.msra.mxu0 0.0
    %3198 = vmatprep.subr.mxu0 0.0
    %3199 = vmatpush1.msra.mxu0 0.0
    %3200 = vmatprep.subr.mxu0 0.0
    %3201 = vmatpush1.msra.mxu0 0.0
    %3202 = vmatprep.subr.mxu0 0.0
    %3203 = vmatpush1.msra.mxu0 0.0
    %3204 = vmatprep.subr.mxu0 0.0
    %3205 = vmatpush1.msra.mxu0 0.0
    %3206 = vmatprep.subr.mxu0 0.0
    %3207 = vmatpush1.msra.mxu0 0.0
    %3208 = vmatprep.subr.mxu0 0.0
    %3209 = vmatpush1.msra.mxu0 0.0
    %3210 = vmatprep.subr.mxu0 0.0
    %3211 = vmatpush1.msra.mxu0 0.0
    %3212 = vmatprep.subr.mxu0 0.0
    %3213 = vmatpush1.msra.mxu0 0.0
    %3214 = vmatprep.subr.mxu0 0.0
    %3215 = vmatpush1.msra.mxu0 0.0
    %3216 = vmatprep.subr.mxu0 0.0
    %3217 = vmatpush1.msra.mxu0 0.0
    %3218 = vmatprep.subr.mxu0 0.0
    %3219 = vmatpush1.msra.mxu0 0.0
    %3220 = vmatprep.subr.mxu0 0.0
    %3221 = vmatpush1.msra.mxu0 0.0
    %3222 = vmatprep.subr.mxu0 0.0
    %3223 = vmatpush1.msra.mxu0 0.0
    %3224 = vmatprep.subr.mxu0 0.0
    %3225 = vmatpush1.msra.mxu0 0.0
    %3226 = vmatprep.mubr.f32.mxu0 0.0
    %3227 = vmatmul.mubr.f32.gmra.mrb[0].mxu0 %v3094
    %v3228 = vpop.f32.mrb[0].mxu0
    %v3229 = vadd.f32 %v3150, %v3228
    %v3230 = vpop.f32.mrb[0].mxu0
    %v3231 = vadd.f32 %v3154, %v3230
    %3232 = vdwg.mxu0
    %3233 = vmatprep.subr.mxu0 0.0
    %3234 = vmatpush1.msra.mxu0 %v3099
    %3235 = vmatprep.subr.mxu0 0.0
    %3236 = vmatpush1.msra.mxu0 %v3102
    %3237 = vmatprep.subr.mxu0 0.0
    %3238 = vmatpush1.msra.mxu0 %v3105
    %3239 = vmatprep.subr.mxu0 0.0
    %3240 = vmatpush1.msra.mxu0 %v3108
    %3241 = vmatprep.subr.mxu0 0.0
    %3242 = vmatpush1.msra.mxu0 %v3111
    %3243 = vmatprep.subr.mxu0 0.0
    %3244 = vmatpush1.msra.mxu0 %v3114
    %3245 = vmatprep.subr.mxu0 0.0
    %3246 = vmatpush1.msra.mxu0 %v3117
    %3247 = vmatprep.subr.mxu0 0.0
    %3248 = vmatpush1.msra.mxu0 %v3120
    %3249 = vmatprep.subr.mxu0 0.0
    %3250 = vmatpush1.msra.mxu0 %v3123
    %3251 = vmatprep.subr.mxu0 0.0
    %3252 = vmatpush1.msra.mxu0 %v3126
    %3253 = vmatprep.subr.mxu0 0.0
    %3254 = vmatpush1.msra.mxu0 %v3129
    %3255 = vmatprep.subr.mxu0 0.0
    %3256 = vmatpush1.msra.mxu0 %v3132
    %3257 = vmatprep.subr.mxu0 0.0
    %3258 = vmatpush1.msra.mxu0 %v3135
    %3259 = vmatprep.subr.mxu0 0.0
    %3260 = vmatpush1.msra.mxu0 %v3138
    %3261 = vmatprep.subr.mxu0 0.0
    %3262 = vmatpush1.msra.mxu0 %v3141
    %3263 = vmatprep.subr.mxu0 0.0
    %3264 = vmatpush1.msra.mxu0 %v3144
    %3265 = vmatprep.subr.mxu0 0.0
    %3266 = vmatpush1.msra.mxu0 0.0
    %3267 = vmatprep.subr.mxu0 0.0
    %3268 = vmatpush1.msra.mxu0 0.0
    %3269 = vmatprep.subr.mxu0 0.0
    %3270 = vmatpush1.msra.mxu0 0.0
    %3271 = vmatprep.subr.mxu0 0.0
    %3272 = vmatpush1.msra.mxu0 0.0
    %3273 = vmatprep.subr.mxu0 0.0
    %3274 = vmatpush1.msra.mxu0 0.0
    %3275 = vmatprep.subr.mxu0 0.0
    %3276 = vmatpush1.msra.mxu0 0.0
    %3277 = vmatprep.subr.mxu0 0.0
    %3278 = vmatpush1.msra.mxu0 0.0
    %3279 = vmatprep.subr.mxu0 0.0
    %3280 = vmatpush1.msra.mxu0 0.0
    %3281 = vmatprep.subr.mxu0 0.0
    %3282 = vmatpush1.msra.mxu0 0.0
    %3283 = vmatprep.subr.mxu0 0.0
    %3284 = vmatpush1.msra.mxu0 0.0
    %3285 = vmatprep.subr.mxu0 0.0
    %3286 = vmatpush1.msra.mxu0 0.0
    %3287 = vmatprep.subr.mxu0 0.0
    %3288 = vmatpush1.msra.mxu0 0.0
    %3289 = vmatprep.subr.mxu0 0.0
    %3290 = vmatpush1.msra.mxu0 0.0
    %3291 = vmatprep.subr.mxu0 0.0
    %3292 = vmatpush1.msra.mxu0 0.0
    %3293 = vmatprep.subr.mxu0 0.0
    %3294 = vmatpush1.msra.mxu0 0.0
    %3295 = vmatprep.subr.mxu0 0.0
    %3296 = vmatpush1.msra.mxu0 0.0
    %3297 = vmatprep.mubr.f32.mxu0 0.0
    %3298 = vmatmul.mubr.f32.gmra.mrb[0].mxu0 %v3094
    %v3299 = vpop.f32.mrb[0].mxu0
    %v3300 = vadd.f32 %v3158, %v3299
    %v3301 = vpop.f32.mrb[0].mxu0
    %3302 = vdwg.mxu0
    %v3303 = vld [vmem:[#allocation9] sm:$0xff]
    %v3304 = vld [vmem:[#allocation9 + $0x8] sm:$0xff]
    %v3305 = vld [vmem:[#allocation9 + $0x10] sm:$0xff]
    %v3306 = vld [vmem:[#allocation9 + $0x18] sm:$0xff]
    %v3307 = vld [vmem:[#allocation9 + $0x20] sm:$0xff]
    %v3308 = vld [vmem:[#allocation9 + $0x28] sm:$0xff]
    %v3309 = vld [vmem:[#allocation9 + $0x30] sm:$0xff]
    %v3310 = vld [vmem:[#allocation9 + $0x38] sm:$0xff]
    %v3311 = vld [vmem:[#allocation9 + $0x40] sm:$0xff]
    %v3312 = vld [vmem:[#allocation9 + $0x48] sm:$0xff]
    %v3313 = vld [vmem:[#allocation9 + $0x50] sm:$0xff]
    %v3314 = vld [vmem:[#allocation9 + $0x58] sm:$0xff]
    %v3315 = vld [vmem:[#allocation9 + $0x60] sm:$0xff]
    %v3316 = vld [vmem:[#allocation9 + $0x68] sm:$0xff]
    %v3317 = vld [vmem:[#allocation9 + $0x70] sm:$0xff]
    %v3318 = vld [vmem:[#allocation9 + $0x78] sm:$0xff]
    %v3319 = vld [vmem:[#allocation9 + $0x80] sm:$0xff]
    %v3320 = vld [vmem:[#allocation9 + $0x88] sm:$0xff]
    %v3321 = vld [vmem:[#allocation9 + $0x90] sm:$0xff]
    %v3322 = vld [vmem:[#allocation9 + $0x98] sm:$0xff]
    %v3323 = vld [vmem:[#allocation9 + $0xa0] sm:$0xff]
    %v3324 = vld [vmem:[#allocation9 + $0xa8] sm:$0xff]
    %v3325 = vld [vmem:[#allocation9 + $0xb0] sm:$0xff]
    %v3326 = vld [vmem:[#allocation9 + $0xb8] sm:$0xff]
    %v3327 = vld [vmem:[#allocation9 + $0xc0] sm:$0xff]
    %v3328 = vld [vmem:[#allocation9 + $0xc8] sm:$0xff]
    %v3329 = vld [vmem:[#allocation9 + $0xd0] sm:$0xff]
    %v3330 = vld [vmem:[#allocation9 + $0xd8] sm:$0xff]
    %v3331 = vld [vmem:[#allocation9 + $0xe0] sm:$0xff]
    %v3332 = vld [vmem:[#allocation9 + $0xe8] sm:$0xff]
    %v3333 = vld [vmem:[#allocation9 + $0xf0] sm:$0xff]
    %v3334 = vld [vmem:[#allocation9 + $0xf8] sm:$0xff]
    %v3335 = vld [vmem:[#allocation9 + $0x100] sm:$0xff]
    %v3336 = vld [vmem:[#allocation9 + $0x108] sm:$0xff]
    %v3337 = vld [vmem:[#allocation9 + $0x110] sm:$0xff]
    %v3338 = vld [vmem:[#allocation9 + $0x118] sm:$0xff]
    %v3339 = vld [vmem:[#allocation9 + $0x120] sm:$0xff]
    %v3340 = vld [vmem:[#allocation9 + $0x128] sm:$0xff]
    %v3341 = vld [vmem:[#allocation9 + $0x130] sm:$0xff]
    %v3342 = vld [vmem:[#allocation9 + $0x138] sm:$0xff]
    %v3343 = vld [vmem:[#allocation9 + $0x140] sm:$0xff]
    %v3344 = vld [vmem:[#allocation9 + $0x148] sm:$0xff]
    %v3345 = vld [vmem:[#allocation9 + $0x150] sm:$0xff]
    %v3346 = vld [vmem:[#allocation9 + $0x158] sm:$0xff]
    %v3347 = vld [vmem:[#allocation9 + $0x160] sm:$0xff]
    %v3348 = vld [vmem:[#allocation9 + $0x168] sm:$0xff]
    %v3349 = vld [vmem:[#allocation9 + $0x170] sm:$0xff]
    %v3350 = vld [vmem:[#allocation9 + $0x178] sm:$0xff]
    %3351 = vmatprep.subr.mxu0 %v3304
    %3352 = vmatpush1.msra.mxu0 %v3303
    %3353 = vmatprep.subr.mxu0 %v3307
    %3354 = vmatpush1.msra.mxu0 %v3306
    %3355 = vmatprep.subr.mxu0 %v3310
    %3356 = vmatpush1.msra.mxu0 %v3309
    %3357 = vmatprep.subr.mxu0 %v3313
    %3358 = vmatpush1.msra.mxu0 %v3312
    %3359 = vmatprep.subr.mxu0 %v3316
    %3360 = vmatpush1.msra.mxu0 %v3315
    %3361 = vmatprep.subr.mxu0 %v3319
    %3362 = vmatpush1.msra.mxu0 %v3318
    %3363 = vmatprep.subr.mxu0 %v3322
    %3364 = vmatpush1.msra.mxu0 %v3321
    %3365 = vmatprep.subr.mxu0 %v3325
    %3366 = vmatpush1.msra.mxu0 %v3324
    %3367 = vmatprep.subr.mxu0 %v3328
    %3368 = vmatpush1.msra.mxu0 %v3327
    %3369 = vmatprep.subr.mxu0 %v3331
    %3370 = vmatpush1.msra.mxu0 %v3330
    %3371 = vmatprep.subr.mxu0 %v3334
    %3372 = vmatpush1.msra.mxu0 %v3333
    %3373 = vmatprep.subr.mxu0 %v3337
    %3374 = vmatpush1.msra.mxu0 %v3336
    %3375 = vmatprep.subr.mxu0 %v3340
    %3376 = vmatpush1.msra.mxu0 %v3339
    %3377 = vmatprep.subr.mxu0 %v3343
    %3378 = vmatpush1.msra.mxu0 %v3342
    %3379 = vmatprep.subr.mxu0 %v3346
    %3380 = vmatpush1.msra.mxu0 %v3345
    %3381 = vmatprep.subr.mxu0 %v3349
    %3382 = vmatpush1.msra.mxu0 %v3348
    %3383 = vmatprep.subr.mxu0 0.0
    %3384 = vmatpush1.msra.mxu0 0.0
    %3385 = vmatprep.subr.mxu0 0.0
    %3386 = vmatpush1.msra.mxu0 0.0
    %3387 = vmatprep.subr.mxu0 0.0
    %3388 = vmatpush1.msra.mxu0 0.0
    %3389 = vmatprep.subr.mxu0 0.0
    %3390 = vmatpush1.msra.mxu0 0.0
    %3391 = vmatprep.subr.mxu0 0.0
    %3392 = vmatpush1.msra.mxu0 0.0
    %3393 = vmatprep.subr.mxu0 0.0
    %3394 = vmatpush1.msra.mxu0 0.0
    %3395 = vmatprep.subr.mxu0 0.0
    %3396 = vmatpush1.msra.mxu0 0.0
    %3397 = vmatprep.subr.mxu0 0.0
    %3398 = vmatpush1.msra.mxu0 0.0
    %3399 = vmatprep.subr.mxu0 0.0
    %3400 = vmatpush1.msra.mxu0 0.0
    %3401 = vmatprep.subr.mxu0 0.0
    %3402 = vmatpush1.msra.mxu0 0.0
    %3403 = vmatprep.subr.mxu0 0.0
    %3404 = vmatpush1.msra.mxu0 0.0
    %3405 = vmatprep.subr.mxu0 0.0
    %3406 = vmatpush1.msra.mxu0 0.0
    %3407 = vmatprep.subr.mxu0 0.0
    %3408 = vmatpush1.msra.mxu0 0.0
    %3409 = vmatprep.subr.mxu0 0.0
    %3410 = vmatpush1.msra.mxu0 0.0
    %3411 = vmatprep.subr.mxu0 0.0
    %3412 = vmatpush1.msra.mxu0 0.0
    %3413 = vmatprep.subr.mxu0 0.0
    %3414 = vmatpush1.msra.mxu0 0.0
    %3415 = vmatprep.mubr.f32.mxu0 0.0
    %3416 = vmatmul.mubr.f32.gmra.mrb[0].mxu0 %v3096
    %v3417 = vpop.f32.mrb[0].mxu0
    %v3418 = vadd.f32 0.0, %v3417
    %v3419 = vpop.f32.mrb[0].mxu0
    %v3420 = vadd.f32 0.0, %v3419
    %3421 = vdwg.mxu0
    %3422 = vmatprep.subr.mxu0 0.0
    %3423 = vmatpush1.msra.mxu0 %v3305
    %3424 = vmatprep.subr.mxu0 0.0
    %3425 = vmatpush1.msra.mxu0 %v3308
    %3426 = vmatprep.subr.mxu0 0.0
    %3427 = vmatpush1.msra.mxu0 %v3311
    %3428 = vmatprep.subr.mxu0 0.0
    %3429 = vmatpush1.msra.mxu0 %v3314
    %3430 = vmatprep.subr.mxu0 0.0
    %3431 = vmatpush1.msra.mxu0 %v3317
    %3432 = vmatprep.subr.mxu0 0.0
    %3433 = vmatpush1.msra.mxu0 %v3320
    %3434 = vmatprep.subr.mxu0 0.0
    %3435 = vmatpush1.msra.mxu0 %v3323
    %3436 = vmatprep.subr.mxu0 0.0
    %3437 = vmatpush1.msra.mxu0 %v3326
    %3438 = vmatprep.subr.mxu0 0.0
    %3439 = vmatpush1.msra.mxu0 %v3329
    %3440 = vmatprep.subr.mxu0 0.0
    %3441 = vmatpush1.msra.mxu0 %v3332
    %3442 = vmatprep.subr.mxu0 0.0
    %3443 = vmatpush1.msra.mxu0 %v3335
    %3444 = vmatprep.subr.mxu0 0.0
    %3445 = vmatpush1.msra.mxu0 %v3338
    %3446 = vmatprep.subr.mxu0 0.0
    %3447 = vmatpush1.msra.mxu0 %v3341
    %3448 = vmatprep.subr.mxu0 0.0
    %3449 = vmatpush1.msra.mxu0 %v3344
    %3450 = vmatprep.subr.mxu0 0.0
    %3451 = vmatpush1.msra.mxu0 %v3347
    %3452 = vmatprep.subr.mxu0 0.0
    %3453 = vmatpush1.msra.mxu0 %v3350
    %3454 = vmatprep.subr.mxu0 0.0
    %3455 = vmatpush1.msra.mxu0 0.0
    %3456 = vmatprep.subr.mxu0 0.0
    %3457 = vmatpush1.msra.mxu0 0.0
    %3458 = vmatprep.subr.mxu0 0.0
    %3459 = vmatpush1.msra.mxu0 0.0
    %3460 = vmatprep.subr.mxu0 0.0
    %3461 = vmatpush1.msra.mxu0 0.0
    %3462 = vmatprep.subr.mxu0 0.0
    %3463 = vmatpush1.msra.mxu0 0.0
    %3464 = vmatprep.subr.mxu0 0.0
    %3465 = vmatpush1.msra.mxu0 0.0
    %3466 = vmatprep.subr.mxu0 0.0
    %3467 = vmatpush1.msra.mxu0 0.0
    %3468 = vmatprep.subr.mxu0 0.0
    %3469 = vmatpush1.msra.mxu0 0.0
    %3470 = vmatprep.subr.mxu0 0.0
    %3471 = vmatpush1.msra.mxu0 0.0
    %3472 = vmatprep.subr.mxu0 0.0
    %3473 = vmatpush1.msra.mxu0 0.0
    %3474 = vmatprep.subr.mxu0 0.0
    %3475 = vmatpush1.msra.mxu0 0.0
    %3476 = vmatprep.subr.mxu0 0.0
    %3477 = vmatpush1.msra.mxu0 0.0
    %3478 = vmatprep.subr.mxu0 0.0
    %3479 = vmatpush1.msra.mxu0 0.0
    %3480 = vmatprep.subr.mxu0 0.0
    %3481 = vmatpush1.msra.mxu0 0.0
    %3482 = vmatprep.subr.mxu0 0.0
    %3483 = vmatpush1.msra.mxu0 0.0
    %3484 = vmatprep.subr.mxu0 0.0
    %3485 = vmatpush1.msra.mxu0 0.0
    %3486 = vmatprep.mubr.f32.mxu0 0.0
    %3487 = vmatmul.mubr.f32.gmra.mrb[0].mxu0 %v3096
    %v3488 = vpop.f32.mrb[0].mxu0
    %v3489 = vadd.f32 0.0, %v3488
    %v3490 = vpop.f32.mrb[0].mxu0
    %3491 = vdwg.mxu0
    %v3492 = vadd.f32 %v3229, %v3418
    %v3493 = vxor.u32 %v3492, 2147483648
    %v3494 = vmul.f32 %v3493, 1.442695
    %v3495 = vpow.pop %v3494
    %v3496 = vadd.f32 %v3495, 1.0
    %v3497 = vrcp.pop %v3496
    %v3498 = vmul.f32 1.0, %v3497
    %v3499 = vadd.f32 %v3231, %v3420
    %v3500 = vxor.u32 %v3499, 2147483648
    %v3501 = vmul.f32 %v3500, 1.442695
    %v3502 = vpow.pop %v3501
    %v3503 = vadd.f32 %v3502, 1.0
    %v3504 = vrcp.pop %v3503
    %v3505 = vmul.f32 1.0, %v3504
    %v3506 = vld [vmem:[%s9] sm:$0x1]
    %v3508 = vlaneseq
    %v3509 = vshrl.u32 %v3508, 7
    %v3510 = vsub.s32 0, %v3509
    %v3511 = vrot.slane %v3506, %v3510
    %v3513 = vadd.f32 %v3489, %v3511
    %v3514 = vmul.f32 %v3498, %v3513
    %v3515 = vadd.f32 %v3300, %v3514
    %v3516 = vtanh.pop %v3515
    %v3517 = vsub.f32 1.0, %v3505
    %v3518 = vmul.f32 %v3517, %v3516
    %v3519 = vmul.f32 %v3505, %v3096
    %v3520 = vadd.f32 %v3518, %v3519
    %3521 = vst [vmem:[%s528] sm:$0x3] %v3520
    %s3522 = scalar_lea.vmem %s10, 6
    %3523 = vst [vmem:[%s3522] sm:$0x3] %v3520
    %s3524 = scalar_lea.vmem %s0, 8
    %v3525 = vld [vmem:[%s3524] sm:$0x3]
    %v3526 = vld [vmem:[#allocation2] sm:$0x3]
    %v3527 = vld [vmem:[#allocation3] sm:$0xff]
    %v3528 = vld [vmem:[#allocation3 + $0x8] sm:$0xff]
    %v3529 = vld [vmem:[#allocation3 + $0x10] sm:$0xff]
    %v3530 = vld [vmem:[#allocation3 + $0x18] sm:$0xff]
    %v3531 = vld [vmem:[#allocation3 + $0x20] sm:$0xff]
    %v3532 = vld [vmem:[#allocation3 + $0x28] sm:$0xff]
    %v3533 = vld [vmem:[#allocation3 + $0x30] sm:$0xff]
    %v3534 = vld [vmem:[#allocation3 + $0x38] sm:$0xff]
    %v3535 = vld [vmem:[#allocation3 + $0x40] sm:$0xff]
    %v3536 = vld [vmem:[#allocation3 + $0x48] sm:$0xff]
    %v3537 = vld [vmem:[#allocation3 + $0x50] sm:$0xff]
    %v3538 = vld [vmem:[#allocation3 + $0x58] sm:$0xff]
    %v3539 = vld [vmem:[#allocation3 + $0x60] sm:$0xff]
    %v3540 = vld [vmem:[#allocation3 + $0x68] sm:$0xff]
    %v3541 = vld [vmem:[#allocation3 + $0x70] sm:$0xff]
    %v3542 = vld [vmem:[#allocation3 + $0x78] sm:$0xff]
    %v3543 = vld [vmem:[#allocation3 + $0x80] sm:$0xff]
    %v3544 = vld [vmem:[#allocation3 + $0x88] sm:$0xff]
    %v3545 = vld [vmem:[#allocation3 + $0x90] sm:$0xff]
    %v3546 = vld [vmem:[#allocation3 + $0x98] sm:$0xff]
    %v3547 = vld [vmem:[#allocation3 + $0xa0] sm:$0xff]
    %v3548 = vld [vmem:[#allocation3 + $0xa8] sm:$0xff]
    %v3549 = vld [vmem:[#allocation3 + $0xb0] sm:$0xff]
    %v3550 = vld [vmem:[#allocation3 + $0xb8] sm:$0xff]
    %v3551 = vld [vmem:[#allocation3 + $0xc0] sm:$0xff]
    %v3552 = vld [vmem:[#allocation3 + $0xc8] sm:$0xff]
    %v3553 = vld [vmem:[#allocation3 + $0xd0] sm:$0xff]
    %v3554 = vld [vmem:[#allocation3 + $0xd8] sm:$0xff]
    %v3555 = vld [vmem:[#allocation3 + $0xe0] sm:$0xff]
    %v3556 = vld [vmem:[#allocation3 + $0xe8] sm:$0xff]
    %v3557 = vld [vmem:[#allocation3 + $0xf0] sm:$0xff]
    %v3558 = vld [vmem:[#allocation3 + $0xf8] sm:$0xff]
    %v3559 = vld [vmem:[#allocation3 + $0x100] sm:$0xff]
    %v3560 = vld [vmem:[#allocation3 + $0x108] sm:$0xff]
    %v3561 = vld [vmem:[#allocation3 + $0x110] sm:$0xff]
    %v3562 = vld [vmem:[#allocation3 + $0x118] sm:$0xff]
    %v3563 = vld [vmem:[#allocation3 + $0x120] sm:$0xff]
    %v3564 = vld [vmem:[#allocation3 + $0x128] sm:$0xff]
    %v3565 = vld [vmem:[#allocation3 + $0x130] sm:$0xff]
    %v3566 = vld [vmem:[#allocation3 + $0x138] sm:$0xff]
    %v3567 = vld [vmem:[#allocation3 + $0x140] sm:$0xff]
    %v3568 = vld [vmem:[#allocation3 + $0x148] sm:$0xff]
    %v3569 = vld [vmem:[#allocation3 + $0x150] sm:$0xff]
    %v3570 = vld [vmem:[#allocation3 + $0x158] sm:$0xff]
    %v3571 = vld [vmem:[#allocation3 + $0x160] sm:$0xff]
    %v3572 = vld [vmem:[#allocation3 + $0x168] sm:$0xff]
    %v3573 = vld [vmem:[#allocation3 + $0x170] sm:$0xff]
    %v3574 = vld [vmem:[#allocation3 + $0x178] sm:$0xff]
    %v3575 = vld [vmem:[%s4] sm:$0x7]
    %v3577 = vlaneseq
    %v3578 = vshrl.u32 %v3577, 7
    %v3579 = vsub.s32 0, %v3578
    %v3580 = vrot.slane %v3575, %v3579
    %v3581 = vlaneseq
    %v3582 = vshrl.u32 %v3581, 7
    %v3583 = vsub.s32 1, %v3582
    %v3584 = vrot.slane %v3575, %v3583
    %v3585 = vlaneseq
    %v3586 = vshrl.u32 %v3585, 7
    %v3587 = vsub.s32 2, %v3586
    %v3588 = vrot.slane %v3575, %v3587
    %3592 = vmatprep.subr.mxu0 %v3528
    %3593 = vmatpush1.msra.mxu0 %v3527
    %3594 = vmatprep.subr.mxu0 %v3531
    %3595 = vmatpush1.msra.mxu0 %v3530
    %3596 = vmatprep.subr.mxu0 %v3534
    %3597 = vmatpush1.msra.mxu0 %v3533
    %3598 = vmatprep.subr.mxu0 %v3537
    %3599 = vmatpush1.msra.mxu0 %v3536
    %3600 = vmatprep.subr.mxu0 %v3540
    %3601 = vmatpush1.msra.mxu0 %v3539
    %3602 = vmatprep.subr.mxu0 %v3543
    %3603 = vmatpush1.msra.mxu0 %v3542
    %3604 = vmatprep.subr.mxu0 %v3546
    %3605 = vmatpush1.msra.mxu0 %v3545
    %3606 = vmatprep.subr.mxu0 %v3549
    %3607 = vmatpush1.msra.mxu0 %v3548
    %3608 = vmatprep.subr.mxu0 %v3552
    %3609 = vmatpush1.msra.mxu0 %v3551
    %3610 = vmatprep.subr.mxu0 %v3555
    %3611 = vmatpush1.msra.mxu0 %v3554
    %3612 = vmatprep.subr.mxu0 %v3558
    %3613 = vmatpush1.msra.mxu0 %v3557
    %3614 = vmatprep.subr.mxu0 %v3561
    %3615 = vmatpush1.msra.mxu0 %v3560
    %3616 = vmatprep.subr.mxu0 %v3564
    %3617 = vmatpush1.msra.mxu0 %v3563
    %3618 = vmatprep.subr.mxu0 %v3567
    %3619 = vmatpush1.msra.mxu0 %v3566
    %3620 = vmatprep.subr.mxu0 %v3570
    %3621 = vmatpush1.msra.mxu0 %v3569
    %3622 = vmatprep.subr.mxu0 %v3573
    %3623 = vmatpush1.msra.mxu0 %v3572
    %3624 = vmatprep.subr.mxu0 0.0
    %3625 = vmatpush1.msra.mxu0 0.0
    %3626 = vmatprep.subr.mxu0 0.0
    %3627 = vmatpush1.msra.mxu0 0.0
    %3628 = vmatprep.subr.mxu0 0.0
    %3629 = vmatpush1.msra.mxu0 0.0
    %3630 = vmatprep.subr.mxu0 0.0
    %3631 = vmatpush1.msra.mxu0 0.0
    %3632 = vmatprep.subr.mxu0 0.0
    %3633 = vmatpush1.msra.mxu0 0.0
    %3634 = vmatprep.subr.mxu0 0.0
    %3635 = vmatpush1.msra.mxu0 0.0
    %3636 = vmatprep.subr.mxu0 0.0
    %3637 = vmatpush1.msra.mxu0 0.0
    %3638 = vmatprep.subr.mxu0 0.0
    %3639 = vmatpush1.msra.mxu0 0.0
    %3640 = vmatprep.subr.mxu0 0.0
    %3641 = vmatpush1.msra.mxu0 0.0
    %3642 = vmatprep.subr.mxu0 0.0
    %3643 = vmatpush1.msra.mxu0 0.0
    %3644 = vmatprep.subr.mxu0 0.0
    %3645 = vmatpush1.msra.mxu0 0.0
    %3646 = vmatprep.subr.mxu0 0.0
    %3647 = vmatpush1.msra.mxu0 0.0
    %3648 = vmatprep.subr.mxu0 0.0
    %3649 = vmatpush1.msra.mxu0 0.0
    %3650 = vmatprep.subr.mxu0 0.0
    %3651 = vmatpush1.msra.mxu0 0.0
    %3652 = vmatprep.subr.mxu0 0.0
    %3653 = vmatpush1.msra.mxu0 0.0
    %3654 = vmatprep.subr.mxu0 0.0
    %3655 = vmatpush1.msra.mxu0 0.0
    %3656 = vmatprep.mubr.f32.mxu0 0.0
    %3657 = vmatmul.mubr.f32.gmra.mrb[0].mxu0 %v3525
    %v3658 = vpop.f32.mrb[0].mxu0
    %v3659 = vadd.f32 %v3580, %v3658
    %v3660 = vpop.f32.mrb[0].mxu0
    %v3661 = vadd.f32 %v3584, %v3660
    %3662 = vdwg.mxu0
    %3663 = vmatprep.subr.mxu0 0.0
    %3664 = vmatpush1.msra.mxu0 %v3529
    %3665 = vmatprep.subr.mxu0 0.0
    %3666 = vmatpush1.msra.mxu0 %v3532
    %3667 = vmatprep.subr.mxu0 0.0
    %3668 = vmatpush1.msra.mxu0 %v3535
    %3669 = vmatprep.subr.mxu0 0.0
    %3670 = vmatpush1.msra.mxu0 %v3538
    %3671 = vmatprep.subr.mxu0 0.0
    %3672 = vmatpush1.msra.mxu0 %v3541
    %3673 = vmatprep.subr.mxu0 0.0
    %3674 = vmatpush1.msra.mxu0 %v3544
    %3675 = vmatprep.subr.mxu0 0.0
    %3676 = vmatpush1.msra.mxu0 %v3547
    %3677 = vmatprep.subr.mxu0 0.0
    %3678 = vmatpush1.msra.mxu0 %v3550
    %3679 = vmatprep.subr.mxu0 0.0
    %3680 = vmatpush1.msra.mxu0 %v3553
    %3681 = vmatprep.subr.mxu0 0.0
    %3682 = vmatpush1.msra.mxu0 %v3556
    %3683 = vmatprep.subr.mxu0 0.0
    %3684 = vmatpush1.msra.mxu0 %v3559
    %3685 = vmatprep.subr.mxu0 0.0
    %3686 = vmatpush1.msra.mxu0 %v3562
    %3687 = vmatprep.subr.mxu0 0.0
    %3688 = vmatpush1.msra.mxu0 %v3565
    %3689 = vmatprep.subr.mxu0 0.0
    %3690 = vmatpush1.msra.mxu0 %v3568
    %3691 = vmatprep.subr.mxu0 0.0
    %3692 = vmatpush1.msra.mxu0 %v3571
    %3693 = vmatprep.subr.mxu0 0.0
    %3694 = vmatpush1.msra.mxu0 %v3574
    %3695 = vmatprep.subr.mxu0 0.0
    %3696 = vmatpush1.msra.mxu0 0.0
    %3697 = vmatprep.subr.mxu0 0.0
    %3698 = vmatpush1.msra.mxu0 0.0
    %3699 = vmatprep.subr.mxu0 0.0
    %3700 = vmatpush1.msra.mxu0 0.0
    %3701 = vmatprep.subr.mxu0 0.0
    %3702 = vmatpush1.msra.mxu0 0.0
    %3703 = vmatprep.subr.mxu0 0.0
    %3704 = vmatpush1.msra.mxu0 0.0
    %3705 = vmatprep.subr.mxu0 0.0
    %3706 = vmatpush1.msra.mxu0 0.0
    %3707 = vmatprep.subr.mxu0 0.0
    %3708 = vmatpush1.msra.mxu0 0.0
    %3709 = vmatprep.subr.mxu0 0.0
    %3710 = vmatpush1.msra.mxu0 0.0
    %3711 = vmatprep.subr.mxu0 0.0
    %3712 = vmatpush1.msra.mxu0 0.0
    %3713 = vmatprep.subr.mxu0 0.0
    %3714 = vmatpush1.msra.mxu0 0.0
    %3715 = vmatprep.subr.mxu0 0.0
    %3716 = vmatpush1.msra.mxu0 0.0
    %3717 = vmatprep.subr.mxu0 0.0
    %3718 = vmatpush1.msra.mxu0 0.0
    %3719 = vmatprep.subr.mxu0 0.0
    %3720 = vmatpush1.msra.mxu0 0.0
    %3721 = vmatprep.subr.mxu0 0.0
    %3722 = vmatpush1.msra.mxu0 0.0
    %3723 = vmatprep.subr.mxu0 0.0
    %3724 = vmatpush1.msra.mxu0 0.0
    %3725 = vmatprep.subr.mxu0 0.0
    %3726 = vmatpush1.msra.mxu0 0.0
    %3727 = vmatprep.mubr.f32.mxu0 0.0
    %3728 = vmatmul.mubr.f32.gmra.mrb[0].mxu0 %v3525
    %v3729 = vpop.f32.mrb[0].mxu0
    %v3730 = vadd.f32 %v3588, %v3729
    %v3731 = vpop.f32.mrb[0].mxu0
    %3732 = vdwg.mxu0
    %v3733 = vld [vmem:[#allocation6] sm:$0xff]
    %v3734 = vld [vmem:[#allocation6 + $0x8] sm:$0xff]
    %v3735 = vld [vmem:[#allocation6 + $0x10] sm:$0xff]
    %v3736 = vld [vmem:[#allocation6 + $0x18] sm:$0xff]
    %v3737 = vld [vmem:[#allocation6 + $0x20] sm:$0xff]
    %v3738 = vld [vmem:[#allocation6 + $0x28] sm:$0xff]
    %v3739 = vld [vmem:[#allocation6 + $0x30] sm:$0xff]
    %v3740 = vld [vmem:[#allocation6 + $0x38] sm:$0xff]
    %v3741 = vld [vmem:[#allocation6 + $0x40] sm:$0xff]
    %v3742 = vld [vmem:[#allocation6 + $0x48] sm:$0xff]
    %v3743 = vld [vmem:[#allocation6 + $0x50] sm:$0xff]
    %v3744 = vld [vmem:[#allocation6 + $0x58] sm:$0xff]
    %v3745 = vld [vmem:[#allocation6 + $0x60] sm:$0xff]
    %v3746 = vld [vmem:[#allocation6 + $0x68] sm:$0xff]
    %v3747 = vld [vmem:[#allocation6 + $0x70] sm:$0xff]
    %v3748 = vld [vmem:[#allocation6 + $0x78] sm:$0xff]
    %v3749 = vld [vmem:[#allocation6 + $0x80] sm:$0xff]
    %v3750 = vld [vmem:[#allocation6 + $0x88] sm:$0xff]
    %v3751 = vld [vmem:[#allocation6 + $0x90] sm:$0xff]
    %v3752 = vld [vmem:[#allocation6 + $0x98] sm:$0xff]
    %v3753 = vld [vmem:[#allocation6 + $0xa0] sm:$0xff]
    %v3754 = vld [vmem:[#allocation6 + $0xa8] sm:$0xff]
    %v3755 = vld [vmem:[#allocation6 + $0xb0] sm:$0xff]
    %v3756 = vld [vmem:[#allocation6 + $0xb8] sm:$0xff]
    %v3757 = vld [vmem:[#allocation6 + $0xc0] sm:$0xff]
    %v3758 = vld [vmem:[#allocation6 + $0xc8] sm:$0xff]
    %v3759 = vld [vmem:[#allocation6 + $0xd0] sm:$0xff]
    %v3760 = vld [vmem:[#allocation6 + $0xd8] sm:$0xff]
    %v3761 = vld [vmem:[#allocation6 + $0xe0] sm:$0xff]
    %v3762 = vld [vmem:[#allocation6 + $0xe8] sm:$0xff]
    %v3763 = vld [vmem:[#allocation6 + $0xf0] sm:$0xff]
    %v3764 = vld [vmem:[#allocation6 + $0xf8] sm:$0xff]
    %v3765 = vld [vmem:[#allocation6 + $0x100] sm:$0xff]
    %v3766 = vld [vmem:[#allocation6 + $0x108] sm:$0xff]
    %v3767 = vld [vmem:[#allocation6 + $0x110] sm:$0xff]
    %v3768 = vld [vmem:[#allocation6 + $0x118] sm:$0xff]
    %v3769 = vld [vmem:[#allocation6 + $0x120] sm:$0xff]
    %v3770 = vld [vmem:[#allocation6 + $0x128] sm:$0xff]
    %v3771 = vld [vmem:[#allocation6 + $0x130] sm:$0xff]
    %v3772 = vld [vmem:[#allocation6 + $0x138] sm:$0xff]
    %v3773 = vld [vmem:[#allocation6 + $0x140] sm:$0xff]
    %v3774 = vld [vmem:[#allocation6 + $0x148] sm:$0xff]
    %v3775 = vld [vmem:[#allocation6 + $0x150] sm:$0xff]
    %v3776 = vld [vmem:[#allocation6 + $0x158] sm:$0xff]
    %v3777 = vld [vmem:[#allocation6 + $0x160] sm:$0xff]
    %v3778 = vld [vmem:[#allocation6 + $0x168] sm:$0xff]
    %v3779 = vld [vmem:[#allocation6 + $0x170] sm:$0xff]
    %v3780 = vld [vmem:[#allocation6 + $0x178] sm:$0xff]
    %3781 = vmatprep.subr.mxu0 %v3734
    %3782 = vmatpush1.msra.mxu0 %v3733
    %3783 = vmatprep.subr.mxu0 %v3737
    %3784 = vmatpush1.msra.mxu0 %v3736
    %3785 = vmatprep.subr.mxu0 %v3740
    %3786 = vmatpush1.msra.mxu0 %v3739
    %3787 = vmatprep.subr.mxu0 %v3743
    %3788 = vmatpush1.msra.mxu0 %v3742
    %3789 = vmatprep.subr.mxu0 %v3746
    %3790 = vmatpush1.msra.mxu0 %v3745
    %3791 = vmatprep.subr.mxu0 %v3749
    %3792 = vmatpush1.msra.mxu0 %v3748
    %3793 = vmatprep.subr.mxu0 %v3752
    %3794 = vmatpush1.msra.mxu0 %v3751
    %3795 = vmatprep.subr.mxu0 %v3755
    %3796 = vmatpush1.msra.mxu0 %v3754
    %3797 = vmatprep.subr.mxu0 %v3758
    %3798 = vmatpush1.msra.mxu0 %v3757
    %3799 = vmatprep.subr.mxu0 %v3761
    %3800 = vmatpush1.msra.mxu0 %v3760
    %3801 = vmatprep.subr.mxu0 %v3764
    %3802 = vmatpush1.msra.mxu0 %v3763
    %3803 = vmatprep.subr.mxu0 %v3767
    %3804 = vmatpush1.msra.mxu0 %v3766
    %3805 = vmatprep.subr.mxu0 %v3770
    %3806 = vmatpush1.msra.mxu0 %v3769
    %3807 = vmatprep.subr.mxu0 %v3773
    %3808 = vmatpush1.msra.mxu0 %v3772
    %3809 = vmatprep.subr.mxu0 %v3776
    %3810 = vmatpush1.msra.mxu0 %v3775
    %3811 = vmatprep.subr.mxu0 %v3779
    %3812 = vmatpush1.msra.mxu0 %v3778
    %3813 = vmatprep.subr.mxu0 0.0
    %3814 = vmatpush1.msra.mxu0 0.0
    %3815 = vmatprep.subr.mxu0 0.0
    %3816 = vmatpush1.msra.mxu0 0.0
    %3817 = vmatprep.subr.mxu0 0.0
    %3818 = vmatpush1.msra.mxu0 0.0
    %3819 = vmatprep.subr.mxu0 0.0
    %3820 = vmatpush1.msra.mxu0 0.0
    %3821 = vmatprep.subr.mxu0 0.0
    %3822 = vmatpush1.msra.mxu0 0.0
    %3823 = vmatprep.subr.mxu0 0.0
    %3824 = vmatpush1.msra.mxu0 0.0
    %3825 = vmatprep.subr.mxu0 0.0
    %3826 = vmatpush1.msra.mxu0 0.0
    %3827 = vmatprep.subr.mxu0 0.0
    %3828 = vmatpush1.msra.mxu0 0.0
    %3829 = vmatprep.subr.mxu0 0.0
    %3830 = vmatpush1.msra.mxu0 0.0
    %3831 = vmatprep.subr.mxu0 0.0
    %3832 = vmatpush1.msra.mxu0 0.0
    %3833 = vmatprep.subr.mxu0 0.0
    %3834 = vmatpush1.msra.mxu0 0.0
    %3835 = vmatprep.subr.mxu0 0.0
    %3836 = vmatpush1.msra.mxu0 0.0
    %3837 = vmatprep.subr.mxu0 0.0
    %3838 = vmatpush1.msra.mxu0 0.0
    %3839 = vmatprep.subr.mxu0 0.0
    %3840 = vmatpush1.msra.mxu0 0.0
    %3841 = vmatprep.subr.mxu0 0.0
    %3842 = vmatpush1.msra.mxu0 0.0
    %3843 = vmatprep.subr.mxu0 0.0
    %3844 = vmatpush1.msra.mxu0 0.0
    %3845 = vmatprep.mubr.f32.mxu0 0.0
    %3846 = vmatmul.mubr.f32.gmra.mrb[0].mxu0 %v3526
    %v3847 = vpop.f32.mrb[0].mxu0
    %v3848 = vadd.f32 0.0, %v3847
    %v3849 = vpop.f32.mrb[0].mxu0
    %v3850 = vadd.f32 0.0, %v3849
    %3851 = vdwg.mxu0
    %3852 = vmatprep.subr.mxu0 0.0
    %3853 = vmatpush1.msra.mxu0 %v3735
    %3854 = vmatprep.subr.mxu0 0.0
    %3855 = vmatpush1.msra.mxu0 %v3738
    %3856 = vmatprep.subr.mxu0 0.0
    %3857 = vmatpush1.msra.mxu0 %v3741
    %3858 = vmatprep.subr.mxu0 0.0
    %3859 = vmatpush1.msra.mxu0 %v3744
    %3860 = vmatprep.subr.mxu0 0.0
    %3861 = vmatpush1.msra.mxu0 %v3747
    %3862 = vmatprep.subr.mxu0 0.0
    %3863 = vmatpush1.msra.mxu0 %v3750
    %3864 = vmatprep.subr.mxu0 0.0
    %3865 = vmatpush1.msra.mxu0 %v3753
    %3866 = vmatprep.subr.mxu0 0.0
    %3867 = vmatpush1.msra.mxu0 %v3756
    %3868 = vmatprep.subr.mxu0 0.0
    %3869 = vmatpush1.msra.mxu0 %v3759
    %3870 = vmatprep.subr.mxu0 0.0
    %3871 = vmatpush1.msra.mxu0 %v3762
    %3872 = vmatprep.subr.mxu0 0.0
    %3873 = vmatpush1.msra.mxu0 %v3765
    %3874 = vmatprep.subr.mxu0 0.0
    %3875 = vmatpush1.msra.mxu0 %v3768
    %3876 = vmatprep.subr.mxu0 0.0
    %3877 = vmatpush1.msra.mxu0 %v3771
    %3878 = vmatprep.subr.mxu0 0.0
    %3879 = vmatpush1.msra.mxu0 %v3774
    %3880 = vmatprep.subr.mxu0 0.0
    %3881 = vmatpush1.msra.mxu0 %v3777
    %3882 = vmatprep.subr.mxu0 0.0
    %3883 = vmatpush1.msra.mxu0 %v3780
    %3884 = vmatprep.subr.mxu0 0.0
    %3885 = vmatpush1.msra.mxu0 0.0
    %3886 = vmatprep.subr.mxu0 0.0
    %3887 = vmatpush1.msra.mxu0 0.0
    %3888 = vmatprep.subr.mxu0 0.0
    %3889 = vmatpush1.msra.mxu0 0.0
    %3890 = vmatprep.subr.mxu0 0.0
    %3891 = vmatpush1.msra.mxu0 0.0
    %3892 = vmatprep.subr.mxu0 0.0
    %3893 = vmatpush1.msra.mxu0 0.0
    %3894 = vmatprep.subr.mxu0 0.0
    %3895 = vmatpush1.msra.mxu0 0.0
    %3896 = vmatprep.subr.mxu0 0.0
    %3897 = vmatpush1.msra.mxu0 0.0
    %3898 = vmatprep.subr.mxu0 0.0
    %3899 = vmatpush1.msra.mxu0 0.0
    %3900 = vmatprep.subr.mxu0 0.0
    %3901 = vmatpush1.msra.mxu0 0.0
    %3902 = vmatprep.subr.mxu0 0.0
    %3903 = vmatpush1.msra.mxu0 0.0
    %3904 = vmatprep.subr.mxu0 0.0
    %3905 = vmatpush1.msra.mxu0 0.0
    %3906 = vmatprep.subr.mxu0 0.0
    %3907 = vmatpush1.msra.mxu0 0.0
    %3908 = vmatprep.subr.mxu0 0.0
    %3909 = vmatpush1.msra.mxu0 0.0
    %3910 = vmatprep.subr.mxu0 0.0
    %3911 = vmatpush1.msra.mxu0 0.0
    %3912 = vmatprep.subr.mxu0 0.0
    %3913 = vmatpush1.msra.mxu0 0.0
    %3914 = vmatprep.subr.mxu0 0.0
    %3915 = vmatpush1.msra.mxu0 0.0
    %3916 = vmatprep.mubr.f32.mxu0 0.0
    %3917 = vmatmul.mubr.f32.gmra.mrb[0].mxu0 %v3526
    %v3918 = vpop.f32.mrb[0].mxu0
    %v3919 = vadd.f32 0.0, %v3918
    %v3920 = vpop.f32.mrb[0].mxu0
    %3921 = vdwg.mxu0
    %v3922 = vadd.f32 %v3659, %v3848
    %v3923 = vxor.u32 %v3922, 2147483648
    %v3924 = vmul.f32 %v3923, 1.442695
    %v3925 = vpow.pop %v3924
    %v3926 = vadd.f32 %v3925, 1.0
    %v3927 = vrcp.pop %v3926
    %v3928 = vmul.f32 1.0, %v3927
    %v3929 = vadd.f32 %v3661, %v3850
    %v3930 = vxor.u32 %v3929, 2147483648
    %v3931 = vmul.f32 %v3930, 1.442695
    %v3932 = vpow.pop %v3931
    %v3933 = vadd.f32 %v3932, 1.0
    %v3934 = vrcp.pop %v3933
    %v3935 = vmul.f32 1.0, %v3934
    %v3936 = vld [vmem:[%s5] sm:$0x1]
    %v3938 = vlaneseq
    %v3939 = vshrl.u32 %v3938, 7
    %v3940 = vsub.s32 0, %v3939
    %v3941 = vrot.slane %v3936, %v3940
    %v3943 = vadd.f32 %v3919, %v3941
    %v3944 = vmul.f32 %v3928, %v3943
    %v3945 = vadd.f32 %v3730, %v3944
    %v3946 = vtanh.pop %v3945
    %v3947 = vsub.f32 1.0, %v3935
    %v3948 = vmul.f32 %v3947, %v3946
    %v3949 = vmul.f32 %v3935, %v3526
    %v3950 = vadd.f32 %v3948, %v3949
    %3951 = vst [vmem:[#allocation2] sm:$0x3] %v3950
    %v3952 = vld [vmem:[%s528] sm:$0x3]
    %v3953 = vld [vmem:[#allocation8] sm:$0xff]
    %v3954 = vld [vmem:[#allocation8 + $0x8] sm:$0xff]
    %v3955 = vld [vmem:[#allocation8 + $0x10] sm:$0xff]
    %v3956 = vld [vmem:[#allocation8 + $0x18] sm:$0xff]
    %v3957 = vld [vmem:[#allocation8 + $0x20] sm:$0xff]
    %v3958 = vld [vmem:[#allocation8 + $0x28] sm:$0xff]
    %v3959 = vld [vmem:[#allocation8 + $0x30] sm:$0xff]
    %v3960 = vld [vmem:[#allocation8 + $0x38] sm:$0xff]
    %v3961 = vld [vmem:[#allocation8 + $0x40] sm:$0xff]
    %v3962 = vld [vmem:[#allocation8 + $0x48] sm:$0xff]
    %v3963 = vld [vmem:[#allocation8 + $0x50] sm:$0xff]
    %v3964 = vld [vmem:[#allocation8 + $0x58] sm:$0xff]
    %v3965 = vld [vmem:[#allocation8 + $0x60] sm:$0xff]
    %v3966 = vld [vmem:[#allocation8 + $0x68] sm:$0xff]
    %v3967 = vld [vmem:[#allocation8 + $0x70] sm:$0xff]
    %v3968 = vld [vmem:[#allocation8 + $0x78] sm:$0xff]
    %v3969 = vld [vmem:[#allocation8 + $0x80] sm:$0xff]
    %v3970 = vld [vmem:[#allocation8 + $0x88] sm:$0xff]
    %v3971 = vld [vmem:[#allocation8 + $0x90] sm:$0xff]
    %v3972 = vld [vmem:[#allocation8 + $0x98] sm:$0xff]
    %v3973 = vld [vmem:[#allocation8 + $0xa0] sm:$0xff]
    %v3974 = vld [vmem:[#allocation8 + $0xa8] sm:$0xff]
    %v3975 = vld [vmem:[#allocation8 + $0xb0] sm:$0xff]
    %v3976 = vld [vmem:[#allocation8 + $0xb8] sm:$0xff]
    %v3977 = vld [vmem:[#allocation8 + $0xc0] sm:$0xff]
    %v3978 = vld [vmem:[#allocation8 + $0xc8] sm:$0xff]
    %v3979 = vld [vmem:[#allocation8 + $0xd0] sm:$0xff]
    %v3980 = vld [vmem:[#allocation8 + $0xd8] sm:$0xff]
    %v3981 = vld [vmem:[#allocation8 + $0xe0] sm:$0xff]
    %v3982 = vld [vmem:[#allocation8 + $0xe8] sm:$0xff]
    %v3983 = vld [vmem:[#allocation8 + $0xf0] sm:$0xff]
    %v3984 = vld [vmem:[#allocation8 + $0xf8] sm:$0xff]
    %v3985 = vld [vmem:[#allocation8 + $0x100] sm:$0xff]
    %v3986 = vld [vmem:[#allocation8 + $0x108] sm:$0xff]
    %v3987 = vld [vmem:[#allocation8 + $0x110] sm:$0xff]
    %v3988 = vld [vmem:[#allocation8 + $0x118] sm:$0xff]
    %v3989 = vld [vmem:[#allocation8 + $0x120] sm:$0xff]
    %v3990 = vld [vmem:[#allocation8 + $0x128] sm:$0xff]
    %v3991 = vld [vmem:[#allocation8 + $0x130] sm:$0xff]
    %v3992 = vld [vmem:[#allocation8 + $0x138] sm:$0xff]
    %v3993 = vld [vmem:[#allocation8 + $0x140] sm:$0xff]
    %v3994 = vld [vmem:[#allocation8 + $0x148] sm:$0xff]
    %v3995 = vld [vmem:[#allocation8 + $0x150] sm:$0xff]
    %v3996 = vld [vmem:[#allocation8 + $0x158] sm:$0xff]
    %v3997 = vld [vmem:[#allocation8 + $0x160] sm:$0xff]
    %v3998 = vld [vmem:[#allocation8 + $0x168] sm:$0xff]
    %v3999 = vld [vmem:[#allocation8 + $0x170] sm:$0xff]
    %v4000 = vld [vmem:[#allocation8 + $0x178] sm:$0xff]
    %v4001 = vld [vmem:[%s8] sm:$0x7]
    %v4003 = vlaneseq
    %v4004 = vshrl.u32 %v4003, 7
    %v4005 = vsub.s32 0, %v4004
    %v4006 = vrot.slane %v4001, %v4005
    %v4007 = vlaneseq
    %v4008 = vshrl.u32 %v4007, 7
    %v4009 = vsub.s32 1, %v4008
    %v4010 = vrot.slane %v4001, %v4009
    %v4011 = vlaneseq
    %v4012 = vshrl.u32 %v4011, 7
    %v4013 = vsub.s32 2, %v4012
    %v4014 = vrot.slane %v4001, %v4013
    %4018 = vmatprep.subr.mxu0 %v3954
    %4019 = vmatpush1.msra.mxu0 %v3953
    %4020 = vmatprep.subr.mxu0 %v3957
    %4021 = vmatpush1.msra.mxu0 %v3956
    %4022 = vmatprep.subr.mxu0 %v3960
    %4023 = vmatpush1.msra.mxu0 %v3959
    %4024 = vmatprep.subr.mxu0 %v3963
    %4025 = vmatpush1.msra.mxu0 %v3962
    %4026 = vmatprep.subr.mxu0 %v3966
    %4027 = vmatpush1.msra.mxu0 %v3965
    %4028 = vmatprep.subr.mxu0 %v3969
    %4029 = vmatpush1.msra.mxu0 %v3968
    %4030 = vmatprep.subr.mxu0 %v3972
    %4031 = vmatpush1.msra.mxu0 %v3971
    %4032 = vmatprep.subr.mxu0 %v3975
    %4033 = vmatpush1.msra.mxu0 %v3974
    %4034 = vmatprep.subr.mxu0 %v3978
    %4035 = vmatpush1.msra.mxu0 %v3977
    %4036 = vmatprep.subr.mxu0 %v3981
    %4037 = vmatpush1.msra.mxu0 %v3980
    %4038 = vmatprep.subr.mxu0 %v3984
    %4039 = vmatpush1.msra.mxu0 %v3983
    %4040 = vmatprep.subr.mxu0 %v3987
    %4041 = vmatpush1.msra.mxu0 %v3986
    %4042 = vmatprep.subr.mxu0 %v3990
    %4043 = vmatpush1.msra.mxu0 %v3989
    %4044 = vmatprep.subr.mxu0 %v3993
    %4045 = vmatpush1.msra.mxu0 %v3992
    %4046 = vmatprep.subr.mxu0 %v3996
    %4047 = vmatpush1.msra.mxu0 %v3995
    %4048 = vmatprep.subr.mxu0 %v3999
    %4049 = vmatpush1.msra.mxu0 %v3998
    %4050 = vmatprep.subr.mxu0 0.0
    %4051 = vmatpush1.msra.mxu0 0.0
    %4052 = vmatprep.subr.mxu0 0.0
    %4053 = vmatpush1.msra.mxu0 0.0
    %4054 = vmatprep.subr.mxu0 0.0
    %4055 = vmatpush1.msra.mxu0 0.0
    %4056 = vmatprep.subr.mxu0 0.0
    %4057 = vmatpush1.msra.mxu0 0.0
    %4058 = vmatprep.subr.mxu0 0.0
    %4059 = vmatpush1.msra.mxu0 0.0
    %4060 = vmatprep.subr.mxu0 0.0
    %4061 = vmatpush1.msra.mxu0 0.0
    %4062 = vmatprep.subr.mxu0 0.0
    %4063 = vmatpush1.msra.mxu0 0.0
    %4064 = vmatprep.subr.mxu0 0.0
    %4065 = vmatpush1.msra.mxu0 0.0
    %4066 = vmatprep.subr.mxu0 0.0
    %4067 = vmatpush1.msra.mxu0 0.0
    %4068 = vmatprep.subr.mxu0 0.0
    %4069 = vmatpush1.msra.mxu0 0.0
    %4070 = vmatprep.subr.mxu0 0.0
    %4071 = vmatpush1.msra.mxu0 0.0
    %4072 = vmatprep.subr.mxu0 0.0
    %4073 = vmatpush1.msra.mxu0 0.0
    %4074 = vmatprep.subr.mxu0 0.0
    %4075 = vmatpush1.msra.mxu0 0.0
    %4076 = vmatprep.subr.mxu0 0.0
    %4077 = vmatpush1.msra.mxu0 0.0
    %4078 = vmatprep.subr.mxu0 0.0
    %4079 = vmatpush1.msra.mxu0 0.0
    %4080 = vmatprep.subr.mxu0 0.0
    %4081 = vmatpush1.msra.mxu0 0.0
    %4082 = vmatprep.mubr.f32.mxu0 0.0
    %4083 = vmatmul.mubr.f32.gmra.mrb[0].mxu0 %v3950
    %v4084 = vpop.f32.mrb[0].mxu0
    %v4085 = vadd.f32 %v4006, %v4084
    %v4086 = vpop.f32.mrb[0].mxu0
    %v4087 = vadd.f32 %v4010, %v4086
    %4088 = vdwg.mxu0
    %4089 = vmatprep.subr.mxu0 0.0
    %4090 = vmatpush1.msra.mxu0 %v3955
    %4091 = vmatprep.subr.mxu0 0.0
    %4092 = vmatpush1.msra.mxu0 %v3958
    %4093 = vmatprep.subr.mxu0 0.0
    %4094 = vmatpush1.msra.mxu0 %v3961
    %4095 = vmatprep.subr.mxu0 0.0
    %4096 = vmatpush1.msra.mxu0 %v3964
    %4097 = vmatprep.subr.mxu0 0.0
    %4098 = vmatpush1.msra.mxu0 %v3967
    %4099 = vmatprep.subr.mxu0 0.0
    %4100 = vmatpush1.msra.mxu0 %v3970
    %4101 = vmatprep.subr.mxu0 0.0
    %4102 = vmatpush1.msra.mxu0 %v3973
    %4103 = vmatprep.subr.mxu0 0.0
    %4104 = vmatpush1.msra.mxu0 %v3976
    %4105 = vmatprep.subr.mxu0 0.0
    %4106 = vmatpush1.msra.mxu0 %v3979
    %4107 = vmatprep.subr.mxu0 0.0
    %4108 = vmatpush1.msra.mxu0 %v3982
    %4109 = vmatprep.subr.mxu0 0.0
    %4110 = vmatpush1.msra.mxu0 %v3985
    %4111 = vmatprep.subr.mxu0 0.0
    %4112 = vmatpush1.msra.mxu0 %v3988
    %4113 = vmatprep.subr.mxu0 0.0
    %4114 = vmatpush1.msra.mxu0 %v3991
    %4115 = vmatprep.subr.mxu0 0.0
    %4116 = vmatpush1.msra.mxu0 %v3994
    %4117 = vmatprep.subr.mxu0 0.0
    %4118 = vmatpush1.msra.mxu0 %v3997
    %4119 = vmatprep.subr.mxu0 0.0
    %4120 = vmatpush1.msra.mxu0 %v4000
    %4121 = vmatprep.subr.mxu0 0.0
    %4122 = vmatpush1.msra.mxu0 0.0
    %4123 = vmatprep.subr.mxu0 0.0
    %4124 = vmatpush1.msra.mxu0 0.0
    %4125 = vmatprep.subr.mxu0 0.0
    %4126 = vmatpush1.msra.mxu0 0.0
    %4127 = vmatprep.subr.mxu0 0.0
    %4128 = vmatpush1.msra.mxu0 0.0
    %4129 = vmatprep.subr.mxu0 0.0
    %4130 = vmatpush1.msra.mxu0 0.0
    %4131 = vmatprep.subr.mxu0 0.0
    %4132 = vmatpush1.msra.mxu0 0.0
    %4133 = vmatprep.subr.mxu0 0.0
    %4134 = vmatpush1.msra.mxu0 0.0
    %4135 = vmatprep.subr.mxu0 0.0
    %4136 = vmatpush1.msra.mxu0 0.0
    %4137 = vmatprep.subr.mxu0 0.0
    %4138 = vmatpush1.msra.mxu0 0.0
    %4139 = vmatprep.subr.mxu0 0.0
    %4140 = vmatpush1.msra.mxu0 0.0
    %4141 = vmatprep.subr.mxu0 0.0
    %4142 = vmatpush1.msra.mxu0 0.0
    %4143 = vmatprep.subr.mxu0 0.0
    %4144 = vmatpush1.msra.mxu0 0.0
    %4145 = vmatprep.subr.mxu0 0.0
    %4146 = vmatpush1.msra.mxu0 0.0
    %4147 = vmatprep.subr.mxu0 0.0
    %4148 = vmatpush1.msra.mxu0 0.0
    %4149 = vmatprep.subr.mxu0 0.0
    %4150 = vmatpush1.msra.mxu0 0.0
    %4151 = vmatprep.subr.mxu0 0.0
    %4152 = vmatpush1.msra.mxu0 0.0
    %4153 = vmatprep.mubr.f32.mxu0 0.0
    %4154 = vmatmul.mubr.f32.gmra.mrb[0].mxu0 %v3950
    %v4155 = vpop.f32.mrb[0].mxu0
    %v4156 = vadd.f32 %v4014, %v4155
    %v4157 = vpop.f32.mrb[0].mxu0
    %4158 = vdwg.mxu0
    %v4159 = vld [vmem:[#allocation9] sm:$0xff]
    %v4160 = vld [vmem:[#allocation9 + $0x8] sm:$0xff]
    %v4161 = vld [vmem:[#allocation9 + $0x10] sm:$0xff]
    %v4162 = vld [vmem:[#allocation9 + $0x18] sm:$0xff]
    %v4163 = vld [vmem:[#allocation9 + $0x20] sm:$0xff]
    %v4164 = vld [vmem:[#allocation9 + $0x28] sm:$0xff]
    %v4165 = vld [vmem:[#allocation9 + $0x30] sm:$0xff]
    %v4166 = vld [vmem:[#allocation9 + $0x38] sm:$0xff]
    %v4167 = vld [vmem:[#allocation9 + $0x40] sm:$0xff]
    %v4168 = vld [vmem:[#allocation9 + $0x48] sm:$0xff]
    %v4169 = vld [vmem:[#allocation9 + $0x50] sm:$0xff]
    %v4170 = vld [vmem:[#allocation9 + $0x58] sm:$0xff]
    %v4171 = vld [vmem:[#allocation9 + $0x60] sm:$0xff]
    %v4172 = vld [vmem:[#allocation9 + $0x68] sm:$0xff]
    %v4173 = vld [vmem:[#allocation9 + $0x70] sm:$0xff]
    %v4174 = vld [vmem:[#allocation9 + $0x78] sm:$0xff]
    %v4175 = vld [vmem:[#allocation9 + $0x80] sm:$0xff]
    %v4176 = vld [vmem:[#allocation9 + $0x88] sm:$0xff]
    %v4177 = vld [vmem:[#allocation9 + $0x90] sm:$0xff]
    %v4178 = vld [vmem:[#allocation9 + $0x98] sm:$0xff]
    %v4179 = vld [vmem:[#allocation9 + $0xa0] sm:$0xff]
    %v4180 = vld [vmem:[#allocation9 + $0xa8] sm:$0xff]
    %v4181 = vld [vmem:[#allocation9 + $0xb0] sm:$0xff]
    %v4182 = vld [vmem:[#allocation9 + $0xb8] sm:$0xff]
    %v4183 = vld [vmem:[#allocation9 + $0xc0] sm:$0xff]
    %v4184 = vld [vmem:[#allocation9 + $0xc8] sm:$0xff]
    %v4185 = vld [vmem:[#allocation9 + $0xd0] sm:$0xff]
    %v4186 = vld [vmem:[#allocation9 + $0xd8] sm:$0xff]
    %v4187 = vld [vmem:[#allocation9 + $0xe0] sm:$0xff]
    %v4188 = vld [vmem:[#allocation9 + $0xe8] sm:$0xff]
    %v4189 = vld [vmem:[#allocation9 + $0xf0] sm:$0xff]
    %v4190 = vld [vmem:[#allocation9 + $0xf8] sm:$0xff]
    %v4191 = vld [vmem:[#allocation9 + $0x100] sm:$0xff]
    %v4192 = vld [vmem:[#allocation9 + $0x108] sm:$0xff]
    %v4193 = vld [vmem:[#allocation9 + $0x110] sm:$0xff]
    %v4194 = vld [vmem:[#allocation9 + $0x118] sm:$0xff]
    %v4195 = vld [vmem:[#allocation9 + $0x120] sm:$0xff]
    %v4196 = vld [vmem:[#allocation9 + $0x128] sm:$0xff]
    %v4197 = vld [vmem:[#allocation9 + $0x130] sm:$0xff]
    %v4198 = vld [vmem:[#allocation9 + $0x138] sm:$0xff]
    %v4199 = vld [vmem:[#allocation9 + $0x140] sm:$0xff]
    %v4200 = vld [vmem:[#allocation9 + $0x148] sm:$0xff]
    %v4201 = vld [vmem:[#allocation9 + $0x150] sm:$0xff]
    %v4202 = vld [vmem:[#allocation9 + $0x158] sm:$0xff]
    %v4203 = vld [vmem:[#allocation9 + $0x160] sm:$0xff]
    %v4204 = vld [vmem:[#allocation9 + $0x168] sm:$0xff]
    %v4205 = vld [vmem:[#allocation9 + $0x170] sm:$0xff]
    %v4206 = vld [vmem:[#allocation9 + $0x178] sm:$0xff]
    %4207 = vmatprep.subr.mxu0 %v4160
    %4208 = vmatpush1.msra.mxu0 %v4159
    %4209 = vmatprep.subr.mxu0 %v4163
    %4210 = vmatpush1.msra.mxu0 %v4162
    %4211 = vmatprep.subr.mxu0 %v4166
    %4212 = vmatpush1.msra.mxu0 %v4165
    %4213 = vmatprep.subr.mxu0 %v4169
    %4214 = vmatpush1.msra.mxu0 %v4168
    %4215 = vmatprep.subr.mxu0 %v4172
    %4216 = vmatpush1.msra.mxu0 %v4171
    %4217 = vmatprep.subr.mxu0 %v4175
    %4218 = vmatpush1.msra.mxu0 %v4174
    %4219 = vmatprep.subr.mxu0 %v4178
    %4220 = vmatpush1.msra.mxu0 %v4177
    %4221 = vmatprep.subr.mxu0 %v4181
    %4222 = vmatpush1.msra.mxu0 %v4180
    %4223 = vmatprep.subr.mxu0 %v4184
    %4224 = vmatpush1.msra.mxu0 %v4183
    %4225 = vmatprep.subr.mxu0 %v4187
    %4226 = vmatpush1.msra.mxu0 %v4186
    %4227 = vmatprep.subr.mxu0 %v4190
    %4228 = vmatpush1.msra.mxu0 %v4189
    %4229 = vmatprep.subr.mxu0 %v4193
    %4230 = vmatpush1.msra.mxu0 %v4192
    %4231 = vmatprep.subr.mxu0 %v4196
    %4232 = vmatpush1.msra.mxu0 %v4195
    %4233 = vmatprep.subr.mxu0 %v4199
    %4234 = vmatpush1.msra.mxu0 %v4198
    %4235 = vmatprep.subr.mxu0 %v4202
    %4236 = vmatpush1.msra.mxu0 %v4201
    %4237 = vmatprep.subr.mxu0 %v4205
    %4238 = vmatpush1.msra.mxu0 %v4204
    %4239 = vmatprep.subr.mxu0 0.0
    %4240 = vmatpush1.msra.mxu0 0.0
    %4241 = vmatprep.subr.mxu0 0.0
    %4242 = vmatpush1.msra.mxu0 0.0
    %4243 = vmatprep.subr.mxu0 0.0
    %4244 = vmatpush1.msra.mxu0 0.0
    %4245 = vmatprep.subr.mxu0 0.0
    %4246 = vmatpush1.msra.mxu0 0.0
    %4247 = vmatprep.subr.mxu0 0.0
    %4248 = vmatpush1.msra.mxu0 0.0
    %4249 = vmatprep.subr.mxu0 0.0
    %4250 = vmatpush1.msra.mxu0 0.0
    %4251 = vmatprep.subr.mxu0 0.0
    %4252 = vmatpush1.msra.mxu0 0.0
    %4253 = vmatprep.subr.mxu0 0.0
    %4254 = vmatpush1.msra.mxu0 0.0
    %4255 = vmatprep.subr.mxu0 0.0
    %4256 = vmatpush1.msra.mxu0 0.0
    %4257 = vmatprep.subr.mxu0 0.0
    %4258 = vmatpush1.msra.mxu0 0.0
    %4259 = vmatprep.subr.mxu0 0.0
    %4260 = vmatpush1.msra.mxu0 0.0
    %4261 = vmatprep.subr.mxu0 0.0
    %4262 = vmatpush1.msra.mxu0 0.0
    %4263 = vmatprep.subr.mxu0 0.0
    %4264 = vmatpush1.msra.mxu0 0.0
    %4265 = vmatprep.subr.mxu0 0.0
    %4266 = vmatpush1.msra.mxu0 0.0
    %4267 = vmatprep.subr.mxu0 0.0
    %4268 = vmatpush1.msra.mxu0 0.0
    %4269 = vmatprep.subr.mxu0 0.0
    %4270 = vmatpush1.msra.mxu0 0.0
    %4271 = vmatprep.mubr.f32.mxu0 0.0
    %4272 = vmatmul.mubr.f32.gmra.mrb[0].mxu0 %v3952
    %v4273 = vpop.f32.mrb[0].mxu0
    %v4274 = vadd.f32 0.0, %v4273
    %v4275 = vpop.f32.mrb[0].mxu0
    %v4276 = vadd.f32 0.0, %v4275
    %4277 = vdwg.mxu0
    %4278 = vmatprep.subr.mxu0 0.0
    %4279 = vmatpush1.msra.mxu0 %v4161
    %4280 = vmatprep.subr.mxu0 0.0
    %4281 = vmatpush1.msra.mxu0 %v4164
    %4282 = vmatprep.subr.mxu0 0.0
    %4283 = vmatpush1.msra.mxu0 %v4167
    %4284 = vmatprep.subr.mxu0 0.0
    %4285 = vmatpush1.msra.mxu0 %v4170
    %4286 = vmatprep.subr.mxu0 0.0
    %4287 = vmatpush1.msra.mxu0 %v4173
    %4288 = vmatprep.subr.mxu0 0.0
    %4289 = vmatpush1.msra.mxu0 %v4176
    %4290 = vmatprep.subr.mxu0 0.0
    %4291 = vmatpush1.msra.mxu0 %v4179
    %4292 = vmatprep.subr.mxu0 0.0
    %4293 = vmatpush1.msra.mxu0 %v4182
    %4294 = vmatprep.subr.mxu0 0.0
    %4295 = vmatpush1.msra.mxu0 %v4185
    %4296 = vmatprep.subr.mxu0 0.0
    %4297 = vmatpush1.msra.mxu0 %v4188
    %4298 = vmatprep.subr.mxu0 0.0
    %4299 = vmatpush1.msra.mxu0 %v4191
    %4300 = vmatprep.subr.mxu0 0.0
    %4301 = vmatpush1.msra.mxu0 %v4194
    %4302 = vmatprep.subr.mxu0 0.0
    %4303 = vmatpush1.msra.mxu0 %v4197
    %4304 = vmatprep.subr.mxu0 0.0
    %4305 = vmatpush1.msra.mxu0 %v4200
    %4306 = vmatprep.subr.mxu0 0.0
    %4307 = vmatpush1.msra.mxu0 %v4203
    %4308 = vmatprep.subr.mxu0 0.0
    %4309 = vmatpush1.msra.mxu0 %v4206
    %4310 = vmatprep.subr.mxu0 0.0
    %4311 = vmatpush1.msra.mxu0 0.0
    %4312 = vmatprep.subr.mxu0 0.0
    %4313 = vmatpush1.msra.mxu0 0.0
    %4314 = vmatprep.subr.mxu0 0.0
    %4315 = vmatpush1.msra.mxu0 0.0
    %4316 = vmatprep.subr.mxu0 0.0
    %4317 = vmatpush1.msra.mxu0 0.0
    %4318 = vmatprep.subr.mxu0 0.0
    %4319 = vmatpush1.msra.mxu0 0.0
    %4320 = vmatprep.subr.mxu0 0.0
    %4321 = vmatpush1.msra.mxu0 0.0
    %4322 = vmatprep.subr.mxu0 0.0
    %4323 = vmatpush1.msra.mxu0 0.0
    %4324 = vmatprep.subr.mxu0 0.0
    %4325 = vmatpush1.msra.mxu0 0.0
    %4326 = vmatprep.subr.mxu0 0.0
    %4327 = vmatpush1.msra.mxu0 0.0
    %4328 = vmatprep.subr.mxu0 0.0
    %4329 = vmatpush1.msra.mxu0 0.0
    %4330 = vmatprep.subr.mxu0 0.0
    %4331 = vmatpush1.msra.mxu0 0.0
    %4332 = vmatprep.subr.mxu0 0.0
    %4333 = vmatpush1.msra.mxu0 0.0
    %4334 = vmatprep.subr.mxu0 0.0
    %4335 = vmatpush1.msra.mxu0 0.0
    %4336 = vmatprep.subr.mxu0 0.0
    %4337 = vmatpush1.msra.mxu0 0.0
    %4338 = vmatprep.subr.mxu0 0.0
    %4339 = vmatpush1.msra.mxu0 0.0
    %4340 = vmatprep.subr.mxu0 0.0
    %4341 = vmatpush1.msra.mxu0 0.0
    %4342 = vmatprep.mubr.f32.mxu0 0.0
    %4343 = vmatmul.mubr.f32.gmra.mrb[0].mxu0 %v3952
    %v4344 = vpop.f32.mrb[0].mxu0
    %v4345 = vadd.f32 0.0, %v4344
    %v4346 = vpop.f32.mrb[0].mxu0
    %4347 = vdwg.mxu0
    %v4348 = vadd.f32 %v4085, %v4274
    %v4349 = vxor.u32 %v4348, 2147483648
    %v4350 = vmul.f32 %v4349, 1.442695
    %v4351 = vpow.pop %v4350
    %v4352 = vadd.f32 %v4351, 1.0
    %v4353 = vrcp.pop %v4352
    %v4354 = vmul.f32 1.0, %v4353
    %v4355 = vadd.f32 %v4087, %v4276
    %v4356 = vxor.u32 %v4355, 2147483648
    %v4357 = vmul.f32 %v4356, 1.442695
    %v4358 = vpow.pop %v4357
    %v4359 = vadd.f32 %v4358, 1.0
    %v4360 = vrcp.pop %v4359
    %v4361 = vmul.f32 1.0, %v4360
    %v4362 = vld [vmem:[%s9] sm:$0x1]
    %v4364 = vlaneseq
    %v4365 = vshrl.u32 %v4364, 7
    %v4366 = vsub.s32 0, %v4365
    %v4367 = vrot.slane %v4362, %v4366
    %v4369 = vadd.f32 %v4345, %v4367
    %v4370 = vmul.f32 %v4354, %v4369
    %v4371 = vadd.f32 %v4156, %v4370
    %v4372 = vtanh.pop %v4371
    %v4373 = vsub.f32 1.0, %v4361
    %v4374 = vmul.f32 %v4373, %v4372
    %v4375 = vmul.f32 %v4361, %v3952
    %v4376 = vadd.f32 %v4374, %v4375
    %4377 = vst [vmem:[%s528] sm:$0x3] %v4376
    %s4378 = scalar_lea.vmem %s10, 8
    %4379 = vst [vmem:[%s4378] sm:$0x3] %v4376
    %s4380 = scalar_lea.vmem %s0, 10
    %v4381 = vld [vmem:[%s4380] sm:$0x3]
    %v4382 = vld [vmem:[#allocation2] sm:$0x3]
    %v4383 = vld [vmem:[#allocation3] sm:$0xff]
    %v4384 = vld [vmem:[#allocation3 + $0x8] sm:$0xff]
    %v4385 = vld [vmem:[#allocation3 + $0x10] sm:$0xff]
    %v4386 = vld [vmem:[#allocation3 + $0x18] sm:$0xff]
    %v4387 = vld [vmem:[#allocation3 + $0x20] sm:$0xff]
    %v4388 = vld [vmem:[#allocation3 + $0x28] sm:$0xff]
    %v4389 = vld [vmem:[#allocation3 + $0x30] sm:$0xff]
    %v4390 = vld [vmem:[#allocation3 + $0x38] sm:$0xff]
    %v4391 = vld [vmem:[#allocation3 + $0x40] sm:$0xff]
    %v4392 = vld [vmem:[#allocation3 + $0x48] sm:$0xff]
    %v4393 = vld [vmem:[#allocation3 + $0x50] sm:$0xff]
    %v4394 = vld [vmem:[#allocation3 + $0x58] sm:$0xff]
    %v4395 = vld [vmem:[#allocation3 + $0x60] sm:$0xff]
    %v4396 = vld [vmem:[#allocation3 + $0x68] sm:$0xff]
    %v4397 = vld [vmem:[#allocation3 + $0x70] sm:$0xff]
    %v4398 = vld [vmem:[#allocation3 + $0x78] sm:$0xff]
    %v4399 = vld [vmem:[#allocation3 + $0x80] sm:$0xff]
    %v4400 = vld [vmem:[#allocation3 + $0x88] sm:$0xff]
    %v4401 = vld [vmem:[#allocation3 + $0x90] sm:$0xff]
    %v4402 = vld [vmem:[#allocation3 + $0x98] sm:$0xff]
    %v4403 = vld [vmem:[#allocation3 + $0xa0] sm:$0xff]
    %v4404 = vld [vmem:[#allocation3 + $0xa8] sm:$0xff]
    %v4405 = vld [vmem:[#allocation3 + $0xb0] sm:$0xff]
    %v4406 = vld [vmem:[#allocation3 + $0xb8] sm:$0xff]
    %v4407 = vld [vmem:[#allocation3 + $0xc0] sm:$0xff]
    %v4408 = vld [vmem:[#allocation3 + $0xc8] sm:$0xff]
    %v4409 = vld [vmem:[#allocation3 + $0xd0] sm:$0xff]
    %v4410 = vld [vmem:[#allocation3 + $0xd8] sm:$0xff]
    %v4411 = vld [vmem:[#allocation3 + $0xe0] sm:$0xff]
    %v4412 = vld [vmem:[#allocation3 + $0xe8] sm:$0xff]
    %v4413 = vld [vmem:[#allocation3 + $0xf0] sm:$0xff]
    %v4414 = vld [vmem:[#allocation3 + $0xf8] sm:$0xff]
    %v4415 = vld [vmem:[#allocation3 + $0x100] sm:$0xff]
    %v4416 = vld [vmem:[#allocation3 + $0x108] sm:$0xff]
    %v4417 = vld [vmem:[#allocation3 + $0x110] sm:$0xff]
    %v4418 = vld [vmem:[#allocation3 + $0x118] sm:$0xff]
    %v4419 = vld [vmem:[#allocation3 + $0x120] sm:$0xff]
    %v4420 = vld [vmem:[#allocation3 + $0x128] sm:$0xff]
    %v4421 = vld [vmem:[#allocation3 + $0x130] sm:$0xff]
    %v4422 = vld [vmem:[#allocation3 + $0x138] sm:$0xff]
    %v4423 = vld [vmem:[#allocation3 + $0x140] sm:$0xff]
    %v4424 = vld [vmem:[#allocation3 + $0x148] sm:$0xff]
    %v4425 = vld [vmem:[#allocation3 + $0x150] sm:$0xff]
    %v4426 = vld [vmem:[#allocation3 + $0x158] sm:$0xff]
    %v4427 = vld [vmem:[#allocation3 + $0x160] sm:$0xff]
    %v4428 = vld [vmem:[#allocation3 + $0x168] sm:$0xff]
    %v4429 = vld [vmem:[#allocation3 + $0x170] sm:$0xff]
    %v4430 = vld [vmem:[#allocation3 + $0x178] sm:$0xff]
    %v4431 = vld [vmem:[%s4] sm:$0x7]
    %v4433 = vlaneseq
    %v4434 = vshrl.u32 %v4433, 7
    %v4435 = vsub.s32 0, %v4434
    %v4436 = vrot.slane %v4431, %v4435
    %v4437 = vlaneseq
    %v4438 = vshrl.u32 %v4437, 7
    %v4439 = vsub.s32 1, %v4438
    %v4440 = vrot.slane %v4431, %v4439
    %v4441 = vlaneseq
    %v4442 = vshrl.u32 %v4441, 7
    %v4443 = vsub.s32 2, %v4442
    %v4444 = vrot.slane %v4431, %v4443
    %4448 = vmatprep.subr.mxu0 %v4384
    %4449 = vmatpush1.msra.mxu0 %v4383
    %4450 = vmatprep.subr.mxu0 %v4387
    %4451 = vmatpush1.msra.mxu0 %v4386
    %4452 = vmatprep.subr.mxu0 %v4390
    %4453 = vmatpush1.msra.mxu0 %v4389
    %4454 = vmatprep.subr.mxu0 %v4393
    %4455 = vmatpush1.msra.mxu0 %v4392
    %4456 = vmatprep.subr.mxu0 %v4396
    %4457 = vmatpush1.msra.mxu0 %v4395
    %4458 = vmatprep.subr.mxu0 %v4399
    %4459 = vmatpush1.msra.mxu0 %v4398
    %4460 = vmatprep.subr.mxu0 %v4402
    %4461 = vmatpush1.msra.mxu0 %v4401
    %4462 = vmatprep.subr.mxu0 %v4405
    %4463 = vmatpush1.msra.mxu0 %v4404
    %4464 = vmatprep.subr.mxu0 %v4408
    %4465 = vmatpush1.msra.mxu0 %v4407
    %4466 = vmatprep.subr.mxu0 %v4411
    %4467 = vmatpush1.msra.mxu0 %v4410
    %4468 = vmatprep.subr.mxu0 %v4414
    %4469 = vmatpush1.msra.mxu0 %v4413
    %4470 = vmatprep.subr.mxu0 %v4417
    %4471 = vmatpush1.msra.mxu0 %v4416
    %4472 = vmatprep.subr.mxu0 %v4420
    %4473 = vmatpush1.msra.mxu0 %v4419
    %4474 = vmatprep.subr.mxu0 %v4423
    %4475 = vmatpush1.msra.mxu0 %v4422
    %4476 = vmatprep.subr.mxu0 %v4426
    %4477 = vmatpush1.msra.mxu0 %v4425
    %4478 = vmatprep.subr.mxu0 %v4429
    %4479 = vmatpush1.msra.mxu0 %v4428
    %4480 = vmatprep.subr.mxu0 0.0
    %4481 = vmatpush1.msra.mxu0 0.0
    %4482 = vmatprep.subr.mxu0 0.0
    %4483 = vmatpush1.msra.mxu0 0.0
    %4484 = vmatprep.subr.mxu0 0.0
    %4485 = vmatpush1.msra.mxu0 0.0
    %4486 = vmatprep.subr.mxu0 0.0
    %4487 = vmatpush1.msra.mxu0 0.0
    %4488 = vmatprep.subr.mxu0 0.0
    %4489 = vmatpush1.msra.mxu0 0.0
    %4490 = vmatprep.subr.mxu0 0.0
    %4491 = vmatpush1.msra.mxu0 0.0
    %4492 = vmatprep.subr.mxu0 0.0
    %4493 = vmatpush1.msra.mxu0 0.0
    %4494 = vmatprep.subr.mxu0 0.0
    %4495 = vmatpush1.msra.mxu0 0.0
    %4496 = vmatprep.subr.mxu0 0.0
    %4497 = vmatpush1.msra.mxu0 0.0
    %4498 = vmatprep.subr.mxu0 0.0
    %4499 = vmatpush1.msra.mxu0 0.0
    %4500 = vmatprep.subr.mxu0 0.0
    %4501 = vmatpush1.msra.mxu0 0.0
    %4502 = vmatprep.subr.mxu0 0.0
    %4503 = vmatpush1.msra.mxu0 0.0
    %4504 = vmatprep.subr.mxu0 0.0
    %4505 = vmatpush1.msra.mxu0 0.0
    %4506 = vmatprep.subr.mxu0 0.0
    %4507 = vmatpush1.msra.mxu0 0.0
    %4508 = vmatprep.subr.mxu0 0.0
    %4509 = vmatpush1.msra.mxu0 0.0
    %4510 = vmatprep.subr.mxu0 0.0
    %4511 = vmatpush1.msra.mxu0 0.0
    %4512 = vmatprep.mubr.f32.mxu0 0.0
    %4513 = vmatmul.mubr.f32.gmra.mrb[0].mxu0 %v4381
    %v4514 = vpop.f32.mrb[0].mxu0
    %v4515 = vadd.f32 %v4436, %v4514
    %v4516 = vpop.f32.mrb[0].mxu0
    %v4517 = vadd.f32 %v4440, %v4516
    %4518 = vdwg.mxu0
    %4519 = vmatprep.subr.mxu0 0.0
    %4520 = vmatpush1.msra.mxu0 %v4385
    %4521 = vmatprep.subr.mxu0 0.0
    %4522 = vmatpush1.msra.mxu0 %v4388
    %4523 = vmatprep.subr.mxu0 0.0
    %4524 = vmatpush1.msra.mxu0 %v4391
    %4525 = vmatprep.subr.mxu0 0.0
    %4526 = vmatpush1.msra.mxu0 %v4394
    %4527 = vmatprep.subr.mxu0 0.0
    %4528 = vmatpush1.msra.mxu0 %v4397
    %4529 = vmatprep.subr.mxu0 0.0
    %4530 = vmatpush1.msra.mxu0 %v4400
    %4531 = vmatprep.subr.mxu0 0.0
    %4532 = vmatpush1.msra.mxu0 %v4403
    %4533 = vmatprep.subr.mxu0 0.0
    %4534 = vmatpush1.msra.mxu0 %v4406
    %4535 = vmatprep.subr.mxu0 0.0
    %4536 = vmatpush1.msra.mxu0 %v4409
    %4537 = vmatprep.subr.mxu0 0.0
    %4538 = vmatpush1.msra.mxu0 %v4412
    %4539 = vmatprep.subr.mxu0 0.0
    %4540 = vmatpush1.msra.mxu0 %v4415
    %4541 = vmatprep.subr.mxu0 0.0
    %4542 = vmatpush1.msra.mxu0 %v4418
    %4543 = vmatprep.subr.mxu0 0.0
    %4544 = vmatpush1.msra.mxu0 %v4421
    %4545 = vmatprep.subr.mxu0 0.0
    %4546 = vmatpush1.msra.mxu0 %v4424
    %4547 = vmatprep.subr.mxu0 0.0
    %4548 = vmatpush1.msra.mxu0 %v4427
    %4549 = vmatprep.subr.mxu0 0.0
    %4550 = vmatpush1.msra.mxu0 %v4430
    %4551 = vmatprep.subr.mxu0 0.0
    %4552 = vmatpush1.msra.mxu0 0.0
    %4553 = vmatprep.subr.mxu0 0.0
    %4554 = vmatpush1.msra.mxu0 0.0
    %4555 = vmatprep.subr.mxu0 0.0
    %4556 = vmatpush1.msra.mxu0 0.0
    %4557 = vmatprep.subr.mxu0 0.0
    %4558 = vmatpush1.msra.mxu0 0.0
    %4559 = vmatprep.subr.mxu0 0.0
    %4560 = vmatpush1.msra.mxu0 0.0
    %4561 = vmatprep.subr.mxu0 0.0
    %4562 = vmatpush1.msra.mxu0 0.0
    %4563 = vmatprep.subr.mxu0 0.0
    %4564 = vmatpush1.msra.mxu0 0.0
    %4565 = vmatprep.subr.mxu0 0.0
    %4566 = vmatpush1.msra.mxu0 0.0
    %4567 = vmatprep.subr.mxu0 0.0
    %4568 = vmatpush1.msra.mxu0 0.0
    %4569 = vmatprep.subr.mxu0 0.0
    %4570 = vmatpush1.msra.mxu0 0.0
    %4571 = vmatprep.subr.mxu0 0.0
    %4572 = vmatpush1.msra.mxu0 0.0
    %4573 = vmatprep.subr.mxu0 0.0
    %4574 = vmatpush1.msra.mxu0 0.0
    %4575 = vmatprep.subr.mxu0 0.0
    %4576 = vmatpush1.msra.mxu0 0.0
    %4577 = vmatprep.subr.mxu0 0.0
    %4578 = vmatpush1.msra.mxu0 0.0
    %4579 = vmatprep.subr.mxu0 0.0
    %4580 = vmatpush1.msra.mxu0 0.0
    %4581 = vmatprep.subr.mxu0 0.0
    %4582 = vmatpush1.msra.mxu0 0.0
    %4583 = vmatprep.mubr.f32.mxu0 0.0
    %4584 = vmatmul.mubr.f32.gmra.mrb[0].mxu0 %v4381
    %v4585 = vpop.f32.mrb[0].mxu0
    %v4586 = vadd.f32 %v4444, %v4585
    %v4587 = vpop.f32.mrb[0].mxu0
    %4588 = vdwg.mxu0
    %v4589 = vld [vmem:[#allocation6] sm:$0xff]
    %v4590 = vld [vmem:[#allocation6 + $0x8] sm:$0xff]
    %v4591 = vld [vmem:[#allocation6 + $0x10] sm:$0xff]
    %v4592 = vld [vmem:[#allocation6 + $0x18] sm:$0xff]
    %v4593 = vld [vmem:[#allocation6 + $0x20] sm:$0xff]
    %v4594 = vld [vmem:[#allocation6 + $0x28] sm:$0xff]
    %v4595 = vld [vmem:[#allocation6 + $0x30] sm:$0xff]
    %v4596 = vld [vmem:[#allocation6 + $0x38] sm:$0xff]
    %v4597 = vld [vmem:[#allocation6 + $0x40] sm:$0xff]
    %v4598 = vld [vmem:[#allocation6 + $0x48] sm:$0xff]
    %v4599 = vld [vmem:[#allocation6 + $0x50] sm:$0xff]
    %v4600 = vld [vmem:[#allocation6 + $0x58] sm:$0xff]
    %v4601 = vld [vmem:[#allocation6 + $0x60] sm:$0xff]
    %v4602 = vld [vmem:[#allocation6 + $0x68] sm:$0xff]
    %v4603 = vld [vmem:[#allocation6 + $0x70] sm:$0xff]
    %v4604 = vld [vmem:[#allocation6 + $0x78] sm:$0xff]
    %v4605 = vld [vmem:[#allocation6 + $0x80] sm:$0xff]
    %v4606 = vld [vmem:[#allocation6 + $0x88] sm:$0xff]
    %v4607 = vld [vmem:[#allocation6 + $0x90] sm:$0xff]
    %v4608 = vld [vmem:[#allocation6 + $0x98] sm:$0xff]
    %v4609 = vld [vmem:[#allocation6 + $0xa0] sm:$0xff]
    %v4610 = vld [vmem:[#allocation6 + $0xa8] sm:$0xff]
    %v4611 = vld [vmem:[#allocation6 + $0xb0] sm:$0xff]
    %v4612 = vld [vmem:[#allocation6 + $0xb8] sm:$0xff]
    %v4613 = vld [vmem:[#allocation6 + $0xc0] sm:$0xff]
    %v4614 = vld [vmem:[#allocation6 + $0xc8] sm:$0xff]
    %v4615 = vld [vmem:[#allocation6 + $0xd0] sm:$0xff]
    %v4616 = vld [vmem:[#allocation6 + $0xd8] sm:$0xff]
    %v4617 = vld [vmem:[#allocation6 + $0xe0] sm:$0xff]
    %v4618 = vld [vmem:[#allocation6 + $0xe8] sm:$0xff]
    %v4619 = vld [vmem:[#allocation6 + $0xf0] sm:$0xff]
    %v4620 = vld [vmem:[#allocation6 + $0xf8] sm:$0xff]
    %v4621 = vld [vmem:[#allocation6 + $0x100] sm:$0xff]
    %v4622 = vld [vmem:[#allocation6 + $0x108] sm:$0xff]
    %v4623 = vld [vmem:[#allocation6 + $0x110] sm:$0xff]
    %v4624 = vld [vmem:[#allocation6 + $0x118] sm:$0xff]
    %v4625 = vld [vmem:[#allocation6 + $0x120] sm:$0xff]
    %v4626 = vld [vmem:[#allocation6 + $0x128] sm:$0xff]
    %v4627 = vld [vmem:[#allocation6 + $0x130] sm:$0xff]
    %v4628 = vld [vmem:[#allocation6 + $0x138] sm:$0xff]
    %v4629 = vld [vmem:[#allocation6 + $0x140] sm:$0xff]
    %v4630 = vld [vmem:[#allocation6 + $0x148] sm:$0xff]
    %v4631 = vld [vmem:[#allocation6 + $0x150] sm:$0xff]
    %v4632 = vld [vmem:[#allocation6 + $0x158] sm:$0xff]
    %v4633 = vld [vmem:[#allocation6 + $0x160] sm:$0xff]
    %v4634 = vld [vmem:[#allocation6 + $0x168] sm:$0xff]
    %v4635 = vld [vmem:[#allocation6 + $0x170] sm:$0xff]
    %v4636 = vld [vmem:[#allocation6 + $0x178] sm:$0xff]
    %4637 = vmatprep.subr.mxu0 %v4590
    %4638 = vmatpush1.msra.mxu0 %v4589
    %4639 = vmatprep.subr.mxu0 %v4593
    %4640 = vmatpush1.msra.mxu0 %v4592
    %4641 = vmatprep.subr.mxu0 %v4596
    %4642 = vmatpush1.msra.mxu0 %v4595
    %4643 = vmatprep.subr.mxu0 %v4599
    %4644 = vmatpush1.msra.mxu0 %v4598
    %4645 = vmatprep.subr.mxu0 %v4602
    %4646 = vmatpush1.msra.mxu0 %v4601
    %4647 = vmatprep.subr.mxu0 %v4605
    %4648 = vmatpush1.msra.mxu0 %v4604
    %4649 = vmatprep.subr.mxu0 %v4608
    %4650 = vmatpush1.msra.mxu0 %v4607
    %4651 = vmatprep.subr.mxu0 %v4611
    %4652 = vmatpush1.msra.mxu0 %v4610
    %4653 = vmatprep.subr.mxu0 %v4614
    %4654 = vmatpush1.msra.mxu0 %v4613
    %4655 = vmatprep.subr.mxu0 %v4617
    %4656 = vmatpush1.msra.mxu0 %v4616
    %4657 = vmatprep.subr.mxu0 %v4620
    %4658 = vmatpush1.msra.mxu0 %v4619
    %4659 = vmatprep.subr.mxu0 %v4623
    %4660 = vmatpush1.msra.mxu0 %v4622
    %4661 = vmatprep.subr.mxu0 %v4626
    %4662 = vmatpush1.msra.mxu0 %v4625
    %4663 = vmatprep.subr.mxu0 %v4629
    %4664 = vmatpush1.msra.mxu0 %v4628
    %4665 = vmatprep.subr.mxu0 %v4632
    %4666 = vmatpush1.msra.mxu0 %v4631
    %4667 = vmatprep.subr.mxu0 %v4635
    %4668 = vmatpush1.msra.mxu0 %v4634
    %4669 = vmatprep.subr.mxu0 0.0
    %4670 = vmatpush1.msra.mxu0 0.0
    %4671 = vmatprep.subr.mxu0 0.0
    %4672 = vmatpush1.msra.mxu0 0.0
    %4673 = vmatprep.subr.mxu0 0.0
    %4674 = vmatpush1.msra.mxu0 0.0
    %4675 = vmatprep.subr.mxu0 0.0
    %4676 = vmatpush1.msra.mxu0 0.0
    %4677 = vmatprep.subr.mxu0 0.0
    %4678 = vmatpush1.msra.mxu0 0.0
    %4679 = vmatprep.subr.mxu0 0.0
    %4680 = vmatpush1.msra.mxu0 0.0
    %4681 = vmatprep.subr.mxu0 0.0
    %4682 = vmatpush1.msra.mxu0 0.0
    %4683 = vmatprep.subr.mxu0 0.0
    %4684 = vmatpush1.msra.mxu0 0.0
    %4685 = vmatprep.subr.mxu0 0.0
    %4686 = vmatpush1.msra.mxu0 0.0
    %4687 = vmatprep.subr.mxu0 0.0
    %4688 = vmatpush1.msra.mxu0 0.0
    %4689 = vmatprep.subr.mxu0 0.0
    %4690 = vmatpush1.msra.mxu0 0.0
    %4691 = vmatprep.subr.mxu0 0.0
    %4692 = vmatpush1.msra.mxu0 0.0
    %4693 = vmatprep.subr.mxu0 0.0
    %4694 = vmatpush1.msra.mxu0 0.0
    %4695 = vmatprep.subr.mxu0 0.0
    %4696 = vmatpush1.msra.mxu0 0.0
    %4697 = vmatprep.subr.mxu0 0.0
    %4698 = vmatpush1.msra.mxu0 0.0
    %4699 = vmatprep.subr.mxu0 0.0
    %4700 = vmatpush1.msra.mxu0 0.0
    %4701 = vmatprep.mubr.f32.mxu0 0.0
    %4702 = vmatmul.mubr.f32.gmra.mrb[0].mxu0 %v4382
    %v4703 = vpop.f32.mrb[0].mxu0
    %v4704 = vadd.f32 0.0, %v4703
    %v4705 = vpop.f32.mrb[0].mxu0
    %v4706 = vadd.f32 0.0, %v4705
    %4707 = vdwg.mxu0
    %4708 = vmatprep.subr.mxu0 0.0
    %4709 = vmatpush1.msra.mxu0 %v4591
    %4710 = vmatprep.subr.mxu0 0.0
    %4711 = vmatpush1.msra.mxu0 %v4594
    %4712 = vmatprep.subr.mxu0 0.0
    %4713 = vmatpush1.msra.mxu0 %v4597
    %4714 = vmatprep.subr.mxu0 0.0
    %4715 = vmatpush1.msra.mxu0 %v4600
    %4716 = vmatprep.subr.mxu0 0.0
    %4717 = vmatpush1.msra.mxu0 %v4603
    %4718 = vmatprep.subr.mxu0 0.0
    %4719 = vmatpush1.msra.mxu0 %v4606
    %4720 = vmatprep.subr.mxu0 0.0
    %4721 = vmatpush1.msra.mxu0 %v4609
    %4722 = vmatprep.subr.mxu0 0.0
    %4723 = vmatpush1.msra.mxu0 %v4612
    %4724 = vmatprep.subr.mxu0 0.0
    %4725 = vmatpush1.msra.mxu0 %v4615
    %4726 = vmatprep.subr.mxu0 0.0
    %4727 = vmatpush1.msra.mxu0 %v4618
    %4728 = vmatprep.subr.mxu0 0.0
    %4729 = vmatpush1.msra.mxu0 %v4621
    %4730 = vmatprep.subr.mxu0 0.0
    %4731 = vmatpush1.msra.mxu0 %v4624
    %4732 = vmatprep.subr.mxu0 0.0
    %4733 = vmatpush1.msra.mxu0 %v4627
    %4734 = vmatprep.subr.mxu0 0.0
    %4735 = vmatpush1.msra.mxu0 %v4630
    %4736 = vmatprep.subr.mxu0 0.0
    %4737 = vmatpush1.msra.mxu0 %v4633
    %4738 = vmatprep.subr.mxu0 0.0
    %4739 = vmatpush1.msra.mxu0 %v4636
    %4740 = vmatprep.subr.mxu0 0.0
    %4741 = vmatpush1.msra.mxu0 0.0
    %4742 = vmatprep.subr.mxu0 0.0
    %4743 = vmatpush1.msra.mxu0 0.0
    %4744 = vmatprep.subr.mxu0 0.0
    %4745 = vmatpush1.msra.mxu0 0.0
    %4746 = vmatprep.subr.mxu0 0.0
    %4747 = vmatpush1.msra.mxu0 0.0
    %4748 = vmatprep.subr.mxu0 0.0
    %4749 = vmatpush1.msra.mxu0 0.0
    %4750 = vmatprep.subr.mxu0 0.0
    %4751 = vmatpush1.msra.mxu0 0.0
    %4752 = vmatprep.subr.mxu0 0.0
    %4753 = vmatpush1.msra.mxu0 0.0
    %4754 = vmatprep.subr.mxu0 0.0
    %4755 = vmatpush1.msra.mxu0 0.0
    %4756 = vmatprep.subr.mxu0 0.0
    %4757 = vmatpush1.msra.mxu0 0.0
    %4758 = vmatprep.subr.mxu0 0.0
    %4759 = vmatpush1.msra.mxu0 0.0
    %4760 = vmatprep.subr.mxu0 0.0
    %4761 = vmatpush1.msra.mxu0 0.0
    %4762 = vmatprep.subr.mxu0 0.0
    %4763 = vmatpush1.msra.mxu0 0.0
    %4764 = vmatprep.subr.mxu0 0.0
    %4765 = vmatpush1.msra.mxu0 0.0
    %4766 = vmatprep.subr.mxu0 0.0
    %4767 = vmatpush1.msra.mxu0 0.0
    %4768 = vmatprep.subr.mxu0 0.0
    %4769 = vmatpush1.msra.mxu0 0.0
    %4770 = vmatprep.subr.mxu0 0.0
    %4771 = vmatpush1.msra.mxu0 0.0
    %4772 = vmatprep.mubr.f32.mxu0 0.0
    %4773 = vmatmul.mubr.f32.gmra.mrb[0].mxu0 %v4382
    %v4774 = vpop.f32.mrb[0].mxu0
    %v4775 = vadd.f32 0.0, %v4774
    %v4776 = vpop.f32.mrb[0].mxu0
    %4777 = vdwg.mxu0
    %v4778 = vadd.f32 %v4515, %v4704
    %v4779 = vxor.u32 %v4778, 2147483648
    %v4780 = vmul.f32 %v4779, 1.442695
    %v4781 = vpow.pop %v4780
    %v4782 = vadd.f32 %v4781, 1.0
    %v4783 = vrcp.pop %v4782
    %v4784 = vmul.f32 1.0, %v4783
    %v4785 = vadd.f32 %v4517, %v4706
    %v4786 = vxor.u32 %v4785, 2147483648
    %v4787 = vmul.f32 %v4786, 1.442695
    %v4788 = vpow.pop %v4787
    %v4789 = vadd.f32 %v4788, 1.0
    %v4790 = vrcp.pop %v4789
    %v4791 = vmul.f32 1.0, %v4790
    %v4792 = vld [vmem:[%s5] sm:$0x1]
    %v4794 = vlaneseq
    %v4795 = vshrl.u32 %v4794, 7
    %v4796 = vsub.s32 0, %v4795
    %v4797 = vrot.slane %v4792, %v4796
    %v4799 = vadd.f32 %v4775, %v4797
    %v4800 = vmul.f32 %v4784, %v4799
    %v4801 = vadd.f32 %v4586, %v4800
    %v4802 = vtanh.pop %v4801
    %v4803 = vsub.f32 1.0, %v4791
    %v4804 = vmul.f32 %v4803, %v4802
    %v4805 = vmul.f32 %v4791, %v4382
    %v4806 = vadd.f32 %v4804, %v4805
    %4807 = vst [vmem:[#allocation2] sm:$0x3] %v4806
    %v4808 = vld [vmem:[%s528] sm:$0x3]
    %v4809 = vld [vmem:[#allocation8] sm:$0xff]
    %v4810 = vld [vmem:[#allocation8 + $0x8] sm:$0xff]
    %v4811 = vld [vmem:[#allocation8 + $0x10] sm:$0xff]
    %v4812 = vld [vmem:[#allocation8 + $0x18] sm:$0xff]
    %v4813 = vld [vmem:[#allocation8 + $0x20] sm:$0xff]
    %v4814 = vld [vmem:[#allocation8 + $0x28] sm:$0xff]
    %v4815 = vld [vmem:[#allocation8 + $0x30] sm:$0xff]
    %v4816 = vld [vmem:[#allocation8 + $0x38] sm:$0xff]
    %v4817 = vld [vmem:[#allocation8 + $0x40] sm:$0xff]
    %v4818 = vld [vmem:[#allocation8 + $0x48] sm:$0xff]
    %v4819 = vld [vmem:[#allocation8 + $0x50] sm:$0xff]
    %v4820 = vld [vmem:[#allocation8 + $0x58] sm:$0xff]
    %v4821 = vld [vmem:[#allocation8 + $0x60] sm:$0xff]
    %v4822 = vld [vmem:[#allocation8 + $0x68] sm:$0xff]
    %v4823 = vld [vmem:[#allocation8 + $0x70] sm:$0xff]
    %v4824 = vld [vmem:[#allocation8 + $0x78] sm:$0xff]
    %v4825 = vld [vmem:[#allocation8 + $0x80] sm:$0xff]
    %v4826 = vld [vmem:[#allocation8 + $0x88] sm:$0xff]
    %v4827 = vld [vmem:[#allocation8 + $0x90] sm:$0xff]
    %v4828 = vld [vmem:[#allocation8 + $0x98] sm:$0xff]
    %v4829 = vld [vmem:[#allocation8 + $0xa0] sm:$0xff]
    %v4830 = vld [vmem:[#allocation8 + $0xa8] sm:$0xff]
    %v4831 = vld [vmem:[#allocation8 + $0xb0] sm:$0xff]
    %v4832 = vld [vmem:[#allocation8 + $0xb8] sm:$0xff]
    %v4833 = vld [vmem:[#allocation8 + $0xc0] sm:$0xff]
    %v4834 = vld [vmem:[#allocation8 + $0xc8] sm:$0xff]
    %v4835 = vld [vmem:[#allocation8 + $0xd0] sm:$0xff]
    %v4836 = vld [vmem:[#allocation8 + $0xd8] sm:$0xff]
    %v4837 = vld [vmem:[#allocation8 + $0xe0] sm:$0xff]
    %v4838 = vld [vmem:[#allocation8 + $0xe8] sm:$0xff]
    %v4839 = vld [vmem:[#allocation8 + $0xf0] sm:$0xff]
    %v4840 = vld [vmem:[#allocation8 + $0xf8] sm:$0xff]
    %v4841 = vld [vmem:[#allocation8 + $0x100] sm:$0xff]
    %v4842 = vld [vmem:[#allocation8 + $0x108] sm:$0xff]
    %v4843 = vld [vmem:[#allocation8 + $0x110] sm:$0xff]
    %v4844 = vld [vmem:[#allocation8 + $0x118] sm:$0xff]
    %v4845 = vld [vmem:[#allocation8 + $0x120] sm:$0xff]
    %v4846 = vld [vmem:[#allocation8 + $0x128] sm:$0xff]
    %v4847 = vld [vmem:[#allocation8 + $0x130] sm:$0xff]
    %v4848 = vld [vmem:[#allocation8 + $0x138] sm:$0xff]
    %v4849 = vld [vmem:[#allocation8 + $0x140] sm:$0xff]
    %v4850 = vld [vmem:[#allocation8 + $0x148] sm:$0xff]
    %v4851 = vld [vmem:[#allocation8 + $0x150] sm:$0xff]
    %v4852 = vld [vmem:[#allocation8 + $0x158] sm:$0xff]
    %v4853 = vld [vmem:[#allocation8 + $0x160] sm:$0xff]
    %v4854 = vld [vmem:[#allocation8 + $0x168] sm:$0xff]
    %v4855 = vld [vmem:[#allocation8 + $0x170] sm:$0xff]
    %v4856 = vld [vmem:[#allocation8 + $0x178] sm:$0xff]
    %v4857 = vld [vmem:[%s8] sm:$0x7]
    %v4859 = vlaneseq
    %v4860 = vshrl.u32 %v4859, 7
    %v4861 = vsub.s32 0, %v4860
    %v4862 = vrot.slane %v4857, %v4861
    %v4863 = vlaneseq
    %v4864 = vshrl.u32 %v4863, 7
    %v4865 = vsub.s32 1, %v4864
    %v4866 = vrot.slane %v4857, %v4865
    %v4867 = vlaneseq
    %v4868 = vshrl.u32 %v4867, 7
    %v4869 = vsub.s32 2, %v4868
    %v4870 = vrot.slane %v4857, %v4869
    %4874 = vmatprep.subr.mxu0 %v4810
    %4875 = vmatpush1.msra.mxu0 %v4809
    %4876 = vmatprep.subr.mxu0 %v4813
    %4877 = vmatpush1.msra.mxu0 %v4812
    %4878 = vmatprep.subr.mxu0 %v4816
    %4879 = vmatpush1.msra.mxu0 %v4815
    %4880 = vmatprep.subr.mxu0 %v4819
    %4881 = vmatpush1.msra.mxu0 %v4818
    %4882 = vmatprep.subr.mxu0 %v4822
    %4883 = vmatpush1.msra.mxu0 %v4821
    %4884 = vmatprep.subr.mxu0 %v4825
    %4885 = vmatpush1.msra.mxu0 %v4824
    %4886 = vmatprep.subr.mxu0 %v4828
    %4887 = vmatpush1.msra.mxu0 %v4827
    %4888 = vmatprep.subr.mxu0 %v4831
    %4889 = vmatpush1.msra.mxu0 %v4830
    %4890 = vmatprep.subr.mxu0 %v4834
    %4891 = vmatpush1.msra.mxu0 %v4833
    %4892 = vmatprep.subr.mxu0 %v4837
    %4893 = vmatpush1.msra.mxu0 %v4836
    %4894 = vmatprep.subr.mxu0 %v4840
    %4895 = vmatpush1.msra.mxu0 %v4839
    %4896 = vmatprep.subr.mxu0 %v4843
    %4897 = vmatpush1.msra.mxu0 %v4842
    %4898 = vmatprep.subr.mxu0 %v4846
    %4899 = vmatpush1.msra.mxu0 %v4845
    %4900 = vmatprep.subr.mxu0 %v4849
    %4901 = vmatpush1.msra.mxu0 %v4848
    %4902 = vmatprep.subr.mxu0 %v4852
    %4903 = vmatpush1.msra.mxu0 %v4851
    %4904 = vmatprep.subr.mxu0 %v4855
    %4905 = vmatpush1.msra.mxu0 %v4854
    %4906 = vmatprep.subr.mxu0 0.0
    %4907 = vmatpush1.msra.mxu0 0.0
    %4908 = vmatprep.subr.mxu0 0.0
    %4909 = vmatpush1.msra.mxu0 0.0
    %4910 = vmatprep.subr.mxu0 0.0
    %4911 = vmatpush1.msra.mxu0 0.0
    %4912 = vmatprep.subr.mxu0 0.0
    %4913 = vmatpush1.msra.mxu0 0.0
    %4914 = vmatprep.subr.mxu0 0.0
    %4915 = vmatpush1.msra.mxu0 0.0
    %4916 = vmatprep.subr.mxu0 0.0
    %4917 = vmatpush1.msra.mxu0 0.0
    %4918 = vmatprep.subr.mxu0 0.0
    %4919 = vmatpush1.msra.mxu0 0.0
    %4920 = vmatprep.subr.mxu0 0.0
    %4921 = vmatpush1.msra.mxu0 0.0
    %4922 = vmatprep.subr.mxu0 0.0
    %4923 = vmatpush1.msra.mxu0 0.0
    %4924 = vmatprep.subr.mxu0 0.0
    %4925 = vmatpush1.msra.mxu0 0.0
    %4926 = vmatprep.subr.mxu0 0.0
    %4927 = vmatpush1.msra.mxu0 0.0
    %4928 = vmatprep.subr.mxu0 0.0
    %4929 = vmatpush1.msra.mxu0 0.0
    %4930 = vmatprep.subr.mxu0 0.0
    %4931 = vmatpush1.msra.mxu0 0.0
    %4932 = vmatprep.subr.mxu0 0.0
    %4933 = vmatpush1.msra.mxu0 0.0
    %4934 = vmatprep.subr.mxu0 0.0
    %4935 = vmatpush1.msra.mxu0 0.0
    %4936 = vmatprep.subr.mxu0 0.0
    %4937 = vmatpush1.msra.mxu0 0.0
    %4938 = vmatprep.mubr.f32.mxu0 0.0
    %4939 = vmatmul.mubr.f32.gmra.mrb[0].mxu0 %v4806
    %v4940 = vpop.f32.mrb[0].mxu0
    %v4941 = vadd.f32 %v4862, %v4940
    %v4942 = vpop.f32.mrb[0].mxu0
    %v4943 = vadd.f32 %v4866, %v4942
    %4944 = vdwg.mxu0
    %4945 = vmatprep.subr.mxu0 0.0
    %4946 = vmatpush1.msra.mxu0 %v4811
    %4947 = vmatprep.subr.mxu0 0.0
    %4948 = vmatpush1.msra.mxu0 %v4814
    %4949 = vmatprep.subr.mxu0 0.0
    %4950 = vmatpush1.msra.mxu0 %v4817
    %4951 = vmatprep.subr.mxu0 0.0
    %4952 = vmatpush1.msra.mxu0 %v4820
    %4953 = vmatprep.subr.mxu0 0.0
    %4954 = vmatpush1.msra.mxu0 %v4823
    %4955 = vmatprep.subr.mxu0 0.0
    %4956 = vmatpush1.msra.mxu0 %v4826
    %4957 = vmatprep.subr.mxu0 0.0
    %4958 = vmatpush1.msra.mxu0 %v4829
    %4959 = vmatprep.subr.mxu0 0.0
    %4960 = vmatpush1.msra.mxu0 %v4832
    %4961 = vmatprep.subr.mxu0 0.0
    %4962 = vmatpush1.msra.mxu0 %v4835
    %4963 = vmatprep.subr.mxu0 0.0
    %4964 = vmatpush1.msra.mxu0 %v4838
    %4965 = vmatprep.subr.mxu0 0.0
    %4966 = vmatpush1.msra.mxu0 %v4841
    %4967 = vmatprep.subr.mxu0 0.0
    %4968 = vmatpush1.msra.mxu0 %v4844
    %4969 = vmatprep.subr.mxu0 0.0
    %4970 = vmatpush1.msra.mxu0 %v4847
    %4971 = vmatprep.subr.mxu0 0.0
    %4972 = vmatpush1.msra.mxu0 %v4850
    %4973 = vmatprep.subr.mxu0 0.0
    %4974 = vmatpush1.msra.mxu0 %v4853
    %4975 = vmatprep.subr.mxu0 0.0
    %4976 = vmatpush1.msra.mxu0 %v4856
    %4977 = vmatprep.subr.mxu0 0.0
    %4978 = vmatpush1.msra.mxu0 0.0
    %4979 = vmatprep.subr.mxu0 0.0
    %4980 = vmatpush1.msra.mxu0 0.0
    %4981 = vmatprep.subr.mxu0 0.0
    %4982 = vmatpush1.msra.mxu0 0.0
    %4983 = vmatprep.subr.mxu0 0.0
    %4984 = vmatpush1.msra.mxu0 0.0
    %4985 = vmatprep.subr.mxu0 0.0
    %4986 = vmatpush1.msra.mxu0 0.0
    %4987 = vmatprep.subr.mxu0 0.0
    %4988 = vmatpush1.msra.mxu0 0.0
    %4989 = vmatprep.subr.mxu0 0.0
    %4990 = vmatpush1.msra.mxu0 0.0
    %4991 = vmatprep.subr.mxu0 0.0
    %4992 = vmatpush1.msra.mxu0 0.0
    %4993 = vmatprep.subr.mxu0 0.0
    %4994 = vmatpush1.msra.mxu0 0.0
    %4995 = vmatprep.subr.mxu0 0.0
    %4996 = vmatpush1.msra.mxu0 0.0
    %4997 = vmatprep.subr.mxu0 0.0
    %4998 = vmatpush1.msra.mxu0 0.0
    %4999 = vmatprep.subr.mxu0 0.0
    %5000 = vmatpush1.msra.mxu0 0.0
    %5001 = vmatprep.subr.mxu0 0.0
    %5002 = vmatpush1.msra.mxu0 0.0
    %5003 = vmatprep.subr.mxu0 0.0
    %5004 = vmatpush1.msra.mxu0 0.0
    %5005 = vmatprep.subr.mxu0 0.0
    %5006 = vmatpush1.msra.mxu0 0.0
    %5007 = vmatprep.subr.mxu0 0.0
    %5008 = vmatpush1.msra.mxu0 0.0
    %5009 = vmatprep.mubr.f32.mxu0 0.0
    %5010 = vmatmul.mubr.f32.gmra.mrb[0].mxu0 %v4806
    %v5011 = vpop.f32.mrb[0].mxu0
    %v5012 = vadd.f32 %v4870, %v5011
    %v5013 = vpop.f32.mrb[0].mxu0
    %5014 = vdwg.mxu0
    %v5015 = vld [vmem:[#allocation9] sm:$0xff]
    %v5016 = vld [vmem:[#allocation9 + $0x8] sm:$0xff]
    %v5017 = vld [vmem:[#allocation9 + $0x10] sm:$0xff]
    %v5018 = vld [vmem:[#allocation9 + $0x18] sm:$0xff]
    %v5019 = vld [vmem:[#allocation9 + $0x20] sm:$0xff]
    %v5020 = vld [vmem:[#allocation9 + $0x28] sm:$0xff]
    %v5021 = vld [vmem:[#allocation9 + $0x30] sm:$0xff]
    %v5022 = vld [vmem:[#allocation9 + $0x38] sm:$0xff]
    %v5023 = vld [vmem:[#allocation9 + $0x40] sm:$0xff]
    %v5024 = vld [vmem:[#allocation9 + $0x48] sm:$0xff]
    %v5025 = vld [vmem:[#allocation9 + $0x50] sm:$0xff]
    %v5026 = vld [vmem:[#allocation9 + $0x58] sm:$0xff]
    %v5027 = vld [vmem:[#allocation9 + $0x60] sm:$0xff]
    %v5028 = vld [vmem:[#allocation9 + $0x68] sm:$0xff]
    %v5029 = vld [vmem:[#allocation9 + $0x70] sm:$0xff]
    %v5030 = vld [vmem:[#allocation9 + $0x78] sm:$0xff]
    %v5031 = vld [vmem:[#allocation9 + $0x80] sm:$0xff]
    %v5032 = vld [vmem:[#allocation9 + $0x88] sm:$0xff]
    %v5033 = vld [vmem:[#allocation9 + $0x90] sm:$0xff]
    %v5034 = vld [vmem:[#allocation9 + $0x98] sm:$0xff]
    %v5035 = vld [vmem:[#allocation9 + $0xa0] sm:$0xff]
    %v5036 = vld [vmem:[#allocation9 + $0xa8] sm:$0xff]
    %v5037 = vld [vmem:[#allocation9 + $0xb0] sm:$0xff]
    %v5038 = vld [vmem:[#allocation9 + $0xb8] sm:$0xff]
    %v5039 = vld [vmem:[#allocation9 + $0xc0] sm:$0xff]
    %v5040 = vld [vmem:[#allocation9 + $0xc8] sm:$0xff]
    %v5041 = vld [vmem:[#allocation9 + $0xd0] sm:$0xff]
    %v5042 = vld [vmem:[#allocation9 + $0xd8] sm:$0xff]
    %v5043 = vld [vmem:[#allocation9 + $0xe0] sm:$0xff]
    %v5044 = vld [vmem:[#allocation9 + $0xe8] sm:$0xff]
    %v5045 = vld [vmem:[#allocation9 + $0xf0] sm:$0xff]
    %v5046 = vld [vmem:[#allocation9 + $0xf8] sm:$0xff]
    %v5047 = vld [vmem:[#allocation9 + $0x100] sm:$0xff]
    %v5048 = vld [vmem:[#allocation9 + $0x108] sm:$0xff]
    %v5049 = vld [vmem:[#allocation9 + $0x110] sm:$0xff]
    %v5050 = vld [vmem:[#allocation9 + $0x118] sm:$0xff]
    %v5051 = vld [vmem:[#allocation9 + $0x120] sm:$0xff]
    %v5052 = vld [vmem:[#allocation9 + $0x128] sm:$0xff]
    %v5053 = vld [vmem:[#allocation9 + $0x130] sm:$0xff]
    %v5054 = vld [vmem:[#allocation9 + $0x138] sm:$0xff]
    %v5055 = vld [vmem:[#allocation9 + $0x140] sm:$0xff]
    %v5056 = vld [vmem:[#allocation9 + $0x148] sm:$0xff]
    %v5057 = vld [vmem:[#allocation9 + $0x150] sm:$0xff]
    %v5058 = vld [vmem:[#allocation9 + $0x158] sm:$0xff]
    %v5059 = vld [vmem:[#allocation9 + $0x160] sm:$0xff]
    %v5060 = vld [vmem:[#allocation9 + $0x168] sm:$0xff]
    %v5061 = vld [vmem:[#allocation9 + $0x170] sm:$0xff]
    %v5062 = vld [vmem:[#allocation9 + $0x178] sm:$0xff]
    %5063 = vmatprep.subr.mxu0 %v5016
    %5064 = vmatpush1.msra.mxu0 %v5015
    %5065 = vmatprep.subr.mxu0 %v5019
    %5066 = vmatpush1.msra.mxu0 %v5018
    %5067 = vmatprep.subr.mxu0 %v5022
    %5068 = vmatpush1.msra.mxu0 %v5021
    %5069 = vmatprep.subr.mxu0 %v5025
    %5070 = vmatpush1.msra.mxu0 %v5024
    %5071 = vmatprep.subr.mxu0 %v5028
    %5072 = vmatpush1.msra.mxu0 %v5027
    %5073 = vmatprep.subr.mxu0 %v5031
    %5074 = vmatpush1.msra.mxu0 %v5030
    %5075 = vmatprep.subr.mxu0 %v5034
    %5076 = vmatpush1.msra.mxu0 %v5033
    %5077 = vmatprep.subr.mxu0 %v5037
    %5078 = vmatpush1.msra.mxu0 %v5036
    %5079 = vmatprep.subr.mxu0 %v5040
    %5080 = vmatpush1.msra.mxu0 %v5039
    %5081 = vmatprep.subr.mxu0 %v5043
    %5082 = vmatpush1.msra.mxu0 %v5042
    %5083 = vmatprep.subr.mxu0 %v5046
    %5084 = vmatpush1.msra.mxu0 %v5045
    %5085 = vmatprep.subr.mxu0 %v5049
    %5086 = vmatpush1.msra.mxu0 %v5048
    %5087 = vmatprep.subr.mxu0 %v5052
    %5088 = vmatpush1.msra.mxu0 %v5051
    %5089 = vmatprep.subr.mxu0 %v5055
    %5090 = vmatpush1.msra.mxu0 %v5054
    %5091 = vmatprep.subr.mxu0 %v5058
    %5092 = vmatpush1.msra.mxu0 %v5057
    %5093 = vmatprep.subr.mxu0 %v5061
    %5094 = vmatpush1.msra.mxu0 %v5060
    %5095 = vmatprep.subr.mxu0 0.0
    %5096 = vmatpush1.msra.mxu0 0.0
    %5097 = vmatprep.subr.mxu0 0.0
    %5098 = vmatpush1.msra.mxu0 0.0
    %5099 = vmatprep.subr.mxu0 0.0
    %5100 = vmatpush1.msra.mxu0 0.0
    %5101 = vmatprep.subr.mxu0 0.0
    %5102 = vmatpush1.msra.mxu0 0.0
    %5103 = vmatprep.subr.mxu0 0.0
    %5104 = vmatpush1.msra.mxu0 0.0
    %5105 = vmatprep.subr.mxu0 0.0
    %5106 = vmatpush1.msra.mxu0 0.0
    %5107 = vmatprep.subr.mxu0 0.0
    %5108 = vmatpush1.msra.mxu0 0.0
    %5109 = vmatprep.subr.mxu0 0.0
    %5110 = vmatpush1.msra.mxu0 0.0
    %5111 = vmatprep.subr.mxu0 0.0
    %5112 = vmatpush1.msra.mxu0 0.0
    %5113 = vmatprep.subr.mxu0 0.0
    %5114 = vmatpush1.msra.mxu0 0.0
    %5115 = vmatprep.subr.mxu0 0.0
    %5116 = vmatpush1.msra.mxu0 0.0
    %5117 = vmatprep.subr.mxu0 0.0
    %5118 = vmatpush1.msra.mxu0 0.0
    %5119 = vmatprep.subr.mxu0 0.0
    %5120 = vmatpush1.msra.mxu0 0.0
    %5121 = vmatprep.subr.mxu0 0.0
    %5122 = vmatpush1.msra.mxu0 0.0
    %5123 = vmatprep.subr.mxu0 0.0
    %5124 = vmatpush1.msra.mxu0 0.0
    %5125 = vmatprep.subr.mxu0 0.0
    %5126 = vmatpush1.msra.mxu0 0.0
    %5127 = vmatprep.mubr.f32.mxu0 0.0
    %5128 = vmatmul.mubr.f32.gmra.mrb[0].mxu0 %v4808
    %v5129 = vpop.f32.mrb[0].mxu0
    %v5130 = vadd.f32 0.0, %v5129
    %v5131 = vpop.f32.mrb[0].mxu0
    %v5132 = vadd.f32 0.0, %v5131
    %5133 = vdwg.mxu0
    %5134 = vmatprep.subr.mxu0 0.0
    %5135 = vmatpush1.msra.mxu0 %v5017
    %5136 = vmatprep.subr.mxu0 0.0
    %5137 = vmatpush1.msra.mxu0 %v5020
    %5138 = vmatprep.subr.mxu0 0.0
    %5139 = vmatpush1.msra.mxu0 %v5023
    %5140 = vmatprep.subr.mxu0 0.0
    %5141 = vmatpush1.msra.mxu0 %v5026
    %5142 = vmatprep.subr.mxu0 0.0
    %5143 = vmatpush1.msra.mxu0 %v5029
    %5144 = vmatprep.subr.mxu0 0.0
    %5145 = vmatpush1.msra.mxu0 %v5032
    %5146 = vmatprep.subr.mxu0 0.0
    %5147 = vmatpush1.msra.mxu0 %v5035
    %5148 = vmatprep.subr.mxu0 0.0
    %5149 = vmatpush1.msra.mxu0 %v5038
    %5150 = vmatprep.subr.mxu0 0.0
    %5151 = vmatpush1.msra.mxu0 %v5041
    %5152 = vmatprep.subr.mxu0 0.0
    %5153 = vmatpush1.msra.mxu0 %v5044
    %5154 = vmatprep.subr.mxu0 0.0
    %5155 = vmatpush1.msra.mxu0 %v5047
    %5156 = vmatprep.subr.mxu0 0.0
    %5157 = vmatpush1.msra.mxu0 %v5050
    %5158 = vmatprep.subr.mxu0 0.0
    %5159 = vmatpush1.msra.mxu0 %v5053
    %5160 = vmatprep.subr.mxu0 0.0
    %5161 = vmatpush1.msra.mxu0 %v5056
    %5162 = vmatprep.subr.mxu0 0.0
    %5163 = vmatpush1.msra.mxu0 %v5059
    %5164 = vmatprep.subr.mxu0 0.0
    %5165 = vmatpush1.msra.mxu0 %v5062
    %5166 = vmatprep.subr.mxu0 0.0
    %5167 = vmatpush1.msra.mxu0 0.0
    %5168 = vmatprep.subr.mxu0 0.0
    %5169 = vmatpush1.msra.mxu0 0.0
    %5170 = vmatprep.subr.mxu0 0.0
    %5171 = vmatpush1.msra.mxu0 0.0
    %5172 = vmatprep.subr.mxu0 0.0
    %5173 = vmatpush1.msra.mxu0 0.0
    %5174 = vmatprep.subr.mxu0 0.0
    %5175 = vmatpush1.msra.mxu0 0.0
    %5176 = vmatprep.subr.mxu0 0.0
    %5177 = vmatpush1.msra.mxu0 0.0
    %5178 = vmatprep.subr.mxu0 0.0
    %5179 = vmatpush1.msra.mxu0 0.0
    %5180 = vmatprep.subr.mxu0 0.0
    %5181 = vmatpush1.msra.mxu0 0.0
    %5182 = vmatprep.subr.mxu0 0.0
    %5183 = vmatpush1.msra.mxu0 0.0
    %5184 = vmatprep.subr.mxu0 0.0
    %5185 = vmatpush1.msra.mxu0 0.0
    %5186 = vmatprep.subr.mxu0 0.0
    %5187 = vmatpush1.msra.mxu0 0.0
    %5188 = vmatprep.subr.mxu0 0.0
    %5189 = vmatpush1.msra.mxu0 0.0
    %5190 = vmatprep.subr.mxu0 0.0
    %5191 = vmatpush1.msra.mxu0 0.0
    %5192 = vmatprep.subr.mxu0 0.0
    %5193 = vmatpush1.msra.mxu0 0.0
    %5194 = vmatprep.subr.mxu0 0.0
    %5195 = vmatpush1.msra.mxu0 0.0
    %5196 = vmatprep.subr.mxu0 0.0
    %5197 = vmatpush1.msra.mxu0 0.0
    %5198 = vmatprep.mubr.f32.mxu0 0.0
    %5199 = vmatmul.mubr.f32.gmra.mrb[0].mxu0 %v4808
    %v5200 = vpop.f32.mrb[0].mxu0
    %v5201 = vadd.f32 0.0, %v5200
    %v5202 = vpop.f32.mrb[0].mxu0
    %5203 = vdwg.mxu0
    %v5204 = vadd.f32 %v4941, %v5130
    %v5205 = vxor.u32 %v5204, 2147483648
    %v5206 = vmul.f32 %v5205, 1.442695
    %v5207 = vpow.pop %v5206
    %v5208 = vadd.f32 %v5207, 1.0
    %v5209 = vrcp.pop %v5208
    %v5210 = vmul.f32 1.0, %v5209
    %v5211 = vadd.f32 %v4943, %v5132
    %v5212 = vxor.u32 %v5211, 2147483648
    %v5213 = vmul.f32 %v5212, 1.442695
    %v5214 = vpow.pop %v5213
    %v5215 = vadd.f32 %v5214, 1.0
    %v5216 = vrcp.pop %v5215
    %v5217 = vmul.f32 1.0, %v5216
    %v5218 = vld [vmem:[%s9] sm:$0x1]
    %v5220 = vlaneseq
    %v5221 = vshrl.u32 %v5220, 7
    %v5222 = vsub.s32 0, %v5221
    %v5223 = vrot.slane %v5218, %v5222
    %v5225 = vadd.f32 %v5201, %v5223
    %v5226 = vmul.f32 %v5210, %v5225
    %v5227 = vadd.f32 %v5012, %v5226
    %v5228 = vtanh.pop %v5227
    %v5229 = vsub.f32 1.0, %v5217
    %v5230 = vmul.f32 %v5229, %v5228
    %v5231 = vmul.f32 %v5217, %v4808
    %v5232 = vadd.f32 %v5230, %v5231
    %5233 = vst [vmem:[%s528] sm:$0x3] %v5232
    %s5234 = scalar_lea.vmem %s10, 10
    %5235 = vst [vmem:[%s5234] sm:$0x3] %v5232
    %s5236 = scalar_lea.vmem %s0, 12
    %v5237 = vld [vmem:[%s5236] sm:$0x3]
    %v5238 = vld [vmem:[#allocation2] sm:$0x3]
    %v5239 = vld [vmem:[#allocation3] sm:$0xff]
    %v5240 = vld [vmem:[#allocation3 + $0x8] sm:$0xff]
    %v5241 = vld [vmem:[#allocation3 + $0x10] sm:$0xff]
    %v5242 = vld [vmem:[#allocation3 + $0x18] sm:$0xff]
    %v5243 = vld [vmem:[#allocation3 + $0x20] sm:$0xff]
    %v5244 = vld [vmem:[#allocation3 + $0x28] sm:$0xff]
    %v5245 = vld [vmem:[#allocation3 + $0x30] sm:$0xff]
    %v5246 = vld [vmem:[#allocation3 + $0x38] sm:$0xff]
    %v5247 = vld [vmem:[#allocation3 + $0x40] sm:$0xff]
    %v5248 = vld [vmem:[#allocation3 + $0x48] sm:$0xff]
    %v5249 = vld [vmem:[#allocation3 + $0x50] sm:$0xff]
    %v5250 = vld [vmem:[#allocation3 + $0x58] sm:$0xff]
    %v5251 = vld [vmem:[#allocation3 + $0x60] sm:$0xff]
    %v5252 = vld [vmem:[#allocation3 + $0x68] sm:$0xff]
    %v5253 = vld [vmem:[#allocation3 + $0x70] sm:$0xff]
    %v5254 = vld [vmem:[#allocation3 + $0x78] sm:$0xff]
    %v5255 = vld [vmem:[#allocation3 + $0x80] sm:$0xff]
    %v5256 = vld [vmem:[#allocation3 + $0x88] sm:$0xff]
    %v5257 = vld [vmem:[#allocation3 + $0x90] sm:$0xff]
    %v5258 = vld [vmem:[#allocation3 + $0x98] sm:$0xff]
    %v5259 = vld [vmem:[#allocation3 + $0xa0] sm:$0xff]
    %v5260 = vld [vmem:[#allocation3 + $0xa8] sm:$0xff]
    %v5261 = vld [vmem:[#allocation3 + $0xb0] sm:$0xff]
    %v5262 = vld [vmem:[#allocation3 + $0xb8] sm:$0xff]
    %v5263 = vld [vmem:[#allocation3 + $0xc0] sm:$0xff]
    %v5264 = vld [vmem:[#allocation3 + $0xc8] sm:$0xff]
    %v5265 = vld [vmem:[#allocation3 + $0xd0] sm:$0xff]
    %v5266 = vld [vmem:[#allocation3 + $0xd8] sm:$0xff]
    %v5267 = vld [vmem:[#allocation3 + $0xe0] sm:$0xff]
    %v5268 = vld [vmem:[#allocation3 + $0xe8] sm:$0xff]
    %v5269 = vld [vmem:[#allocation3 + $0xf0] sm:$0xff]
    %v5270 = vld [vmem:[#allocation3 + $0xf8] sm:$0xff]
    %v5271 = vld [vmem:[#allocation3 + $0x100] sm:$0xff]
    %v5272 = vld [vmem:[#allocation3 + $0x108] sm:$0xff]
    %v5273 = vld [vmem:[#allocation3 + $0x110] sm:$0xff]
    %v5274 = vld [vmem:[#allocation3 + $0x118] sm:$0xff]
    %v5275 = vld [vmem:[#allocation3 + $0x120] sm:$0xff]
    %v5276 = vld [vmem:[#allocation3 + $0x128] sm:$0xff]
    %v5277 = vld [vmem:[#allocation3 + $0x130] sm:$0xff]
    %v5278 = vld [vmem:[#allocation3 + $0x138] sm:$0xff]
    %v5279 = vld [vmem:[#allocation3 + $0x140] sm:$0xff]
    %v5280 = vld [vmem:[#allocation3 + $0x148] sm:$0xff]
    %v5281 = vld [vmem:[#allocation3 + $0x150] sm:$0xff]
    %v5282 = vld [vmem:[#allocation3 + $0x158] sm:$0xff]
    %v5283 = vld [vmem:[#allocation3 + $0x160] sm:$0xff]
    %v5284 = vld [vmem:[#allocation3 + $0x168] sm:$0xff]
    %v5285 = vld [vmem:[#allocation3 + $0x170] sm:$0xff]
    %v5286 = vld [vmem:[#allocation3 + $0x178] sm:$0xff]
    %v5287 = vld [vmem:[%s4] sm:$0x7]
    %v5289 = vlaneseq
    %v5290 = vshrl.u32 %v5289, 7
    %v5291 = vsub.s32 0, %v5290
    %v5292 = vrot.slane %v5287, %v5291
    %v5293 = vlaneseq
    %v5294 = vshrl.u32 %v5293, 7
    %v5295 = vsub.s32 1, %v5294
    %v5296 = vrot.slane %v5287, %v5295
    %v5297 = vlaneseq
    %v5298 = vshrl.u32 %v5297, 7
    %v5299 = vsub.s32 2, %v5298
    %v5300 = vrot.slane %v5287, %v5299
    %5304 = vmatprep.subr.mxu0 %v5240
    %5305 = vmatpush1.msra.mxu0 %v5239
    %5306 = vmatprep.subr.mxu0 %v5243
    %5307 = vmatpush1.msra.mxu0 %v5242
    %5308 = vmatprep.subr.mxu0 %v5246
    %5309 = vmatpush1.msra.mxu0 %v5245
    %5310 = vmatprep.subr.mxu0 %v5249
    %5311 = vmatpush1.msra.mxu0 %v5248
    %5312 = vmatprep.subr.mxu0 %v5252
    %5313 = vmatpush1.msra.mxu0 %v5251
    %5314 = vmatprep.subr.mxu0 %v5255
    %5315 = vmatpush1.msra.mxu0 %v5254
    %5316 = vmatprep.subr.mxu0 %v5258
    %5317 = vmatpush1.msra.mxu0 %v5257
    %5318 = vmatprep.subr.mxu0 %v5261
    %5319 = vmatpush1.msra.mxu0 %v5260
    %5320 = vmatprep.subr.mxu0 %v5264
    %5321 = vmatpush1.msra.mxu0 %v5263
    %5322 = vmatprep.subr.mxu0 %v5267
    %5323 = vmatpush1.msra.mxu0 %v5266
    %5324 = vmatprep.subr.mxu0 %v5270
    %5325 = vmatpush1.msra.mxu0 %v5269
    %5326 = vmatprep.subr.mxu0 %v5273
    %5327 = vmatpush1.msra.mxu0 %v5272
    %5328 = vmatprep.subr.mxu0 %v5276
    %5329 = vmatpush1.msra.mxu0 %v5275
    %5330 = vmatprep.subr.mxu0 %v5279
    %5331 = vmatpush1.msra.mxu0 %v5278
    %5332 = vmatprep.subr.mxu0 %v5282
    %5333 = vmatpush1.msra.mxu0 %v5281
    %5334 = vmatprep.subr.mxu0 %v5285
    %5335 = vmatpush1.msra.mxu0 %v5284
    %5336 = vmatprep.subr.mxu0 0.0
    %5337 = vmatpush1.msra.mxu0 0.0
    %5338 = vmatprep.subr.mxu0 0.0
    %5339 = vmatpush1.msra.mxu0 0.0
    %5340 = vmatprep.subr.mxu0 0.0
    %5341 = vmatpush1.msra.mxu0 0.0
    %5342 = vmatprep.subr.mxu0 0.0
    %5343 = vmatpush1.msra.mxu0 0.0
    %5344 = vmatprep.subr.mxu0 0.0
    %5345 = vmatpush1.msra.mxu0 0.0
    %5346 = vmatprep.subr.mxu0 0.0
    %5347 = vmatpush1.msra.mxu0 0.0
    %5348 = vmatprep.subr.mxu0 0.0
    %5349 = vmatpush1.msra.mxu0 0.0
    %5350 = vmatprep.subr.mxu0 0.0
    %5351 = vmatpush1.msra.mxu0 0.0
    %5352 = vmatprep.subr.mxu0 0.0
    %5353 = vmatpush1.msra.mxu0 0.0
    %5354 = vmatprep.subr.mxu0 0.0
    %5355 = vmatpush1.msra.mxu0 0.0
    %5356 = vmatprep.subr.mxu0 0.0
    %5357 = vmatpush1.msra.mxu0 0.0
    %5358 = vmatprep.subr.mxu0 0.0
    %5359 = vmatpush1.msra.mxu0 0.0
    %5360 = vmatprep.subr.mxu0 0.0
    %5361 = vmatpush1.msra.mxu0 0.0
    %5362 = vmatprep.subr.mxu0 0.0
    %5363 = vmatpush1.msra.mxu0 0.0
    %5364 = vmatprep.subr.mxu0 0.0
    %5365 = vmatpush1.msra.mxu0 0.0
    %5366 = vmatprep.subr.mxu0 0.0
    %5367 = vmatpush1.msra.mxu0 0.0
    %5368 = vmatprep.mubr.f32.mxu0 0.0
    %5369 = vmatmul.mubr.f32.gmra.mrb[0].mxu0 %v5237
    %v5370 = vpop.f32.mrb[0].mxu0
    %v5371 = vadd.f32 %v5292, %v5370
    %v5372 = vpop.f32.mrb[0].mxu0
    %v5373 = vadd.f32 %v5296, %v5372
    %5374 = vdwg.mxu0
    %5375 = vmatprep.subr.mxu0 0.0
    %5376 = vmatpush1.msra.mxu0 %v5241
    %5377 = vmatprep.subr.mxu0 0.0
    %5378 = vmatpush1.msra.mxu0 %v5244
    %5379 = vmatprep.subr.mxu0 0.0
    %5380 = vmatpush1.msra.mxu0 %v5247
    %5381 = vmatprep.subr.mxu0 0.0
    %5382 = vmatpush1.msra.mxu0 %v5250
    %5383 = vmatprep.subr.mxu0 0.0
    %5384 = vmatpush1.msra.mxu0 %v5253
    %5385 = vmatprep.subr.mxu0 0.0
    %5386 = vmatpush1.msra.mxu0 %v5256
    %5387 = vmatprep.subr.mxu0 0.0
    %5388 = vmatpush1.msra.mxu0 %v5259
    %5389 = vmatprep.subr.mxu0 0.0
    %5390 = vmatpush1.msra.mxu0 %v5262
    %5391 = vmatprep.subr.mxu0 0.0
    %5392 = vmatpush1.msra.mxu0 %v5265
    %5393 = vmatprep.subr.mxu0 0.0
    %5394 = vmatpush1.msra.mxu0 %v5268
    %5395 = vmatprep.subr.mxu0 0.0
    %5396 = vmatpush1.msra.mxu0 %v5271
    %5397 = vmatprep.subr.mxu0 0.0
    %5398 = vmatpush1.msra.mxu0 %v5274
    %5399 = vmatprep.subr.mxu0 0.0
    %5400 = vmatpush1.msra.mxu0 %v5277
    %5401 = vmatprep.subr.mxu0 0.0
    %5402 = vmatpush1.msra.mxu0 %v5280
    %5403 = vmatprep.subr.mxu0 0.0
    %5404 = vmatpush1.msra.mxu0 %v5283
    %5405 = vmatprep.subr.mxu0 0.0
    %5406 = vmatpush1.msra.mxu0 %v5286
    %5407 = vmatprep.subr.mxu0 0.0
    %5408 = vmatpush1.msra.mxu0 0.0
    %5409 = vmatprep.subr.mxu0 0.0
    %5410 = vmatpush1.msra.mxu0 0.0
    %5411 = vmatprep.subr.mxu0 0.0
    %5412 = vmatpush1.msra.mxu0 0.0
    %5413 = vmatprep.subr.mxu0 0.0
    %5414 = vmatpush1.msra.mxu0 0.0
    %5415 = vmatprep.subr.mxu0 0.0
    %5416 = vmatpush1.msra.mxu0 0.0
    %5417 = vmatprep.subr.mxu0 0.0
    %5418 = vmatpush1.msra.mxu0 0.0
    %5419 = vmatprep.subr.mxu0 0.0
    %5420 = vmatpush1.msra.mxu0 0.0
    %5421 = vmatprep.subr.mxu0 0.0
    %5422 = vmatpush1.msra.mxu0 0.0
    %5423 = vmatprep.subr.mxu0 0.0
    %5424 = vmatpush1.msra.mxu0 0.0
    %5425 = vmatprep.subr.mxu0 0.0
    %5426 = vmatpush1.msra.mxu0 0.0
    %5427 = vmatprep.subr.mxu0 0.0
    %5428 = vmatpush1.msra.mxu0 0.0
    %5429 = vmatprep.subr.mxu0 0.0
    %5430 = vmatpush1.msra.mxu0 0.0
    %5431 = vmatprep.subr.mxu0 0.0
    %5432 = vmatpush1.msra.mxu0 0.0
    %5433 = vmatprep.subr.mxu0 0.0
    %5434 = vmatpush1.msra.mxu0 0.0
    %5435 = vmatprep.subr.mxu0 0.0
    %5436 = vmatpush1.msra.mxu0 0.0
    %5437 = vmatprep.subr.mxu0 0.0
    %5438 = vmatpush1.msra.mxu0 0.0
    %5439 = vmatprep.mubr.f32.mxu0 0.0
    %5440 = vmatmul.mubr.f32.gmra.mrb[0].mxu0 %v5237
    %v5441 = vpop.f32.mrb[0].mxu0
    %v5442 = vadd.f32 %v5300, %v5441
    %v5443 = vpop.f32.mrb[0].mxu0
    %5444 = vdwg.mxu0
    %v5445 = vld [vmem:[#allocation6] sm:$0xff]
    %v5446 = vld [vmem:[#allocation6 + $0x8] sm:$0xff]
    %v5447 = vld [vmem:[#allocation6 + $0x10] sm:$0xff]
    %v5448 = vld [vmem:[#allocation6 + $0x18] sm:$0xff]
    %v5449 = vld [vmem:[#allocation6 + $0x20] sm:$0xff]
    %v5450 = vld [vmem:[#allocation6 + $0x28] sm:$0xff]
    %v5451 = vld [vmem:[#allocation6 + $0x30] sm:$0xff]
    %v5452 = vld [vmem:[#allocation6 + $0x38] sm:$0xff]
    %v5453 = vld [vmem:[#allocation6 + $0x40] sm:$0xff]
    %v5454 = vld [vmem:[#allocation6 + $0x48] sm:$0xff]
    %v5455 = vld [vmem:[#allocation6 + $0x50] sm:$0xff]
    %v5456 = vld [vmem:[#allocation6 + $0x58] sm:$0xff]
    %v5457 = vld [vmem:[#allocation6 + $0x60] sm:$0xff]
    %v5458 = vld [vmem:[#allocation6 + $0x68] sm:$0xff]
    %v5459 = vld [vmem:[#allocation6 + $0x70] sm:$0xff]
    %v5460 = vld [vmem:[#allocation6 + $0x78] sm:$0xff]
    %v5461 = vld [vmem:[#allocation6 + $0x80] sm:$0xff]
    %v5462 = vld [vmem:[#allocation6 + $0x88] sm:$0xff]
    %v5463 = vld [vmem:[#allocation6 + $0x90] sm:$0xff]
    %v5464 = vld [vmem:[#allocation6 + $0x98] sm:$0xff]
    %v5465 = vld [vmem:[#allocation6 + $0xa0] sm:$0xff]
    %v5466 = vld [vmem:[#allocation6 + $0xa8] sm:$0xff]
    %v5467 = vld [vmem:[#allocation6 + $0xb0] sm:$0xff]
    %v5468 = vld [vmem:[#allocation6 + $0xb8] sm:$0xff]
    %v5469 = vld [vmem:[#allocation6 + $0xc0] sm:$0xff]
    %v5470 = vld [vmem:[#allocation6 + $0xc8] sm:$0xff]
    %v5471 = vld [vmem:[#allocation6 + $0xd0] sm:$0xff]
    %v5472 = vld [vmem:[#allocation6 + $0xd8] sm:$0xff]
    %v5473 = vld [vmem:[#allocation6 + $0xe0] sm:$0xff]
    %v5474 = vld [vmem:[#allocation6 + $0xe8] sm:$0xff]
    %v5475 = vld [vmem:[#allocation6 + $0xf0] sm:$0xff]
    %v5476 = vld [vmem:[#allocation6 + $0xf8] sm:$0xff]
    %v5477 = vld [vmem:[#allocation6 + $0x100] sm:$0xff]
    %v5478 = vld [vmem:[#allocation6 + $0x108] sm:$0xff]
    %v5479 = vld [vmem:[#allocation6 + $0x110] sm:$0xff]
    %v5480 = vld [vmem:[#allocation6 + $0x118] sm:$0xff]
    %v5481 = vld [vmem:[#allocation6 + $0x120] sm:$0xff]
    %v5482 = vld [vmem:[#allocation6 + $0x128] sm:$0xff]
    %v5483 = vld [vmem:[#allocation6 + $0x130] sm:$0xff]
    %v5484 = vld [vmem:[#allocation6 + $0x138] sm:$0xff]
    %v5485 = vld [vmem:[#allocation6 + $0x140] sm:$0xff]
    %v5486 = vld [vmem:[#allocation6 + $0x148] sm:$0xff]
    %v5487 = vld [vmem:[#allocation6 + $0x150] sm:$0xff]
    %v5488 = vld [vmem:[#allocation6 + $0x158] sm:$0xff]
    %v5489 = vld [vmem:[#allocation6 + $0x160] sm:$0xff]
    %v5490 = vld [vmem:[#allocation6 + $0x168] sm:$0xff]
    %v5491 = vld [vmem:[#allocation6 + $0x170] sm:$0xff]
    %v5492 = vld [vmem:[#allocation6 + $0x178] sm:$0xff]
    %5493 = vmatprep.subr.mxu0 %v5446
    %5494 = vmatpush1.msra.mxu0 %v5445
    %5495 = vmatprep.subr.mxu0 %v5449
    %5496 = vmatpush1.msra.mxu0 %v5448
    %5497 = vmatprep.subr.mxu0 %v5452
    %5498 = vmatpush1.msra.mxu0 %v5451
    %5499 = vmatprep.subr.mxu0 %v5455
    %5500 = vmatpush1.msra.mxu0 %v5454
    %5501 = vmatprep.subr.mxu0 %v5458
    %5502 = vmatpush1.msra.mxu0 %v5457
    %5503 = vmatprep.subr.mxu0 %v5461
    %5504 = vmatpush1.msra.mxu0 %v5460
    %5505 = vmatprep.subr.mxu0 %v5464
    %5506 = vmatpush1.msra.mxu0 %v5463
    %5507 = vmatprep.subr.mxu0 %v5467
    %5508 = vmatpush1.msra.mxu0 %v5466
    %5509 = vmatprep.subr.mxu0 %v5470
    %5510 = vmatpush1.msra.mxu0 %v5469
    %5511 = vmatprep.subr.mxu0 %v5473
    %5512 = vmatpush1.msra.mxu0 %v5472
    %5513 = vmatprep.subr.mxu0 %v5476
    %5514 = vmatpush1.msra.mxu0 %v5475
    %5515 = vmatprep.subr.mxu0 %v5479
    %5516 = vmatpush1.msra.mxu0 %v5478
    %5517 = vmatprep.subr.mxu0 %v5482
    %5518 = vmatpush1.msra.mxu0 %v5481
    %5519 = vmatprep.subr.mxu0 %v5485
    %5520 = vmatpush1.msra.mxu0 %v5484
    %5521 = vmatprep.subr.mxu0 %v5488
    %5522 = vmatpush1.msra.mxu0 %v5487
    %5523 = vmatprep.subr.mxu0 %v5491
    %5524 = vmatpush1.msra.mxu0 %v5490
    %5525 = vmatprep.subr.mxu0 0.0
    %5526 = vmatpush1.msra.mxu0 0.0
    %5527 = vmatprep.subr.mxu0 0.0
    %5528 = vmatpush1.msra.mxu0 0.0
    %5529 = vmatprep.subr.mxu0 0.0
    %5530 = vmatpush1.msra.mxu0 0.0
    %5531 = vmatprep.subr.mxu0 0.0
    %5532 = vmatpush1.msra.mxu0 0.0
    %5533 = vmatprep.subr.mxu0 0.0
    %5534 = vmatpush1.msra.mxu0 0.0
    %5535 = vmatprep.subr.mxu0 0.0
    %5536 = vmatpush1.msra.mxu0 0.0
    %5537 = vmatprep.subr.mxu0 0.0
    %5538 = vmatpush1.msra.mxu0 0.0
    %5539 = vmatprep.subr.mxu0 0.0
    %5540 = vmatpush1.msra.mxu0 0.0
    %5541 = vmatprep.subr.mxu0 0.0
    %5542 = vmatpush1.msra.mxu0 0.0
    %5543 = vmatprep.subr.mxu0 0.0
    %5544 = vmatpush1.msra.mxu0 0.0
    %5545 = vmatprep.subr.mxu0 0.0
    %5546 = vmatpush1.msra.mxu0 0.0
    %5547 = vmatprep.subr.mxu0 0.0
    %5548 = vmatpush1.msra.mxu0 0.0
    %5549 = vmatprep.subr.mxu0 0.0
    %5550 = vmatpush1.msra.mxu0 0.0
    %5551 = vmatprep.subr.mxu0 0.0
    %5552 = vmatpush1.msra.mxu0 0.0
    %5553 = vmatprep.subr.mxu0 0.0
    %5554 = vmatpush1.msra.mxu0 0.0
    %5555 = vmatprep.subr.mxu0 0.0
    %5556 = vmatpush1.msra.mxu0 0.0
    %5557 = vmatprep.mubr.f32.mxu0 0.0
    %5558 = vmatmul.mubr.f32.gmra.mrb[0].mxu0 %v5238
    %v5559 = vpop.f32.mrb[0].mxu0
    %v5560 = vadd.f32 0.0, %v5559
    %v5561 = vpop.f32.mrb[0].mxu0
    %v5562 = vadd.f32 0.0, %v5561
    %5563 = vdwg.mxu0
    %5564 = vmatprep.subr.mxu0 0.0
    %5565 = vmatpush1.msra.mxu0 %v5447
    %5566 = vmatprep.subr.mxu0 0.0
    %5567 = vmatpush1.msra.mxu0 %v5450
    %5568 = vmatprep.subr.mxu0 0.0
    %5569 = vmatpush1.msra.mxu0 %v5453
    %5570 = vmatprep.subr.mxu0 0.0
    %5571 = vmatpush1.msra.mxu0 %v5456
    %5572 = vmatprep.subr.mxu0 0.0
    %5573 = vmatpush1.msra.mxu0 %v5459
    %5574 = vmatprep.subr.mxu0 0.0
    %5575 = vmatpush1.msra.mxu0 %v5462
    %5576 = vmatprep.subr.mxu0 0.0
    %5577 = vmatpush1.msra.mxu0 %v5465
    %5578 = vmatprep.subr.mxu0 0.0
    %5579 = vmatpush1.msra.mxu0 %v5468
    %5580 = vmatprep.subr.mxu0 0.0
    %5581 = vmatpush1.msra.mxu0 %v5471
    %5582 = vmatprep.subr.mxu0 0.0
    %5583 = vmatpush1.msra.mxu0 %v5474
    %5584 = vmatprep.subr.mxu0 0.0
    %5585 = vmatpush1.msra.mxu0 %v5477
    %5586 = vmatprep.subr.mxu0 0.0
    %5587 = vmatpush1.msra.mxu0 %v5480
    %5588 = vmatprep.subr.mxu0 0.0
    %5589 = vmatpush1.msra.mxu0 %v5483
    %5590 = vmatprep.subr.mxu0 0.0
    %5591 = vmatpush1.msra.mxu0 %v5486
    %5592 = vmatprep.subr.mxu0 0.0
    %5593 = vmatpush1.msra.mxu0 %v5489
    %5594 = vmatprep.subr.mxu0 0.0
    %5595 = vmatpush1.msra.mxu0 %v5492
    %5596 = vmatprep.subr.mxu0 0.0
    %5597 = vmatpush1.msra.mxu0 0.0
    %5598 = vmatprep.subr.mxu0 0.0
    %5599 = vmatpush1.msra.mxu0 0.0
    %5600 = vmatprep.subr.mxu0 0.0
    %5601 = vmatpush1.msra.mxu0 0.0
    %5602 = vmatprep.subr.mxu0 0.0
    %5603 = vmatpush1.msra.mxu0 0.0
    %5604 = vmatprep.subr.mxu0 0.0
    %5605 = vmatpush1.msra.mxu0 0.0
    %5606 = vmatprep.subr.mxu0 0.0
    %5607 = vmatpush1.msra.mxu0 0.0
    %5608 = vmatprep.subr.mxu0 0.0
    %5609 = vmatpush1.msra.mxu0 0.0
    %5610 = vmatprep.subr.mxu0 0.0
    %5611 = vmatpush1.msra.mxu0 0.0
    %5612 = vmatprep.subr.mxu0 0.0
    %5613 = vmatpush1.msra.mxu0 0.0
    %5614 = vmatprep.subr.mxu0 0.0
    %5615 = vmatpush1.msra.mxu0 0.0
    %5616 = vmatprep.subr.mxu0 0.0
    %5617 = vmatpush1.msra.mxu0 0.0
    %5618 = vmatprep.subr.mxu0 0.0
    %5619 = vmatpush1.msra.mxu0 0.0
    %5620 = vmatprep.subr.mxu0 0.0
    %5621 = vmatpush1.msra.mxu0 0.0
    %5622 = vmatprep.subr.mxu0 0.0
    %5623 = vmatpush1.msra.mxu0 0.0
    %5624 = vmatprep.subr.mxu0 0.0
    %5625 = vmatpush1.msra.mxu0 0.0
    %5626 = vmatprep.subr.mxu0 0.0
    %5627 = vmatpush1.msra.mxu0 0.0
    %5628 = vmatprep.mubr.f32.mxu0 0.0
    %5629 = vmatmul.mubr.f32.gmra.mrb[0].mxu0 %v5238
    %v5630 = vpop.f32.mrb[0].mxu0
    %v5631 = vadd.f32 0.0, %v5630
    %v5632 = vpop.f32.mrb[0].mxu0
    %5633 = vdwg.mxu0
    %v5634 = vadd.f32 %v5371, %v5560
    %v5635 = vxor.u32 %v5634, 2147483648
    %v5636 = vmul.f32 %v5635, 1.442695
    %v5637 = vpow.pop %v5636
    %v5638 = vadd.f32 %v5637, 1.0
    %v5639 = vrcp.pop %v5638
    %v5640 = vmul.f32 1.0, %v5639
    %v5641 = vadd.f32 %v5373, %v5562
    %v5642 = vxor.u32 %v5641, 2147483648
    %v5643 = vmul.f32 %v5642, 1.442695
    %v5644 = vpow.pop %v5643
    %v5645 = vadd.f32 %v5644, 1.0
    %v5646 = vrcp.pop %v5645
    %v5647 = vmul.f32 1.0, %v5646
    %v5648 = vld [vmem:[%s5] sm:$0x1]
    %v5650 = vlaneseq
    %v5651 = vshrl.u32 %v5650, 7
    %v5652 = vsub.s32 0, %v5651
    %v5653 = vrot.slane %v5648, %v5652
    %v5655 = vadd.f32 %v5631, %v5653
    %v5656 = vmul.f32 %v5640, %v5655
    %v5657 = vadd.f32 %v5442, %v5656
    %v5658 = vtanh.pop %v5657
    %v5659 = vsub.f32 1.0, %v5647
    %v5660 = vmul.f32 %v5659, %v5658
    %v5661 = vmul.f32 %v5647, %v5238
    %v5662 = vadd.f32 %v5660, %v5661
    %5663 = vst [vmem:[#allocation2] sm:$0x3] %v5662
    %v5664 = vld [vmem:[%s528] sm:$0x3]
    %v5665 = vld [vmem:[#allocation8] sm:$0xff]
    %v5666 = vld [vmem:[#allocation8 + $0x8] sm:$0xff]
    %v5667 = vld [vmem:[#allocation8 + $0x10] sm:$0xff]
    %v5668 = vld [vmem:[#allocation8 + $0x18] sm:$0xff]
    %v5669 = vld [vmem:[#allocation8 + $0x20] sm:$0xff]
    %v5670 = vld [vmem:[#allocation8 + $0x28] sm:$0xff]
    %v5671 = vld [vmem:[#allocation8 + $0x30] sm:$0xff]
    %v5672 = vld [vmem:[#allocation8 + $0x38] sm:$0xff]
    %v5673 = vld [vmem:[#allocation8 + $0x40] sm:$0xff]
    %v5674 = vld [vmem:[#allocation8 + $0x48] sm:$0xff]
    %v5675 = vld [vmem:[#allocation8 + $0x50] sm:$0xff]
    %v5676 = vld [vmem:[#allocation8 + $0x58] sm:$0xff]
    %v5677 = vld [vmem:[#allocation8 + $0x60] sm:$0xff]
    %v5678 = vld [vmem:[#allocation8 + $0x68] sm:$0xff]
    %v5679 = vld [vmem:[#allocation8 + $0x70] sm:$0xff]
    %v5680 = vld [vmem:[#allocation8 + $0x78] sm:$0xff]
    %v5681 = vld [vmem:[#allocation8 + $0x80] sm:$0xff]
    %v5682 = vld [vmem:[#allocation8 + $0x88] sm:$0xff]
    %v5683 = vld [vmem:[#allocation8 + $0x90] sm:$0xff]
    %v5684 = vld [vmem:[#allocation8 + $0x98] sm:$0xff]
    %v5685 = vld [vmem:[#allocation8 + $0xa0] sm:$0xff]
    %v5686 = vld [vmem:[#allocation8 + $0xa8] sm:$0xff]
    %v5687 = vld [vmem:[#allocation8 + $0xb0] sm:$0xff]
    %v5688 = vld [vmem:[#allocation8 + $0xb8] sm:$0xff]
    %v5689 = vld [vmem:[#allocation8 + $0xc0] sm:$0xff]
    %v5690 = vld [vmem:[#allocation8 + $0xc8] sm:$0xff]
    %v5691 = vld [vmem:[#allocation8 + $0xd0] sm:$0xff]
    %v5692 = vld [vmem:[#allocation8 + $0xd8] sm:$0xff]
    %v5693 = vld [vmem:[#allocation8 + $0xe0] sm:$0xff]
    %v5694 = vld [vmem:[#allocation8 + $0xe8] sm:$0xff]
    %v5695 = vld [vmem:[#allocation8 + $0xf0] sm:$0xff]
    %v5696 = vld [vmem:[#allocation8 + $0xf8] sm:$0xff]
    %v5697 = vld [vmem:[#allocation8 + $0x100] sm:$0xff]
    %v5698 = vld [vmem:[#allocation8 + $0x108] sm:$0xff]
    %v5699 = vld [vmem:[#allocation8 + $0x110] sm:$0xff]
    %v5700 = vld [vmem:[#allocation8 + $0x118] sm:$0xff]
    %v5701 = vld [vmem:[#allocation8 + $0x120] sm:$0xff]
    %v5702 = vld [vmem:[#allocation8 + $0x128] sm:$0xff]
    %v5703 = vld [vmem:[#allocation8 + $0x130] sm:$0xff]
    %v5704 = vld [vmem:[#allocation8 + $0x138] sm:$0xff]
    %v5705 = vld [vmem:[#allocation8 + $0x140] sm:$0xff]
    %v5706 = vld [vmem:[#allocation8 + $0x148] sm:$0xff]
    %v5707 = vld [vmem:[#allocation8 + $0x150] sm:$0xff]
    %v5708 = vld [vmem:[#allocation8 + $0x158] sm:$0xff]
    %v5709 = vld [vmem:[#allocation8 + $0x160] sm:$0xff]
    %v5710 = vld [vmem:[#allocation8 + $0x168] sm:$0xff]
    %v5711 = vld [vmem:[#allocation8 + $0x170] sm:$0xff]
    %v5712 = vld [vmem:[#allocation8 + $0x178] sm:$0xff]
    %v5713 = vld [vmem:[%s8] sm:$0x7]
    %v5715 = vlaneseq
    %v5716 = vshrl.u32 %v5715, 7
    %v5717 = vsub.s32 0, %v5716
    %v5718 = vrot.slane %v5713, %v5717
    %v5719 = vlaneseq
    %v5720 = vshrl.u32 %v5719, 7
    %v5721 = vsub.s32 1, %v5720
    %v5722 = vrot.slane %v5713, %v5721
    %v5723 = vlaneseq
    %v5724 = vshrl.u32 %v5723, 7
    %v5725 = vsub.s32 2, %v5724
    %v5726 = vrot.slane %v5713, %v5725
    %5730 = vmatprep.subr.mxu0 %v5666
    %5731 = vmatpush1.msra.mxu0 %v5665
    %5732 = vmatprep.subr.mxu0 %v5669
    %5733 = vmatpush1.msra.mxu0 %v5668
    %5734 = vmatprep.subr.mxu0 %v5672
    %5735 = vmatpush1.msra.mxu0 %v5671
    %5736 = vmatprep.subr.mxu0 %v5675
    %5737 = vmatpush1.msra.mxu0 %v5674
    %5738 = vmatprep.subr.mxu0 %v5678
    %5739 = vmatpush1.msra.mxu0 %v5677
    %5740 = vmatprep.subr.mxu0 %v5681
    %5741 = vmatpush1.msra.mxu0 %v5680
    %5742 = vmatprep.subr.mxu0 %v5684
    %5743 = vmatpush1.msra.mxu0 %v5683
    %5744 = vmatprep.subr.mxu0 %v5687
    %5745 = vmatpush1.msra.mxu0 %v5686
    %5746 = vmatprep.subr.mxu0 %v5690
    %5747 = vmatpush1.msra.mxu0 %v5689
    %5748 = vmatprep.subr.mxu0 %v5693
    %5749 = vmatpush1.msra.mxu0 %v5692
    %5750 = vmatprep.subr.mxu0 %v5696
    %5751 = vmatpush1.msra.mxu0 %v5695
    %5752 = vmatprep.subr.mxu0 %v5699
    %5753 = vmatpush1.msra.mxu0 %v5698
    %5754 = vmatprep.subr.mxu0 %v5702
    %5755 = vmatpush1.msra.mxu0 %v5701
    %5756 = vmatprep.subr.mxu0 %v5705
    %5757 = vmatpush1.msra.mxu0 %v5704
    %5758 = vmatprep.subr.mxu0 %v5708
    %5759 = vmatpush1.msra.mxu0 %v5707
    %5760 = vmatprep.subr.mxu0 %v5711
    %5761 = vmatpush1.msra.mxu0 %v5710
    %5762 = vmatprep.subr.mxu0 0.0
    %5763 = vmatpush1.msra.mxu0 0.0
    %5764 = vmatprep.subr.mxu0 0.0
    %5765 = vmatpush1.msra.mxu0 0.0
    %5766 = vmatprep.subr.mxu0 0.0
    %5767 = vmatpush1.msra.mxu0 0.0
    %5768 = vmatprep.subr.mxu0 0.0
    %5769 = vmatpush1.msra.mxu0 0.0
    %5770 = vmatprep.subr.mxu0 0.0
    %5771 = vmatpush1.msra.mxu0 0.0
    %5772 = vmatprep.subr.mxu0 0.0
    %5773 = vmatpush1.msra.mxu0 0.0
    %5774 = vmatprep.subr.mxu0 0.0
    %5775 = vmatpush1.msra.mxu0 0.0
    %5776 = vmatprep.subr.mxu0 0.0
    %5777 = vmatpush1.msra.mxu0 0.0
    %5778 = vmatprep.subr.mxu0 0.0
    %5779 = vmatpush1.msra.mxu0 0.0
    %5780 = vmatprep.subr.mxu0 0.0
    %5781 = vmatpush1.msra.mxu0 0.0
    %5782 = vmatprep.subr.mxu0 0.0
    %5783 = vmatpush1.msra.mxu0 0.0
    %5784 = vmatprep.subr.mxu0 0.0
    %5785 = vmatpush1.msra.mxu0 0.0
    %5786 = vmatprep.subr.mxu0 0.0
    %5787 = vmatpush1.msra.mxu0 0.0
    %5788 = vmatprep.subr.mxu0 0.0
    %5789 = vmatpush1.msra.mxu0 0.0
    %5790 = vmatprep.subr.mxu0 0.0
    %5791 = vmatpush1.msra.mxu0 0.0
    %5792 = vmatprep.subr.mxu0 0.0
    %5793 = vmatpush1.msra.mxu0 0.0
    %5794 = vmatprep.mubr.f32.mxu0 0.0
    %5795 = vmatmul.mubr.f32.gmra.mrb[0].mxu0 %v5662
    %v5796 = vpop.f32.mrb[0].mxu0
    %v5797 = vadd.f32 %v5718, %v5796
    %v5798 = vpop.f32.mrb[0].mxu0
    %v5799 = vadd.f32 %v5722, %v5798
    %5800 = vdwg.mxu0
    %5801 = vmatprep.subr.mxu0 0.0
    %5802 = vmatpush1.msra.mxu0 %v5667
    %5803 = vmatprep.subr.mxu0 0.0
    %5804 = vmatpush1.msra.mxu0 %v5670
    %5805 = vmatprep.subr.mxu0 0.0
    %5806 = vmatpush1.msra.mxu0 %v5673
    %5807 = vmatprep.subr.mxu0 0.0
    %5808 = vmatpush1.msra.mxu0 %v5676
    %5809 = vmatprep.subr.mxu0 0.0
    %5810 = vmatpush1.msra.mxu0 %v5679
    %5811 = vmatprep.subr.mxu0 0.0
    %5812 = vmatpush1.msra.mxu0 %v5682
    %5813 = vmatprep.subr.mxu0 0.0
    %5814 = vmatpush1.msra.mxu0 %v5685
    %5815 = vmatprep.subr.mxu0 0.0
    %5816 = vmatpush1.msra.mxu0 %v5688
    %5817 = vmatprep.subr.mxu0 0.0
    %5818 = vmatpush1.msra.mxu0 %v5691
    %5819 = vmatprep.subr.mxu0 0.0
    %5820 = vmatpush1.msra.mxu0 %v5694
    %5821 = vmatprep.subr.mxu0 0.0
    %5822 = vmatpush1.msra.mxu0 %v5697
    %5823 = vmatprep.subr.mxu0 0.0
    %5824 = vmatpush1.msra.mxu0 %v5700
    %5825 = vmatprep.subr.mxu0 0.0
    %5826 = vmatpush1.msra.mxu0 %v5703
    %5827 = vmatprep.subr.mxu0 0.0
    %5828 = vmatpush1.msra.mxu0 %v5706
    %5829 = vmatprep.subr.mxu0 0.0
    %5830 = vmatpush1.msra.mxu0 %v5709
    %5831 = vmatprep.subr.mxu0 0.0
    %5832 = vmatpush1.msra.mxu0 %v5712
    %5833 = vmatprep.subr.mxu0 0.0
    %5834 = vmatpush1.msra.mxu0 0.0
    %5835 = vmatprep.subr.mxu0 0.0
    %5836 = vmatpush1.msra.mxu0 0.0
    %5837 = vmatprep.subr.mxu0 0.0
    %5838 = vmatpush1.msra.mxu0 0.0
    %5839 = vmatprep.subr.mxu0 0.0
    %5840 = vmatpush1.msra.mxu0 0.0
    %5841 = vmatprep.subr.mxu0 0.0
    %5842 = vmatpush1.msra.mxu0 0.0
    %5843 = vmatprep.subr.mxu0 0.0
    %5844 = vmatpush1.msra.mxu0 0.0
    %5845 = vmatprep.subr.mxu0 0.0
    %5846 = vmatpush1.msra.mxu0 0.0
    %5847 = vmatprep.subr.mxu0 0.0
    %5848 = vmatpush1.msra.mxu0 0.0
    %5849 = vmatprep.subr.mxu0 0.0
    %5850 = vmatpush1.msra.mxu0 0.0
    %5851 = vmatprep.subr.mxu0 0.0
    %5852 = vmatpush1.msra.mxu0 0.0
    %5853 = vmatprep.subr.mxu0 0.0
    %5854 = vmatpush1.msra.mxu0 0.0
    %5855 = vmatprep.subr.mxu0 0.0
    %5856 = vmatpush1.msra.mxu0 0.0
    %5857 = vmatprep.subr.mxu0 0.0
    %5858 = vmatpush1.msra.mxu0 0.0
    %5859 = vmatprep.subr.mxu0 0.0
    %5860 = vmatpush1.msra.mxu0 0.0
    %5861 = vmatprep.subr.mxu0 0.0
    %5862 = vmatpush1.msra.mxu0 0.0
    %5863 = vmatprep.subr.mxu0 0.0
    %5864 = vmatpush1.msra.mxu0 0.0
    %5865 = vmatprep.mubr.f32.mxu0 0.0
    %5866 = vmatmul.mubr.f32.gmra.mrb[0].mxu0 %v5662
    %v5867 = vpop.f32.mrb[0].mxu0
    %v5868 = vadd.f32 %v5726, %v5867
    %v5869 = vpop.f32.mrb[0].mxu0
    %5870 = vdwg.mxu0
    %v5871 = vld [vmem:[#allocation9] sm:$0xff]
    %v5872 = vld [vmem:[#allocation9 + $0x8] sm:$0xff]
    %v5873 = vld [vmem:[#allocation9 + $0x10] sm:$0xff]
    %v5874 = vld [vmem:[#allocation9 + $0x18] sm:$0xff]
    %v5875 = vld [vmem:[#allocation9 + $0x20] sm:$0xff]
    %v5876 = vld [vmem:[#allocation9 + $0x28] sm:$0xff]
    %v5877 = vld [vmem:[#allocation9 + $0x30] sm:$0xff]
    %v5878 = vld [vmem:[#allocation9 + $0x38] sm:$0xff]
    %v5879 = vld [vmem:[#allocation9 + $0x40] sm:$0xff]
    %v5880 = vld [vmem:[#allocation9 + $0x48] sm:$0xff]
    %v5881 = vld [vmem:[#allocation9 + $0x50] sm:$0xff]
    %v5882 = vld [vmem:[#allocation9 + $0x58] sm:$0xff]
    %v5883 = vld [vmem:[#allocation9 + $0x60] sm:$0xff]
    %v5884 = vld [vmem:[#allocation9 + $0x68] sm:$0xff]
    %v5885 = vld [vmem:[#allocation9 + $0x70] sm:$0xff]
    %v5886 = vld [vmem:[#allocation9 + $0x78] sm:$0xff]
    %v5887 = vld [vmem:[#allocation9 + $0x80] sm:$0xff]
    %v5888 = vld [vmem:[#allocation9 + $0x88] sm:$0xff]
    %v5889 = vld [vmem:[#allocation9 + $0x90] sm:$0xff]
    %v5890 = vld [vmem:[#allocation9 + $0x98] sm:$0xff]
    %v5891 = vld [vmem:[#allocation9 + $0xa0] sm:$0xff]
    %v5892 = vld [vmem:[#allocation9 + $0xa8] sm:$0xff]
    %v5893 = vld [vmem:[#allocation9 + $0xb0] sm:$0xff]
    %v5894 = vld [vmem:[#allocation9 + $0xb8] sm:$0xff]
    %v5895 = vld [vmem:[#allocation9 + $0xc0] sm:$0xff]
    %v5896 = vld [vmem:[#allocation9 + $0xc8] sm:$0xff]
    %v5897 = vld [vmem:[#allocation9 + $0xd0] sm:$0xff]
    %v5898 = vld [vmem:[#allocation9 + $0xd8] sm:$0xff]
    %v5899 = vld [vmem:[#allocation9 + $0xe0] sm:$0xff]
    %v5900 = vld [vmem:[#allocation9 + $0xe8] sm:$0xff]
    %v5901 = vld [vmem:[#allocation9 + $0xf0] sm:$0xff]
    %v5902 = vld [vmem:[#allocation9 + $0xf8] sm:$0xff]
    %v5903 = vld [vmem:[#allocation9 + $0x100] sm:$0xff]
    %v5904 = vld [vmem:[#allocation9 + $0x108] sm:$0xff]
    %v5905 = vld [vmem:[#allocation9 + $0x110] sm:$0xff]
    %v5906 = vld [vmem:[#allocation9 + $0x118] sm:$0xff]
    %v5907 = vld [vmem:[#allocation9 + $0x120] sm:$0xff]
    %v5908 = vld [vmem:[#allocation9 + $0x128] sm:$0xff]
    %v5909 = vld [vmem:[#allocation9 + $0x130] sm:$0xff]
    %v5910 = vld [vmem:[#allocation9 + $0x138] sm:$0xff]
    %v5911 = vld [vmem:[#allocation9 + $0x140] sm:$0xff]
    %v5912 = vld [vmem:[#allocation9 + $0x148] sm:$0xff]
    %v5913 = vld [vmem:[#allocation9 + $0x150] sm:$0xff]
    %v5914 = vld [vmem:[#allocation9 + $0x158] sm:$0xff]
    %v5915 = vld [vmem:[#allocation9 + $0x160] sm:$0xff]
    %v5916 = vld [vmem:[#allocation9 + $0x168] sm:$0xff]
    %v5917 = vld [vmem:[#allocation9 + $0x170] sm:$0xff]
    %v5918 = vld [vmem:[#allocation9 + $0x178] sm:$0xff]
    %5919 = vmatprep.subr.mxu0 %v5872
    %5920 = vmatpush1.msra.mxu0 %v5871
    %5921 = vmatprep.subr.mxu0 %v5875
    %5922 = vmatpush1.msra.mxu0 %v5874
    %5923 = vmatprep.subr.mxu0 %v5878
    %5924 = vmatpush1.msra.mxu0 %v5877
    %5925 = vmatprep.subr.mxu0 %v5881
    %5926 = vmatpush1.msra.mxu0 %v5880
    %5927 = vmatprep.subr.mxu0 %v5884
    %5928 = vmatpush1.msra.mxu0 %v5883
    %5929 = vmatprep.subr.mxu0 %v5887
    %5930 = vmatpush1.msra.mxu0 %v5886
    %5931 = vmatprep.subr.mxu0 %v5890
    %5932 = vmatpush1.msra.mxu0 %v5889
    %5933 = vmatprep.subr.mxu0 %v5893
    %5934 = vmatpush1.msra.mxu0 %v5892
    %5935 = vmatprep.subr.mxu0 %v5896
    %5936 = vmatpush1.msra.mxu0 %v5895
    %5937 = vmatprep.subr.mxu0 %v5899
    %5938 = vmatpush1.msra.mxu0 %v5898
    %5939 = vmatprep.subr.mxu0 %v5902
    %5940 = vmatpush1.msra.mxu0 %v5901
    %5941 = vmatprep.subr.mxu0 %v5905
    %5942 = vmatpush1.msra.mxu0 %v5904
    %5943 = vmatprep.subr.mxu0 %v5908
    %5944 = vmatpush1.msra.mxu0 %v5907
    %5945 = vmatprep.subr.mxu0 %v5911
    %5946 = vmatpush1.msra.mxu0 %v5910
    %5947 = vmatprep.subr.mxu0 %v5914
    %5948 = vmatpush1.msra.mxu0 %v5913
    %5949 = vmatprep.subr.mxu0 %v5917
    %5950 = vmatpush1.msra.mxu0 %v5916
    %5951 = vmatprep.subr.mxu0 0.0
    %5952 = vmatpush1.msra.mxu0 0.0
    %5953 = vmatprep.subr.mxu0 0.0
    %5954 = vmatpush1.msra.mxu0 0.0
    %5955 = vmatprep.subr.mxu0 0.0
    %5956 = vmatpush1.msra.mxu0 0.0
    %5957 = vmatprep.subr.mxu0 0.0
    %5958 = vmatpush1.msra.mxu0 0.0
    %5959 = vmatprep.subr.mxu0 0.0
    %5960 = vmatpush1.msra.mxu0 0.0
    %5961 = vmatprep.subr.mxu0 0.0
    %5962 = vmatpush1.msra.mxu0 0.0
    %5963 = vmatprep.subr.mxu0 0.0
    %5964 = vmatpush1.msra.mxu0 0.0
    %5965 = vmatprep.subr.mxu0 0.0
    %5966 = vmatpush1.msra.mxu0 0.0
    %5967 = vmatprep.subr.mxu0 0.0
    %5968 = vmatpush1.msra.mxu0 0.0
    %5969 = vmatprep.subr.mxu0 0.0
    %5970 = vmatpush1.msra.mxu0 0.0
    %5971 = vmatprep.subr.mxu0 0.0
    %5972 = vmatpush1.msra.mxu0 0.0
    %5973 = vmatprep.subr.mxu0 0.0
    %5974 = vmatpush1.msra.mxu0 0.0
    %5975 = vmatprep.subr.mxu0 0.0
    %5976 = vmatpush1.msra.mxu0 0.0
    %5977 = vmatprep.subr.mxu0 0.0
    %5978 = vmatpush1.msra.mxu0 0.0
    %5979 = vmatprep.subr.mxu0 0.0
    %5980 = vmatpush1.msra.mxu0 0.0
    %5981 = vmatprep.subr.mxu0 0.0
    %5982 = vmatpush1.msra.mxu0 0.0
    %5983 = vmatprep.mubr.f32.mxu0 0.0
    %5984 = vmatmul.mubr.f32.gmra.mrb[0].mxu0 %v5664
    %v5985 = vpop.f32.mrb[0].mxu0
    %v5986 = vadd.f32 0.0, %v5985
    %v5987 = vpop.f32.mrb[0].mxu0
    %v5988 = vadd.f32 0.0, %v5987
    %5989 = vdwg.mxu0
    %5990 = vmatprep.subr.mxu0 0.0
    %5991 = vmatpush1.msra.mxu0 %v5873
    %5992 = vmatprep.subr.mxu0 0.0
    %5993 = vmatpush1.msra.mxu0 %v5876
    %5994 = vmatprep.subr.mxu0 0.0
    %5995 = vmatpush1.msra.mxu0 %v5879
    %5996 = vmatprep.subr.mxu0 0.0
    %5997 = vmatpush1.msra.mxu0 %v5882
    %5998 = vmatprep.subr.mxu0 0.0
    %5999 = vmatpush1.msra.mxu0 %v5885
    %6000 = vmatprep.subr.mxu0 0.0
    %6001 = vmatpush1.msra.mxu0 %v5888
    %6002 = vmatprep.subr.mxu0 0.0
    %6003 = vmatpush1.msra.mxu0 %v5891
    %6004 = vmatprep.subr.mxu0 0.0
    %6005 = vmatpush1.msra.mxu0 %v5894
    %6006 = vmatprep.subr.mxu0 0.0
    %6007 = vmatpush1.msra.mxu0 %v5897
    %6008 = vmatprep.subr.mxu0 0.0
    %6009 = vmatpush1.msra.mxu0 %v5900
    %6010 = vmatprep.subr.mxu0 0.0
    %6011 = vmatpush1.msra.mxu0 %v5903
    %6012 = vmatprep.subr.mxu0 0.0
    %6013 = vmatpush1.msra.mxu0 %v5906
    %6014 = vmatprep.subr.mxu0 0.0
    %6015 = vmatpush1.msra.mxu0 %v5909
    %6016 = vmatprep.subr.mxu0 0.0
    %6017 = vmatpush1.msra.mxu0 %v5912
    %6018 = vmatprep.subr.mxu0 0.0
    %6019 = vmatpush1.msra.mxu0 %v5915
    %6020 = vmatprep.subr.mxu0 0.0
    %6021 = vmatpush1.msra.mxu0 %v5918
    %6022 = vmatprep.subr.mxu0 0.0
    %6023 = vmatpush1.msra.mxu0 0.0
    %6024 = vmatprep.subr.mxu0 0.0
    %6025 = vmatpush1.msra.mxu0 0.0
    %6026 = vmatprep.subr.mxu0 0.0
    %6027 = vmatpush1.msra.mxu0 0.0
    %6028 = vmatprep.subr.mxu0 0.0
    %6029 = vmatpush1.msra.mxu0 0.0
    %6030 = vmatprep.subr.mxu0 0.0
    %6031 = vmatpush1.msra.mxu0 0.0
    %6032 = vmatprep.subr.mxu0 0.0
    %6033 = vmatpush1.msra.mxu0 0.0
    %6034 = vmatprep.subr.mxu0 0.0
    %6035 = vmatpush1.msra.mxu0 0.0
    %6036 = vmatprep.subr.mxu0 0.0
    %6037 = vmatpush1.msra.mxu0 0.0
    %6038 = vmatprep.subr.mxu0 0.0
    %6039 = vmatpush1.msra.mxu0 0.0
    %6040 = vmatprep.subr.mxu0 0.0
    %6041 = vmatpush1.msra.mxu0 0.0
    %6042 = vmatprep.subr.mxu0 0.0
    %6043 = vmatpush1.msra.mxu0 0.0
    %6044 = vmatprep.subr.mxu0 0.0
    %6045 = vmatpush1.msra.mxu0 0.0
    %6046 = vmatprep.subr.mxu0 0.0
    %6047 = vmatpush1.msra.mxu0 0.0
    %6048 = vmatprep.subr.mxu0 0.0
    %6049 = vmatpush1.msra.mxu0 0.0
    %6050 = vmatprep.subr.mxu0 0.0
    %6051 = vmatpush1.msra.mxu0 0.0
    %6052 = vmatprep.subr.mxu0 0.0
    %6053 = vmatpush1.msra.mxu0 0.0
    %6054 = vmatprep.mubr.f32.mxu0 0.0
    %6055 = vmatmul.mubr.f32.gmra.mrb[0].mxu0 %v5664
    %v6056 = vpop.f32.mrb[0].mxu0
    %v6057 = vadd.f32 0.0, %v6056
    %v6058 = vpop.f32.mrb[0].mxu0
    %6059 = vdwg.mxu0
    %v6060 = vadd.f32 %v5797, %v5986
    %v6061 = vxor.u32 %v6060, 2147483648
    %v6062 = vmul.f32 %v6061, 1.442695
    %v6063 = vpow.pop %v6062
    %v6064 = vadd.f32 %v6063, 1.0
    %v6065 = vrcp.pop %v6064
    %v6066 = vmul.f32 1.0, %v6065
    %v6067 = vadd.f32 %v5799, %v5988
    %v6068 = vxor.u32 %v6067, 2147483648
    %v6069 = vmul.f32 %v6068, 1.442695
    %v6070 = vpow.pop %v6069
    %v6071 = vadd.f32 %v6070, 1.0
    %v6072 = vrcp.pop %v6071
    %v6073 = vmul.f32 1.0, %v6072
    %v6074 = vld [vmem:[%s9] sm:$0x1]
    %v6076 = vlaneseq
    %v6077 = vshrl.u32 %v6076, 7
    %v6078 = vsub.s32 0, %v6077
    %v6079 = vrot.slane %v6074, %v6078
    %v6081 = vadd.f32 %v6057, %v6079
    %v6082 = vmul.f32 %v6066, %v6081
    %v6083 = vadd.f32 %v5868, %v6082
    %v6084 = vtanh.pop %v6083
    %v6085 = vsub.f32 1.0, %v6073
    %v6086 = vmul.f32 %v6085, %v6084
    %v6087 = vmul.f32 %v6073, %v5664
    %v6088 = vadd.f32 %v6086, %v6087
    %6089 = vst [vmem:[%s528] sm:$0x3] %v6088
    %s6090 = scalar_lea.vmem %s10, 12
    %6091 = vst [vmem:[%s6090] sm:$0x3] %v6088
    %s6092 = scalar_lea.vmem %s0, 14
    %v6093 = vld [vmem:[%s6092] sm:$0x3]
    %v6094 = vld [vmem:[#allocation2] sm:$0x3]
    %v6095 = vld [vmem:[#allocation3] sm:$0xff]
    %v6096 = vld [vmem:[#allocation3 + $0x8] sm:$0xff]
    %v6097 = vld [vmem:[#allocation3 + $0x10] sm:$0xff]
    %v6098 = vld [vmem:[#allocation3 + $0x18] sm:$0xff]
    %v6099 = vld [vmem:[#allocation3 + $0x20] sm:$0xff]
    %v6100 = vld [vmem:[#allocation3 + $0x28] sm:$0xff]
    %v6101 = vld [vmem:[#allocation3 + $0x30] sm:$0xff]
    %v6102 = vld [vmem:[#allocation3 + $0x38] sm:$0xff]
    %v6103 = vld [vmem:[#allocation3 + $0x40] sm:$0xff]
    %v6104 = vld [vmem:[#allocation3 + $0x48] sm:$0xff]
    %v6105 = vld [vmem:[#allocation3 + $0x50] sm:$0xff]
    %v6106 = vld [vmem:[#allocation3 + $0x58] sm:$0xff]
    %v6107 = vld [vmem:[#allocation3 + $0x60] sm:$0xff]
    %v6108 = vld [vmem:[#allocation3 + $0x68] sm:$0xff]
    %v6109 = vld [vmem:[#allocation3 + $0x70] sm:$0xff]
    %v6110 = vld [vmem:[#allocation3 + $0x78] sm:$0xff]
    %v6111 = vld [vmem:[#allocation3 + $0x80] sm:$0xff]
    %v6112 = vld [vmem:[#allocation3 + $0x88] sm:$0xff]
    %v6113 = vld [vmem:[#allocation3 + $0x90] sm:$0xff]
    %v6114 = vld [vmem:[#allocation3 + $0x98] sm:$0xff]
    %v6115 = vld [vmem:[#allocation3 + $0xa0] sm:$0xff]
    %v6116 = vld [vmem:[#allocation3 + $0xa8] sm:$0xff]
    %v6117 = vld [vmem:[#allocation3 + $0xb0] sm:$0xff]
    %v6118 = vld [vmem:[#allocation3 + $0xb8] sm:$0xff]
    %v6119 = vld [vmem:[#allocation3 + $0xc0] sm:$0xff]
    %v6120 = vld [vmem:[#allocation3 + $0xc8] sm:$0xff]
    %v6121 = vld [vmem:[#allocation3 + $0xd0] sm:$0xff]
    %v6122 = vld [vmem:[#allocation3 + $0xd8] sm:$0xff]
    %v6123 = vld [vmem:[#allocation3 + $0xe0] sm:$0xff]
    %v6124 = vld [vmem:[#allocation3 + $0xe8] sm:$0xff]
    %v6125 = vld [vmem:[#allocation3 + $0xf0] sm:$0xff]
    %v6126 = vld [vmem:[#allocation3 + $0xf8] sm:$0xff]
    %v6127 = vld [vmem:[#allocation3 + $0x100] sm:$0xff]
    %v6128 = vld [vmem:[#allocation3 + $0x108] sm:$0xff]
    %v6129 = vld [vmem:[#allocation3 + $0x110] sm:$0xff]
    %v6130 = vld [vmem:[#allocation3 + $0x118] sm:$0xff]
    %v6131 = vld [vmem:[#allocation3 + $0x120] sm:$0xff]
    %v6132 = vld [vmem:[#allocation3 + $0x128] sm:$0xff]
    %v6133 = vld [vmem:[#allocation3 + $0x130] sm:$0xff]
    %v6134 = vld [vmem:[#allocation3 + $0x138] sm:$0xff]
    %v6135 = vld [vmem:[#allocation3 + $0x140] sm:$0xff]
    %v6136 = vld [vmem:[#allocation3 + $0x148] sm:$0xff]
    %v6137 = vld [vmem:[#allocation3 + $0x150] sm:$0xff]
    %v6138 = vld [vmem:[#allocation3 + $0x158] sm:$0xff]
    %v6139 = vld [vmem:[#allocation3 + $0x160] sm:$0xff]
    %v6140 = vld [vmem:[#allocation3 + $0x168] sm:$0xff]
    %v6141 = vld [vmem:[#allocation3 + $0x170] sm:$0xff]
    %v6142 = vld [vmem:[#allocation3 + $0x178] sm:$0xff]
    %v6143 = vld [vmem:[%s4] sm:$0x7]
    %v6145 = vlaneseq
    %v6146 = vshrl.u32 %v6145, 7
    %v6147 = vsub.s32 0, %v6146
    %v6148 = vrot.slane %v6143, %v6147
    %v6149 = vlaneseq
    %v6150 = vshrl.u32 %v6149, 7
    %v6151 = vsub.s32 1, %v6150
    %v6152 = vrot.slane %v6143, %v6151
    %v6153 = vlaneseq
    %v6154 = vshrl.u32 %v6153, 7
    %v6155 = vsub.s32 2, %v6154
    %v6156 = vrot.slane %v6143, %v6155
    %6160 = vmatprep.subr.mxu0 %v6096
    %6161 = vmatpush1.msra.mxu0 %v6095
    %6162 = vmatprep.subr.mxu0 %v6099
    %6163 = vmatpush1.msra.mxu0 %v6098
    %6164 = vmatprep.subr.mxu0 %v6102
    %6165 = vmatpush1.msra.mxu0 %v6101
    %6166 = vmatprep.subr.mxu0 %v6105
    %6167 = vmatpush1.msra.mxu0 %v6104
    %6168 = vmatprep.subr.mxu0 %v6108
    %6169 = vmatpush1.msra.mxu0 %v6107
    %6170 = vmatprep.subr.mxu0 %v6111
    %6171 = vmatpush1.msra.mxu0 %v6110
    %6172 = vmatprep.subr.mxu0 %v6114
    %6173 = vmatpush1.msra.mxu0 %v6113
    %6174 = vmatprep.subr.mxu0 %v6117
    %6175 = vmatpush1.msra.mxu0 %v6116
    %6176 = vmatprep.subr.mxu0 %v6120
    %6177 = vmatpush1.msra.mxu0 %v6119
    %6178 = vmatprep.subr.mxu0 %v6123
    %6179 = vmatpush1.msra.mxu0 %v6122
    %6180 = vmatprep.subr.mxu0 %v6126
    %6181 = vmatpush1.msra.mxu0 %v6125
    %6182 = vmatprep.subr.mxu0 %v6129
    %6183 = vmatpush1.msra.mxu0 %v6128
    %6184 = vmatprep.subr.mxu0 %v6132
    %6185 = vmatpush1.msra.mxu0 %v6131
    %6186 = vmatprep.subr.mxu0 %v6135
    %6187 = vmatpush1.msra.mxu0 %v6134
    %6188 = vmatprep.subr.mxu0 %v6138
    %6189 = vmatpush1.msra.mxu0 %v6137
    %6190 = vmatprep.subr.mxu0 %v6141
    %6191 = vmatpush1.msra.mxu0 %v6140
    %6192 = vmatprep.subr.mxu0 0.0
    %6193 = vmatpush1.msra.mxu0 0.0
    %6194 = vmatprep.subr.mxu0 0.0
    %6195 = vmatpush1.msra.mxu0 0.0
    %6196 = vmatprep.subr.mxu0 0.0
    %6197 = vmatpush1.msra.mxu0 0.0
    %6198 = vmatprep.subr.mxu0 0.0
    %6199 = vmatpush1.msra.mxu0 0.0
    %6200 = vmatprep.subr.mxu0 0.0
    %6201 = vmatpush1.msra.mxu0 0.0
    %6202 = vmatprep.subr.mxu0 0.0
    %6203 = vmatpush1.msra.mxu0 0.0
    %6204 = vmatprep.subr.mxu0 0.0
    %6205 = vmatpush1.msra.mxu0 0.0
    %6206 = vmatprep.subr.mxu0 0.0
    %6207 = vmatpush1.msra.mxu0 0.0
    %6208 = vmatprep.subr.mxu0 0.0
    %6209 = vmatpush1.msra.mxu0 0.0
    %6210 = vmatprep.subr.mxu0 0.0
    %6211 = vmatpush1.msra.mxu0 0.0
    %6212 = vmatprep.subr.mxu0 0.0
    %6213 = vmatpush1.msra.mxu0 0.0
    %6214 = vmatprep.subr.mxu0 0.0
    %6215 = vmatpush1.msra.mxu0 0.0
    %6216 = vmatprep.subr.mxu0 0.0
    %6217 = vmatpush1.msra.mxu0 0.0
    %6218 = vmatprep.subr.mxu0 0.0
    %6219 = vmatpush1.msra.mxu0 0.0
    %6220 = vmatprep.subr.mxu0 0.0
    %6221 = vmatpush1.msra.mxu0 0.0
    %6222 = vmatprep.subr.mxu0 0.0
    %6223 = vmatpush1.msra.mxu0 0.0
    %6224 = vmatprep.mubr.f32.mxu0 0.0
    %6225 = vmatmul.mubr.f32.gmra.mrb[0].mxu0 %v6093
    %v6226 = vpop.f32.mrb[0].mxu0
    %v6227 = vadd.f32 %v6148, %v6226
    %v6228 = vpop.f32.mrb[0].mxu0
    %v6229 = vadd.f32 %v6152, %v6228
    %6230 = vdwg.mxu0
    %6231 = vmatprep.subr.mxu0 0.0
    %6232 = vmatpush1.msra.mxu0 %v6097
    %6233 = vmatprep.subr.mxu0 0.0
    %6234 = vmatpush1.msra.mxu0 %v6100
    %6235 = vmatprep.subr.mxu0 0.0
    %6236 = vmatpush1.msra.mxu0 %v6103
    %6237 = vmatprep.subr.mxu0 0.0
    %6238 = vmatpush1.msra.mxu0 %v6106
    %6239 = vmatprep.subr.mxu0 0.0
    %6240 = vmatpush1.msra.mxu0 %v6109
    %6241 = vmatprep.subr.mxu0 0.0
    %6242 = vmatpush1.msra.mxu0 %v6112
    %6243 = vmatprep.subr.mxu0 0.0
    %6244 = vmatpush1.msra.mxu0 %v6115
    %6245 = vmatprep.subr.mxu0 0.0
    %6246 = vmatpush1.msra.mxu0 %v6118
    %6247 = vmatprep.subr.mxu0 0.0
    %6248 = vmatpush1.msra.mxu0 %v6121
    %6249 = vmatprep.subr.mxu0 0.0
    %6250 = vmatpush1.msra.mxu0 %v6124
    %6251 = vmatprep.subr.mxu0 0.0
    %6252 = vmatpush1.msra.mxu0 %v6127
    %6253 = vmatprep.subr.mxu0 0.0
    %6254 = vmatpush1.msra.mxu0 %v6130
    %6255 = vmatprep.subr.mxu0 0.0
    %6256 = vmatpush1.msra.mxu0 %v6133
    %6257 = vmatprep.subr.mxu0 0.0
    %6258 = vmatpush1.msra.mxu0 %v6136
    %6259 = vmatprep.subr.mxu0 0.0
    %6260 = vmatpush1.msra.mxu0 %v6139
    %6261 = vmatprep.subr.mxu0 0.0
    %6262 = vmatpush1.msra.mxu0 %v6142
    %6263 = vmatprep.subr.mxu0 0.0
    %6264 = vmatpush1.msra.mxu0 0.0
    %6265 = vmatprep.subr.mxu0 0.0
    %6266 = vmatpush1.msra.mxu0 0.0
    %6267 = vmatprep.subr.mxu0 0.0
    %6268 = vmatpush1.msra.mxu0 0.0
    %6269 = vmatprep.subr.mxu0 0.0
    %6270 = vmatpush1.msra.mxu0 0.0
    %6271 = vmatprep.subr.mxu0 0.0
    %6272 = vmatpush1.msra.mxu0 0.0
    %6273 = vmatprep.subr.mxu0 0.0
    %6274 = vmatpush1.msra.mxu0 0.0
    %6275 = vmatprep.subr.mxu0 0.0
    %6276 = vmatpush1.msra.mxu0 0.0
    %6277 = vmatprep.subr.mxu0 0.0
    %6278 = vmatpush1.msra.mxu0 0.0
    %6279 = vmatprep.subr.mxu0 0.0
    %6280 = vmatpush1.msra.mxu0 0.0
    %6281 = vmatprep.subr.mxu0 0.0
    %6282 = vmatpush1.msra.mxu0 0.0
    %6283 = vmatprep.subr.mxu0 0.0
    %6284 = vmatpush1.msra.mxu0 0.0
    %6285 = vmatprep.subr.mxu0 0.0
    %6286 = vmatpush1.msra.mxu0 0.0
    %6287 = vmatprep.subr.mxu0 0.0
    %6288 = vmatpush1.msra.mxu0 0.0
    %6289 = vmatprep.subr.mxu0 0.0
    %6290 = vmatpush1.msra.mxu0 0.0
    %6291 = vmatprep.subr.mxu0 0.0
    %6292 = vmatpush1.msra.mxu0 0.0
    %6293 = vmatprep.subr.mxu0 0.0
    %6294 = vmatpush1.msra.mxu0 0.0
    %6295 = vmatprep.mubr.f32.mxu0 0.0
    %6296 = vmatmul.mubr.f32.gmra.mrb[0].mxu0 %v6093
    %v6297 = vpop.f32.mrb[0].mxu0
    %v6298 = vadd.f32 %v6156, %v6297
    %v6299 = vpop.f32.mrb[0].mxu0
    %6300 = vdwg.mxu0
    %v6301 = vld [vmem:[#allocation6] sm:$0xff]
    %v6302 = vld [vmem:[#allocation6 + $0x8] sm:$0xff]
    %v6303 = vld [vmem:[#allocation6 + $0x10] sm:$0xff]
    %v6304 = vld [vmem:[#allocation6 + $0x18] sm:$0xff]
    %v6305 = vld [vmem:[#allocation6 + $0x20] sm:$0xff]
    %v6306 = vld [vmem:[#allocation6 + $0x28] sm:$0xff]
    %v6307 = vld [vmem:[#allocation6 + $0x30] sm:$0xff]
    %v6308 = vld [vmem:[#allocation6 + $0x38] sm:$0xff]
    %v6309 = vld [vmem:[#allocation6 + $0x40] sm:$0xff]
    %v6310 = vld [vmem:[#allocation6 + $0x48] sm:$0xff]
    %v6311 = vld [vmem:[#allocation6 + $0x50] sm:$0xff]
    %v6312 = vld [vmem:[#allocation6 + $0x58] sm:$0xff]
    %v6313 = vld [vmem:[#allocation6 + $0x60] sm:$0xff]
    %v6314 = vld [vmem:[#allocation6 + $0x68] sm:$0xff]
    %v6315 = vld [vmem:[#allocation6 + $0x70] sm:$0xff]
    %v6316 = vld [vmem:[#allocation6 + $0x78] sm:$0xff]
    %v6317 = vld [vmem:[#allocation6 + $0x80] sm:$0xff]
    %v6318 = vld [vmem:[#allocation6 + $0x88] sm:$0xff]
    %v6319 = vld [vmem:[#allocation6 + $0x90] sm:$0xff]
    %v6320 = vld [vmem:[#allocation6 + $0x98] sm:$0xff]
    %v6321 = vld [vmem:[#allocation6 + $0xa0] sm:$0xff]
    %v6322 = vld [vmem:[#allocation6 + $0xa8] sm:$0xff]
    %v6323 = vld [vmem:[#allocation6 + $0xb0] sm:$0xff]
    %v6324 = vld [vmem:[#allocation6 + $0xb8] sm:$0xff]
    %v6325 = vld [vmem:[#allocation6 + $0xc0] sm:$0xff]
    %v6326 = vld [vmem:[#allocation6 + $0xc8] sm:$0xff]
    %v6327 = vld [vmem:[#allocation6 + $0xd0] sm:$0xff]
    %v6328 = vld [vmem:[#allocation6 + $0xd8] sm:$0xff]
    %v6329 = vld [vmem:[#allocation6 + $0xe0] sm:$0xff]
    %v6330 = vld [vmem:[#allocation6 + $0xe8] sm:$0xff]
    %v6331 = vld [vmem:[#allocation6 + $0xf0] sm:$0xff]
    %v6332 = vld [vmem:[#allocation6 + $0xf8] sm:$0xff]
    %v6333 = vld [vmem:[#allocation6 + $0x100] sm:$0xff]
    %v6334 = vld [vmem:[#allocation6 + $0x108] sm:$0xff]
    %v6335 = vld [vmem:[#allocation6 + $0x110] sm:$0xff]
    %v6336 = vld [vmem:[#allocation6 + $0x118] sm:$0xff]
    %v6337 = vld [vmem:[#allocation6 + $0x120] sm:$0xff]
    %v6338 = vld [vmem:[#allocation6 + $0x128] sm:$0xff]
    %v6339 = vld [vmem:[#allocation6 + $0x130] sm:$0xff]
    %v6340 = vld [vmem:[#allocation6 + $0x138] sm:$0xff]
    %v6341 = vld [vmem:[#allocation6 + $0x140] sm:$0xff]
    %v6342 = vld [vmem:[#allocation6 + $0x148] sm:$0xff]
    %v6343 = vld [vmem:[#allocation6 + $0x150] sm:$0xff]
    %v6344 = vld [vmem:[#allocation6 + $0x158] sm:$0xff]
    %v6345 = vld [vmem:[#allocation6 + $0x160] sm:$0xff]
    %v6346 = vld [vmem:[#allocation6 + $0x168] sm:$0xff]
    %v6347 = vld [vmem:[#allocation6 + $0x170] sm:$0xff]
    %v6348 = vld [vmem:[#allocation6 + $0x178] sm:$0xff]
    %6349 = vmatprep.subr.mxu0 %v6302
    %6350 = vmatpush1.msra.mxu0 %v6301
    %6351 = vmatprep.subr.mxu0 %v6305
    %6352 = vmatpush1.msra.mxu0 %v6304
    %6353 = vmatprep.subr.mxu0 %v6308
    %6354 = vmatpush1.msra.mxu0 %v6307
    %6355 = vmatprep.subr.mxu0 %v6311
    %6356 = vmatpush1.msra.mxu0 %v6310
    %6357 = vmatprep.subr.mxu0 %v6314
    %6358 = vmatpush1.msra.mxu0 %v6313
    %6359 = vmatprep.subr.mxu0 %v6317
    %6360 = vmatpush1.msra.mxu0 %v6316
    %6361 = vmatprep.subr.mxu0 %v6320
    %6362 = vmatpush1.msra.mxu0 %v6319
    %6363 = vmatprep.subr.mxu0 %v6323
    %6364 = vmatpush1.msra.mxu0 %v6322
    %6365 = vmatprep.subr.mxu0 %v6326
    %6366 = vmatpush1.msra.mxu0 %v6325
    %6367 = vmatprep.subr.mxu0 %v6329
    %6368 = vmatpush1.msra.mxu0 %v6328
    %6369 = vmatprep.subr.mxu0 %v6332
    %6370 = vmatpush1.msra.mxu0 %v6331
    %6371 = vmatprep.subr.mxu0 %v6335
    %6372 = vmatpush1.msra.mxu0 %v6334
    %6373 = vmatprep.subr.mxu0 %v6338
    %6374 = vmatpush1.msra.mxu0 %v6337
    %6375 = vmatprep.subr.mxu0 %v6341
    %6376 = vmatpush1.msra.mxu0 %v6340
    %6377 = vmatprep.subr.mxu0 %v6344
    %6378 = vmatpush1.msra.mxu0 %v6343
    %6379 = vmatprep.subr.mxu0 %v6347
    %6380 = vmatpush1.msra.mxu0 %v6346
    %6381 = vmatprep.subr.mxu0 0.0
    %6382 = vmatpush1.msra.mxu0 0.0
    %6383 = vmatprep.subr.mxu0 0.0
    %6384 = vmatpush1.msra.mxu0 0.0
    %6385 = vmatprep.subr.mxu0 0.0
    %6386 = vmatpush1.msra.mxu0 0.0
    %6387 = vmatprep.subr.mxu0 0.0
    %6388 = vmatpush1.msra.mxu0 0.0
    %6389 = vmatprep.subr.mxu0 0.0
    %6390 = vmatpush1.msra.mxu0 0.0
    %6391 = vmatprep.subr.mxu0 0.0
    %6392 = vmatpush1.msra.mxu0 0.0
    %6393 = vmatprep.subr.mxu0 0.0
    %6394 = vmatpush1.msra.mxu0 0.0
    %6395 = vmatprep.subr.mxu0 0.0
    %6396 = vmatpush1.msra.mxu0 0.0
    %6397 = vmatprep.subr.mxu0 0.0
    %6398 = vmatpush1.msra.mxu0 0.0
    %6399 = vmatprep.subr.mxu0 0.0
    %6400 = vmatpush1.msra.mxu0 0.0
    %6401 = vmatprep.subr.mxu0 0.0
    %6402 = vmatpush1.msra.mxu0 0.0
    %6403 = vmatprep.subr.mxu0 0.0
    %6404 = vmatpush1.msra.mxu0 0.0
    %6405 = vmatprep.subr.mxu0 0.0
    %6406 = vmatpush1.msra.mxu0 0.0
    %6407 = vmatprep.subr.mxu0 0.0
    %6408 = vmatpush1.msra.mxu0 0.0
    %6409 = vmatprep.subr.mxu0 0.0
    %6410 = vmatpush1.msra.mxu0 0.0
    %6411 = vmatprep.subr.mxu0 0.0
    %6412 = vmatpush1.msra.mxu0 0.0
    %6413 = vmatprep.mubr.f32.mxu0 0.0
    %6414 = vmatmul.mubr.f32.gmra.mrb[0].mxu0 %v6094
    %v6415 = vpop.f32.mrb[0].mxu0
    %v6416 = vadd.f32 0.0, %v6415
    %v6417 = vpop.f32.mrb[0].mxu0
    %v6418 = vadd.f32 0.0, %v6417
    %6419 = vdwg.mxu0
    %6420 = vmatprep.subr.mxu0 0.0
    %6421 = vmatpush1.msra.mxu0 %v6303
    %6422 = vmatprep.subr.mxu0 0.0
    %6423 = vmatpush1.msra.mxu0 %v6306
    %6424 = vmatprep.subr.mxu0 0.0
    %6425 = vmatpush1.msra.mxu0 %v6309
    %6426 = vmatprep.subr.mxu0 0.0
    %6427 = vmatpush1.msra.mxu0 %v6312
    %6428 = vmatprep.subr.mxu0 0.0
    %6429 = vmatpush1.msra.mxu0 %v6315
    %6430 = vmatprep.subr.mxu0 0.0
    %6431 = vmatpush1.msra.mxu0 %v6318
    %6432 = vmatprep.subr.mxu0 0.0
    %6433 = vmatpush1.msra.mxu0 %v6321
    %6434 = vmatprep.subr.mxu0 0.0
    %6435 = vmatpush1.msra.mxu0 %v6324
    %6436 = vmatprep.subr.mxu0 0.0
    %6437 = vmatpush1.msra.mxu0 %v6327
    %6438 = vmatprep.subr.mxu0 0.0
    %6439 = vmatpush1.msra.mxu0 %v6330
    %6440 = vmatprep.subr.mxu0 0.0
    %6441 = vmatpush1.msra.mxu0 %v6333
    %6442 = vmatprep.subr.mxu0 0.0
    %6443 = vmatpush1.msra.mxu0 %v6336
    %6444 = vmatprep.subr.mxu0 0.0
    %6445 = vmatpush1.msra.mxu0 %v6339
    %6446 = vmatprep.subr.mxu0 0.0
    %6447 = vmatpush1.msra.mxu0 %v6342
    %6448 = vmatprep.subr.mxu0 0.0
    %6449 = vmatpush1.msra.mxu0 %v6345
    %6450 = vmatprep.subr.mxu0 0.0
    %6451 = vmatpush1.msra.mxu0 %v6348
    %6452 = vmatprep.subr.mxu0 0.0
    %6453 = vmatpush1.msra.mxu0 0.0
    %6454 = vmatprep.subr.mxu0 0.0
    %6455 = vmatpush1.msra.mxu0 0.0
    %6456 = vmatprep.subr.mxu0 0.0
    %6457 = vmatpush1.msra.mxu0 0.0
    %6458 = vmatprep.subr.mxu0 0.0
    %6459 = vmatpush1.msra.mxu0 0.0
    %6460 = vmatprep.subr.mxu0 0.0
    %6461 = vmatpush1.msra.mxu0 0.0
    %6462 = vmatprep.subr.mxu0 0.0
    %6463 = vmatpush1.msra.mxu0 0.0
    %6464 = vmatprep.subr.mxu0 0.0
    %6465 = vmatpush1.msra.mxu0 0.0
    %6466 = vmatprep.subr.mxu0 0.0
    %6467 = vmatpush1.msra.mxu0 0.0
    %6468 = vmatprep.subr.mxu0 0.0
    %6469 = vmatpush1.msra.mxu0 0.0
    %6470 = vmatprep.subr.mxu0 0.0
    %6471 = vmatpush1.msra.mxu0 0.0
    %6472 = vmatprep.subr.mxu0 0.0
    %6473 = vmatpush1.msra.mxu0 0.0
    %6474 = vmatprep.subr.mxu0 0.0
    %6475 = vmatpush1.msra.mxu0 0.0
    %6476 = vmatprep.subr.mxu0 0.0
    %6477 = vmatpush1.msra.mxu0 0.0
    %6478 = vmatprep.subr.mxu0 0.0
    %6479 = vmatpush1.msra.mxu0 0.0
    %6480 = vmatprep.subr.mxu0 0.0
    %6481 = vmatpush1.msra.mxu0 0.0
    %6482 = vmatprep.subr.mxu0 0.0
    %6483 = vmatpush1.msra.mxu0 0.0
    %6484 = vmatprep.mubr.f32.mxu0 0.0
    %6485 = vmatmul.mubr.f32.gmra.mrb[0].mxu0 %v6094
    %v6486 = vpop.f32.mrb[0].mxu0
    %v6487 = vadd.f32 0.0, %v6486
    %v6488 = vpop.f32.mrb[0].mxu0
    %6489 = vdwg.mxu0
    %v6490 = vadd.f32 %v6227, %v6416
    %v6491 = vxor.u32 %v6490, 2147483648
    %v6492 = vmul.f32 %v6491, 1.442695
    %v6493 = vpow.pop %v6492
    %v6494 = vadd.f32 %v6493, 1.0
    %v6495 = vrcp.pop %v6494
    %v6496 = vmul.f32 1.0, %v6495
    %v6497 = vadd.f32 %v6229, %v6418
    %v6498 = vxor.u32 %v6497, 2147483648
    %v6499 = vmul.f32 %v6498, 1.442695
    %v6500 = vpow.pop %v6499
    %v6501 = vadd.f32 %v6500, 1.0
    %v6502 = vrcp.pop %v6501
    %v6503 = vmul.f32 1.0, %v6502
    %v6504 = vld [vmem:[%s5] sm:$0x1]
    %v6506 = vlaneseq
    %v6507 = vshrl.u32 %v6506, 7
    %v6508 = vsub.s32 0, %v6507
    %v6509 = vrot.slane %v6504, %v6508
    %v6511 = vadd.f32 %v6487, %v6509
    %v6512 = vmul.f32 %v6496, %v6511
    %v6513 = vadd.f32 %v6298, %v6512
    %v6514 = vtanh.pop %v6513
    %v6515 = vsub.f32 1.0, %v6503
    %v6516 = vmul.f32 %v6515, %v6514
    %v6517 = vmul.f32 %v6503, %v6094
    %v6518 = vadd.f32 %v6516, %v6517
    %6519 = vst [vmem:[#allocation2] sm:$0x3] %v6518
    %v6520 = vld [vmem:[%s528] sm:$0x3]
    %v6521 = vld [vmem:[#allocation8] sm:$0xff]
    %v6522 = vld [vmem:[#allocation8 + $0x8] sm:$0xff]
    %v6523 = vld [vmem:[#allocation8 + $0x10] sm:$0xff]
    %v6524 = vld [vmem:[#allocation8 + $0x18] sm:$0xff]
    %v6525 = vld [vmem:[#allocation8 + $0x20] sm:$0xff]
    %v6526 = vld [vmem:[#allocation8 + $0x28] sm:$0xff]
    %v6527 = vld [vmem:[#allocation8 + $0x30] sm:$0xff]
    %v6528 = vld [vmem:[#allocation8 + $0x38] sm:$0xff]
    %v6529 = vld [vmem:[#allocation8 + $0x40] sm:$0xff]
    %v6530 = vld [vmem:[#allocation8 + $0x48] sm:$0xff]
    %v6531 = vld [vmem:[#allocation8 + $0x50] sm:$0xff]
    %v6532 = vld [vmem:[#allocation8 + $0x58] sm:$0xff]
    %v6533 = vld [vmem:[#allocation8 + $0x60] sm:$0xff]
    %v6534 = vld [vmem:[#allocation8 + $0x68] sm:$0xff]
    %v6535 = vld [vmem:[#allocation8 + $0x70] sm:$0xff]
    %v6536 = vld [vmem:[#allocation8 + $0x78] sm:$0xff]
    %v6537 = vld [vmem:[#allocation8 + $0x80] sm:$0xff]
    %v6538 = vld [vmem:[#allocation8 + $0x88] sm:$0xff]
    %v6539 = vld [vmem:[#allocation8 + $0x90] sm:$0xff]
    %v6540 = vld [vmem:[#allocation8 + $0x98] sm:$0xff]
    %v6541 = vld [vmem:[#allocation8 + $0xa0] sm:$0xff]
    %v6542 = vld [vmem:[#allocation8 + $0xa8] sm:$0xff]
    %v6543 = vld [vmem:[#allocation8 + $0xb0] sm:$0xff]
    %v6544 = vld [vmem:[#allocation8 + $0xb8] sm:$0xff]
    %v6545 = vld [vmem:[#allocation8 + $0xc0] sm:$0xff]
    %v6546 = vld [vmem:[#allocation8 + $0xc8] sm:$0xff]
    %v6547 = vld [vmem:[#allocation8 + $0xd0] sm:$0xff]
    %v6548 = vld [vmem:[#allocation8 + $0xd8] sm:$0xff]
    %v6549 = vld [vmem:[#allocation8 + $0xe0] sm:$0xff]
    %v6550 = vld [vmem:[#allocation8 + $0xe8] sm:$0xff]
    %v6551 = vld [vmem:[#allocation8 + $0xf0] sm:$0xff]
    %v6552 = vld [vmem:[#allocation8 + $0xf8] sm:$0xff]
    %v6553 = vld [vmem:[#allocation8 + $0x100] sm:$0xff]
    %v6554 = vld [vmem:[#allocation8 + $0x108] sm:$0xff]
    %v6555 = vld [vmem:[#allocation8 + $0x110] sm:$0xff]
    %v6556 = vld [vmem:[#allocation8 + $0x118] sm:$0xff]
    %v6557 = vld [vmem:[#allocation8 + $0x120] sm:$0xff]
    %v6558 = vld [vmem:[#allocation8 + $0x128] sm:$0xff]
    %v6559 = vld [vmem:[#allocation8 + $0x130] sm:$0xff]
    %v6560 = vld [vmem:[#allocation8 + $0x138] sm:$0xff]
    %v6561 = vld [vmem:[#allocation8 + $0x140] sm:$0xff]
    %v6562 = vld [vmem:[#allocation8 + $0x148] sm:$0xff]
    %v6563 = vld [vmem:[#allocation8 + $0x150] sm:$0xff]
    %v6564 = vld [vmem:[#allocation8 + $0x158] sm:$0xff]
    %v6565 = vld [vmem:[#allocation8 + $0x160] sm:$0xff]
    %v6566 = vld [vmem:[#allocation8 + $0x168] sm:$0xff]
    %v6567 = vld [vmem:[#allocation8 + $0x170] sm:$0xff]
    %v6568 = vld [vmem:[#allocation8 + $0x178] sm:$0xff]
    %v6569 = vld [vmem:[%s8] sm:$0x7]
    %v6571 = vlaneseq
    %v6572 = vshrl.u32 %v6571, 7
    %v6573 = vsub.s32 0, %v6572
    %v6574 = vrot.slane %v6569, %v6573
    %v6575 = vlaneseq
    %v6576 = vshrl.u32 %v6575, 7
    %v6577 = vsub.s32 1, %v6576
    %v6578 = vrot.slane %v6569, %v6577
    %v6579 = vlaneseq
    %v6580 = vshrl.u32 %v6579, 7
    %v6581 = vsub.s32 2, %v6580
    %v6582 = vrot.slane %v6569, %v6581
    %6586 = vmatprep.subr.mxu0 %v6522
    %6587 = vmatpush1.msra.mxu0 %v6521
    %6588 = vmatprep.subr.mxu0 %v6525
    %6589 = vmatpush1.msra.mxu0 %v6524
    %6590 = vmatprep.subr.mxu0 %v6528
    %6591 = vmatpush1.msra.mxu0 %v6527
    %6592 = vmatprep.subr.mxu0 %v6531
    %6593 = vmatpush1.msra.mxu0 %v6530
    %6594 = vmatprep.subr.mxu0 %v6534
    %6595 = vmatpush1.msra.mxu0 %v6533
    %6596 = vmatprep.subr.mxu0 %v6537
    %6597 = vmatpush1.msra.mxu0 %v6536
    %6598 = vmatprep.subr.mxu0 %v6540
    %6599 = vmatpush1.msra.mxu0 %v6539
    %6600 = vmatprep.subr.mxu0 %v6543
    %6601 = vmatpush1.msra.mxu0 %v6542
    %6602 = vmatprep.subr.mxu0 %v6546
    %6603 = vmatpush1.msra.mxu0 %v6545
    %6604 = vmatprep.subr.mxu0 %v6549
    %6605 = vmatpush1.msra.mxu0 %v6548
    %6606 = vmatprep.subr.mxu0 %v6552
    %6607 = vmatpush1.msra.mxu0 %v6551
    %6608 = vmatprep.subr.mxu0 %v6555
    %6609 = vmatpush1.msra.mxu0 %v6554
    %6610 = vmatprep.subr.mxu0 %v6558
    %6611 = vmatpush1.msra.mxu0 %v6557
    %6612 = vmatprep.subr.mxu0 %v6561
    %6613 = vmatpush1.msra.mxu0 %v6560
    %6614 = vmatprep.subr.mxu0 %v6564
    %6615 = vmatpush1.msra.mxu0 %v6563
    %6616 = vmatprep.subr.mxu0 %v6567
    %6617 = vmatpush1.msra.mxu0 %v6566
    %6618 = vmatprep.subr.mxu0 0.0
    %6619 = vmatpush1.msra.mxu0 0.0
    %6620 = vmatprep.subr.mxu0 0.0
    %6621 = vmatpush1.msra.mxu0 0.0
    %6622 = vmatprep.subr.mxu0 0.0
    %6623 = vmatpush1.msra.mxu0 0.0
    %6624 = vmatprep.subr.mxu0 0.0
    %6625 = vmatpush1.msra.mxu0 0.0
    %6626 = vmatprep.subr.mxu0 0.0
    %6627 = vmatpush1.msra.mxu0 0.0
    %6628 = vmatprep.subr.mxu0 0.0
    %6629 = vmatpush1.msra.mxu0 0.0
    %6630 = vmatprep.subr.mxu0 0.0
    %6631 = vmatpush1.msra.mxu0 0.0
    %6632 = vmatprep.subr.mxu0 0.0
    %6633 = vmatpush1.msra.mxu0 0.0
    %6634 = vmatprep.subr.mxu0 0.0
    %6635 = vmatpush1.msra.mxu0 0.0
    %6636 = vmatprep.subr.mxu0 0.0
    %6637 = vmatpush1.msra.mxu0 0.0
    %6638 = vmatprep.subr.mxu0 0.0
    %6639 = vmatpush1.msra.mxu0 0.0
    %6640 = vmatprep.subr.mxu0 0.0
    %6641 = vmatpush1.msra.mxu0 0.0
    %6642 = vmatprep.subr.mxu0 0.0
    %6643 = vmatpush1.msra.mxu0 0.0
    %6644 = vmatprep.subr.mxu0 0.0
    %6645 = vmatpush1.msra.mxu0 0.0
    %6646 = vmatprep.subr.mxu0 0.0
    %6647 = vmatpush1.msra.mxu0 0.0
    %6648 = vmatprep.subr.mxu0 0.0
    %6649 = vmatpush1.msra.mxu0 0.0
    %6650 = vmatprep.mubr.f32.mxu0 0.0
    %6651 = vmatmul.mubr.f32.gmra.mrb[0].mxu0 %v6518
    %v6652 = vpop.f32.mrb[0].mxu0
    %v6653 = vadd.f32 %v6574, %v6652
    %v6654 = vpop.f32.mrb[0].mxu0
    %v6655 = vadd.f32 %v6578, %v6654
    %6656 = vdwg.mxu0
    %6657 = vmatprep.subr.mxu0 0.0
    %6658 = vmatpush1.msra.mxu0 %v6523
    %6659 = vmatprep.subr.mxu0 0.0
    %6660 = vmatpush1.msra.mxu0 %v6526
    %6661 = vmatprep.subr.mxu0 0.0
    %6662 = vmatpush1.msra.mxu0 %v6529
    %6663 = vmatprep.subr.mxu0 0.0
    %6664 = vmatpush1.msra.mxu0 %v6532
    %6665 = vmatprep.subr.mxu0 0.0
    %6666 = vmatpush1.msra.mxu0 %v6535
    %6667 = vmatprep.subr.mxu0 0.0
    %6668 = vmatpush1.msra.mxu0 %v6538
    %6669 = vmatprep.subr.mxu0 0.0
    %6670 = vmatpush1.msra.mxu0 %v6541
    %6671 = vmatprep.subr.mxu0 0.0
    %6672 = vmatpush1.msra.mxu0 %v6544
    %6673 = vmatprep.subr.mxu0 0.0
    %6674 = vmatpush1.msra.mxu0 %v6547
    %6675 = vmatprep.subr.mxu0 0.0
    %6676 = vmatpush1.msra.mxu0 %v6550
    %6677 = vmatprep.subr.mxu0 0.0
    %6678 = vmatpush1.msra.mxu0 %v6553
    %6679 = vmatprep.subr.mxu0 0.0
    %6680 = vmatpush1.msra.mxu0 %v6556
    %6681 = vmatprep.subr.mxu0 0.0
    %6682 = vmatpush1.msra.mxu0 %v6559
    %6683 = vmatprep.subr.mxu0 0.0
    %6684 = vmatpush1.msra.mxu0 %v6562
    %6685 = vmatprep.subr.mxu0 0.0
    %6686 = vmatpush1.msra.mxu0 %v6565
    %6687 = vmatprep.subr.mxu0 0.0
    %6688 = vmatpush1.msra.mxu0 %v6568
    %6689 = vmatprep.subr.mxu0 0.0
    %6690 = vmatpush1.msra.mxu0 0.0
    %6691 = vmatprep.subr.mxu0 0.0
    %6692 = vmatpush1.msra.mxu0 0.0
    %6693 = vmatprep.subr.mxu0 0.0
    %6694 = vmatpush1.msra.mxu0 0.0
    %6695 = vmatprep.subr.mxu0 0.0
    %6696 = vmatpush1.msra.mxu0 0.0
    %6697 = vmatprep.subr.mxu0 0.0
    %6698 = vmatpush1.msra.mxu0 0.0
    %6699 = vmatprep.subr.mxu0 0.0
    %6700 = vmatpush1.msra.mxu0 0.0
    %6701 = vmatprep.subr.mxu0 0.0
    %6702 = vmatpush1.msra.mxu0 0.0
    %6703 = vmatprep.subr.mxu0 0.0
    %6704 = vmatpush1.msra.mxu0 0.0
    %6705 = vmatprep.subr.mxu0 0.0
    %6706 = vmatpush1.msra.mxu0 0.0
    %6707 = vmatprep.subr.mxu0 0.0
    %6708 = vmatpush1.msra.mxu0 0.0
    %6709 = vmatprep.subr.mxu0 0.0
    %6710 = vmatpush1.msra.mxu0 0.0
    %6711 = vmatprep.subr.mxu0 0.0
    %6712 = vmatpush1.msra.mxu0 0.0
    %6713 = vmatprep.subr.mxu0 0.0
    %6714 = vmatpush1.msra.mxu0 0.0
    %6715 = vmatprep.subr.mxu0 0.0
    %6716 = vmatpush1.msra.mxu0 0.0
    %6717 = vmatprep.subr.mxu0 0.0
    %6718 = vmatpush1.msra.mxu0 0.0
    %6719 = vmatprep.subr.mxu0 0.0
    %6720 = vmatpush1.msra.mxu0 0.0
    %6721 = vmatprep.mubr.f32.mxu0 0.0
    %6722 = vmatmul.mubr.f32.gmra.mrb[0].mxu0 %v6518
    %v6723 = vpop.f32.mrb[0].mxu0
    %v6724 = vadd.f32 %v6582, %v6723
    %v6725 = vpop.f32.mrb[0].mxu0
    %6726 = vdwg.mxu0
    %v6727 = vld [vmem:[#allocation9] sm:$0xff]
    %v6728 = vld [vmem:[#allocation9 + $0x8] sm:$0xff]
    %v6729 = vld [vmem:[#allocation9 + $0x10] sm:$0xff]
    %v6730 = vld [vmem:[#allocation9 + $0x18] sm:$0xff]
    %v6731 = vld [vmem:[#allocation9 + $0x20] sm:$0xff]
    %v6732 = vld [vmem:[#allocation9 + $0x28] sm:$0xff]
    %v6733 = vld [vmem:[#allocation9 + $0x30] sm:$0xff]
    %v6734 = vld [vmem:[#allocation9 + $0x38] sm:$0xff]
    %v6735 = vld [vmem:[#allocation9 + $0x40] sm:$0xff]
    %v6736 = vld [vmem:[#allocation9 + $0x48] sm:$0xff]
    %v6737 = vld [vmem:[#allocation9 + $0x50] sm:$0xff]
    %v6738 = vld [vmem:[#allocation9 + $0x58] sm:$0xff]
    %v6739 = vld [vmem:[#allocation9 + $0x60] sm:$0xff]
    %v6740 = vld [vmem:[#allocation9 + $0x68] sm:$0xff]
    %v6741 = vld [vmem:[#allocation9 + $0x70] sm:$0xff]
    %v6742 = vld [vmem:[#allocation9 + $0x78] sm:$0xff]
    %v6743 = vld [vmem:[#allocation9 + $0x80] sm:$0xff]
    %v6744 = vld [vmem:[#allocation9 + $0x88] sm:$0xff]
    %v6745 = vld [vmem:[#allocation9 + $0x90] sm:$0xff]
    %v6746 = vld [vmem:[#allocation9 + $0x98] sm:$0xff]
    %v6747 = vld [vmem:[#allocation9 + $0xa0] sm:$0xff]
    %v6748 = vld [vmem:[#allocation9 + $0xa8] sm:$0xff]
    %v6749 = vld [vmem:[#allocation9 + $0xb0] sm:$0xff]
    %v6750 = vld [vmem:[#allocation9 + $0xb8] sm:$0xff]
    %v6751 = vld [vmem:[#allocation9 + $0xc0] sm:$0xff]
    %v6752 = vld [vmem:[#allocation9 + $0xc8] sm:$0xff]
    %v6753 = vld [vmem:[#allocation9 + $0xd0] sm:$0xff]
    %v6754 = vld [vmem:[#allocation9 + $0xd8] sm:$0xff]
    %v6755 = vld [vmem:[#allocation9 + $0xe0] sm:$0xff]
    %v6756 = vld [vmem:[#allocation9 + $0xe8] sm:$0xff]
    %v6757 = vld [vmem:[#allocation9 + $0xf0] sm:$0xff]
    %v6758 = vld [vmem:[#allocation9 + $0xf8] sm:$0xff]
    %v6759 = vld [vmem:[#allocation9 + $0x100] sm:$0xff]
    %v6760 = vld [vmem:[#allocation9 + $0x108] sm:$0xff]
    %v6761 = vld [vmem:[#allocation9 + $0x110] sm:$0xff]
    %v6762 = vld [vmem:[#allocation9 + $0x118] sm:$0xff]
    %v6763 = vld [vmem:[#allocation9 + $0x120] sm:$0xff]
    %v6764 = vld [vmem:[#allocation9 + $0x128] sm:$0xff]
    %v6765 = vld [vmem:[#allocation9 + $0x130] sm:$0xff]
    %v6766 = vld [vmem:[#allocation9 + $0x138] sm:$0xff]
    %v6767 = vld [vmem:[#allocation9 + $0x140] sm:$0xff]
    %v6768 = vld [vmem:[#allocation9 + $0x148] sm:$0xff]
    %v6769 = vld [vmem:[#allocation9 + $0x150] sm:$0xff]
    %v6770 = vld [vmem:[#allocation9 + $0x158] sm:$0xff]
    %v6771 = vld [vmem:[#allocation9 + $0x160] sm:$0xff]
    %v6772 = vld [vmem:[#allocation9 + $0x168] sm:$0xff]
    %v6773 = vld [vmem:[#allocation9 + $0x170] sm:$0xff]
    %v6774 = vld [vmem:[#allocation9 + $0x178] sm:$0xff]
    %6775 = vmatprep.subr.mxu0 %v6728
    %6776 = vmatpush1.msra.mxu0 %v6727
    %6777 = vmatprep.subr.mxu0 %v6731
    %6778 = vmatpush1.msra.mxu0 %v6730
    %6779 = vmatprep.subr.mxu0 %v6734
    %6780 = vmatpush1.msra.mxu0 %v6733
    %6781 = vmatprep.subr.mxu0 %v6737
    %6782 = vmatpush1.msra.mxu0 %v6736
    %6783 = vmatprep.subr.mxu0 %v6740
    %6784 = vmatpush1.msra.mxu0 %v6739
    %6785 = vmatprep.subr.mxu0 %v6743
    %6786 = vmatpush1.msra.mxu0 %v6742
    %6787 = vmatprep.subr.mxu0 %v6746
    %6788 = vmatpush1.msra.mxu0 %v6745
    %6789 = vmatprep.subr.mxu0 %v6749
    %6790 = vmatpush1.msra.mxu0 %v6748
    %6791 = vmatprep.subr.mxu0 %v6752
    %6792 = vmatpush1.msra.mxu0 %v6751
    %6793 = vmatprep.subr.mxu0 %v6755
    %6794 = vmatpush1.msra.mxu0 %v6754
    %6795 = vmatprep.subr.mxu0 %v6758
    %6796 = vmatpush1.msra.mxu0 %v6757
    %6797 = vmatprep.subr.mxu0 %v6761
    %6798 = vmatpush1.msra.mxu0 %v6760
    %6799 = vmatprep.subr.mxu0 %v6764
    %6800 = vmatpush1.msra.mxu0 %v6763
    %6801 = vmatprep.subr.mxu0 %v6767
    %6802 = vmatpush1.msra.mxu0 %v6766
    %6803 = vmatprep.subr.mxu0 %v6770
    %6804 = vmatpush1.msra.mxu0 %v6769
    %6805 = vmatprep.subr.mxu0 %v6773
    %6806 = vmatpush1.msra.mxu0 %v6772
    %6807 = vmatprep.subr.mxu0 0.0
    %6808 = vmatpush1.msra.mxu0 0.0
    %6809 = vmatprep.subr.mxu0 0.0
    %6810 = vmatpush1.msra.mxu0 0.0
    %6811 = vmatprep.subr.mxu0 0.0
    %6812 = vmatpush1.msra.mxu0 0.0
    %6813 = vmatprep.subr.mxu0 0.0
    %6814 = vmatpush1.msra.mxu0 0.0
    %6815 = vmatprep.subr.mxu0 0.0
    %6816 = vmatpush1.msra.mxu0 0.0
    %6817 = vmatprep.subr.mxu0 0.0
    %6818 = vmatpush1.msra.mxu0 0.0
    %6819 = vmatprep.subr.mxu0 0.0
    %6820 = vmatpush1.msra.mxu0 0.0
    %6821 = vmatprep.subr.mxu0 0.0
    %6822 = vmatpush1.msra.mxu0 0.0
    %6823 = vmatprep.subr.mxu0 0.0
    %6824 = vmatpush1.msra.mxu0 0.0
    %6825 = vmatprep.subr.mxu0 0.0
    %6826 = vmatpush1.msra.mxu0 0.0
    %6827 = vmatprep.subr.mxu0 0.0
    %6828 = vmatpush1.msra.mxu0 0.0
    %6829 = vmatprep.subr.mxu0 0.0
    %6830 = vmatpush1.msra.mxu0 0.0
    %6831 = vmatprep.subr.mxu0 0.0
    %6832 = vmatpush1.msra.mxu0 0.0
    %6833 = vmatprep.subr.mxu0 0.0
    %6834 = vmatpush1.msra.mxu0 0.0
    %6835 = vmatprep.subr.mxu0 0.0
    %6836 = vmatpush1.msra.mxu0 0.0
    %6837 = vmatprep.subr.mxu0 0.0
    %6838 = vmatpush1.msra.mxu0 0.0
    %6839 = vmatprep.mubr.f32.mxu0 0.0
    %6840 = vmatmul.mubr.f32.gmra.mrb[0].mxu0 %v6520
    %v6841 = vpop.f32.mrb[0].mxu0
    %v6842 = vadd.f32 0.0, %v6841
    %v6843 = vpop.f32.mrb[0].mxu0
    %v6844 = vadd.f32 0.0, %v6843
    %6845 = vdwg.mxu0
    %6846 = vmatprep.subr.mxu0 0.0
    %6847 = vmatpush1.msra.mxu0 %v6729
    %6848 = vmatprep.subr.mxu0 0.0
    %6849 = vmatpush1.msra.mxu0 %v6732
    %6850 = vmatprep.subr.mxu0 0.0
    %6851 = vmatpush1.msra.mxu0 %v6735
    %6852 = vmatprep.subr.mxu0 0.0
    %6853 = vmatpush1.msra.mxu0 %v6738
    %6854 = vmatprep.subr.mxu0 0.0
    %6855 = vmatpush1.msra.mxu0 %v6741
    %6856 = vmatprep.subr.mxu0 0.0
    %6857 = vmatpush1.msra.mxu0 %v6744
    %6858 = vmatprep.subr.mxu0 0.0
    %6859 = vmatpush1.msra.mxu0 %v6747
    %6860 = vmatprep.subr.mxu0 0.0
    %6861 = vmatpush1.msra.mxu0 %v6750
    %6862 = vmatprep.subr.mxu0 0.0
    %6863 = vmatpush1.msra.mxu0 %v6753
    %6864 = vmatprep.subr.mxu0 0.0
    %6865 = vmatpush1.msra.mxu0 %v6756
    %6866 = vmatprep.subr.mxu0 0.0
    %6867 = vmatpush1.msra.mxu0 %v6759
    %6868 = vmatprep.subr.mxu0 0.0
    %6869 = vmatpush1.msra.mxu0 %v6762
    %6870 = vmatprep.subr.mxu0 0.0
    %6871 = vmatpush1.msra.mxu0 %v6765
    %6872 = vmatprep.subr.mxu0 0.0
    %6873 = vmatpush1.msra.mxu0 %v6768
    %6874 = vmatprep.subr.mxu0 0.0
    %6875 = vmatpush1.msra.mxu0 %v6771
    %6876 = vmatprep.subr.mxu0 0.0
    %6877 = vmatpush1.msra.mxu0 %v6774
    %6878 = vmatprep.subr.mxu0 0.0
    %6879 = vmatpush1.msra.mxu0 0.0
    %6880 = vmatprep.subr.mxu0 0.0
    %6881 = vmatpush1.msra.mxu0 0.0
    %6882 = vmatprep.subr.mxu0 0.0
    %6883 = vmatpush1.msra.mxu0 0.0
    %6884 = vmatprep.subr.mxu0 0.0
    %6885 = vmatpush1.msra.mxu0 0.0
    %6886 = vmatprep.subr.mxu0 0.0
    %6887 = vmatpush1.msra.mxu0 0.0
    %6888 = vmatprep.subr.mxu0 0.0
    %6889 = vmatpush1.msra.mxu0 0.0
    %6890 = vmatprep.subr.mxu0 0.0
    %6891 = vmatpush1.msra.mxu0 0.0
    %6892 = vmatprep.subr.mxu0 0.0
    %6893 = vmatpush1.msra.mxu0 0.0
    %6894 = vmatprep.subr.mxu0 0.0
    %6895 = vmatpush1.msra.mxu0 0.0
    %6896 = vmatprep.subr.mxu0 0.0
    %6897 = vmatpush1.msra.mxu0 0.0
    %6898 = vmatprep.subr.mxu0 0.0
    %6899 = vmatpush1.msra.mxu0 0.0
    %6900 = vmatprep.subr.mxu0 0.0
    %6901 = vmatpush1.msra.mxu0 0.0
    %6902 = vmatprep.subr.mxu0 0.0
    %6903 = vmatpush1.msra.mxu0 0.0
    %6904 = vmatprep.subr.mxu0 0.0
    %6905 = vmatpush1.msra.mxu0 0.0
    %6906 = vmatprep.subr.mxu0 0.0
    %6907 = vmatpush1.msra.mxu0 0.0
    %6908 = vmatprep.subr.mxu0 0.0
    %6909 = vmatpush1.msra.mxu0 0.0
    %6910 = vmatprep.mubr.f32.mxu0 0.0
    %6911 = vmatmul.mubr.f32.gmra.mrb[0].mxu0 %v6520
    %v6912 = vpop.f32.mrb[0].mxu0
    %v6913 = vadd.f32 0.0, %v6912
    %v6914 = vpop.f32.mrb[0].mxu0
    %6915 = vdwg.mxu0
    %v6916 = vadd.f32 %v6653, %v6842
    %v6917 = vxor.u32 %v6916, 2147483648
    %v6918 = vmul.f32 %v6917, 1.442695
    %v6919 = vpow.pop %v6918
    %v6920 = vadd.f32 %v6919, 1.0
    %v6921 = vrcp.pop %v6920
    %v6922 = vmul.f32 1.0, %v6921
    %v6923 = vadd.f32 %v6655, %v6844
    %v6924 = vxor.u32 %v6923, 2147483648
    %v6925 = vmul.f32 %v6924, 1.442695
    %v6926 = vpow.pop %v6925
    %v6927 = vadd.f32 %v6926, 1.0
    %v6928 = vrcp.pop %v6927
    %v6929 = vmul.f32 1.0, %v6928
    %v6930 = vld [vmem:[%s9] sm:$0x1]
    %v6932 = vlaneseq
    %v6933 = vshrl.u32 %v6932, 7
    %v6934 = vsub.s32 0, %v6933
    %v6935 = vrot.slane %v6930, %v6934
    %v6937 = vadd.f32 %v6913, %v6935
    %v6938 = vmul.f32 %v6922, %v6937
    %v6939 = vadd.f32 %v6724, %v6938
    %v6940 = vtanh.pop %v6939
    %v6941 = vsub.f32 1.0, %v6929
    %v6942 = vmul.f32 %v6941, %v6940
    %v6943 = vmul.f32 %v6929, %v6520
    %v6944 = vadd.f32 %v6942, %v6943
    %6945 = vst [vmem:[%s528] sm:$0x3] %v6944
    %s6946 = scalar_lea.vmem %s10, 14
    %6947 = vst [vmem:[%s6946] sm:$0x3] %v6944
    %v6948 = vld [vmem:[#allocation2] sm:$0x3]
    %v6949 = vld [vmem:[#allocation2 + $0x2] sm:$0x3]
    %6950 = vst [vmem:[#allocation11] sm:$0x3] %v6948
    %6951 = vst [vmem:[#allocation11 + $0x2] sm:$0x3] %v6949
    // Predicated region
    $region62: #{_decoder_forward_impl.1} parent=1 // pred_check
      _
    $region63: #{_decoder_forward_impl.1} parent=1 // pred_check_branch
      %6953 = sbr.rel (0) target = $region65
    $region64: #{_decoder_forward_impl.1} parent=1 // pred_region
      _
    $region65: #{_decoder_forward_impl.1} parent=1 // pred_fallthru
      _
    // Predicated region
    $region66: #{_decoder_forward_impl.1} parent=1 // pred_check
      _
    $region67: #{_decoder_forward_impl.1} parent=1 // pred_check_branch
      %6955 = sbr.rel (0) target = $region69
    $region68: #{_decoder_forward_impl.1} parent=1 // pred_region
      %s6957 = ssub.s32 64, 64
      %6958 = vsyncadd [#allocation5], %s6957
      %s6959 = sshll.u32 [#allocation11], 4
      %s6960 = int_to_ptr.vmem [resolvable:$true] %s6959
      %6965 = dma.vmem_to_hbm [thread:$0]  %s6960, 64, %s11, [#allocation5], 32, 32, 2
    $region69: #{_decoder_forward_impl.1} parent=1 // pred_fallthru
      _
    // Predicated region
    $region70: #{_decoder_forward_impl.1} parent=1 // pred_check
      _
    $region71: #{_decoder_forward_impl.1} parent=1 // pred_check_branch
      %6967 = sbr.rel (0) target = $region73
    $region72: #{_decoder_forward_impl.1} parent=1 // pred_region
      _
    $region73: #{_decoder_forward_impl.1} parent=1 // pred_fallthru
      _
    // Predicated region
    $region74: #{_decoder_forward_impl.1} parent=1 // pred_check
      _
    $region75: #{_decoder_forward_impl.1} parent=1 // pred_check_branch
      %6969 = sbr.rel (0) target = $region77
    $region76: #{_decoder_forward_impl.1} parent=1 // pred_region
      %6970 = dma.done [#allocation5], 64
    $region77: #{_decoder_forward_impl.1} parent=1 // pred_fallthru
      _
    %6971 = vsyncpa [#allocation4], 1
    %6972 = vsyncpa [#allocation7], 1
    %6973 = vsyncpa [#allocation10], 1
    %6974 = vsyncpa [#allocation5], 1

</llo_original>
